<compile_context>
chip_gen: v7x
topology: tpu7x:2x2x1
jax: 0.10.0
libtpu: 0.0.40
codegen_flags: <defaults>
</compile_context>

<pallas_src>
import functools

import jax
import jax.numpy as jnp
from jax import lax
from jax.experimental import pallas as pl
from jax.experimental.pallas import tpu as pltpu

_EPS = 1e-5


# ----------------------------------------------------------------------------
# Fused stage kernel factory: 3x3 conv + AdaIN (+ residual) + ReLU.
# Grid step 0 is (by construction of `perm`) the style sample providing the
# AdaIN statistics; they are stored in persistent VMEM scratch for later steps.
# ----------------------------------------------------------------------------
def _make_stage_kernel(H, W, Cin, Cout, n_content, with_residual):
    HW = H * W

    def _stats(y):
        # Single-pass per-channel mean / unbiased variance (+eps) of y: [HW, C] f32.
        s1 = jnp.sum(y, axis=0, keepdims=True)                     # [1, C]
        s2 = jnp.sum(y * y, axis=0, keepdims=True)                 # [1, C]
        m = s1 * (1.0 / HW)
        var = (s2 - HW * m * m) * (1.0 / (HW - 1)) + _EPS
        return m, var

    def kernel(perm_ref, x_ref, w_ref, *rest):
        if with_residual:
            res_ref, o_ref, xpad_ref, smean_ref, sstd_ref = rest
        else:
            o_ref, xpad_ref, smean_ref, sstd_ref = rest

        pid = pl.program_id(0)
        idx = perm_ref[pid]                       # real batch index of this grid step
        is_content = idx < n_content

        # --- stage sample into zero-padded scratch (halo-only zeroing) ----------
        pdt = xpad_ref.dtype
        zrow = jnp.zeros((1, W + 2, Cin), pdt)
        zcol = jnp.zeros((H + 2, 1, Cin), pdt)
        xpad_ref[0:1, :, :] = zrow
        xpad_ref[H + 1:H + 2, :, :] = zrow
        xpad_ref[:, 0:1, :] = zcol
        xpad_ref[:, W + 1:W + 2, :] = zcol
        xpad_ref[1:H + 1, 1:W + 1, :] = x_ref[0]

        # --- 3x3 'same' conv: 9 accumulated per-tap matmuls (no im2col concat) --
        acc = jnp.zeros((HW, Cout), jnp.float32)
        for dy in range(3):
            for dx in range(3):
                tap = xpad_ref[dy:dy + H, dx:dx + W, :].reshape(HW, Cin)
                acc = acc + jnp.dot(tap, w_ref[dy * 3 + dx],
                                    preferred_element_type=jnp.float32)

        # --- grid step 0: stash the style sample's AdaIN statistics -------------
        @pl.when(pid == 0)
        def _():
            m, var = _stats(acc)
            smean_ref[...] = m
            sstd_ref[...] = jnp.sqrt(var)

        if with_residual:
            res = res_ref[0].reshape(HW, Cout).astype(jnp.float32)

        def _finish(val):
            if with_residual:
                val = val + res
            return jnp.maximum(val, 0.0).reshape(H, W, Cout).astype(o_ref.dtype)

        @pl.when(is_content)
        def _():
            c_mean, c_var = _stats(acc)
            scale = sstd_ref[...] * lax.rsqrt(c_var)       # EUP rsqrt (free slot)
            bias = smean_ref[...] - c_mean * scale
            o_ref[0] = _finish(acc * scale + bias)

        @pl.when(jnp.logical_not(is_content))
        def _():
            # Style samples pass through AdaIN unchanged.
            o_ref[0] = _finish(acc)

    return kernel


# ----------------------------------------------------------------------------
# pallas_call wrapper for one fused stage.
# ----------------------------------------------------------------------------
def _fused_stage(feat_nhwc, w_taps, perm, Cout, n_content, residual=None):
    N, H, W, Cin = feat_nhwc.shape
    kernel = _make_stage_kernel(H, W, Cin, Cout, n_content, residual is not None)

    in_specs = [
        pl.BlockSpec((1, H, W, Cin), lambda n, perm: (perm[n], 0, 0, 0)),
        pl.BlockSpec((9, Cin, Cout), lambda n, perm: (0, 0, 0)),
    ]
    args = [feat_nhwc, w_taps]
    if residual is not None:
        in_specs.append(pl.BlockSpec((1, H, W, Cout), lambda n, perm: (perm[n], 0, 0, 0)))
        args.append(residual)

    # Scoped-VMEM budget from the actual block sizes (inputs double-buffered).
    itemsize = feat_nhwc.dtype.itemsize
    est = (2 * H * W * Cin * itemsize                         # input block
           + 2 * 9 * Cin * Cout * itemsize                    # weight taps
           + 2 * H * W * Cout * itemsize                      # output block
           + (2 * H * W * Cout * itemsize if residual is not None else 0)
           + (H + 2) * (W + 2) * Cin * itemsize               # padded scratch
           + 2 * Cout * 4                                     # style mean/std scratch
           + 4 * H * W * Cout * 4)                            # f32 accumulator + epilogue temps
    vmem_limit = int(min(64 * 2 ** 20, max(32 * 2 ** 20, 2 * est)))

    grid_spec = pltpu.PrefetchScalarGridSpec(
        num_scalar_prefetch=1,
        grid=(N,),
        in_specs=in_specs,
        out_specs=pl.BlockSpec((1, H, W, Cout), lambda n, perm: (perm[n], 0, 0, 0)),
        scratch_shapes=[
            pltpu.VMEM((H + 2, W + 2, Cin), feat_nhwc.dtype),  # zero-padded sample
            pltpu.VMEM((1, Cout), jnp.float32),                # style mean (persists)
            pltpu.VMEM((1, Cout), jnp.float32),                # style std  (persists)
        ],
    )
    return pl.pallas_call(
        kernel,
        grid_spec=grid_spec,
        out_shape=jax.ShapeDtypeStruct((N, H, W, Cout), feat_nhwc.dtype),
        # Step 0 seeds the style-stats scratch used by later steps -> 'arbitrary'.
        compiler_params=pltpu.CompilerParams(
            dimension_semantics=("arbitrary",),
            vmem_limit_bytes=vmem_limit),
    )(perm, *args)


# ----------------------------------------------------------------------------
# Full AdaptiveBlock forward (stride=1, in_planes == planes -> identity shortcut).
# style_label and b are static Python ints (they select batch slices).
# ----------------------------------------------------------------------------
@functools.partial(jax.jit, static_argnames=("style_label", "b"))
def adaptive_block_forward(x_nchw, w1_oihw, w2_oihw, *, style_label, b):
    N, Cin, H, W = x_nchw.shape
    Cout1 = w1_oihw.shape[0]
    Cout2 = w2_oihw.shape[0]
    assert Cin == Cout2, "identity shortcut requires in_planes == planes"
    # TODO(synk): conv1x1 + BatchNorm shortcut branch (stride != 1 or in_planes != planes)
    # is not implemented; only the identity-shortcut configuration is supported.

    x = jnp.transpose(x_nchw, (0, 2, 3, 1))                                # NHWC
    # OIHW -> HWIO -> [9 taps, Cin, Cout]
    w1 = jnp.transpose(w1_oihw, (2, 3, 1, 0)).reshape(9, Cin, Cout1)
    w2 = jnp.transpose(w2_oihw, (2, 3, 1, 0)).reshape(9, Cout1, Cout2)
    # NOTE: on v6e/v7x feed bf16 activations/weights here for full MXU rate (kernels
    # accumulate in f32 either way); kept in the input dtype so the demo matches the
    # f32 reference tightly.

    n_content = N - b
    style_idx = N - b + style_label
    # Grid visit order: the AdaIN-stats style sample first, everything else after.
    perm = jnp.asarray([style_idx] + [i for i in range(N) if i != style_idx],
                       dtype=jnp.int32)

    h = _fused_stage(x, w1, perm, Cout1, n_content)                        # conv1+AdaIN+ReLU
    out = _fused_stage(h, w2, perm, Cout2, n_content, residual=x)          # conv2+AdaIN+add+ReLU

    return jnp.transpose(out, (0, 3, 1, 2))                                # back to NCHW


# ----------------------------------------------------------------------------
# Pure-JAX reference (mirrors the PyTorch module) for validation.
# ----------------------------------------------------------------------------
def _ref_forward(x_nchw, w1_oihw, w2_oihw, style_label, b):
    def conv(x, w):
        return lax.conv_general_dilated(
            x, w, window_strides=(1, 1), padding="SAME",
            dimension_numbers=("NCHW", "OIHW", "NCHW"))

    def calc_mean_std(f, eps=1e-5):
        N, C = f.shape[0], f.shape[1]
        fr = f.reshape(N, C, -1)
        mean = fr.mean(axis=2).reshape(N, C, 1, 1)
        var = fr.var(axis=2, ddof=1) + eps
        std = jnp.sqrt(var).reshape(N, C, 1, 1)
        return mean, std

    def adain(feat):
        style = feat[-b:]
        style_feat = style[style_label:style_label + 1]
        content = feat[:-b]
        sm, ss = calc_mean_std(style_feat)
        cm, cs = calc_mean_std(content)
        adaptive = (content - cm) / cs * ss + sm
        return jnp.concatenate([adaptive, style], axis=0)

    out = conv(x_nchw, w1_oihw)
    out = adain(out)
    out = jnp.maximum(out, 0.0)
    out = conv(out, w2_oihw)
    out = adain(out)
    out = out + x_nchw
    return jnp.maximum(out, 0.0)


if __name__ == "__main__":
    # Small, deterministic example: batch = 2 content + 2 style images, C=32, 16x16.
    in_planes = planes = 32
    N_total, H, W = 4, 16, 16
    b = 2               # number of style images at the end of the batch
    style_label = 1     # which of the b style images supplies the AdaIN stats

    key = jax.random.PRNGKey(0)
    kx, k1, k2 = jax.random.split(key, 3)
    x = jax.random.normal(kx, (N_total, in_planes, H, W), dtype=jnp.float32)
    w1 = jax.random.normal(k1, (planes, in_planes, 3, 3), dtype=jnp.float32) * 0.1
    w2 = jax.random.normal(k2, (planes, planes, 3, 3), dtype=jnp.float32) * 0.1

    out = adaptive_block_forward(x, w1, w2, style_label=style_label, b=b)
    out = jax.block_until_ready(out)

    ref = jax.block_until_ready(_ref_forward(x, w1, w2, style_label, b))
    assert out.shape == ref.shape == (N_total, planes, H, W)
    max_err = float(jnp.max(jnp.abs(out - ref)))
    assert jnp.allclose(out, ref, rtol=2e-3, atol=2e-3), max_err

    print("KERNEL_OK")
</pallas_src>

<mosaic_0001>
module attributes {stable_mosaic.version = 11 : i64} {
  func.func @kernel(%arg0: i32, %arg1: memref<4xi32, #tpu.memory_space<smem>>, %arg2: memref<1x16x16x32xf32, #tpu.memory_space<vmem>>, %arg3: memref<9x32x32xf32, #tpu.memory_space<vmem>>, %arg4: memref<1x16x16x32xf32, #tpu.memory_space<vmem>>, %arg5: memref<1x16x16x32xf32, #tpu.memory_space<vmem>>, %arg6: memref<18x18x32xf32, #tpu.memory_space<vmem>>, %arg7: memref<1x32xf32, #tpu.memory_space<vmem>>, %arg8: memref<1x32xf32, #tpu.memory_space<vmem>>) attributes {dimension_semantics = [#tpu.dimension_semantics<arbitrary>], iteration_bounds = array<i64: 4>, scalar_prefetch = 1 : i64, scratch_operands = 3 : i64, tpu.core_type = #tpu.core_type<tc>, window_params = [{transform_indices = @transform_0, window_bounds = array<i64: 1, 16, 16, 32>}, {pipeline_mode = #tpu.pipeline_mode<synchronous>, transform_indices = @transform_1, window_bounds = array<i64: 9, 32, 32>}, {transform_indices = @transform_2, window_bounds = array<i64: 1, 16, 16, 32>}, {transform_indices = @transform_3, window_bounds = array<i64: 1, 16, 16, 32>}]} {
    %0 = arith.index_cast %arg0 : i32 to index
    %1 = memref.load %arg1[%0] : memref<4xi32, #tpu.memory_space<smem>>
    %c2_i32 = arith.constant 2 : i32
    %2 = arith.cmpi slt, %1, %c2_i32 : i32
    %cst = arith.constant 0.000000e+00 : f32
    %3 = vector.broadcast %cst : f32 to vector<1x18x32xf32>
    %cst_0 = arith.constant 0.000000e+00 : f32
    %4 = vector.broadcast %cst_0 : f32 to vector<18x1x32xf32>
    %c0 = arith.constant 0 : index
    %c0_1 = arith.constant 0 : index
    %c0_2 = arith.constant 0 : index
    %5 = vector.load %arg6[%c0, %c0_1, %c0_2] : memref<18x18x32xf32, #tpu.memory_space<vmem>>, vector<1x18x32xf32>
    tpu.vector_store %arg6[%c0, %c0_1, %c0_2], %3 {strides = array<i32>} : memref<18x18x32xf32, #tpu.memory_space<vmem>>, vector<1x18x32xf32>,
    %c17 = arith.constant 17 : index
    %c0_3 = arith.constant 0 : index
    %c0_4 = arith.constant 0 : index
    %6 = vector.load %arg6[%c17, %c0_3, %c0_4] : memref<18x18x32xf32, #tpu.memory_space<vmem>>, vector<1x18x32xf32>
    tpu.vector_store %arg6[%c17, %c0_3, %c0_4], %3 {strides = array<i32>} : memref<18x18x32xf32, #tpu.memory_space<vmem>>, vector<1x18x32xf32>,
    %c0_5 = arith.constant 0 : index
    %c0_6 = arith.constant 0 : index
    %c0_7 = arith.constant 0 : index
    %7 = vector.load %arg6[%c0_5, %c0_6, %c0_7] : memref<18x18x32xf32, #tpu.memory_space<vmem>>, vector<18x1x32xf32>
    tpu.vector_store %arg6[%c0_5, %c0_6, %c0_7], %4 {strides = array<i32>} : memref<18x18x32xf32, #tpu.memory_space<vmem>>, vector<18x1x32xf32>,
    %c0_8 = arith.constant 0 : index
    %c17_9 = arith.constant 17 : index
    %c0_10 = arith.constant 0 : index
    %8 = vector.load %arg6[%c0_8, %c17_9, %c0_10] : memref<18x18x32xf32, #tpu.memory_space<vmem>>, vector<18x1x32xf32>
    tpu.vector_store %arg6[%c0_8, %c17_9, %c0_10], %4 {strides = array<i32>} : memref<18x18x32xf32, #tpu.memory_space<vmem>>, vector<18x1x32xf32>,
    %c0_11 = arith.constant 0 : index
    %c0_12 = arith.constant 0 : index
    %c0_13 = arith.constant 0 : index
    %c0_14 = arith.constant 0 : index
    %9 = vector.load %arg2[%c0_11, %c0_12, %c0_13, %c0_14] : memref<1x16x16x32xf32, #tpu.memory_space<vmem>>, vector<1x16x16x32xf32>
    %10 = vector.shape_cast %9 : vector<1x16x16x32xf32> to vector<16x16x32xf32>
    %c1 = arith.constant 1 : index
    %c1_15 = arith.constant 1 : index
    %c0_16 = arith.constant 0 : index
    %11 = vector.load %arg6[%c1, %c1_15, %c0_16] : memref<18x18x32xf32, #tpu.memory_space<vmem>>, vector<16x16x32xf32>
    tpu.vector_store %arg6[%c1, %c1_15, %c0_16], %10 {strides = array<i32>} : memref<18x18x32xf32, #tpu.memory_space<vmem>>, vector<16x16x32xf32>,
    %cst_17 = arith.constant 0.000000e+00 : f32
    %12 = vector.broadcast %cst_17 : f32 to vector<256x32xf32>
    %c0_18 = arith.constant 0 : index
    %c0_19 = arith.constant 0 : index
    %c0_20 = arith.constant 0 : index
    %13 = vector.load %arg6[%c0_18, %c0_19, %c0_20] : memref<18x18x32xf32, #tpu.memory_space<vmem>>, vector<16x16x32xf32>
    %14 = vector.shape_cast %13 : vector<16x16x32xf32> to vector<256x32xf32>
    %c0_21 = arith.constant 0 : index
    %c0_22 = arith.constant 0 : index
    %c0_23 = arith.constant 0 : index
    %15 = vector.load %arg3[%c0_21, %c0_22, %c0_23] : memref<9x32x32xf32, #tpu.memory_space<vmem>>, vector<1x32x32xf32>
    %16 = vector.shape_cast %15 : vector<1x32x32xf32> to vector<32x32xf32>
    %cst_24 = arith.constant dense<0.000000e+00> : vector<256x32xf32>
    %17 = tpu.matmul %14, %16, %cst_24 {dimension_numbers = #tpu.dot_dimension_numbers<[1], [0], [0], [1], [0, 0, 1, 1], [], []>} : vector<256x32xf32>, vector<32x32xf32>, vector<256x32xf32> -> vector<256x32xf32>
    %18 = arith.addf %12, %17 : vector<256x32xf32>
    %c0_25 = arith.constant 0 : index
    %c1_26 = arith.constant 1 : index
    %c0_27 = arith.constant 0 : index
    %19 = vector.load %arg6[%c0_25, %c1_26, %c0_27] : memref<18x18x32xf32, #tpu.memory_space<vmem>>, vector<16x16x32xf32>
    %20 = vector.shape_cast %19 : vector<16x16x32xf32> to vector<256x32xf32>
    %c1_28 = arith.constant 1 : index
    %c0_29 = arith.constant 0 : index
    %c0_30 = arith.constant 0 : index
    %21 = vector.load %arg3[%c1_28, %c0_29, %c0_30] : memref<9x32x32xf32, #tpu.memory_space<vmem>>, vector<1x32x32xf32>
    %22 = vector.shape_cast %21 : vector<1x32x32xf32> to vector<32x32xf32>
    %cst_31 = arith.constant dense<0.000000e+00> : vector<256x32xf32>
    %23 = tpu.matmul %20, %22, %cst_31 {dimension_numbers = #tpu.dot_dimension_numbers<[1], [0], [0], [1], [0, 0, 1, 1], [], []>} : vector<256x32xf32>, vector<32x32xf32>, vector<256x32xf32> -> vector<256x32xf32>
    %24 = arith.addf %18, %23 : vector<256x32xf32>
    %c0_32 = arith.constant 0 : index
    %c2 = arith.constant 2 : index
    %c0_33 = arith.constant 0 : index
    %25 = vector.load %arg6[%c0_32, %c2, %c0_33] : memref<18x18x32xf32, #tpu.memory_space<vmem>>, vector<16x16x32xf32>
    %26 = vector.shape_cast %25 : vector<16x16x32xf32> to vector<256x32xf32>
    %c2_34 = arith.constant 2 : index
    %c0_35 = arith.constant 0 : index
    %c0_36 = arith.constant 0 : index
    %27 = vector.load %arg3[%c2_34, %c0_35, %c0_36] : memref<9x32x32xf32, #tpu.memory_space<vmem>>, vector<1x32x32xf32>
    %28 = vector.shape_cast %27 : vector<1x32x32xf32> to vector<32x32xf32>
    %cst_37 = arith.constant dense<0.000000e+00> : vector<256x32xf32>
    %29 = tpu.matmul %26, %28, %cst_37 {dimension_numbers = #tpu.dot_dimension_numbers<[1], [0], [0], [1], [0, 0, 1, 1], [], []>} : vector<256x32xf32>, vector<32x32xf32>, vector<256x32xf32> -> vector<256x32xf32>
    %30 = arith.addf %24, %29 : vector<256x32xf32>
    %c1_38 = arith.constant 1 : index
    %c0_39 = arith.constant 0 : index
    %c0_40 = arith.constant 0 : index
    %31 = vector.load %arg6[%c1_38, %c0_39, %c0_40] : memref<18x18x32xf32, #tpu.memory_space<vmem>>, vector<16x16x32xf32>
    %32 = vector.shape_cast %31 : vector<16x16x32xf32> to vector<256x32xf32>
    %c3 = arith.constant 3 : index
    %c0_41 = arith.constant 0 : index
    %c0_42 = arith.constant 0 : index
    %33 = vector.load %arg3[%c3, %c0_41, %c0_42] : memref<9x32x32xf32, #tpu.memory_space<vmem>>, vector<1x32x32xf32>
    %34 = vector.shape_cast %33 : vector<1x32x32xf32> to vector<32x32xf32>
    %cst_43 = arith.constant dense<0.000000e+00> : vector<256x32xf32>
    %35 = tpu.matmul %32, %34, %cst_43 {dimension_numbers = #tpu.dot_dimension_numbers<[1], [0], [0], [1], [0, 0, 1, 1], [], []>} : vector<256x32xf32>, vector<32x32xf32>, vector<256x32xf32> -> vector<256x32xf32>
    %36 = arith.addf %30, %35 : vector<256x32xf32>
    %c1_44 = arith.constant 1 : index
    %c1_45 = arith.constant 1 : index
    %c0_46 = arith.constant 0 : index
    %37 = vector.load %arg6[%c1_44, %c1_45, %c0_46] : memref<18x18x32xf32, #tpu.memory_space<vmem>>, vector<16x16x32xf32>
    %38 = vector.shape_cast %37 : vector<16x16x32xf32> to vector<256x32xf32>
    %c4 = arith.constant 4 : index
    %c0_47 = arith.constant 0 : index
    %c0_48 = arith.constant 0 : index
    %39 = vector.load %arg3[%c4, %c0_47, %c0_48] : memref<9x32x32xf32, #tpu.memory_space<vmem>>, vector<1x32x32xf32>
    %40 = vector.shape_cast %39 : vector<1x32x32xf32> to vector<32x32xf32>
    %cst_49 = arith.constant dense<0.000000e+00> : vector<256x32xf32>
    %41 = tpu.matmul %38, %40, %cst_49 {dimension_numbers = #tpu.dot_dimension_numbers<[1], [0], [0], [1], [0, 0, 1, 1], [], []>} : vector<256x32xf32>, vector<32x32xf32>, vector<256x32xf32> -> vector<256x32xf32>
    %42 = arith.addf %36, %41 : vector<256x32xf32>
    %c1_50 = arith.constant 1 : index
    %c2_51 = arith.constant 2 : index
    %c0_52 = arith.constant 0 : index
    %43 = vector.load %arg6[%c1_50, %c2_51, %c0_52] : memref<18x18x32xf32, #tpu.memory_space<vmem>>, vector<16x16x32xf32>
    %44 = vector.shape_cast %43 : vector<16x16x32xf32> to vector<256x32xf32>
    %c5 = arith.constant 5 : index
    %c0_53 = arith.constant 0 : index
    %c0_54 = arith.constant 0 : index
    %45 = vector.load %arg3[%c5, %c0_53, %c0_54] : memref<9x32x32xf32, #tpu.memory_space<vmem>>, vector<1x32x32xf32>
    %46 = vector.shape_cast %45 : vector<1x32x32xf32> to vector<32x32xf32>
    %cst_55 = arith.constant dense<0.000000e+00> : vector<256x32xf32>
    %47 = tpu.matmul %44, %46, %cst_55 {dimension_numbers = #tpu.dot_dimension_numbers<[1], [0], [0], [1], [0, 0, 1, 1], [], []>} : vector<256x32xf32>, vector<32x32xf32>, vector<256x32xf32> -> vector<256x32xf32>
    %48 = arith.addf %42, %47 : vector<256x32xf32>
    %c2_56 = arith.constant 2 : index
    %c0_57 = arith.constant 0 : index
    %c0_58 = arith.constant 0 : index
    %49 = vector.load %arg6[%c2_56, %c0_57, %c0_58] : memref<18x18x32xf32, #tpu.memory_space<vmem>>, vector<16x16x32xf32>
    %50 = vector.shape_cast %49 : vector<16x16x32xf32> to vector<256x32xf32>
    %c6 = arith.constant 6 : index
    %c0_59 = arith.constant 0 : index
    %c0_60 = arith.constant 0 : index
    %51 = vector.load %arg3[%c6, %c0_59, %c0_60] : memref<9x32x32xf32, #tpu.memory_space<vmem>>, vector<1x32x32xf32>
    %52 = vector.shape_cast %51 : vector<1x32x32xf32> to vector<32x32xf32>
    %cst_61 = arith.constant dense<0.000000e+00> : vector<256x32xf32>
    %53 = tpu.matmul %50, %52, %cst_61 {dimension_numbers = #tpu.dot_dimension_numbers<[1], [0], [0], [1], [0, 0, 1, 1], [], []>} : vector<256x32xf32>, vector<32x32xf32>, vector<256x32xf32> -> vector<256x32xf32>
    %54 = arith.addf %48, %53 : vector<256x32xf32>
    %c2_62 = arith.constant 2 : index
    %c1_63 = arith.constant 1 : index
    %c0_64 = arith.constant 0 : index
    %55 = vector.load %arg6[%c2_62, %c1_63, %c0_64] : memref<18x18x32xf32, #tpu.memory_space<vmem>>, vector<16x16x32xf32>
    %56 = vector.shape_cast %55 : vector<16x16x32xf32> to vector<256x32xf32>
    %c7 = arith.constant 7 : index
    %c0_65 = arith.constant 0 : index
    %c0_66 = arith.constant 0 : index
    %57 = vector.load %arg3[%c7, %c0_65, %c0_66] : memref<9x32x32xf32, #tpu.memory_space<vmem>>, vector<1x32x32xf32>
    %58 = vector.shape_cast %57 : vector<1x32x32xf32> to vector<32x32xf32>
    %cst_67 = arith.constant dense<0.000000e+00> : vector<256x32xf32>
    %59 = tpu.matmul %56, %58, %cst_67 {dimension_numbers = #tpu.dot_dimension_numbers<[1], [0], [0], [1], [0, 0, 1, 1], [], []>} : vector<256x32xf32>, vector<32x32xf32>, vector<256x32xf32> -> vector<256x32xf32>
    %60 = arith.addf %54, %59 : vector<256x32xf32>
    %c2_68 = arith.constant 2 : index
    %c2_69 = arith.constant 2 : index
    %c0_70 = arith.constant 0 : index
    %61 = vector.load %arg6[%c2_68, %c2_69, %c0_70] : memref<18x18x32xf32, #tpu.memory_space<vmem>>, vector<16x16x32xf32>
    %62 = vector.shape_cast %61 : vector<16x16x32xf32> to vector<256x32xf32>
    %c8 = arith.constant 8 : index
    %c0_71 = arith.constant 0 : index
    %c0_72 = arith.constant 0 : index
    %63 = vector.load %arg3[%c8, %c0_71, %c0_72] : memref<9x32x32xf32, #tpu.memory_space<vmem>>, vector<1x32x32xf32>
    %64 = vector.shape_cast %63 : vector<1x32x32xf32> to vector<32x32xf32>
    %cst_73 = arith.constant dense<0.000000e+00> : vector<256x32xf32>
    %65 = tpu.matmul %62, %64, %cst_73 {dimension_numbers = #tpu.dot_dimension_numbers<[1], [0], [0], [1], [0, 0, 1, 1], [], []>} : vector<256x32xf32>, vector<32x32xf32>, vector<256x32xf32> -> vector<256x32xf32>
    %66 = arith.addf %60, %65 : vector<256x32xf32>
    %c0_i32 = arith.constant 0 : i32
    %67 = arith.cmpi eq, %arg0, %c0_i32 : i32
    %68 = arith.extui %67 : i1 to i32
    %c0_i32_74 = arith.constant 0 : i32
    %69 = arith.cmpi ne, %68, %c0_i32_74 : i32
    scf.if %69 {
      %cst_81 = arith.constant dense<0.000000e+00> : vector<32xf32>
      %78 = vector.multi_reduction <add>, %66, %cst_81 [0] : vector<256x32xf32> to vector<32xf32>
      %79 = vector.shape_cast %78 : vector<32xf32> to vector<1x32xf32>
      %80 = arith.mulf %66, %66 : vector<256x32xf32>
      %cst_82 = arith.constant dense<0.000000e+00> : vector<32xf32>
      %81 = vector.multi_reduction <add>, %80, %cst_82 [0] : vector<256x32xf32> to vector<32xf32>
      %82 = vector.shape_cast %81 : vector<32xf32> to vector<1x32xf32>
      %cst_83 = arith.constant 3.906250e-03 : f32
      %83 = vector.broadcast %cst_83 : f32 to vector<1x32xf32>
      %84 = arith.mulf %79, %83 : vector<1x32xf32>
      %cst_84 = arith.constant 2.560000e+02 : f32
      %85 = vector.broadcast %cst_84 : f32 to vector<1x32xf32>
      %86 = arith.mulf %85, %84 : vector<1x32xf32>
      %87 = arith.mulf %86, %84 : vector<1x32xf32>
      %88 = arith.subf %82, %87 : vector<1x32xf32>
      %cst_85 = arith.constant 0.00392156886 : f32
      %89 = vector.broadcast %cst_85 : f32 to vector<1x32xf32>
      %90 = arith.mulf %88, %89 : vector<1x32xf32>
      %cst_86 = arith.constant 9.99999974E-6 : f32
      %91 = vector.broadcast %cst_86 : f32 to vector<1x32xf32>
      %92 = arith.addf %90, %91 : vector<1x32xf32>
      %c0_87 = arith.constant 0 : index
      %c0_88 = arith.constant 0 : index
      %93 = vector.load %arg7[%c0_87, %c0_88] : memref<1x32xf32, #tpu.memory_space<vmem>>, vector<1x32xf32>
      tpu.vector_store %arg7[%c0_87, %c0_88], %84 {strides = array<i32>} : memref<1x32xf32, #tpu.memory_space<vmem>>, vector<1x32xf32>,
      %94 = math.sqrt %92 : vector<1x32xf32>
      %c0_89 = arith.constant 0 : index
      %c0_90 = arith.constant 0 : index
      %95 = vector.load %arg8[%c0_89, %c0_90] : memref<1x32xf32, #tpu.memory_space<vmem>>, vector<1x32xf32>
      tpu.vector_store %arg8[%c0_89, %c0_90], %94 {strides = array<i32>} : memref<1x32xf32, #tpu.memory_space<vmem>>, vector<1x32xf32>,
    } else {
    }
    %c0_75 = arith.constant 0 : index
    %c0_76 = arith.constant 0 : index
    %c0_77 = arith.constant 0 : index
    %c0_78 = arith.constant 0 : index
    %70 = vector.load %arg4[%c0_75, %c0_76, %c0_77, %c0_78] : memref<1x16x16x32xf32, #tpu.memory_space<vmem>>, vector<1x16x16x32xf32>
    %71 = vector.shape_cast %70 : vector<1x16x16x32xf32> to vector<16x16x32xf32>
    %72 = vector.shape_cast %71 : vector<16x16x32xf32> to vector<256x32xf32>
    %73 = arith.extui %2 : i1 to i32
    %c0_i32_79 = arith.constant 0 : i32
    %74 = arith.cmpi ne, %73, %c0_i32_79 : i32
    scf.if %74 {
      %cst_81 = arith.constant dense<0.000000e+00> : vector<32xf32>
      %78 = vector.multi_reduction <add>, %66, %cst_81 [0] : vector<256x32xf32> to vector<32xf32>
      %79 = vector.shape_cast %78 : vector<32xf32> to vector<1x32xf32>
      %80 = arith.mulf %66, %66 : vector<256x32xf32>
      %cst_82 = arith.constant dense<0.000000e+00> : vector<32xf32>
      %81 = vector.multi_reduction <add>, %80, %cst_82 [0] : vector<256x32xf32> to vector<32xf32>
      %82 = vector.shape_cast %81 : vector<32xf32> to vector<1x32xf32>
      %cst_83 = arith.constant 3.906250e-03 : f32
      %83 = vector.broadcast %cst_83 : f32 to vector<1x32xf32>
      %84 = arith.mulf %79, %83 : vector<1x32xf32>
      %cst_84 = arith.constant 2.560000e+02 : f32
      %85 = vector.broadcast %cst_84 : f32 to vector<1x32xf32>
      %86 = arith.mulf %85, %84 : vector<1x32xf32>
      %87 = arith.mulf %86, %84 : vector<1x32xf32>
      %88 = arith.subf %82, %87 : vector<1x32xf32>
      %cst_85 = arith.constant 0.00392156886 : f32
      %89 = vector.broadcast %cst_85 : f32 to vector<1x32xf32>
      %90 = arith.mulf %88, %89 : vector<1x32xf32>
      %cst_86 = arith.constant 9.99999974E-6 : f32
      %91 = vector.broadcast %cst_86 : f32 to vector<1x32xf32>
      %92 = arith.addf %90, %91 : vector<1x32xf32>
      %c0_87 = arith.constant 0 : index
      %c0_88 = arith.constant 0 : index
      %93 = vector.load %arg8[%c0_87, %c0_88] : memref<1x32xf32, #tpu.memory_space<vmem>>, vector<1x32xf32>
      %94 = math.rsqrt %92 : vector<1x32xf32>
      %95 = arith.mulf %93, %94 : vector<1x32xf32>
      %c0_89 = arith.constant 0 : index
      %c0_90 = arith.constant 0 : index
      %96 = vector.load %arg7[%c0_89, %c0_90] : memref<1x32xf32, #tpu.memory_space<vmem>>, vector<1x32xf32>
      %97 = arith.mulf %84, %95 : vector<1x32xf32>
      %98 = arith.subf %96, %97 : vector<1x32xf32>
      %99 = vector.broadcast %95 : vector<1x32xf32> to vector<256x32xf32>
      %100 = arith.mulf %66, %99 : vector<256x32xf32>
      %101 = vector.broadcast %98 : vector<1x32xf32> to vector<256x32xf32>
      %102 = arith.addf %100, %101 : vector<256x32xf32>
      %103 = arith.addf %102, %72 : vector<256x32xf32>
      %cst_91 = arith.constant 0.000000e+00 : f32
      %104 = vector.broadcast %cst_91 : f32 to vector<256x32xf32>
      %105 = arith.maximumf %103, %104 : vector<256x32xf32>
      %106 = vector.shape_cast %105 : vector<256x32xf32> to vector<16x16x32xf32>
      %c0_92 = arith.constant 0 : index
      %c0_93 = arith.constant 0 : index
      %c0_94 = arith.constant 0 : index
      %c0_95 = arith.constant 0 : index
      %107 = vector.load %arg5[%c0_92, %c0_93, %c0_94, %c0_95] : memref<1x16x16x32xf32, #tpu.memory_space<vmem>>, vector<1x16x16x32xf32>
      %108 = vector.shape_cast %107 : vector<1x16x16x32xf32> to vector<16x16x32xf32>
      %109 = vector.shape_cast %106 : vector<16x16x32xf32> to vector<1x16x16x32xf32>
      tpu.vector_store %arg5[%c0_92, %c0_93, %c0_94, %c0_95], %109 {strides = array<i32>} : memref<1x16x16x32xf32, #tpu.memory_space<vmem>>, vector<1x16x16x32xf32>,
    } else {
    }
    %true = arith.constant true
    %75 = arith.xori %2, %true : i1
    %76 = arith.extui %75 : i1 to i32
    %c0_i32_80 = arith.constant 0 : i32
    %77 = arith.cmpi ne, %76, %c0_i32_80 : i32
    scf.if %77 {
      %78 = arith.addf %66, %72 : vector<256x32xf32>
      %cst_81 = arith.constant 0.000000e+00 : f32
      %79 = vector.broadcast %cst_81 : f32 to vector<256x32xf32>
      %80 = arith.maximumf %78, %79 : vector<256x32xf32>
      %81 = vector.shape_cast %80 : vector<256x32xf32> to vector<16x16x32xf32>
      %c0_82 = arith.constant 0 : index
      %c0_83 = arith.constant 0 : index
      %c0_84 = arith.constant 0 : index
      %c0_85 = arith.constant 0 : index
      %82 = vector.load %arg5[%c0_82, %c0_83, %c0_84, %c0_85] : memref<1x16x16x32xf32, #tpu.memory_space<vmem>>, vector<1x16x16x32xf32>
      %83 = vector.shape_cast %82 : vector<1x16x16x32xf32> to vector<16x16x32xf32>
      %84 = vector.shape_cast %81 : vector<16x16x32xf32> to vector<1x16x16x32xf32>
      tpu.vector_store %arg5[%c0_82, %c0_83, %c0_84, %c0_85], %84 {strides = array<i32>} : memref<1x16x16x32xf32, #tpu.memory_space<vmem>>, vector<1x16x16x32xf32>,
    } else {
    }
    return
  }
  func.func @transform_0(%arg0: i32, %arg1: memref<4xi32, #tpu.memory_space<smem>>) -> (i32, i32, i32, i32) {
    %0 = arith.index_cast %arg0 : i32 to index
    %1 = memref.load %arg1[%0] : memref<4xi32, #tpu.memory_space<smem>>
    %c0_i32 = arith.constant 0 : i32
    %c0_i32_0 = arith.constant 0 : i32
    %c0_i32_1 = arith.constant 0 : i32
    %c0_i32_2 = arith.constant 0 : i32
    return %1, %c0_i32, %c0_i32_0, %c0_i32_1 : i32, i32, i32, i32
  }
  func.func @transform_1(%arg0: i32, %arg1: memref<4xi32, #tpu.memory_space<smem>>) -> (i32, i32, i32) {
    %c0_i32 = arith.constant 0 : i32
    %c0_i32_0 = arith.constant 0 : i32
    %c0_i32_1 = arith.constant 0 : i32
    %c0_i32_2 = arith.constant 0 : i32
    return %c0_i32, %c0_i32_0, %c0_i32_1 : i32, i32, i32
  }
  func.func @transform_2(%arg0: i32, %arg1: memref<4xi32, #tpu.memory_space<smem>>) -> (i32, i32, i32, i32) {
    %0 = arith.index_cast %arg0 : i32 to index
    %1 = memref.load %arg1[%0] : memref<4xi32, #tpu.memory_space<smem>>
    %c0_i32 = arith.constant 0 : i32
    %c0_i32_0 = arith.constant 0 : i32
    %c0_i32_1 = arith.constant 0 : i32
    %c0_i32_2 = arith.constant 0 : i32
    return %1, %c0_i32, %c0_i32_0, %c0_i32_1 : i32, i32, i32, i32
  }
  func.func @transform_3(%arg0: i32, %arg1: memref<4xi32, #tpu.memory_space<smem>>) -> (i32, i32, i32, i32) {
    %0 = arith.index_cast %arg0 : i32 to index
    %1 = memref.load %arg1[%0] : memref<4xi32, #tpu.memory_space<smem>>
    %c0_i32 = arith.constant 0 : i32
    %c0_i32_0 = arith.constant 0 : i32
    %c0_i32_1 = arith.constant 0 : i32
    %c0_i32_2 = arith.constant 0 : i32
    return %1, %c0_i32, %c0_i32_0, %c0_i32_1 : i32, i32, i32, i32
  }
}

module attributes {stable_mosaic.version = 11 : i64} {
  func.func @kernel(%arg0: i32, %arg1: memref<4xi32, #tpu.memory_space<smem>>, %arg2: memref<1x16x16x32xf32, #tpu.memory_space<vmem>>, %arg3: memref<9x32x32xf32, #tpu.memory_space<vmem>>, %arg4: memref<1x16x16x32xf32, #tpu.memory_space<vmem>>, %arg5: memref<18x18x32xf32, #tpu.memory_space<vmem>>, %arg6: memref<1x32xf32, #tpu.memory_space<vmem>>, %arg7: memref<1x32xf32, #tpu.memory_space<vmem>>) attributes {dimension_semantics = [#tpu.dimension_semantics<arbitrary>], iteration_bounds = array<i64: 4>, scalar_prefetch = 1 : i64, scratch_operands = 3 : i64, tpu.core_type = #tpu.core_type<tc>, window_params = [{transform_indices = @transform_0, window_bounds = array<i64: 1, 16, 16, 32>}, {pipeline_mode = #tpu.pipeline_mode<synchronous>, transform_indices = @transform_1, window_bounds = array<i64: 9, 32, 32>}, {transform_indices = @transform_2, window_bounds = array<i64: 1, 16, 16, 32>}]} {
    %0 = arith.index_cast %arg0 : i32 to index
    %1 = memref.load %arg1[%0] : memref<4xi32, #tpu.memory_space<smem>>
    %c2_i32 = arith.constant 2 : i32
    %2 = arith.cmpi slt, %1, %c2_i32 : i32
    %cst = arith.constant 0.000000e+00 : f32
    %3 = vector.broadcast %cst : f32 to vector<1x18x32xf32>
    %cst_0 = arith.constant 0.000000e+00 : f32
    %4 = vector.broadcast %cst_0 : f32 to vector<18x1x32xf32>
    %c0 = arith.constant 0 : index
    %c0_1 = arith.constant 0 : index
    %c0_2 = arith.constant 0 : index
    %5 = vector.load %arg5[%c0, %c0_1, %c0_2] : memref<18x18x32xf32, #tpu.memory_space<vmem>>, vector<1x18x32xf32>
    tpu.vector_store %arg5[%c0, %c0_1, %c0_2], %3 {strides = array<i32>} : memref<18x18x32xf32, #tpu.memory_space<vmem>>, vector<1x18x32xf32>,
    %c17 = arith.constant 17 : index
    %c0_3 = arith.constant 0 : index
    %c0_4 = arith.constant 0 : index
    %6 = vector.load %arg5[%c17, %c0_3, %c0_4] : memref<18x18x32xf32, #tpu.memory_space<vmem>>, vector<1x18x32xf32>
    tpu.vector_store %arg5[%c17, %c0_3, %c0_4], %3 {strides = array<i32>} : memref<18x18x32xf32, #tpu.memory_space<vmem>>, vector<1x18x32xf32>,
    %c0_5 = arith.constant 0 : index
    %c0_6 = arith.constant 0 : index
    %c0_7 = arith.constant 0 : index
    %7 = vector.load %arg5[%c0_5, %c0_6, %c0_7] : memref<18x18x32xf32, #tpu.memory_space<vmem>>, vector<18x1x32xf32>
    tpu.vector_store %arg5[%c0_5, %c0_6, %c0_7], %4 {strides = array<i32>} : memref<18x18x32xf32, #tpu.memory_space<vmem>>, vector<18x1x32xf32>,
    %c0_8 = arith.constant 0 : index
    %c17_9 = arith.constant 17 : index
    %c0_10 = arith.constant 0 : index
    %8 = vector.load %arg5[%c0_8, %c17_9, %c0_10] : memref<18x18x32xf32, #tpu.memory_space<vmem>>, vector<18x1x32xf32>
    tpu.vector_store %arg5[%c0_8, %c17_9, %c0_10], %4 {strides = array<i32>} : memref<18x18x32xf32, #tpu.memory_space<vmem>>, vector<18x1x32xf32>,
    %c0_11 = arith.constant 0 : index
    %c0_12 = arith.constant 0 : index
    %c0_13 = arith.constant 0 : index
    %c0_14 = arith.constant 0 : index
    %9 = vector.load %arg2[%c0_11, %c0_12, %c0_13, %c0_14] : memref<1x16x16x32xf32, #tpu.memory_space<vmem>>, vector<1x16x16x32xf32>
    %10 = vector.shape_cast %9 : vector<1x16x16x32xf32> to vector<16x16x32xf32>
    %c1 = arith.constant 1 : index
    %c1_15 = arith.constant 1 : index
    %c0_16 = arith.constant 0 : index
    %11 = vector.load %arg5[%c1, %c1_15, %c0_16] : memref<18x18x32xf32, #tpu.memory_space<vmem>>, vector<16x16x32xf32>
    tpu.vector_store %arg5[%c1, %c1_15, %c0_16], %10 {strides = array<i32>} : memref<18x18x32xf32, #tpu.memory_space<vmem>>, vector<16x16x32xf32>,
    %cst_17 = arith.constant 0.000000e+00 : f32
    %12 = vector.broadcast %cst_17 : f32 to vector<256x32xf32>
    %c0_18 = arith.constant 0 : index
    %c0_19 = arith.constant 0 : index
    %c0_20 = arith.constant 0 : index
    %13 = vector.load %arg5[%c0_18, %c0_19, %c0_20] : memref<18x18x32xf32, #tpu.memory_space<vmem>>, vector<16x16x32xf32>
    %14 = vector.shape_cast %13 : vector<16x16x32xf32> to vector<256x32xf32>
    %c0_21 = arith.constant 0 : index
    %c0_22 = arith.constant 0 : index
    %c0_23 = arith.constant 0 : index
    %15 = vector.load %arg3[%c0_21, %c0_22, %c0_23] : memref<9x32x32xf32, #tpu.memory_space<vmem>>, vector<1x32x32xf32>
    %16 = vector.shape_cast %15 : vector<1x32x32xf32> to vector<32x32xf32>
    %cst_24 = arith.constant dense<0.000000e+00> : vector<256x32xf32>
    %17 = tpu.matmul %14, %16, %cst_24 {dimension_numbers = #tpu.dot_dimension_numbers<[1], [0], [0], [1], [0, 0, 1, 1], [], []>} : vector<256x32xf32>, vector<32x32xf32>, vector<256x32xf32> -> vector<256x32xf32>
    %18 = arith.addf %12, %17 : vector<256x32xf32>
    %c0_25 = arith.constant 0 : index
    %c1_26 = arith.constant 1 : index
    %c0_27 = arith.constant 0 : index
    %19 = vector.load %arg5[%c0_25, %c1_26, %c0_27] : memref<18x18x32xf32, #tpu.memory_space<vmem>>, vector<16x16x32xf32>
    %20 = vector.shape_cast %19 : vector<16x16x32xf32> to vector<256x32xf32>
    %c1_28 = arith.constant 1 : index
    %c0_29 = arith.constant 0 : index
    %c0_30 = arith.constant 0 : index
    %21 = vector.load %arg3[%c1_28, %c0_29, %c0_30] : memref<9x32x32xf32, #tpu.memory_space<vmem>>, vector<1x32x32xf32>
    %22 = vector.shape_cast %21 : vector<1x32x32xf32> to vector<32x32xf32>
    %cst_31 = arith.constant dense<0.000000e+00> : vector<256x32xf32>
    %23 = tpu.matmul %20, %22, %cst_31 {dimension_numbers = #tpu.dot_dimension_numbers<[1], [0], [0], [1], [0, 0, 1, 1], [], []>} : vector<256x32xf32>, vector<32x32xf32>, vector<256x32xf32> -> vector<256x32xf32>
    %24 = arith.addf %18, %23 : vector<256x32xf32>
    %c0_32 = arith.constant 0 : index
    %c2 = arith.constant 2 : index
    %c0_33 = arith.constant 0 : index
    %25 = vector.load %arg5[%c0_32, %c2, %c0_33] : memref<18x18x32xf32, #tpu.memory_space<vmem>>, vector<16x16x32xf32>
    %26 = vector.shape_cast %25 : vector<16x16x32xf32> to vector<256x32xf32>
    %c2_34 = arith.constant 2 : index
    %c0_35 = arith.constant 0 : index
    %c0_36 = arith.constant 0 : index
    %27 = vector.load %arg3[%c2_34, %c0_35, %c0_36] : memref<9x32x32xf32, #tpu.memory_space<vmem>>, vector<1x32x32xf32>
    %28 = vector.shape_cast %27 : vector<1x32x32xf32> to vector<32x32xf32>
    %cst_37 = arith.constant dense<0.000000e+00> : vector<256x32xf32>
    %29 = tpu.matmul %26, %28, %cst_37 {dimension_numbers = #tpu.dot_dimension_numbers<[1], [0], [0], [1], [0, 0, 1, 1], [], []>} : vector<256x32xf32>, vector<32x32xf32>, vector<256x32xf32> -> vector<256x32xf32>
    %30 = arith.addf %24, %29 : vector<256x32xf32>
    %c1_38 = arith.constant 1 : index
    %c0_39 = arith.constant 0 : index
    %c0_40 = arith.constant 0 : index
    %31 = vector.load %arg5[%c1_38, %c0_39, %c0_40] : memref<18x18x32xf32, #tpu.memory_space<vmem>>, vector<16x16x32xf32>
    %32 = vector.shape_cast %31 : vector<16x16x32xf32> to vector<256x32xf32>
    %c3 = arith.constant 3 : index
    %c0_41 = arith.constant 0 : index
    %c0_42 = arith.constant 0 : index
    %33 = vector.load %arg3[%c3, %c0_41, %c0_42] : memref<9x32x32xf32, #tpu.memory_space<vmem>>, vector<1x32x32xf32>
    %34 = vector.shape_cast %33 : vector<1x32x32xf32> to vector<32x32xf32>
    %cst_43 = arith.constant dense<0.000000e+00> : vector<256x32xf32>
    %35 = tpu.matmul %32, %34, %cst_43 {dimension_numbers = #tpu.dot_dimension_numbers<[1], [0], [0], [1], [0, 0, 1, 1], [], []>} : vector<256x32xf32>, vector<32x32xf32>, vector<256x32xf32> -> vector<256x32xf32>
    %36 = arith.addf %30, %35 : vector<256x32xf32>
    %c1_44 = arith.constant 1 : index
    %c1_45 = arith.constant 1 : index
    %c0_46 = arith.constant 0 : index
    %37 = vector.load %arg5[%c1_44, %c1_45, %c0_46] : memref<18x18x32xf32, #tpu.memory_space<vmem>>, vector<16x16x32xf32>
    %38 = vector.shape_cast %37 : vector<16x16x32xf32> to vector<256x32xf32>
    %c4 = arith.constant 4 : index
    %c0_47 = arith.constant 0 : index
    %c0_48 = arith.constant 0 : index
    %39 = vector.load %arg3[%c4, %c0_47, %c0_48] : memref<9x32x32xf32, #tpu.memory_space<vmem>>, vector<1x32x32xf32>
    %40 = vector.shape_cast %39 : vector<1x32x32xf32> to vector<32x32xf32>
    %cst_49 = arith.constant dense<0.000000e+00> : vector<256x32xf32>
    %41 = tpu.matmul %38, %40, %cst_49 {dimension_numbers = #tpu.dot_dimension_numbers<[1], [0], [0], [1], [0, 0, 1, 1], [], []>} : vector<256x32xf32>, vector<32x32xf32>, vector<256x32xf32> -> vector<256x32xf32>
    %42 = arith.addf %36, %41 : vector<256x32xf32>
    %c1_50 = arith.constant 1 : index
    %c2_51 = arith.constant 2 : index
    %c0_52 = arith.constant 0 : index
    %43 = vector.load %arg5[%c1_50, %c2_51, %c0_52] : memref<18x18x32xf32, #tpu.memory_space<vmem>>, vector<16x16x32xf32>
    %44 = vector.shape_cast %43 : vector<16x16x32xf32> to vector<256x32xf32>
    %c5 = arith.constant 5 : index
    %c0_53 = arith.constant 0 : index
    %c0_54 = arith.constant 0 : index
    %45 = vector.load %arg3[%c5, %c0_53, %c0_54] : memref<9x32x32xf32, #tpu.memory_space<vmem>>, vector<1x32x32xf32>
    %46 = vector.shape_cast %45 : vector<1x32x32xf32> to vector<32x32xf32>
    %cst_55 = arith.constant dense<0.000000e+00> : vector<256x32xf32>
    %47 = tpu.matmul %44, %46, %cst_55 {dimension_numbers = #tpu.dot_dimension_numbers<[1], [0], [0], [1], [0, 0, 1, 1], [], []>} : vector<256x32xf32>, vector<32x32xf32>, vector<256x32xf32> -> vector<256x32xf32>
    %48 = arith.addf %42, %47 : vector<256x32xf32>
    %c2_56 = arith.constant 2 : index
    %c0_57 = arith.constant 0 : index
    %c0_58 = arith.constant 0 : index
    %49 = vector.load %arg5[%c2_56, %c0_57, %c0_58] : memref<18x18x32xf32, #tpu.memory_space<vmem>>, vector<16x16x32xf32>
    %50 = vector.shape_cast %49 : vector<16x16x32xf32> to vector<256x32xf32>
    %c6 = arith.constant 6 : index
    %c0_59 = arith.constant 0 : index
    %c0_60 = arith.constant 0 : index
    %51 = vector.load %arg3[%c6, %c0_59, %c0_60] : memref<9x32x32xf32, #tpu.memory_space<vmem>>, vector<1x32x32xf32>
    %52 = vector.shape_cast %51 : vector<1x32x32xf32> to vector<32x32xf32>
    %cst_61 = arith.constant dense<0.000000e+00> : vector<256x32xf32>
    %53 = tpu.matmul %50, %52, %cst_61 {dimension_numbers = #tpu.dot_dimension_numbers<[1], [0], [0], [1], [0, 0, 1, 1], [], []>} : vector<256x32xf32>, vector<32x32xf32>, vector<256x32xf32> -> vector<256x32xf32>
    %54 = arith.addf %48, %53 : vector<256x32xf32>
    %c2_62 = arith.constant 2 : index
    %c1_63 = arith.constant 1 : index
    %c0_64 = arith.constant 0 : index
    %55 = vector.load %arg5[%c2_62, %c1_63, %c0_64] : memref<18x18x32xf32, #tpu.memory_space<vmem>>, vector<16x16x32xf32>
    %56 = vector.shape_cast %55 : vector<16x16x32xf32> to vector<256x32xf32>
    %c7 = arith.constant 7 : index
    %c0_65 = arith.constant 0 : index
    %c0_66 = arith.constant 0 : index
    %57 = vector.load %arg3[%c7, %c0_65, %c0_66] : memref<9x32x32xf32, #tpu.memory_space<vmem>>, vector<1x32x32xf32>
    %58 = vector.shape_cast %57 : vector<1x32x32xf32> to vector<32x32xf32>
    %cst_67 = arith.constant dense<0.000000e+00> : vector<256x32xf32>
    %59 = tpu.matmul %56, %58, %cst_67 {dimension_numbers = #tpu.dot_dimension_numbers<[1], [0], [0], [1], [0, 0, 1, 1], [], []>} : vector<256x32xf32>, vector<32x32xf32>, vector<256x32xf32> -> vector<256x32xf32>
    %60 = arith.addf %54, %59 : vector<256x32xf32>
    %c2_68 = arith.constant 2 : index
    %c2_69 = arith.constant 2 : index
    %c0_70 = arith.constant 0 : index
    %61 = vector.load %arg5[%c2_68, %c2_69, %c0_70] : memref<18x18x32xf32, #tpu.memory_space<vmem>>, vector<16x16x32xf32>
    %62 = vector.shape_cast %61 : vector<16x16x32xf32> to vector<256x32xf32>
    %c8 = arith.constant 8 : index
    %c0_71 = arith.constant 0 : index
    %c0_72 = arith.constant 0 : index
    %63 = vector.load %arg3[%c8, %c0_71, %c0_72] : memref<9x32x32xf32, #tpu.memory_space<vmem>>, vector<1x32x32xf32>
    %64 = vector.shape_cast %63 : vector<1x32x32xf32> to vector<32x32xf32>
    %cst_73 = arith.constant dense<0.000000e+00> : vector<256x32xf32>
    %65 = tpu.matmul %62, %64, %cst_73 {dimension_numbers = #tpu.dot_dimension_numbers<[1], [0], [0], [1], [0, 0, 1, 1], [], []>} : vector<256x32xf32>, vector<32x32xf32>, vector<256x32xf32> -> vector<256x32xf32>
    %66 = arith.addf %60, %65 : vector<256x32xf32>
    %c0_i32 = arith.constant 0 : i32
    %67 = arith.cmpi eq, %arg0, %c0_i32 : i32
    %68 = arith.extui %67 : i1 to i32
    %c0_i32_74 = arith.constant 0 : i32
    %69 = arith.cmpi ne, %68, %c0_i32_74 : i32
    scf.if %69 {
      %cst_77 = arith.constant dense<0.000000e+00> : vector<32xf32>
      %75 = vector.multi_reduction <add>, %66, %cst_77 [0] : vector<256x32xf32> to vector<32xf32>
      %76 = vector.shape_cast %75 : vector<32xf32> to vector<1x32xf32>
      %77 = arith.mulf %66, %66 : vector<256x32xf32>
      %cst_78 = arith.constant dense<0.000000e+00> : vector<32xf32>
      %78 = vector.multi_reduction <add>, %77, %cst_78 [0] : vector<256x32xf32> to vector<32xf32>
      %79 = vector.shape_cast %78 : vector<32xf32> to vector<1x32xf32>
      %cst_79 = arith.constant 3.906250e-03 : f32
      %80 = vector.broadcast %cst_79 : f32 to vector<1x32xf32>
      %81 = arith.mulf %76, %80 : vector<1x32xf32>
      %cst_80 = arith.constant 2.560000e+02 : f32
      %82 = vector.broadcast %cst_80 : f32 to vector<1x32xf32>
      %83 = arith.mulf %82, %81 : vector<1x32xf32>
      %84 = arith.mulf %83, %81 : vector<1x32xf32>
      %85 = arith.subf %79, %84 : vector<1x32xf32>
      %cst_81 = arith.constant 0.00392156886 : f32
      %86 = vector.broadcast %cst_81 : f32 to vector<1x32xf32>
      %87 = arith.mulf %85, %86 : vector<1x32xf32>
      %cst_82 = arith.constant 9.99999974E-6 : f32
      %88 = vector.broadcast %cst_82 : f32 to vector<1x32xf32>
      %89 = arith.addf %87, %88 : vector<1x32xf32>
      %c0_83 = arith.constant 0 : index
      %c0_84 = arith.constant 0 : index
      %90 = vector.load %arg6[%c0_83, %c0_84] : memref<1x32xf32, #tpu.memory_space<vmem>>, vector<1x32xf32>
      tpu.vector_store %arg6[%c0_83, %c0_84], %81 {strides = array<i32>} : memref<1x32xf32, #tpu.memory_space<vmem>>, vector<1x32xf32>,
      %91 = math.sqrt %89 : vector<1x32xf32>
      %c0_85 = arith.constant 0 : index
      %c0_86 = arith.constant 0 : index
      %92 = vector.load %arg7[%c0_85, %c0_86] : memref<1x32xf32, #tpu.memory_space<vmem>>, vector<1x32xf32>
      tpu.vector_store %arg7[%c0_85, %c0_86], %91 {strides = array<i32>} : memref<1x32xf32, #tpu.memory_space<vmem>>, vector<1x32xf32>,
    } else {
    }
    %70 = arith.extui %2 : i1 to i32
    %c0_i32_75 = arith.constant 0 : i32
    %71 = arith.cmpi ne, %70, %c0_i32_75 : i32
    scf.if %71 {
      %cst_77 = arith.constant dense<0.000000e+00> : vector<32xf32>
      %75 = vector.multi_reduction <add>, %66, %cst_77 [0] : vector<256x32xf32> to vector<32xf32>
      %76 = vector.shape_cast %75 : vector<32xf32> to vector<1x32xf32>
      %77 = arith.mulf %66, %66 : vector<256x32xf32>
      %cst_78 = arith.constant dense<0.000000e+00> : vector<32xf32>
      %78 = vector.multi_reduction <add>, %77, %cst_78 [0] : vector<256x32xf32> to vector<32xf32>
      %79 = vector.shape_cast %78 : vector<32xf32> to vector<1x32xf32>
      %cst_79 = arith.constant 3.906250e-03 : f32
      %80 = vector.broadcast %cst_79 : f32 to vector<1x32xf32>
      %81 = arith.mulf %76, %80 : vector<1x32xf32>
      %cst_80 = arith.constant 2.560000e+02 : f32
      %82 = vector.broadcast %cst_80 : f32 to vector<1x32xf32>
      %83 = arith.mulf %82, %81 : vector<1x32xf32>
      %84 = arith.mulf %83, %81 : vector<1x32xf32>
      %85 = arith.subf %79, %84 : vector<1x32xf32>
      %cst_81 = arith.constant 0.00392156886 : f32
      %86 = vector.broadcast %cst_81 : f32 to vector<1x32xf32>
      %87 = arith.mulf %85, %86 : vector<1x32xf32>
      %cst_82 = arith.constant 9.99999974E-6 : f32
      %88 = vector.broadcast %cst_82 : f32 to vector<1x32xf32>
      %89 = arith.addf %87, %88 : vector<1x32xf32>
      %c0_83 = arith.constant 0 : index
      %c0_84 = arith.constant 0 : index
      %90 = vector.load %arg7[%c0_83, %c0_84] : memref<1x32xf32, #tpu.memory_space<vmem>>, vector<1x32xf32>
      %91 = math.rsqrt %89 : vector<1x32xf32>
      %92 = arith.mulf %90, %91 : vector<1x32xf32>
      %c0_85 = arith.constant 0 : index
      %c0_86 = arith.constant 0 : index
      %93 = vector.load %arg6[%c0_85, %c0_86] : memref<1x32xf32, #tpu.memory_space<vmem>>, vector<1x32xf32>
      %94 = arith.mulf %81, %92 : vector<1x32xf32>
      %95 = arith.subf %93, %94 : vector<1x32xf32>
      %96 = vector.broadcast %92 : vector<1x32xf32> to vector<256x32xf32>
      %97 = arith.mulf %66, %96 : vector<256x32xf32>
      %98 = vector.broadcast %95 : vector<1x32xf32> to vector<256x32xf32>
      %99 = arith.addf %97, %98 : vector<256x32xf32>
      %cst_87 = arith.constant 0.000000e+00 : f32
      %100 = vector.broadcast %cst_87 : f32 to vector<256x32xf32>
      %101 = arith.maximumf %99, %100 : vector<256x32xf32>
      %102 = vector.shape_cast %101 : vector<256x32xf32> to vector<16x16x32xf32>
      %c0_88 = arith.constant 0 : index
      %c0_89 = arith.constant 0 : index
      %c0_90 = arith.constant 0 : index
      %c0_91 = arith.constant 0 : index
      %103 = vector.load %arg4[%c0_88, %c0_89, %c0_90, %c0_91] : memref<1x16x16x32xf32, #tpu.memory_space<vmem>>, vector<1x16x16x32xf32>
      %104 = vector.shape_cast %103 : vector<1x16x16x32xf32> to vector<16x16x32xf32>
      %105 = vector.shape_cast %102 : vector<16x16x32xf32> to vector<1x16x16x32xf32>
      tpu.vector_store %arg4[%c0_88, %c0_89, %c0_90, %c0_91], %105 {strides = array<i32>} : memref<1x16x16x32xf32, #tpu.memory_space<vmem>>, vector<1x16x16x32xf32>,
    } else {
    }
    %true = arith.constant true
    %72 = arith.xori %2, %true : i1
    %73 = arith.extui %72 : i1 to i32
    %c0_i32_76 = arith.constant 0 : i32
    %74 = arith.cmpi ne, %73, %c0_i32_76 : i32
    scf.if %74 {
      %cst_77 = arith.constant 0.000000e+00 : f32
      %75 = vector.broadcast %cst_77 : f32 to vector<256x32xf32>
      %76 = arith.maximumf %66, %75 : vector<256x32xf32>
      %77 = vector.shape_cast %76 : vector<256x32xf32> to vector<16x16x32xf32>
      %c0_78 = arith.constant 0 : index
      %c0_79 = arith.constant 0 : index
      %c0_80 = arith.constant 0 : index
      %c0_81 = arith.constant 0 : index
      %78 = vector.load %arg4[%c0_78, %c0_79, %c0_80, %c0_81] : memref<1x16x16x32xf32, #tpu.memory_space<vmem>>, vector<1x16x16x32xf32>
      %79 = vector.shape_cast %78 : vector<1x16x16x32xf32> to vector<16x16x32xf32>
      %80 = vector.shape_cast %77 : vector<16x16x32xf32> to vector<1x16x16x32xf32>
      tpu.vector_store %arg4[%c0_78, %c0_79, %c0_80, %c0_81], %80 {strides = array<i32>} : memref<1x16x16x32xf32, #tpu.memory_space<vmem>>, vector<1x16x16x32xf32>,
    } else {
    }
    return
  }
  func.func @transform_0(%arg0: i32, %arg1: memref<4xi32, #tpu.memory_space<smem>>) -> (i32, i32, i32, i32) {
    %0 = arith.index_cast %arg0 : i32 to index
    %1 = memref.load %arg1[%0] : memref<4xi32, #tpu.memory_space<smem>>
    %c0_i32 = arith.constant 0 : i32
    %c0_i32_0 = arith.constant 0 : i32
    %c0_i32_1 = arith.constant 0 : i32
    %c0_i32_2 = arith.constant 0 : i32
    return %1, %c0_i32, %c0_i32_0, %c0_i32_1 : i32, i32, i32, i32
  }
  func.func @transform_1(%arg0: i32, %arg1: memref<4xi32, #tpu.memory_space<smem>>) -> (i32, i32, i32) {
    %c0_i32 = arith.constant 0 : i32
    %c0_i32_0 = arith.constant 0 : i32
    %c0_i32_1 = arith.constant 0 : i32
    %c0_i32_2 = arith.constant 0 : i32
    return %c0_i32, %c0_i32_0, %c0_i32_1 : i32, i32, i32
  }
  func.func @transform_2(%arg0: i32, %arg1: memref<4xi32, #tpu.memory_space<smem>>) -> (i32, i32, i32, i32) {
    %0 = arith.index_cast %arg0 : i32 to index
    %1 = memref.load %arg1[%0] : memref<4xi32, #tpu.memory_space<smem>>
    %c0_i32 = arith.constant 0 : i32
    %c0_i32_0 = arith.constant 0 : i32
    %c0_i32_1 = arith.constant 0 : i32
    %c0_i32_2 = arith.constant 0 : i32
    return %1, %c0_i32, %c0_i32_0, %c0_i32_1 : i32, i32, i32, i32
  }
}

</mosaic_0001>

<llo_original>
// kernel: adaptive_block_forward.2
$region0: #{adaptive_block_forward.2}
  #allocation0 [shape = 'u32[]', space=smem, size = 0x4, offset = 0x4, fixed_abs, tag = 'smem constant byte address 0x4 - core index']
  #allocation1 [shape = 'u32[144,128]{1,0:T(1,128)}', space=vmem, size = 0x12000, scoped, tag = 'internal scratch']
  #allocation2 [shape = 'f32[18,18,32]{2,1,0:T(8,128)}', space=vmem, size = 0x36000, scoped, tag = 'scratch operand']
  #allocation3 [shape = 'f32[1,32]{1,0:T(1,128)}', space=vmem, size = 0x200, scoped, tag = 'scratch operand']
  #allocation4 [shape = 'f32[1,32]{1,0:T(1,128)}', space=vmem, size = 0x200, scoped, tag = 'scratch operand']
  #allocation5 [shape = 's32[1]{0}', space=sflag, size = 0x4, scoped, tag = 'scoped memory for adaptive_block_forward.2']
  #allocation6 [shape = 'u8[512]{0}', space=smem, size = 0x200, scoped, tag = 'prefetched SMEM operand 0']
  %s0 = inlined_call_operand.vmem [shape: s32[4], index: 0, kind: input, shape index: {}]
  %s1 = inlined_call_operand.vmem [shape: f32[4,16,16,32], index: 1, kind: input, shape index: {}]
  %s2 = inlined_call_operand.vmem [shape: f32[9,32,32], index: 2, kind: input, shape index: {}]
  %s3 = inlined_call_operand.vmem [shape: f32[4,16,16,32], index: 3, kind: output, shape index: {}]
  %s4 = sld [smem:[#allocation0]]
  $region53: #{adaptive_block_forward.2} parent=0
    _
  %s6 = ssub.s32 1, %s4
  %s7 = scalar_select 0, %s6, %s4
  %s8 = sshll.u32 %s0, 4
  %s9 = int_to_ptr.vmem [resolvable:$true] %s8
  %11 = dma.vmem_to_smem %s9, 16, [#allocation6], [#allocation5]
  %12 = dma.done [#allocation5], 16
  %13 = sfence
  loop: start=0, step=1, limit=6
  $region2: #{adaptive_block_forward.2} parent=0 // loop_pre_header
    _
  $region3: #{adaptive_block_forward.2} parent=0 // loop_header
    %s15 = sphi 0, %s19
    %p16 = scmp.ge.s32.totalorder %s15, 6
    %s27 = sphi 0, %s29
    %s30 = sphi 0, %s27
    %s31 = sphi 0, %s30
    %s47 = sphi 0, %s31
    %s51 = sphi 0, %s51
    %s53 = sphi 0, %s51
    %s54 = sphi 0, %s53
    %s68 = sphi 0, %s54
    %s76 = sphi 0, %s78
    %s79 = sphi 0, %s76
    %s80 = sphi 0, %s79
    %s96 = sphi 0, %s80
  $region4: #{adaptive_block_forward.2} parent=0 // loop_header_branch
    %18 = sbr.rel (%p16) target = $region8
  $region5: #{adaptive_block_forward.2} parent=0 // loop_body
    %s20 = ssub.s32 %s15, 1
    %s21 = ssub.s32 %s15, 2
    %s22 = sadd.s32 %s15, 1
    %s23 = sld [smem:[#allocation6 + %s15]]
    %s24 = sld [smem:[#allocation6 + %s22]]
    %s25 = ssub.s32 %s23, %s24
    %p26 = scmp.eq.s32.totalorder %s25, 0
    %s28 = sadd.s32 %s27, 1
    %s29 = scalar_select %p26, %s27, %s28
    %p32 = pneg %p26
    %p33 = scmp.eq.s32.totalorder %s15, 3
    %p34 = por %p32, %p33
    %p35 = scmp.ne.s32.totalorder %s27, %s30
    %p36 = scmp.eq.s32.totalorder %s15, 0
    %p37 = por %p35, %p36
    %p38 = scmp.ne.s32.totalorder %s27, %s30
    %p39 = scmp.eq.s32.totalorder %s20, 3
    %p40 = por %p38, %p39
    %p41 = scmp.ne.s32.totalorder %s30, %s31
    %p42 = scmp.eq.s32.totalorder %s20, 0
    %p43 = por %p41, %p42
    %p44 = scmp.ne.s32.totalorder %s30, %s31
    %p45 = scmp.eq.s32.totalorder %s21, 3
    %p46 = por %p44, %p45
    %p48 = scmp.ne.s32.totalorder %s31, %s47
    %p49 = scmp.eq.s32.totalorder %s21, 0
    %p50 = por %p48, %p49
    %s52 = sadd.s32 %s51, 1
    %p55 = scmp.eq.s32.totalorder %s15, 3
    %p56 = scmp.ne.s32.totalorder %s51, %s53
    %p57 = scmp.eq.s32.totalorder %s15, 0
    %p58 = por %p56, %p57
    %p59 = scmp.ne.s32.totalorder %s51, %s53
    %p60 = scmp.eq.s32.totalorder %s20, 3
    %p61 = por %p59, %p60
    %p62 = scmp.ne.s32.totalorder %s53, %s54
    %p63 = scmp.eq.s32.totalorder %s20, 0
    %p64 = por %p62, %p63
    %p65 = scmp.ne.s32.totalorder %s53, %s54
    %p66 = scmp.eq.s32.totalorder %s21, 3
    %p67 = por %p65, %p66
    %p69 = scmp.ne.s32.totalorder %s54, %s68
    %p70 = scmp.eq.s32.totalorder %s21, 0
    %p71 = por %p69, %p70
    %s72 = sld [smem:[#allocation6 + %s15]]
    %s73 = sld [smem:[#allocation6 + %s22]]
    %s74 = ssub.s32 %s72, %s73
    %p75 = scmp.eq.s32.totalorder %s74, 0
    %s77 = sadd.s32 %s76, 1
    %s78 = scalar_select %p75, %s76, %s77
    %p81 = pneg %p75
    %p82 = scmp.eq.s32.totalorder %s15, 3
    %p83 = por %p81, %p82
    %p84 = scmp.ne.s32.totalorder %s76, %s79
    %p85 = scmp.eq.s32.totalorder %s15, 0
    %p86 = por %p84, %p85
    %p87 = scmp.ne.s32.totalorder %s76, %s79
    %p88 = scmp.eq.s32.totalorder %s20, 3
    %p89 = por %p87, %p88
    %p90 = scmp.ne.s32.totalorder %s79, %s80
    %p91 = scmp.eq.s32.totalorder %s20, 0
    %p92 = por %p90, %p91
    %p93 = scmp.ne.s32.totalorder %s79, %s80
    %p94 = scmp.eq.s32.totalorder %s21, 3
    %p95 = por %p93, %p94
    %p97 = scmp.ne.s32.totalorder %s80, %s96
    %p98 = scmp.eq.s32.totalorder %s21, 0
    %p99 = por %p97, %p98
    %p100 = scmp.le.s32.totalorder 1, %s15
    %p101 = scmp.lt.s32.totalorder %s15, 5
    %p102 = pnand %p100, %p101
    %p103 = pneg %p102
    // Predicated region
    $region9: #{adaptive_block_forward.2} parent=5 // pred_check
      _
    $region10: #{adaptive_block_forward.2} parent=5 // pred_check_branch
      %105 = sbr.rel (%p102) target = $region12
    $region11: #{adaptive_block_forward.2} parent=5 // pred_region
      %s106 = ssub.s32 %s15, 1
      // Predicated region
      $region13: #{adaptive_block_forward.2} parent=11 // pred_check
        %p107 = pneg %p64
      $region14: #{adaptive_block_forward.2} parent=11 // pred_check_branch
        %109 = sbr.rel (%p107) target = $region16
      $region15: #{adaptive_block_forward.2} parent=11 // pred_region
        _
      $region16: #{adaptive_block_forward.2} parent=11 // pred_fallthru
        _
    $region12: #{adaptive_block_forward.2} parent=5 // pred_fallthru
      _
    %p110 = scmp.lt.s32.totalorder %s15, 4
    // Predicated region
    $region17: #{adaptive_block_forward.2} parent=5 // pred_check
      %p111 = pneg %p110
    $region18: #{adaptive_block_forward.2} parent=5 // pred_check_branch
      %113 = sbr.rel (%p111) target = $region20
    $region19: #{adaptive_block_forward.2} parent=5 // pred_region
      // Predicated region
      $region21: #{adaptive_block_forward.2} parent=19 // pred_check
        %p114 = pneg %p37
      $region22: #{adaptive_block_forward.2} parent=19 // pred_check_branch
        %116 = sbr.rel (%p114) target = $region24
      $region23: #{adaptive_block_forward.2} parent=19 // pred_region
        %s117 = sld [smem:[#allocation6 + %s15]]
        %p118 = scmp.lt.s32.totalorder %s117, 3
        %s119 = scalar_select %p118, %s117, 3
        %s120 = smul.addr %s119, 32
        %s121 = smul.addr %s120, 8
        %s122 = scalar_lea.vmem %s1, %s121
        %s123 = sld [smem:[#allocation6 + %s15]]
      $region24: #{adaptive_block_forward.2} parent=19 // pred_fallthru
        _
    $region20: #{adaptive_block_forward.2} parent=5 // pred_fallthru
      _
    %p124 = scmp.le.s32.totalorder 1, %s15
    %p125 = scmp.lt.s32.totalorder %s15, 5
    %p126 = pnand %p124, %p125
    %p127 = pneg %p126
    // Predicated region
    $region25: #{adaptive_block_forward.2} parent=5 // pred_check
      _
    $region26: #{adaptive_block_forward.2} parent=5 // pred_check_branch
      %129 = sbr.rel (%p126) target = $region28
    $region27: #{adaptive_block_forward.2} parent=5 // pred_region
      %s130 = ssub.s32 %s15, 1
      %s131 = sld [smem:[#allocation6 + %s20]]
      %p132 = scmp.lt.s32.totalorder %s131, 3
      %s133 = scalar_select %p132, %s131, 3
      %s134 = smul.addr %s133, 32
      %s135 = smul.addr %s134, 8
      %s136 = scalar_lea.vmem %s1, %s135
      %p137 = pneg %p43
      %p138 = pneg %p40
      %p139 = pneg %p64
      %p140 = pneg %p61
      %p141 = pneg %p92
      %p142 = pneg %p89
      %s143 = sld [smem:[#allocation6 + %s20]]
      %p144 = scmp.lt.s32.totalorder %s143, 3
      %s145 = scalar_select %p144, %s143, 3
      %s146 = smul.addr %s145, 32
      %s147 = smul.addr %s146, 8
      %s148 = scalar_lea.vmem %s3, %s147
      %s149 = sld [smem:[#allocation6 + %s20]]
      %p150 = scmp.lt.s32.totalorder %s149, 3
      %s151 = scalar_select %p150, %s149, 3
      %s152 = smul.addr %s151, 32
      %s153 = smul.addr %s152, 8
      %s154 = scalar_lea.vmem %s1, %s153
      %s155 = sld [smem:[#allocation6 + %s20]]
      %s156 = sld [smem:[#allocation6 + %s20]]
      %p157 = scmp.lt.s32.totalorder %s156, 3
      %s158 = scalar_select %p157, %s156, 3
      %s159 = smul.addr %s158, 32
      %s160 = smul.addr %s159, 8
      %s161 = scalar_lea.vmem %s3, %s160
      %s162 = sld [smem:[#allocation6 + %s20]]
      %s163 = sld [smem:[#allocation6 + %s20]]
      %p164 = scmp.lt.s32.totalorder %s163, 2
      %vm165 = vcmask 261120
      %166 = vst.msk [vmem:[#allocation2] sm:$0xff] %vm165, 0.0
      %167 = vst.msk [vmem:[#allocation2 + $0x8] sm:$0xff] %vm165, 0.0
      %vm168 = vcmask 254976
      %169 = vst.msk [vmem:[#allocation2 + $0x10] sm:$0x3] %vm168, 0.0
      %s170 = scalar_lea.vmem [#allocation2], 408
      %171 = vst.msk [vmem:[%s170] sm:$0xff] %vm165, 0.0
      %172 = vst.msk [vmem:[%s170 + $0x8] sm:$0xff] %vm165, 0.0
      %173 = vst.msk [vmem:[%s170 + $0x10] sm:$0x3] %vm168, 0.0
      %vm174 = vcmask 253952
      %175 = vst.msk [vmem:[#allocation2] sm:$0x1] %vm174, 0.0
      %176 = vst.msk [vmem:[#allocation2 + $0x18] sm:$0x1] %vm174, 0.0
      %177 = vst.msk [vmem:[#allocation2 + $0x30] sm:$0x1] %vm174, 0.0
      %178 = vst.msk [vmem:[#allocation2 + $0x48] sm:$0x1] %vm174, 0.0
      %179 = vst.msk [vmem:[#allocation2 + $0x60] sm:$0x1] %vm174, 0.0
      %180 = vst.msk [vmem:[#allocation2 + $0x78] sm:$0x1] %vm174, 0.0
      %181 = vst.msk [vmem:[#allocation2 + $0x90] sm:$0x1] %vm174, 0.0
      %182 = vst.msk [vmem:[#allocation2 + $0xa8] sm:$0x1] %vm174, 0.0
      %183 = vst.msk [vmem:[#allocation2 + $0xc0] sm:$0x1] %vm174, 0.0
      %184 = vst.msk [vmem:[#allocation2 + $0xd8] sm:$0x1] %vm174, 0.0
      %185 = vst.msk [vmem:[#allocation2 + $0xf0] sm:$0x1] %vm174, 0.0
      %186 = vst.msk [vmem:[#allocation2 + $0x108] sm:$0x1] %vm174, 0.0
      %187 = vst.msk [vmem:[#allocation2 + $0x120] sm:$0x1] %vm174, 0.0
      %188 = vst.msk [vmem:[#allocation2 + $0x138] sm:$0x1] %vm174, 0.0
      %189 = vst.msk [vmem:[#allocation2 + $0x150] sm:$0x1] %vm174, 0.0
      %190 = vst.msk [vmem:[#allocation2 + $0x168] sm:$0x1] %vm174, 0.0
      %191 = vst.msk [vmem:[#allocation2 + $0x180] sm:$0x1] %vm174, 0.0
      %192 = vst.msk [vmem:[#allocation2 + $0x198] sm:$0x1] %vm174, 0.0
      %193 = vst.msk [vmem:[#allocation2 + $0x11] sm:$0x1] %vm174, 0.0
      %194 = vst.msk [vmem:[#allocation2 + $0x29] sm:$0x1] %vm174, 0.0
      %195 = vst.msk [vmem:[#allocation2 + $0x41] sm:$0x1] %vm174, 0.0
      %196 = vst.msk [vmem:[#allocation2 + $0x59] sm:$0x1] %vm174, 0.0
      %197 = vst.msk [vmem:[#allocation2 + $0x71] sm:$0x1] %vm174, 0.0
      %198 = vst.msk [vmem:[#allocation2 + $0x89] sm:$0x1] %vm174, 0.0
      %199 = vst.msk [vmem:[#allocation2 + $0xa1] sm:$0x1] %vm174, 0.0
      %200 = vst.msk [vmem:[#allocation2 + $0xb9] sm:$0x1] %vm174, 0.0
      %201 = vst.msk [vmem:[#allocation2 + $0xd1] sm:$0x1] %vm174, 0.0
      %202 = vst.msk [vmem:[#allocation2 + $0xe9] sm:$0x1] %vm174, 0.0
      %203 = vst.msk [vmem:[#allocation2 + $0x101] sm:$0x1] %vm174, 0.0
      %204 = vst.msk [vmem:[#allocation2 + $0x119] sm:$0x1] %vm174, 0.0
      %205 = vst.msk [vmem:[#allocation2 + $0x131] sm:$0x1] %vm174, 0.0
      %206 = vst.msk [vmem:[#allocation2 + $0x149] sm:$0x1] %vm174, 0.0
      %207 = vst.msk [vmem:[#allocation2 + $0x161] sm:$0x1] %vm174, 0.0
      %208 = vst.msk [vmem:[#allocation2 + $0x179] sm:$0x1] %vm174, 0.0
      %209 = vst.msk [vmem:[#allocation2 + $0x191] sm:$0x1] %vm174, 0.0
      %210 = vst.msk [vmem:[#allocation2 + $0x1a9] sm:$0x1] %vm174, 0.0
      %v211 = vld [vmem:[%s154] sm:$0xff]
      %v212 = vld [vmem:[%s154 + $0x8] sm:$0xff]
      %v213 = vld [vmem:[%s154 + $0x10] sm:$0xff]
      %v214 = vld [vmem:[%s154 + $0x18] sm:$0xff]
      %v215 = vld [vmem:[%s154 + $0x20] sm:$0xff]
      %v216 = vld [vmem:[%s154 + $0x28] sm:$0xff]
      %v217 = vld [vmem:[%s154 + $0x30] sm:$0xff]
      %v218 = vld [vmem:[%s154 + $0x38] sm:$0xff]
      %v219 = vld [vmem:[%s154 + $0x40] sm:$0xff]
      %v220 = vld [vmem:[%s154 + $0x48] sm:$0xff]
      %v221 = vld [vmem:[%s154 + $0x50] sm:$0xff]
      %v222 = vld [vmem:[%s154 + $0x58] sm:$0xff]
      %v223 = vld [vmem:[%s154 + $0x60] sm:$0xff]
      %v224 = vld [vmem:[%s154 + $0x68] sm:$0xff]
      %v225 = vld [vmem:[%s154 + $0x70] sm:$0xff]
      %v226 = vld [vmem:[%s154 + $0x78] sm:$0xff]
      %v227 = vld [vmem:[%s154 + $0x80] sm:$0xff]
      %v228 = vld [vmem:[%s154 + $0x88] sm:$0xff]
      %v229 = vld [vmem:[%s154 + $0x90] sm:$0xff]
      %v230 = vld [vmem:[%s154 + $0x98] sm:$0xff]
      %v231 = vld [vmem:[%s154 + $0xa0] sm:$0xff]
      %v232 = vld [vmem:[%s154 + $0xa8] sm:$0xff]
      %v233 = vld [vmem:[%s154 + $0xb0] sm:$0xff]
      %v234 = vld [vmem:[%s154 + $0xb8] sm:$0xff]
      %v235 = vld [vmem:[%s154 + $0xc0] sm:$0xff]
      %v236 = vld [vmem:[%s154 + $0xc8] sm:$0xff]
      %v237 = vld [vmem:[%s154 + $0xd0] sm:$0xff]
      %v238 = vld [vmem:[%s154 + $0xd8] sm:$0xff]
      %v239 = vld [vmem:[%s154 + $0xe0] sm:$0xff]
      %v240 = vld [vmem:[%s154 + $0xe8] sm:$0xff]
      %v241 = vld [vmem:[%s154 + $0xf0] sm:$0xff]
      %v242 = vld [vmem:[%s154 + $0xf8] sm:$0xff]
      %s243 = scalar_lea.vmem [#allocation2], 24
      %244 = vst.msk [vmem:[%s243 + $0x1] sm:$0xff] %vm165, %v211
      %245 = vst.msk [vmem:[%s243 + $0x9] sm:$0xff] %vm165, %v212
      %246 = vst.msk [vmem:[%s243 + $0x19] sm:$0xff] %vm165, %v213
      %247 = vst.msk [vmem:[%s243 + $0x21] sm:$0xff] %vm165, %v214
      %248 = vst.msk [vmem:[%s243 + $0x31] sm:$0xff] %vm165, %v215
      %249 = vst.msk [vmem:[%s243 + $0x39] sm:$0xff] %vm165, %v216
      %250 = vst.msk [vmem:[%s243 + $0x49] sm:$0xff] %vm165, %v217
      %251 = vst.msk [vmem:[%s243 + $0x51] sm:$0xff] %vm165, %v218
      %252 = vst.msk [vmem:[%s243 + $0x61] sm:$0xff] %vm165, %v219
      %253 = vst.msk [vmem:[%s243 + $0x69] sm:$0xff] %vm165, %v220
      %254 = vst.msk [vmem:[%s243 + $0x79] sm:$0xff] %vm165, %v221
      %255 = vst.msk [vmem:[%s243 + $0x81] sm:$0xff] %vm165, %v222
      %256 = vst.msk [vmem:[%s243 + $0x91] sm:$0xff] %vm165, %v223
      %257 = vst.msk [vmem:[%s243 + $0x99] sm:$0xff] %vm165, %v224
      %258 = vst.msk [vmem:[%s243 + $0xa9] sm:$0xff] %vm165, %v225
      %259 = vst.msk [vmem:[%s243 + $0xb1] sm:$0xff] %vm165, %v226
      %260 = vst.msk [vmem:[%s243 + $0xc1] sm:$0xff] %vm165, %v227
      %261 = vst.msk [vmem:[%s243 + $0xc9] sm:$0xff] %vm165, %v228
      %262 = vst.msk [vmem:[%s243 + $0xd9] sm:$0xff] %vm165, %v229
      %263 = vst.msk [vmem:[%s243 + $0xe1] sm:$0xff] %vm165, %v230
      %264 = vst.msk [vmem:[%s243 + $0xf1] sm:$0xff] %vm165, %v231
      %265 = vst.msk [vmem:[%s243 + $0xf9] sm:$0xff] %vm165, %v232
      %266 = vst.msk [vmem:[%s243 + $0x109] sm:$0xff] %vm165, %v233
      %267 = vst.msk [vmem:[%s243 + $0x111] sm:$0xff] %vm165, %v234
      %268 = vst.msk [vmem:[%s243 + $0x121] sm:$0xff] %vm165, %v235
      %269 = vst.msk [vmem:[%s243 + $0x129] sm:$0xff] %vm165, %v236
      %270 = vst.msk [vmem:[%s243 + $0x139] sm:$0xff] %vm165, %v237
      %271 = vst.msk [vmem:[%s243 + $0x141] sm:$0xff] %vm165, %v238
      %272 = vst.msk [vmem:[%s243 + $0x151] sm:$0xff] %vm165, %v239
      %273 = vst.msk [vmem:[%s243 + $0x159] sm:$0xff] %vm165, %v240
      %274 = vst.msk [vmem:[%s243 + $0x169] sm:$0xff] %vm165, %v241
      %275 = vst.msk [vmem:[%s243 + $0x171] sm:$0xff] %vm165, %v242
      %v276 = vld [vmem:[#allocation2] sm:$0xff]
      %v277 = vld [vmem:[#allocation2 + $0x8] sm:$0xff]
      %v278 = vld [vmem:[#allocation2 + $0x18] sm:$0xff]
      %v279 = vld [vmem:[#allocation2 + $0x20] sm:$0xff]
      %v280 = vld [vmem:[#allocation2 + $0x30] sm:$0xff]
      %v281 = vld [vmem:[#allocation2 + $0x38] sm:$0xff]
      %v282 = vld [vmem:[#allocation2 + $0x48] sm:$0xff]
      %v283 = vld [vmem:[#allocation2 + $0x50] sm:$0xff]
      %v284 = vld [vmem:[#allocation2 + $0x60] sm:$0xff]
      %v285 = vld [vmem:[#allocation2 + $0x68] sm:$0xff]
      %v286 = vld [vmem:[#allocation2 + $0x78] sm:$0xff]
      %v287 = vld [vmem:[#allocation2 + $0x80] sm:$0xff]
      %v288 = vld [vmem:[#allocation2 + $0x90] sm:$0xff]
      %v289 = vld [vmem:[#allocation2 + $0x98] sm:$0xff]
      %v290 = vld [vmem:[#allocation2 + $0xa8] sm:$0xff]
      %v291 = vld [vmem:[#allocation2 + $0xb0] sm:$0xff]
      %v292 = vld [vmem:[#allocation2 + $0xc0] sm:$0xff]
      %v293 = vld [vmem:[#allocation2 + $0xc8] sm:$0xff]
      %v294 = vld [vmem:[#allocation2 + $0xd8] sm:$0xff]
      %v295 = vld [vmem:[#allocation2 + $0xe0] sm:$0xff]
      %v296 = vld [vmem:[#allocation2 + $0xf0] sm:$0xff]
      %v297 = vld [vmem:[#allocation2 + $0xf8] sm:$0xff]
      %v298 = vld [vmem:[#allocation2 + $0x108] sm:$0xff]
      %v299 = vld [vmem:[#allocation2 + $0x110] sm:$0xff]
      %v300 = vld [vmem:[#allocation2 + $0x120] sm:$0xff]
      %v301 = vld [vmem:[#allocation2 + $0x128] sm:$0xff]
      %v302 = vld [vmem:[#allocation2 + $0x138] sm:$0xff]
      %v303 = vld [vmem:[#allocation2 + $0x140] sm:$0xff]
      %v304 = vld [vmem:[#allocation2 + $0x150] sm:$0xff]
      %v305 = vld [vmem:[#allocation2 + $0x158] sm:$0xff]
      %v306 = vld [vmem:[#allocation2 + $0x168] sm:$0xff]
      %v307 = vld [vmem:[#allocation2 + $0x170] sm:$0xff]
      %v308 = vld [vmem:[%s2] sm:$0xff]
      %v309 = vld [vmem:[%s2 + $0x8] sm:$0xff]
      %v310 = vld [vmem:[%s2 + $0x10] sm:$0xff]
      %v311 = vld [vmem:[%s2 + $0x18] sm:$0xff]
      %v312 = vld [vmem:[#allocation2 + $0x1] sm:$0xff]
      %v313 = vld [vmem:[#allocation2 + $0x9] sm:$0xff]
      %v314 = vld [vmem:[#allocation2 + $0x19] sm:$0xff]
      %v315 = vld [vmem:[#allocation2 + $0x21] sm:$0xff]
      %v316 = vld [vmem:[#allocation2 + $0x31] sm:$0xff]
      %v317 = vld [vmem:[#allocation2 + $0x39] sm:$0xff]
      %v318 = vld [vmem:[#allocation2 + $0x49] sm:$0xff]
      %v319 = vld [vmem:[#allocation2 + $0x51] sm:$0xff]
      %v320 = vld [vmem:[#allocation2 + $0x61] sm:$0xff]
      %v321 = vld [vmem:[#allocation2 + $0x69] sm:$0xff]
      %v322 = vld [vmem:[#allocation2 + $0x79] sm:$0xff]
      %v323 = vld [vmem:[#allocation2 + $0x81] sm:$0xff]
      %v324 = vld [vmem:[#allocation2 + $0x91] sm:$0xff]
      %v325 = vld [vmem:[#allocation2 + $0x99] sm:$0xff]
      %v326 = vld [vmem:[#allocation2 + $0xa9] sm:$0xff]
      %v327 = vld [vmem:[#allocation2 + $0xb1] sm:$0xff]
      %v328 = vld [vmem:[#allocation2 + $0xc1] sm:$0xff]
      %v329 = vld [vmem:[#allocation2 + $0xc9] sm:$0xff]
      %v330 = vld [vmem:[#allocation2 + $0xd9] sm:$0xff]
      %v331 = vld [vmem:[#allocation2 + $0xe1] sm:$0xff]
      %v332 = vld [vmem:[#allocation2 + $0xf1] sm:$0xff]
      %v333 = vld [vmem:[#allocation2 + $0xf9] sm:$0xff]
      %v334 = vld [vmem:[#allocation2 + $0x109] sm:$0xff]
      %v335 = vld [vmem:[#allocation2 + $0x111] sm:$0xff]
      %v336 = vld [vmem:[#allocation2 + $0x121] sm:$0xff]
      %v337 = vld [vmem:[#allocation2 + $0x129] sm:$0xff]
      %v338 = vld [vmem:[#allocation2 + $0x139] sm:$0xff]
      %v339 = vld [vmem:[#allocation2 + $0x141] sm:$0xff]
      %v340 = vld [vmem:[#allocation2 + $0x151] sm:$0xff]
      %v341 = vld [vmem:[#allocation2 + $0x159] sm:$0xff]
      %v342 = vld [vmem:[#allocation2 + $0x169] sm:$0xff]
      %v343 = vld [vmem:[#allocation2 + $0x171] sm:$0xff]
      %s344 = scalar_lea.vmem %s2, 32
      %v345 = vld [vmem:[%s344] sm:$0xff]
      %v346 = vld [vmem:[%s344 + $0x8] sm:$0xff]
      %v347 = vld [vmem:[%s344 + $0x10] sm:$0xff]
      %v348 = vld [vmem:[%s344 + $0x18] sm:$0xff]
      %v350 = vsel %vm165, %v312, 0
      %v353 = vsel %vm165, %v313, 0
      %v356 = vsel %vm165, %v314, 0
      %v359 = vsel %vm165, %v315, 0
      %v362 = vsel %vm165, %v316, 0
      %v365 = vsel %vm165, %v317, 0
      %v368 = vsel %vm165, %v318, 0
      %v371 = vsel %vm165, %v319, 0
      %v374 = vsel %vm165, %v320, 0
      %v377 = vsel %vm165, %v321, 0
      %v380 = vsel %vm165, %v322, 0
      %v383 = vsel %vm165, %v323, 0
      %v386 = vsel %vm165, %v324, 0
      %v389 = vsel %vm165, %v325, 0
      %v392 = vsel %vm165, %v326, 0
      %v395 = vsel %vm165, %v327, 0
      %v398 = vsel %vm165, %v328, 0
      %v401 = vsel %vm165, %v329, 0
      %v404 = vsel %vm165, %v330, 0
      %v407 = vsel %vm165, %v331, 0
      %v410 = vsel %vm165, %v332, 0
      %v413 = vsel %vm165, %v333, 0
      %v416 = vsel %vm165, %v334, 0
      %v419 = vsel %vm165, %v335, 0
      %v422 = vsel %vm165, %v336, 0
      %v425 = vsel %vm165, %v337, 0
      %v428 = vsel %vm165, %v338, 0
      %v431 = vsel %vm165, %v339, 0
      %v434 = vsel %vm165, %v340, 0
      %v437 = vsel %vm165, %v341, 0
      %v440 = vsel %vm165, %v342, 0
      %v443 = vsel %vm165, %v343, 0
      %445 = vmatprep.subr.mxu0 0.0
      %446 = vmatpush1.msra.mxu0 %v345
      %447 = vmatprep.subr.mxu0 0.0
      %448 = vmatpush1.msra.mxu0 %v346
      %449 = vmatprep.subr.mxu0 0.0
      %450 = vmatpush1.msra.mxu0 %v347
      %451 = vmatprep.subr.mxu0 0.0
      %452 = vmatpush1.msra.mxu0 %v348
      %453 = vmatprep.subr.mxu0 0.0
      %454 = vmatpush1.msra.mxu0 0.0
      %455 = vmatprep.subr.mxu0 0.0
      %456 = vmatpush1.msra.mxu0 0.0
      %457 = vmatprep.subr.mxu0 0.0
      %458 = vmatpush1.msra.mxu0 0.0
      %459 = vmatprep.subr.mxu0 0.0
      %460 = vmatpush1.msra.mxu0 0.0
      %461 = vmatprep.subr.mxu0 0.0
      %462 = vmatpush1.msra.mxu0 0.0
      %463 = vmatprep.subr.mxu0 0.0
      %464 = vmatpush1.msra.mxu0 0.0
      %465 = vmatprep.subr.mxu0 0.0
      %466 = vmatpush1.msra.mxu0 0.0
      %467 = vmatprep.subr.mxu0 0.0
      %468 = vmatpush1.msra.mxu0 0.0
      %469 = vmatprep.subr.mxu0 0.0
      %470 = vmatpush1.msra.mxu0 0.0
      %471 = vmatprep.subr.mxu0 0.0
      %472 = vmatpush1.msra.mxu0 0.0
      %473 = vmatprep.subr.mxu0 0.0
      %474 = vmatpush1.msra.mxu0 0.0
      %475 = vmatprep.subr.mxu0 0.0
      %476 = vmatpush1.msra.mxu0 0.0
      %477 = vmatprep.subr.mxu0 0.0
      %478 = vmatpush1.msra.mxu0 0.0
      %479 = vmatprep.subr.mxu0 0.0
      %480 = vmatpush1.msra.mxu0 0.0
      %481 = vmatprep.subr.mxu0 0.0
      %482 = vmatpush1.msra.mxu0 0.0
      %483 = vmatprep.subr.mxu0 0.0
      %484 = vmatpush1.msra.mxu0 0.0
      %485 = vmatprep.subr.mxu0 0.0
      %486 = vmatpush1.msra.mxu0 0.0
      %487 = vmatprep.subr.mxu0 0.0
      %488 = vmatpush1.msra.mxu0 0.0
      %489 = vmatprep.subr.mxu0 0.0
      %490 = vmatpush1.msra.mxu0 0.0
      %491 = vmatprep.subr.mxu0 0.0
      %492 = vmatpush1.msra.mxu0 0.0
      %493 = vmatprep.subr.mxu0 0.0
      %494 = vmatpush1.msra.mxu0 0.0
      %495 = vmatprep.subr.mxu0 0.0
      %496 = vmatpush1.msra.mxu0 0.0
      %497 = vmatprep.subr.mxu0 0.0
      %498 = vmatpush1.msra.mxu0 0.0
      %499 = vmatprep.subr.mxu0 0.0
      %500 = vmatpush1.msra.mxu0 0.0
      %501 = vmatprep.subr.mxu0 0.0
      %502 = vmatpush1.msra.mxu0 0.0
      %503 = vmatprep.subr.mxu0 0.0
      %504 = vmatpush1.msra.mxu0 0.0
      %505 = vmatprep.subr.mxu0 0.0
      %506 = vmatpush1.msra.mxu0 0.0
      %507 = vmatprep.subr.mxu0 0.0
      %508 = vmatpush1.msra.mxu0 0.0
      %509 = vmatprep.mubr.f32.mxu0 0.0
      %510 = vmatmul.mubr.f32.gmra.mrb[0].mxu0 %v350
      %v511 = vpop.f32.mrb[0].mxu0
      %v512 = vadd.f32 0.0, %v511
      %v513 = vpop.f32.mrb[0].mxu0
      %514 = vmatprep.mubr.f32.mxu0 0.0
      %515 = vmatmul.mubr.f32.gmra.mrb[0].mxu0 %v353
      %v516 = vpop.f32.mrb[0].mxu0
      %v517 = vadd.f32 0.0, %v516
      %v518 = vpop.f32.mrb[0].mxu0
      %519 = vmatprep.mubr.f32.mxu0 0.0
      %520 = vmatmul.mubr.f32.gmra.mrb[0].mxu0 %v356
      %v521 = vpop.f32.mrb[0].mxu0
      %v522 = vadd.f32 0.0, %v521
      %v523 = vpop.f32.mrb[0].mxu0
      %524 = vmatprep.mubr.f32.mxu0 0.0
      %525 = vmatmul.mubr.f32.gmra.mrb[0].mxu0 %v359
      %v526 = vpop.f32.mrb[0].mxu0
      %v527 = vadd.f32 0.0, %v526
      %v528 = vpop.f32.mrb[0].mxu0
      %529 = vmatprep.mubr.f32.mxu0 0.0
      %530 = vmatmul.mubr.f32.gmra.mrb[0].mxu0 %v362
      %v531 = vpop.f32.mrb[0].mxu0
      %v532 = vadd.f32 0.0, %v531
      %v533 = vpop.f32.mrb[0].mxu0
      %534 = vmatprep.mubr.f32.mxu0 0.0
      %535 = vmatmul.mubr.f32.gmra.mrb[0].mxu0 %v365
      %v536 = vpop.f32.mrb[0].mxu0
      %v537 = vadd.f32 0.0, %v536
      %v538 = vpop.f32.mrb[0].mxu0
      %539 = vmatprep.mubr.f32.mxu0 0.0
      %540 = vmatmul.mubr.f32.gmra.mrb[0].mxu0 %v368
      %v541 = vpop.f32.mrb[0].mxu0
      %v542 = vadd.f32 0.0, %v541
      %v543 = vpop.f32.mrb[0].mxu0
      %544 = vmatprep.mubr.f32.mxu0 0.0
      %545 = vmatmul.mubr.f32.gmra.mrb[0].mxu0 %v371
      %v546 = vpop.f32.mrb[0].mxu0
      %v547 = vadd.f32 0.0, %v546
      %v548 = vpop.f32.mrb[0].mxu0
      %549 = vmatprep.mubr.f32.mxu0 0.0
      %550 = vmatmul.mubr.f32.gmra.mrb[0].mxu0 %v374
      %v551 = vpop.f32.mrb[0].mxu0
      %v552 = vadd.f32 0.0, %v551
      %v553 = vpop.f32.mrb[0].mxu0
      %554 = vmatprep.mubr.f32.mxu0 0.0
      %555 = vmatmul.mubr.f32.gmra.mrb[0].mxu0 %v377
      %v556 = vpop.f32.mrb[0].mxu0
      %v557 = vadd.f32 0.0, %v556
      %v558 = vpop.f32.mrb[0].mxu0
      %559 = vmatprep.mubr.f32.mxu0 0.0
      %560 = vmatmul.mubr.f32.gmra.mrb[0].mxu0 %v380
      %v561 = vpop.f32.mrb[0].mxu0
      %v562 = vadd.f32 0.0, %v561
      %v563 = vpop.f32.mrb[0].mxu0
      %564 = vmatprep.mubr.f32.mxu0 0.0
      %565 = vmatmul.mubr.f32.gmra.mrb[0].mxu0 %v383
      %v566 = vpop.f32.mrb[0].mxu0
      %v567 = vadd.f32 0.0, %v566
      %v568 = vpop.f32.mrb[0].mxu0
      %569 = vmatprep.mubr.f32.mxu0 0.0
      %570 = vmatmul.mubr.f32.gmra.mrb[0].mxu0 %v386
      %v571 = vpop.f32.mrb[0].mxu0
      %v572 = vadd.f32 0.0, %v571
      %v573 = vpop.f32.mrb[0].mxu0
      %574 = vmatprep.mubr.f32.mxu0 0.0
      %575 = vmatmul.mubr.f32.gmra.mrb[0].mxu0 %v389
      %v576 = vpop.f32.mrb[0].mxu0
      %v577 = vadd.f32 0.0, %v576
      %v578 = vpop.f32.mrb[0].mxu0
      %579 = vmatprep.mubr.f32.mxu0 0.0
      %580 = vmatmul.mubr.f32.gmra.mrb[0].mxu0 %v392
      %v581 = vpop.f32.mrb[0].mxu0
      %v582 = vadd.f32 0.0, %v581
      %v583 = vpop.f32.mrb[0].mxu0
      %584 = vmatprep.mubr.f32.mxu0 0.0
      %585 = vmatmul.mubr.f32.gmra.mrb[0].mxu0 %v395
      %v586 = vpop.f32.mrb[0].mxu0
      %v587 = vadd.f32 0.0, %v586
      %v588 = vpop.f32.mrb[0].mxu0
      %589 = vmatprep.mubr.f32.mxu0 0.0
      %590 = vmatmul.mubr.f32.gmra.mrb[0].mxu0 %v398
      %v591 = vpop.f32.mrb[0].mxu0
      %v592 = vadd.f32 0.0, %v591
      %v593 = vpop.f32.mrb[0].mxu0
      %594 = vmatprep.mubr.f32.mxu0 0.0
      %595 = vmatmul.mubr.f32.gmra.mrb[0].mxu0 %v401
      %v596 = vpop.f32.mrb[0].mxu0
      %v597 = vadd.f32 0.0, %v596
      %v598 = vpop.f32.mrb[0].mxu0
      %599 = vmatprep.mubr.f32.mxu0 0.0
      %600 = vmatmul.mubr.f32.gmra.mrb[0].mxu0 %v404
      %v601 = vpop.f32.mrb[0].mxu0
      %v602 = vadd.f32 0.0, %v601
      %v603 = vpop.f32.mrb[0].mxu0
      %604 = vmatprep.mubr.f32.mxu0 0.0
      %605 = vmatmul.mubr.f32.gmra.mrb[0].mxu0 %v407
      %v606 = vpop.f32.mrb[0].mxu0
      %v607 = vadd.f32 0.0, %v606
      %v608 = vpop.f32.mrb[0].mxu0
      %609 = vmatprep.mubr.f32.mxu0 0.0
      %610 = vmatmul.mubr.f32.gmra.mrb[0].mxu0 %v410
      %v611 = vpop.f32.mrb[0].mxu0
      %v612 = vadd.f32 0.0, %v611
      %v613 = vpop.f32.mrb[0].mxu0
      %614 = vmatprep.mubr.f32.mxu0 0.0
      %615 = vmatmul.mubr.f32.gmra.mrb[0].mxu0 %v413
      %v616 = vpop.f32.mrb[0].mxu0
      %v617 = vadd.f32 0.0, %v616
      %v618 = vpop.f32.mrb[0].mxu0
      %619 = vmatprep.mubr.f32.mxu0 0.0
      %620 = vmatmul.mubr.f32.gmra.mrb[0].mxu0 %v416
      %v621 = vpop.f32.mrb[0].mxu0
      %v622 = vadd.f32 0.0, %v621
      %v623 = vpop.f32.mrb[0].mxu0
      %624 = vmatprep.mubr.f32.mxu0 0.0
      %625 = vmatmul.mubr.f32.gmra.mrb[0].mxu0 %v419
      %v626 = vpop.f32.mrb[0].mxu0
      %v627 = vadd.f32 0.0, %v626
      %v628 = vpop.f32.mrb[0].mxu0
      %629 = vmatprep.mubr.f32.mxu0 0.0
      %630 = vmatmul.mubr.f32.gmra.mrb[0].mxu0 %v422
      %v631 = vpop.f32.mrb[0].mxu0
      %v632 = vadd.f32 0.0, %v631
      %v633 = vpop.f32.mrb[0].mxu0
      %634 = vmatprep.mubr.f32.mxu0 0.0
      %635 = vmatmul.mubr.f32.gmra.mrb[0].mxu0 %v425
      %v636 = vpop.f32.mrb[0].mxu0
      %v637 = vadd.f32 0.0, %v636
      %v638 = vpop.f32.mrb[0].mxu0
      %639 = vmatprep.mubr.f32.mxu0 0.0
      %640 = vmatmul.mubr.f32.gmra.mrb[0].mxu0 %v428
      %v641 = vpop.f32.mrb[0].mxu0
      %v642 = vadd.f32 0.0, %v641
      %v643 = vpop.f32.mrb[0].mxu0
      %644 = vmatprep.mubr.f32.mxu0 0.0
      %645 = vmatmul.mubr.f32.gmra.mrb[0].mxu0 %v431
      %v646 = vpop.f32.mrb[0].mxu0
      %v647 = vadd.f32 0.0, %v646
      %v648 = vpop.f32.mrb[0].mxu0
      %649 = vmatprep.mubr.f32.mxu0 0.0
      %650 = vmatmul.mubr.f32.gmra.mrb[0].mxu0 %v434
      %v651 = vpop.f32.mrb[0].mxu0
      %v652 = vadd.f32 0.0, %v651
      %v653 = vpop.f32.mrb[0].mxu0
      %654 = vmatprep.mubr.f32.mxu0 0.0
      %655 = vmatmul.mubr.f32.gmra.mrb[0].mxu0 %v437
      %v656 = vpop.f32.mrb[0].mxu0
      %v657 = vadd.f32 0.0, %v656
      %v658 = vpop.f32.mrb[0].mxu0
      %659 = vmatprep.mubr.f32.mxu0 0.0
      %660 = vmatmul.mubr.f32.gmra.mrb[0].mxu0 %v440
      %v661 = vpop.f32.mrb[0].mxu0
      %v662 = vadd.f32 0.0, %v661
      %v663 = vpop.f32.mrb[0].mxu0
      %664 = vmatprep.mubr.f32.mxu0 0.0
      %665 = vmatmul.mubr.f32.gmra.mrb[0].mxu0 %v443
      %v666 = vpop.f32.mrb[0].mxu0
      %v667 = vadd.f32 0.0, %v666
      %v668 = vpop.f32.mrb[0].mxu0
      %669 = vdwg.mxu0
      %v671 = vsel %vm165, %v276, 0
      %v674 = vsel %vm165, %v277, 0
      %v677 = vsel %vm165, %v278, 0
      %v680 = vsel %vm165, %v279, 0
      %v683 = vsel %vm165, %v280, 0
      %v686 = vsel %vm165, %v281, 0
      %v689 = vsel %vm165, %v282, 0
      %v692 = vsel %vm165, %v283, 0
      %v695 = vsel %vm165, %v284, 0
      %v698 = vsel %vm165, %v285, 0
      %v701 = vsel %vm165, %v286, 0
      %v704 = vsel %vm165, %v287, 0
      %v707 = vsel %vm165, %v288, 0
      %v710 = vsel %vm165, %v289, 0
      %v713 = vsel %vm165, %v290, 0
      %v716 = vsel %vm165, %v291, 0
      %v719 = vsel %vm165, %v292, 0
      %v722 = vsel %vm165, %v293, 0
      %v725 = vsel %vm165, %v294, 0
      %v728 = vsel %vm165, %v295, 0
      %v731 = vsel %vm165, %v296, 0
      %v734 = vsel %vm165, %v297, 0
      %v737 = vsel %vm165, %v298, 0
      %v740 = vsel %vm165, %v299, 0
      %v743 = vsel %vm165, %v300, 0
      %v746 = vsel %vm165, %v301, 0
      %v749 = vsel %vm165, %v302, 0
      %v752 = vsel %vm165, %v303, 0
      %v755 = vsel %vm165, %v304, 0
      %v758 = vsel %vm165, %v305, 0
      %v761 = vsel %vm165, %v306, 0
      %v764 = vsel %vm165, %v307, 0
      %766 = vmatprep.subr.mxu0 0.0
      %767 = vmatpush1.msra.mxu0 %v308
      %768 = vmatprep.subr.mxu0 0.0
      %769 = vmatpush1.msra.mxu0 %v309
      %770 = vmatprep.subr.mxu0 0.0
      %771 = vmatpush1.msra.mxu0 %v310
      %772 = vmatprep.subr.mxu0 0.0
      %773 = vmatpush1.msra.mxu0 %v311
      %774 = vmatprep.subr.mxu0 0.0
      %775 = vmatpush1.msra.mxu0 0.0
      %776 = vmatprep.subr.mxu0 0.0
      %777 = vmatpush1.msra.mxu0 0.0
      %778 = vmatprep.subr.mxu0 0.0
      %779 = vmatpush1.msra.mxu0 0.0
      %780 = vmatprep.subr.mxu0 0.0
      %781 = vmatpush1.msra.mxu0 0.0
      %782 = vmatprep.subr.mxu0 0.0
      %783 = vmatpush1.msra.mxu0 0.0
      %784 = vmatprep.subr.mxu0 0.0
      %785 = vmatpush1.msra.mxu0 0.0
      %786 = vmatprep.subr.mxu0 0.0
      %787 = vmatpush1.msra.mxu0 0.0
      %788 = vmatprep.subr.mxu0 0.0
      %789 = vmatpush1.msra.mxu0 0.0
      %790 = vmatprep.subr.mxu0 0.0
      %791 = vmatpush1.msra.mxu0 0.0
      %792 = vmatprep.subr.mxu0 0.0
      %793 = vmatpush1.msra.mxu0 0.0
      %794 = vmatprep.subr.mxu0 0.0
      %795 = vmatpush1.msra.mxu0 0.0
      %796 = vmatprep.subr.mxu0 0.0
      %797 = vmatpush1.msra.mxu0 0.0
      %798 = vmatprep.subr.mxu0 0.0
      %799 = vmatpush1.msra.mxu0 0.0
      %800 = vmatprep.subr.mxu0 0.0
      %801 = vmatpush1.msra.mxu0 0.0
      %802 = vmatprep.subr.mxu0 0.0
      %803 = vmatpush1.msra.mxu0 0.0
      %804 = vmatprep.subr.mxu0 0.0
      %805 = vmatpush1.msra.mxu0 0.0
      %806 = vmatprep.subr.mxu0 0.0
      %807 = vmatpush1.msra.mxu0 0.0
      %808 = vmatprep.subr.mxu0 0.0
      %809 = vmatpush1.msra.mxu0 0.0
      %810 = vmatprep.subr.mxu0 0.0
      %811 = vmatpush1.msra.mxu0 0.0
      %812 = vmatprep.subr.mxu0 0.0
      %813 = vmatpush1.msra.mxu0 0.0
      %814 = vmatprep.subr.mxu0 0.0
      %815 = vmatpush1.msra.mxu0 0.0
      %816 = vmatprep.subr.mxu0 0.0
      %817 = vmatpush1.msra.mxu0 0.0
      %818 = vmatprep.subr.mxu0 0.0
      %819 = vmatpush1.msra.mxu0 0.0
      %820 = vmatprep.subr.mxu0 0.0
      %821 = vmatpush1.msra.mxu0 0.0
      %822 = vmatprep.subr.mxu0 0.0
      %823 = vmatpush1.msra.mxu0 0.0
      %824 = vmatprep.subr.mxu0 0.0
      %825 = vmatpush1.msra.mxu0 0.0
      %826 = vmatprep.subr.mxu0 0.0
      %827 = vmatpush1.msra.mxu0 0.0
      %828 = vmatprep.subr.mxu0 0.0
      %829 = vmatpush1.msra.mxu0 0.0
      %830 = vmatprep.mubr.f32.mxu0 0.0
      %831 = vmatmul.mubr.f32.gmra.mrb[0].mxu0 %v671
      %v832 = vpop.f32.mrb[0].mxu0
      %v833 = vadd.f32 %v512, %v832
      %v834 = vpop.f32.mrb[0].mxu0
      %835 = vmatprep.mubr.f32.mxu0 0.0
      %836 = vmatmul.mubr.f32.gmra.mrb[0].mxu0 %v674
      %v837 = vpop.f32.mrb[0].mxu0
      %v838 = vadd.f32 %v517, %v837
      %v839 = vpop.f32.mrb[0].mxu0
      %840 = vmatprep.mubr.f32.mxu0 0.0
      %841 = vmatmul.mubr.f32.gmra.mrb[0].mxu0 %v677
      %v842 = vpop.f32.mrb[0].mxu0
      %v843 = vadd.f32 %v522, %v842
      %v844 = vpop.f32.mrb[0].mxu0
      %845 = vmatprep.mubr.f32.mxu0 0.0
      %846 = vmatmul.mubr.f32.gmra.mrb[0].mxu0 %v680
      %v847 = vpop.f32.mrb[0].mxu0
      %v848 = vadd.f32 %v527, %v847
      %v849 = vpop.f32.mrb[0].mxu0
      %850 = vmatprep.mubr.f32.mxu0 0.0
      %851 = vmatmul.mubr.f32.gmra.mrb[0].mxu0 %v683
      %v852 = vpop.f32.mrb[0].mxu0
      %v853 = vadd.f32 %v532, %v852
      %v854 = vpop.f32.mrb[0].mxu0
      %855 = vmatprep.mubr.f32.mxu0 0.0
      %856 = vmatmul.mubr.f32.gmra.mrb[0].mxu0 %v686
      %v857 = vpop.f32.mrb[0].mxu0
      %v858 = vadd.f32 %v537, %v857
      %v859 = vpop.f32.mrb[0].mxu0
      %860 = vmatprep.mubr.f32.mxu0 0.0
      %861 = vmatmul.mubr.f32.gmra.mrb[0].mxu0 %v689
      %v862 = vpop.f32.mrb[0].mxu0
      %v863 = vadd.f32 %v542, %v862
      %v864 = vpop.f32.mrb[0].mxu0
      %865 = vmatprep.mubr.f32.mxu0 0.0
      %866 = vmatmul.mubr.f32.gmra.mrb[0].mxu0 %v692
      %v867 = vpop.f32.mrb[0].mxu0
      %v868 = vadd.f32 %v547, %v867
      %v869 = vpop.f32.mrb[0].mxu0
      %870 = vmatprep.mubr.f32.mxu0 0.0
      %871 = vmatmul.mubr.f32.gmra.mrb[0].mxu0 %v695
      %v872 = vpop.f32.mrb[0].mxu0
      %v873 = vadd.f32 %v552, %v872
      %v874 = vpop.f32.mrb[0].mxu0
      %875 = vmatprep.mubr.f32.mxu0 0.0
      %876 = vmatmul.mubr.f32.gmra.mrb[0].mxu0 %v698
      %v877 = vpop.f32.mrb[0].mxu0
      %v878 = vadd.f32 %v557, %v877
      %v879 = vpop.f32.mrb[0].mxu0
      %880 = vmatprep.mubr.f32.mxu0 0.0
      %881 = vmatmul.mubr.f32.gmra.mrb[0].mxu0 %v701
      %v882 = vpop.f32.mrb[0].mxu0
      %v883 = vadd.f32 %v562, %v882
      %v884 = vpop.f32.mrb[0].mxu0
      %885 = vmatprep.mubr.f32.mxu0 0.0
      %886 = vmatmul.mubr.f32.gmra.mrb[0].mxu0 %v704
      %v887 = vpop.f32.mrb[0].mxu0
      %v888 = vadd.f32 %v567, %v887
      %v889 = vpop.f32.mrb[0].mxu0
      %890 = vmatprep.mubr.f32.mxu0 0.0
      %891 = vmatmul.mubr.f32.gmra.mrb[0].mxu0 %v707
      %v892 = vpop.f32.mrb[0].mxu0
      %v893 = vadd.f32 %v572, %v892
      %v894 = vpop.f32.mrb[0].mxu0
      %895 = vmatprep.mubr.f32.mxu0 0.0
      %896 = vmatmul.mubr.f32.gmra.mrb[0].mxu0 %v710
      %v897 = vpop.f32.mrb[0].mxu0
      %v898 = vadd.f32 %v577, %v897
      %v899 = vpop.f32.mrb[0].mxu0
      %900 = vmatprep.mubr.f32.mxu0 0.0
      %901 = vmatmul.mubr.f32.gmra.mrb[0].mxu0 %v713
      %v902 = vpop.f32.mrb[0].mxu0
      %v903 = vadd.f32 %v582, %v902
      %v904 = vpop.f32.mrb[0].mxu0
      %905 = vmatprep.mubr.f32.mxu0 0.0
      %906 = vmatmul.mubr.f32.gmra.mrb[0].mxu0 %v716
      %v907 = vpop.f32.mrb[0].mxu0
      %v908 = vadd.f32 %v587, %v907
      %v909 = vpop.f32.mrb[0].mxu0
      %910 = vmatprep.mubr.f32.mxu0 0.0
      %911 = vmatmul.mubr.f32.gmra.mrb[0].mxu0 %v719
      %v912 = vpop.f32.mrb[0].mxu0
      %v913 = vadd.f32 %v592, %v912
      %v914 = vpop.f32.mrb[0].mxu0
      %915 = vmatprep.mubr.f32.mxu0 0.0
      %916 = vmatmul.mubr.f32.gmra.mrb[0].mxu0 %v722
      %v917 = vpop.f32.mrb[0].mxu0
      %v918 = vadd.f32 %v597, %v917
      %v919 = vpop.f32.mrb[0].mxu0
      %920 = vmatprep.mubr.f32.mxu0 0.0
      %921 = vmatmul.mubr.f32.gmra.mrb[0].mxu0 %v725
      %v922 = vpop.f32.mrb[0].mxu0
      %v923 = vadd.f32 %v602, %v922
      %v924 = vpop.f32.mrb[0].mxu0
      %925 = vmatprep.mubr.f32.mxu0 0.0
      %926 = vmatmul.mubr.f32.gmra.mrb[0].mxu0 %v728
      %v927 = vpop.f32.mrb[0].mxu0
      %v928 = vadd.f32 %v607, %v927
      %v929 = vpop.f32.mrb[0].mxu0
      %930 = vmatprep.mubr.f32.mxu0 0.0
      %931 = vmatmul.mubr.f32.gmra.mrb[0].mxu0 %v731
      %v932 = vpop.f32.mrb[0].mxu0
      %v933 = vadd.f32 %v612, %v932
      %v934 = vpop.f32.mrb[0].mxu0
      %935 = vmatprep.mubr.f32.mxu0 0.0
      %936 = vmatmul.mubr.f32.gmra.mrb[0].mxu0 %v734
      %v937 = vpop.f32.mrb[0].mxu0
      %v938 = vadd.f32 %v617, %v937
      %v939 = vpop.f32.mrb[0].mxu0
      %940 = vmatprep.mubr.f32.mxu0 0.0
      %941 = vmatmul.mubr.f32.gmra.mrb[0].mxu0 %v737
      %v942 = vpop.f32.mrb[0].mxu0
      %v943 = vadd.f32 %v622, %v942
      %v944 = vpop.f32.mrb[0].mxu0
      %945 = vmatprep.mubr.f32.mxu0 0.0
      %946 = vmatmul.mubr.f32.gmra.mrb[0].mxu0 %v740
      %v947 = vpop.f32.mrb[0].mxu0
      %v948 = vadd.f32 %v627, %v947
      %v949 = vpop.f32.mrb[0].mxu0
      %950 = vmatprep.mubr.f32.mxu0 0.0
      %951 = vmatmul.mubr.f32.gmra.mrb[0].mxu0 %v743
      %v952 = vpop.f32.mrb[0].mxu0
      %v953 = vadd.f32 %v632, %v952
      %v954 = vpop.f32.mrb[0].mxu0
      %955 = vmatprep.mubr.f32.mxu0 0.0
      %956 = vmatmul.mubr.f32.gmra.mrb[0].mxu0 %v746
      %v957 = vpop.f32.mrb[0].mxu0
      %v958 = vadd.f32 %v637, %v957
      %v959 = vpop.f32.mrb[0].mxu0
      %960 = vmatprep.mubr.f32.mxu0 0.0
      %961 = vmatmul.mubr.f32.gmra.mrb[0].mxu0 %v749
      %v962 = vpop.f32.mrb[0].mxu0
      %v963 = vadd.f32 %v642, %v962
      %v964 = vpop.f32.mrb[0].mxu0
      %965 = vmatprep.mubr.f32.mxu0 0.0
      %966 = vmatmul.mubr.f32.gmra.mrb[0].mxu0 %v752
      %v967 = vpop.f32.mrb[0].mxu0
      %v968 = vadd.f32 %v647, %v967
      %v969 = vpop.f32.mrb[0].mxu0
      %970 = vmatprep.mubr.f32.mxu0 0.0
      %971 = vmatmul.mubr.f32.gmra.mrb[0].mxu0 %v755
      %v972 = vpop.f32.mrb[0].mxu0
      %v973 = vadd.f32 %v652, %v972
      %v974 = vpop.f32.mrb[0].mxu0
      %975 = vmatprep.mubr.f32.mxu0 0.0
      %976 = vmatmul.mubr.f32.gmra.mrb[0].mxu0 %v758
      %v977 = vpop.f32.mrb[0].mxu0
      %v978 = vadd.f32 %v657, %v977
      %v979 = vpop.f32.mrb[0].mxu0
      %980 = vmatprep.mubr.f32.mxu0 0.0
      %981 = vmatmul.mubr.f32.gmra.mrb[0].mxu0 %v761
      %v982 = vpop.f32.mrb[0].mxu0
      %v983 = vadd.f32 %v662, %v982
      %v984 = vpop.f32.mrb[0].mxu0
      %985 = vmatprep.mubr.f32.mxu0 0.0
      %986 = vmatmul.mubr.f32.gmra.mrb[0].mxu0 %v764
      %v987 = vpop.f32.mrb[0].mxu0
      %v988 = vadd.f32 %v667, %v987
      %v989 = vpop.f32.mrb[0].mxu0
      %990 = vdwg.mxu0
      %v991 = vld [vmem:[#allocation2 + $0x2] sm:$0xff]
      %v992 = vld [vmem:[#allocation2 + $0xa] sm:$0xff]
      %v993 = vld [vmem:[#allocation2 + $0x1a] sm:$0xff]
      %v994 = vld [vmem:[#allocation2 + $0x22] sm:$0xff]
      %v995 = vld [vmem:[#allocation2 + $0x32] sm:$0xff]
      %v996 = vld [vmem:[#allocation2 + $0x3a] sm:$0xff]
      %v997 = vld [vmem:[#allocation2 + $0x4a] sm:$0xff]
      %v998 = vld [vmem:[#allocation2 + $0x52] sm:$0xff]
      %v999 = vld [vmem:[#allocation2 + $0x62] sm:$0xff]
      %v1000 = vld [vmem:[#allocation2 + $0x6a] sm:$0xff]
      %v1001 = vld [vmem:[#allocation2 + $0x7a] sm:$0xff]
      %v1002 = vld [vmem:[#allocation2 + $0x82] sm:$0xff]
      %v1003 = vld [vmem:[#allocation2 + $0x92] sm:$0xff]
      %v1004 = vld [vmem:[#allocation2 + $0x9a] sm:$0xff]
      %v1005 = vld [vmem:[#allocation2 + $0xaa] sm:$0xff]
      %v1006 = vld [vmem:[#allocation2 + $0xb2] sm:$0xff]
      %v1007 = vld [vmem:[#allocation2 + $0xc2] sm:$0xff]
      %v1008 = vld [vmem:[#allocation2 + $0xca] sm:$0xff]
      %v1009 = vld [vmem:[#allocation2 + $0xda] sm:$0xff]
      %v1010 = vld [vmem:[#allocation2 + $0xe2] sm:$0xff]
      %v1011 = vld [vmem:[#allocation2 + $0xf2] sm:$0xff]
      %v1012 = vld [vmem:[#allocation2 + $0xfa] sm:$0xff]
      %v1013 = vld [vmem:[#allocation2 + $0x10a] sm:$0xff]
      %v1014 = vld [vmem:[#allocation2 + $0x112] sm:$0xff]
      %v1015 = vld [vmem:[#allocation2 + $0x122] sm:$0xff]
      %v1016 = vld [vmem:[#allocation2 + $0x12a] sm:$0xff]
      %v1017 = vld [vmem:[#allocation2 + $0x13a] sm:$0xff]
      %v1018 = vld [vmem:[#allocation2 + $0x142] sm:$0xff]
      %v1019 = vld [vmem:[#allocation2 + $0x152] sm:$0xff]
      %v1020 = vld [vmem:[#allocation2 + $0x15a] sm:$0xff]
      %v1021 = vld [vmem:[#allocation2 + $0x16a] sm:$0xff]
      %v1022 = vld [vmem:[#allocation2 + $0x172] sm:$0xff]
      %s1023 = scalar_lea.vmem %s2, 64
      %v1024 = vld [vmem:[%s1023] sm:$0xff]
      %v1025 = vld [vmem:[%s1023 + $0x8] sm:$0xff]
      %v1026 = vld [vmem:[%s1023 + $0x10] sm:$0xff]
      %v1027 = vld [vmem:[%s1023 + $0x18] sm:$0xff]
      %v1029 = vsel %vm165, %v991, 0
      %v1032 = vsel %vm165, %v992, 0
      %v1035 = vsel %vm165, %v993, 0
      %v1038 = vsel %vm165, %v994, 0
      %v1041 = vsel %vm165, %v995, 0
      %v1044 = vsel %vm165, %v996, 0
      %v1047 = vsel %vm165, %v997, 0
      %v1050 = vsel %vm165, %v998, 0
      %v1053 = vsel %vm165, %v999, 0
      %v1056 = vsel %vm165, %v1000, 0
      %v1059 = vsel %vm165, %v1001, 0
      %v1062 = vsel %vm165, %v1002, 0
      %v1065 = vsel %vm165, %v1003, 0
      %v1068 = vsel %vm165, %v1004, 0
      %v1071 = vsel %vm165, %v1005, 0
      %v1074 = vsel %vm165, %v1006, 0
      %v1077 = vsel %vm165, %v1007, 0
      %v1080 = vsel %vm165, %v1008, 0
      %v1083 = vsel %vm165, %v1009, 0
      %v1086 = vsel %vm165, %v1010, 0
      %v1089 = vsel %vm165, %v1011, 0
      %v1092 = vsel %vm165, %v1012, 0
      %v1095 = vsel %vm165, %v1013, 0
      %v1098 = vsel %vm165, %v1014, 0
      %v1101 = vsel %vm165, %v1015, 0
      %v1104 = vsel %vm165, %v1016, 0
      %v1107 = vsel %vm165, %v1017, 0
      %v1110 = vsel %vm165, %v1018, 0
      %v1113 = vsel %vm165, %v1019, 0
      %v1116 = vsel %vm165, %v1020, 0
      %v1119 = vsel %vm165, %v1021, 0
      %v1122 = vsel %vm165, %v1022, 0
      %1124 = vmatprep.subr.mxu0 0.0
      %1125 = vmatpush1.msra.mxu0 %v1024
      %1126 = vmatprep.subr.mxu0 0.0
      %1127 = vmatpush1.msra.mxu0 %v1025
      %1128 = vmatprep.subr.mxu0 0.0
      %1129 = vmatpush1.msra.mxu0 %v1026
      %1130 = vmatprep.subr.mxu0 0.0
      %1131 = vmatpush1.msra.mxu0 %v1027
      %1132 = vmatprep.subr.mxu0 0.0
      %1133 = vmatpush1.msra.mxu0 0.0
      %1134 = vmatprep.subr.mxu0 0.0
      %1135 = vmatpush1.msra.mxu0 0.0
      %1136 = vmatprep.subr.mxu0 0.0
      %1137 = vmatpush1.msra.mxu0 0.0
      %1138 = vmatprep.subr.mxu0 0.0
      %1139 = vmatpush1.msra.mxu0 0.0
      %1140 = vmatprep.subr.mxu0 0.0
      %1141 = vmatpush1.msra.mxu0 0.0
      %1142 = vmatprep.subr.mxu0 0.0
      %1143 = vmatpush1.msra.mxu0 0.0
      %1144 = vmatprep.subr.mxu0 0.0
      %1145 = vmatpush1.msra.mxu0 0.0
      %1146 = vmatprep.subr.mxu0 0.0
      %1147 = vmatpush1.msra.mxu0 0.0
      %1148 = vmatprep.subr.mxu0 0.0
      %1149 = vmatpush1.msra.mxu0 0.0
      %1150 = vmatprep.subr.mxu0 0.0
      %1151 = vmatpush1.msra.mxu0 0.0
      %1152 = vmatprep.subr.mxu0 0.0
      %1153 = vmatpush1.msra.mxu0 0.0
      %1154 = vmatprep.subr.mxu0 0.0
      %1155 = vmatpush1.msra.mxu0 0.0
      %1156 = vmatprep.subr.mxu0 0.0
      %1157 = vmatpush1.msra.mxu0 0.0
      %1158 = vmatprep.subr.mxu0 0.0
      %1159 = vmatpush1.msra.mxu0 0.0
      %1160 = vmatprep.subr.mxu0 0.0
      %1161 = vmatpush1.msra.mxu0 0.0
      %1162 = vmatprep.subr.mxu0 0.0
      %1163 = vmatpush1.msra.mxu0 0.0
      %1164 = vmatprep.subr.mxu0 0.0
      %1165 = vmatpush1.msra.mxu0 0.0
      %1166 = vmatprep.subr.mxu0 0.0
      %1167 = vmatpush1.msra.mxu0 0.0
      %1168 = vmatprep.subr.mxu0 0.0
      %1169 = vmatpush1.msra.mxu0 0.0
      %1170 = vmatprep.subr.mxu0 0.0
      %1171 = vmatpush1.msra.mxu0 0.0
      %1172 = vmatprep.subr.mxu0 0.0
      %1173 = vmatpush1.msra.mxu0 0.0
      %1174 = vmatprep.subr.mxu0 0.0
      %1175 = vmatpush1.msra.mxu0 0.0
      %1176 = vmatprep.subr.mxu0 0.0
      %1177 = vmatpush1.msra.mxu0 0.0
      %1178 = vmatprep.subr.mxu0 0.0
      %1179 = vmatpush1.msra.mxu0 0.0
      %1180 = vmatprep.subr.mxu0 0.0
      %1181 = vmatpush1.msra.mxu0 0.0
      %1182 = vmatprep.subr.mxu0 0.0
      %1183 = vmatpush1.msra.mxu0 0.0
      %1184 = vmatprep.subr.mxu0 0.0
      %1185 = vmatpush1.msra.mxu0 0.0
      %1186 = vmatprep.subr.mxu0 0.0
      %1187 = vmatpush1.msra.mxu0 0.0
      %1188 = vmatprep.mubr.f32.mxu0 0.0
      %1189 = vmatmul.mubr.f32.gmra.mrb[0].mxu0 %v1029
      %v1190 = vpop.f32.mrb[0].mxu0
      %v1191 = vadd.f32 0.0, %v1190
      %v1192 = vpop.f32.mrb[0].mxu0
      %1193 = vmatprep.mubr.f32.mxu0 0.0
      %1194 = vmatmul.mubr.f32.gmra.mrb[0].mxu0 %v1032
      %v1195 = vpop.f32.mrb[0].mxu0
      %v1196 = vadd.f32 0.0, %v1195
      %v1197 = vpop.f32.mrb[0].mxu0
      %1198 = vmatprep.mubr.f32.mxu0 0.0
      %1199 = vmatmul.mubr.f32.gmra.mrb[0].mxu0 %v1035
      %v1200 = vpop.f32.mrb[0].mxu0
      %v1201 = vadd.f32 0.0, %v1200
      %v1202 = vpop.f32.mrb[0].mxu0
      %1203 = vmatprep.mubr.f32.mxu0 0.0
      %1204 = vmatmul.mubr.f32.gmra.mrb[0].mxu0 %v1038
      %v1205 = vpop.f32.mrb[0].mxu0
      %v1206 = vadd.f32 0.0, %v1205
      %v1207 = vpop.f32.mrb[0].mxu0
      %1208 = vmatprep.mubr.f32.mxu0 0.0
      %1209 = vmatmul.mubr.f32.gmra.mrb[0].mxu0 %v1041
      %v1210 = vpop.f32.mrb[0].mxu0
      %v1211 = vadd.f32 0.0, %v1210
      %v1212 = vpop.f32.mrb[0].mxu0
      %1213 = vmatprep.mubr.f32.mxu0 0.0
      %1214 = vmatmul.mubr.f32.gmra.mrb[0].mxu0 %v1044
      %v1215 = vpop.f32.mrb[0].mxu0
      %v1216 = vadd.f32 0.0, %v1215
      %v1217 = vpop.f32.mrb[0].mxu0
      %1218 = vmatprep.mubr.f32.mxu0 0.0
      %1219 = vmatmul.mubr.f32.gmra.mrb[0].mxu0 %v1047
      %v1220 = vpop.f32.mrb[0].mxu0
      %v1221 = vadd.f32 0.0, %v1220
      %v1222 = vpop.f32.mrb[0].mxu0
      %1223 = vmatprep.mubr.f32.mxu0 0.0
      %1224 = vmatmul.mubr.f32.gmra.mrb[0].mxu0 %v1050
      %v1225 = vpop.f32.mrb[0].mxu0
      %v1226 = vadd.f32 0.0, %v1225
      %v1227 = vpop.f32.mrb[0].mxu0
      %1228 = vmatprep.mubr.f32.mxu0 0.0
      %1229 = vmatmul.mubr.f32.gmra.mrb[0].mxu0 %v1053
      %v1230 = vpop.f32.mrb[0].mxu0
      %v1231 = vadd.f32 0.0, %v1230
      %v1232 = vpop.f32.mrb[0].mxu0
      %1233 = vmatprep.mubr.f32.mxu0 0.0
      %1234 = vmatmul.mubr.f32.gmra.mrb[0].mxu0 %v1056
      %v1235 = vpop.f32.mrb[0].mxu0
      %v1236 = vadd.f32 0.0, %v1235
      %v1237 = vpop.f32.mrb[0].mxu0
      %1238 = vmatprep.mubr.f32.mxu0 0.0
      %1239 = vmatmul.mubr.f32.gmra.mrb[0].mxu0 %v1059
      %v1240 = vpop.f32.mrb[0].mxu0
      %v1241 = vadd.f32 0.0, %v1240
      %v1242 = vpop.f32.mrb[0].mxu0
      %1243 = vmatprep.mubr.f32.mxu0 0.0
      %1244 = vmatmul.mubr.f32.gmra.mrb[0].mxu0 %v1062
      %v1245 = vpop.f32.mrb[0].mxu0
      %v1246 = vadd.f32 0.0, %v1245
      %v1247 = vpop.f32.mrb[0].mxu0
      %1248 = vmatprep.mubr.f32.mxu0 0.0
      %1249 = vmatmul.mubr.f32.gmra.mrb[0].mxu0 %v1065
      %v1250 = vpop.f32.mrb[0].mxu0
      %v1251 = vadd.f32 0.0, %v1250
      %v1252 = vpop.f32.mrb[0].mxu0
      %1253 = vmatprep.mubr.f32.mxu0 0.0
      %1254 = vmatmul.mubr.f32.gmra.mrb[0].mxu0 %v1068
      %v1255 = vpop.f32.mrb[0].mxu0
      %v1256 = vadd.f32 0.0, %v1255
      %v1257 = vpop.f32.mrb[0].mxu0
      %1258 = vmatprep.mubr.f32.mxu0 0.0
      %1259 = vmatmul.mubr.f32.gmra.mrb[0].mxu0 %v1071
      %v1260 = vpop.f32.mrb[0].mxu0
      %v1261 = vadd.f32 0.0, %v1260
      %v1262 = vpop.f32.mrb[0].mxu0
      %1263 = vmatprep.mubr.f32.mxu0 0.0
      %1264 = vmatmul.mubr.f32.gmra.mrb[0].mxu0 %v1074
      %v1265 = vpop.f32.mrb[0].mxu0
      %v1266 = vadd.f32 0.0, %v1265
      %v1267 = vpop.f32.mrb[0].mxu0
      %1268 = vmatprep.mubr.f32.mxu0 0.0
      %1269 = vmatmul.mubr.f32.gmra.mrb[0].mxu0 %v1077
      %v1270 = vpop.f32.mrb[0].mxu0
      %v1271 = vadd.f32 0.0, %v1270
      %v1272 = vpop.f32.mrb[0].mxu0
      %1273 = vmatprep.mubr.f32.mxu0 0.0
      %1274 = vmatmul.mubr.f32.gmra.mrb[0].mxu0 %v1080
      %v1275 = vpop.f32.mrb[0].mxu0
      %v1276 = vadd.f32 0.0, %v1275
      %v1277 = vpop.f32.mrb[0].mxu0
      %1278 = vmatprep.mubr.f32.mxu0 0.0
      %1279 = vmatmul.mubr.f32.gmra.mrb[0].mxu0 %v1083
      %v1280 = vpop.f32.mrb[0].mxu0
      %v1281 = vadd.f32 0.0, %v1280
      %v1282 = vpop.f32.mrb[0].mxu0
      %1283 = vmatprep.mubr.f32.mxu0 0.0
      %1284 = vmatmul.mubr.f32.gmra.mrb[0].mxu0 %v1086
      %v1285 = vpop.f32.mrb[0].mxu0
      %v1286 = vadd.f32 0.0, %v1285
      %v1287 = vpop.f32.mrb[0].mxu0
      %1288 = vmatprep.mubr.f32.mxu0 0.0
      %1289 = vmatmul.mubr.f32.gmra.mrb[0].mxu0 %v1089
      %v1290 = vpop.f32.mrb[0].mxu0
      %v1291 = vadd.f32 0.0, %v1290
      %v1292 = vpop.f32.mrb[0].mxu0
      %1293 = vmatprep.mubr.f32.mxu0 0.0
      %1294 = vmatmul.mubr.f32.gmra.mrb[0].mxu0 %v1092
      %v1295 = vpop.f32.mrb[0].mxu0
      %v1296 = vadd.f32 0.0, %v1295
      %v1297 = vpop.f32.mrb[0].mxu0
      %1298 = vmatprep.mubr.f32.mxu0 0.0
      %1299 = vmatmul.mubr.f32.gmra.mrb[0].mxu0 %v1095
      %v1300 = vpop.f32.mrb[0].mxu0
      %v1301 = vadd.f32 0.0, %v1300
      %v1302 = vpop.f32.mrb[0].mxu0
      %1303 = vmatprep.mubr.f32.mxu0 0.0
      %1304 = vmatmul.mubr.f32.gmra.mrb[0].mxu0 %v1098
      %v1305 = vpop.f32.mrb[0].mxu0
      %v1306 = vadd.f32 0.0, %v1305
      %v1307 = vpop.f32.mrb[0].mxu0
      %1308 = vmatprep.mubr.f32.mxu0 0.0
      %1309 = vmatmul.mubr.f32.gmra.mrb[0].mxu0 %v1101
      %v1310 = vpop.f32.mrb[0].mxu0
      %v1311 = vadd.f32 0.0, %v1310
      %v1312 = vpop.f32.mrb[0].mxu0
      %1313 = vmatprep.mubr.f32.mxu0 0.0
      %1314 = vmatmul.mubr.f32.gmra.mrb[0].mxu0 %v1104
      %v1315 = vpop.f32.mrb[0].mxu0
      %v1316 = vadd.f32 0.0, %v1315
      %v1317 = vpop.f32.mrb[0].mxu0
      %1318 = vmatprep.mubr.f32.mxu0 0.0
      %1319 = vmatmul.mubr.f32.gmra.mrb[0].mxu0 %v1107
      %v1320 = vpop.f32.mrb[0].mxu0
      %v1321 = vadd.f32 0.0, %v1320
      %v1322 = vpop.f32.mrb[0].mxu0
      %1323 = vmatprep.mubr.f32.mxu0 0.0
      %1324 = vmatmul.mubr.f32.gmra.mrb[0].mxu0 %v1110
      %v1325 = vpop.f32.mrb[0].mxu0
      %v1326 = vadd.f32 0.0, %v1325
      %v1327 = vpop.f32.mrb[0].mxu0
      %1328 = vmatprep.mubr.f32.mxu0 0.0
      %1329 = vmatmul.mubr.f32.gmra.mrb[0].mxu0 %v1113
      %v1330 = vpop.f32.mrb[0].mxu0
      %v1331 = vadd.f32 0.0, %v1330
      %v1332 = vpop.f32.mrb[0].mxu0
      %1333 = vmatprep.mubr.f32.mxu0 0.0
      %1334 = vmatmul.mubr.f32.gmra.mrb[0].mxu0 %v1116
      %v1335 = vpop.f32.mrb[0].mxu0
      %v1336 = vadd.f32 0.0, %v1335
      %v1337 = vpop.f32.mrb[0].mxu0
      %1338 = vmatprep.mubr.f32.mxu0 0.0
      %1339 = vmatmul.mubr.f32.gmra.mrb[0].mxu0 %v1119
      %v1340 = vpop.f32.mrb[0].mxu0
      %v1341 = vadd.f32 0.0, %v1340
      %v1342 = vpop.f32.mrb[0].mxu0
      %1343 = vmatprep.mubr.f32.mxu0 0.0
      %1344 = vmatmul.mubr.f32.gmra.mrb[0].mxu0 %v1122
      %v1345 = vpop.f32.mrb[0].mxu0
      %v1346 = vadd.f32 0.0, %v1345
      %v1347 = vpop.f32.mrb[0].mxu0
      %1348 = vdwg.mxu0
      %v1349 = vadd.f32 %v833, %v1191
      %v1350 = vadd.f32 %v838, %v1196
      %v1351 = vadd.f32 %v843, %v1201
      %v1352 = vadd.f32 %v848, %v1206
      %v1353 = vadd.f32 %v853, %v1211
      %v1354 = vadd.f32 %v858, %v1216
      %v1355 = vadd.f32 %v863, %v1221
      %v1356 = vadd.f32 %v868, %v1226
      %v1357 = vadd.f32 %v873, %v1231
      %v1358 = vadd.f32 %v878, %v1236
      %v1359 = vadd.f32 %v883, %v1241
      %v1360 = vadd.f32 %v888, %v1246
      %v1361 = vadd.f32 %v893, %v1251
      %v1362 = vadd.f32 %v898, %v1256
      %v1363 = vadd.f32 %v903, %v1261
      %v1364 = vadd.f32 %v908, %v1266
      %v1365 = vadd.f32 %v913, %v1271
      %v1366 = vadd.f32 %v918, %v1276
      %v1367 = vadd.f32 %v923, %v1281
      %v1368 = vadd.f32 %v928, %v1286
      %v1369 = vadd.f32 %v933, %v1291
      %v1370 = vadd.f32 %v938, %v1296
      %v1371 = vadd.f32 %v943, %v1301
      %v1372 = vadd.f32 %v948, %v1306
      %v1373 = vadd.f32 %v953, %v1311
      %v1374 = vadd.f32 %v958, %v1316
      %v1375 = vadd.f32 %v963, %v1321
      %v1376 = vadd.f32 %v968, %v1326
      %v1377 = vadd.f32 %v973, %v1331
      %v1378 = vadd.f32 %v978, %v1336
      %v1379 = vadd.f32 %v983, %v1341
      %v1380 = vadd.f32 %v988, %v1346
      %v1381 = vld [vmem:[%s243] sm:$0xff]
      %v1382 = vld [vmem:[%s243 + $0x8] sm:$0xff]
      %v1383 = vld [vmem:[%s243 + $0x18] sm:$0xff]
      %v1384 = vld [vmem:[%s243 + $0x20] sm:$0xff]
      %v1385 = vld [vmem:[%s243 + $0x30] sm:$0xff]
      %v1386 = vld [vmem:[%s243 + $0x38] sm:$0xff]
      %v1387 = vld [vmem:[%s243 + $0x48] sm:$0xff]
      %v1388 = vld [vmem:[%s243 + $0x50] sm:$0xff]
      %v1389 = vld [vmem:[%s243 + $0x60] sm:$0xff]
      %v1390 = vld [vmem:[%s243 + $0x68] sm:$0xff]
      %v1391 = vld [vmem:[%s243 + $0x78] sm:$0xff]
      %v1392 = vld [vmem:[%s243 + $0x80] sm:$0xff]
      %v1393 = vld [vmem:[%s243 + $0x90] sm:$0xff]
      %v1394 = vld [vmem:[%s243 + $0x98] sm:$0xff]
      %v1395 = vld [vmem:[%s243 + $0xa8] sm:$0xff]
      %v1396 = vld [vmem:[%s243 + $0xb0] sm:$0xff]
      %v1397 = vld [vmem:[%s243 + $0xc0] sm:$0xff]
      %v1398 = vld [vmem:[%s243 + $0xc8] sm:$0xff]
      %v1399 = vld [vmem:[%s243 + $0xd8] sm:$0xff]
      %v1400 = vld [vmem:[%s243 + $0xe0] sm:$0xff]
      %v1401 = vld [vmem:[%s243 + $0xf0] sm:$0xff]
      %v1402 = vld [vmem:[%s243 + $0xf8] sm:$0xff]
      %v1403 = vld [vmem:[%s243 + $0x108] sm:$0xff]
      %v1404 = vld [vmem:[%s243 + $0x110] sm:$0xff]
      %v1405 = vld [vmem:[%s243 + $0x120] sm:$0xff]
      %v1406 = vld [vmem:[%s243 + $0x128] sm:$0xff]
      %v1407 = vld [vmem:[%s243 + $0x138] sm:$0xff]
      %v1408 = vld [vmem:[%s243 + $0x140] sm:$0xff]
      %v1409 = vld [vmem:[%s243 + $0x150] sm:$0xff]
      %v1410 = vld [vmem:[%s243 + $0x158] sm:$0xff]
      %v1411 = vld [vmem:[%s243 + $0x168] sm:$0xff]
      %v1412 = vld [vmem:[%s243 + $0x170] sm:$0xff]
      %s1413 = scalar_lea.vmem %s2, 96
      %v1414 = vld [vmem:[%s1413] sm:$0xff]
      %v1415 = vld [vmem:[%s1413 + $0x8] sm:$0xff]
      %v1416 = vld [vmem:[%s1413 + $0x10] sm:$0xff]
      %v1417 = vld [vmem:[%s1413 + $0x18] sm:$0xff]
      %v1419 = vsel %vm165, %v1381, 0
      %v1422 = vsel %vm165, %v1382, 0
      %v1425 = vsel %vm165, %v1383, 0
      %v1428 = vsel %vm165, %v1384, 0
      %v1431 = vsel %vm165, %v1385, 0
      %v1434 = vsel %vm165, %v1386, 0
      %v1437 = vsel %vm165, %v1387, 0
      %v1440 = vsel %vm165, %v1388, 0
      %v1443 = vsel %vm165, %v1389, 0
      %v1446 = vsel %vm165, %v1390, 0
      %v1449 = vsel %vm165, %v1391, 0
      %v1452 = vsel %vm165, %v1392, 0
      %v1455 = vsel %vm165, %v1393, 0
      %v1458 = vsel %vm165, %v1394, 0
      %v1461 = vsel %vm165, %v1395, 0
      %v1464 = vsel %vm165, %v1396, 0
      %v1467 = vsel %vm165, %v1397, 0
      %v1470 = vsel %vm165, %v1398, 0
      %v1473 = vsel %vm165, %v1399, 0
      %v1476 = vsel %vm165, %v1400, 0
      %v1479 = vsel %vm165, %v1401, 0
      %v1482 = vsel %vm165, %v1402, 0
      %v1485 = vsel %vm165, %v1403, 0
      %v1488 = vsel %vm165, %v1404, 0
      %v1491 = vsel %vm165, %v1405, 0
      %v1494 = vsel %vm165, %v1406, 0
      %v1497 = vsel %vm165, %v1407, 0
      %v1500 = vsel %vm165, %v1408, 0
      %v1503 = vsel %vm165, %v1409, 0
      %v1506 = vsel %vm165, %v1410, 0
      %v1509 = vsel %vm165, %v1411, 0
      %v1512 = vsel %vm165, %v1412, 0
      %1514 = vmatprep.subr.mxu0 0.0
      %1515 = vmatpush1.msra.mxu0 %v1414
      %1516 = vmatprep.subr.mxu0 0.0
      %1517 = vmatpush1.msra.mxu0 %v1415
      %1518 = vmatprep.subr.mxu0 0.0
      %1519 = vmatpush1.msra.mxu0 %v1416
      %1520 = vmatprep.subr.mxu0 0.0
      %1521 = vmatpush1.msra.mxu0 %v1417
      %1522 = vmatprep.subr.mxu0 0.0
      %1523 = vmatpush1.msra.mxu0 0.0
      %1524 = vmatprep.subr.mxu0 0.0
      %1525 = vmatpush1.msra.mxu0 0.0
      %1526 = vmatprep.subr.mxu0 0.0
      %1527 = vmatpush1.msra.mxu0 0.0
      %1528 = vmatprep.subr.mxu0 0.0
      %1529 = vmatpush1.msra.mxu0 0.0
      %1530 = vmatprep.subr.mxu0 0.0
      %1531 = vmatpush1.msra.mxu0 0.0
      %1532 = vmatprep.subr.mxu0 0.0
      %1533 = vmatpush1.msra.mxu0 0.0
      %1534 = vmatprep.subr.mxu0 0.0
      %1535 = vmatpush1.msra.mxu0 0.0
      %1536 = vmatprep.subr.mxu0 0.0
      %1537 = vmatpush1.msra.mxu0 0.0
      %1538 = vmatprep.subr.mxu0 0.0
      %1539 = vmatpush1.msra.mxu0 0.0
      %1540 = vmatprep.subr.mxu0 0.0
      %1541 = vmatpush1.msra.mxu0 0.0
      %1542 = vmatprep.subr.mxu0 0.0
      %1543 = vmatpush1.msra.mxu0 0.0
      %1544 = vmatprep.subr.mxu0 0.0
      %1545 = vmatpush1.msra.mxu0 0.0
      %1546 = vmatprep.subr.mxu0 0.0
      %1547 = vmatpush1.msra.mxu0 0.0
      %1548 = vmatprep.subr.mxu0 0.0
      %1549 = vmatpush1.msra.mxu0 0.0
      %1550 = vmatprep.subr.mxu0 0.0
      %1551 = vmatpush1.msra.mxu0 0.0
      %1552 = vmatprep.subr.mxu0 0.0
      %1553 = vmatpush1.msra.mxu0 0.0
      %1554 = vmatprep.subr.mxu0 0.0
      %1555 = vmatpush1.msra.mxu0 0.0
      %1556 = vmatprep.subr.mxu0 0.0
      %1557 = vmatpush1.msra.mxu0 0.0
      %1558 = vmatprep.subr.mxu0 0.0
      %1559 = vmatpush1.msra.mxu0 0.0
      %1560 = vmatprep.subr.mxu0 0.0
      %1561 = vmatpush1.msra.mxu0 0.0
      %1562 = vmatprep.subr.mxu0 0.0
      %1563 = vmatpush1.msra.mxu0 0.0
      %1564 = vmatprep.subr.mxu0 0.0
      %1565 = vmatpush1.msra.mxu0 0.0
      %1566 = vmatprep.subr.mxu0 0.0
      %1567 = vmatpush1.msra.mxu0 0.0
      %1568 = vmatprep.subr.mxu0 0.0
      %1569 = vmatpush1.msra.mxu0 0.0
      %1570 = vmatprep.subr.mxu0 0.0
      %1571 = vmatpush1.msra.mxu0 0.0
      %1572 = vmatprep.subr.mxu0 0.0
      %1573 = vmatpush1.msra.mxu0 0.0
      %1574 = vmatprep.subr.mxu0 0.0
      %1575 = vmatpush1.msra.mxu0 0.0
      %1576 = vmatprep.subr.mxu0 0.0
      %1577 = vmatpush1.msra.mxu0 0.0
      %1578 = vmatprep.mubr.f32.mxu0 0.0
      %1579 = vmatmul.mubr.f32.gmra.mrb[0].mxu0 %v1419
      %v1580 = vpop.f32.mrb[0].mxu0
      %v1581 = vadd.f32 0.0, %v1580
      %v1582 = vpop.f32.mrb[0].mxu0
      %1583 = vmatprep.mubr.f32.mxu0 0.0
      %1584 = vmatmul.mubr.f32.gmra.mrb[0].mxu0 %v1422
      %v1585 = vpop.f32.mrb[0].mxu0
      %v1586 = vadd.f32 0.0, %v1585
      %v1587 = vpop.f32.mrb[0].mxu0
      %1588 = vmatprep.mubr.f32.mxu0 0.0
      %1589 = vmatmul.mubr.f32.gmra.mrb[0].mxu0 %v1425
      %v1590 = vpop.f32.mrb[0].mxu0
      %v1591 = vadd.f32 0.0, %v1590
      %v1592 = vpop.f32.mrb[0].mxu0
      %1593 = vmatprep.mubr.f32.mxu0 0.0
      %1594 = vmatmul.mubr.f32.gmra.mrb[0].mxu0 %v1428
      %v1595 = vpop.f32.mrb[0].mxu0
      %v1596 = vadd.f32 0.0, %v1595
      %v1597 = vpop.f32.mrb[0].mxu0
      %1598 = vmatprep.mubr.f32.mxu0 0.0
      %1599 = vmatmul.mubr.f32.gmra.mrb[0].mxu0 %v1431
      %v1600 = vpop.f32.mrb[0].mxu0
      %v1601 = vadd.f32 0.0, %v1600
      %v1602 = vpop.f32.mrb[0].mxu0
      %1603 = vmatprep.mubr.f32.mxu0 0.0
      %1604 = vmatmul.mubr.f32.gmra.mrb[0].mxu0 %v1434
      %v1605 = vpop.f32.mrb[0].mxu0
      %v1606 = vadd.f32 0.0, %v1605
      %v1607 = vpop.f32.mrb[0].mxu0
      %1608 = vmatprep.mubr.f32.mxu0 0.0
      %1609 = vmatmul.mubr.f32.gmra.mrb[0].mxu0 %v1437
      %v1610 = vpop.f32.mrb[0].mxu0
      %v1611 = vadd.f32 0.0, %v1610
      %v1612 = vpop.f32.mrb[0].mxu0
      %1613 = vmatprep.mubr.f32.mxu0 0.0
      %1614 = vmatmul.mubr.f32.gmra.mrb[0].mxu0 %v1440
      %v1615 = vpop.f32.mrb[0].mxu0
      %v1616 = vadd.f32 0.0, %v1615
      %v1617 = vpop.f32.mrb[0].mxu0
      %1618 = vmatprep.mubr.f32.mxu0 0.0
      %1619 = vmatmul.mubr.f32.gmra.mrb[0].mxu0 %v1443
      %v1620 = vpop.f32.mrb[0].mxu0
      %v1621 = vadd.f32 0.0, %v1620
      %v1622 = vpop.f32.mrb[0].mxu0
      %1623 = vmatprep.mubr.f32.mxu0 0.0
      %1624 = vmatmul.mubr.f32.gmra.mrb[0].mxu0 %v1446
      %v1625 = vpop.f32.mrb[0].mxu0
      %v1626 = vadd.f32 0.0, %v1625
      %v1627 = vpop.f32.mrb[0].mxu0
      %1628 = vmatprep.mubr.f32.mxu0 0.0
      %1629 = vmatmul.mubr.f32.gmra.mrb[0].mxu0 %v1449
      %v1630 = vpop.f32.mrb[0].mxu0
      %v1631 = vadd.f32 0.0, %v1630
      %v1632 = vpop.f32.mrb[0].mxu0
      %1633 = vmatprep.mubr.f32.mxu0 0.0
      %1634 = vmatmul.mubr.f32.gmra.mrb[0].mxu0 %v1452
      %v1635 = vpop.f32.mrb[0].mxu0
      %v1636 = vadd.f32 0.0, %v1635
      %v1637 = vpop.f32.mrb[0].mxu0
      %1638 = vmatprep.mubr.f32.mxu0 0.0
      %1639 = vmatmul.mubr.f32.gmra.mrb[0].mxu0 %v1455
      %v1640 = vpop.f32.mrb[0].mxu0
      %v1641 = vadd.f32 0.0, %v1640
      %v1642 = vpop.f32.mrb[0].mxu0
      %1643 = vmatprep.mubr.f32.mxu0 0.0
      %1644 = vmatmul.mubr.f32.gmra.mrb[0].mxu0 %v1458
      %v1645 = vpop.f32.mrb[0].mxu0
      %v1646 = vadd.f32 0.0, %v1645
      %v1647 = vpop.f32.mrb[0].mxu0
      %1648 = vmatprep.mubr.f32.mxu0 0.0
      %1649 = vmatmul.mubr.f32.gmra.mrb[0].mxu0 %v1461
      %v1650 = vpop.f32.mrb[0].mxu0
      %v1651 = vadd.f32 0.0, %v1650
      %v1652 = vpop.f32.mrb[0].mxu0
      %1653 = vmatprep.mubr.f32.mxu0 0.0
      %1654 = vmatmul.mubr.f32.gmra.mrb[0].mxu0 %v1464
      %v1655 = vpop.f32.mrb[0].mxu0
      %v1656 = vadd.f32 0.0, %v1655
      %v1657 = vpop.f32.mrb[0].mxu0
      %1658 = vmatprep.mubr.f32.mxu0 0.0
      %1659 = vmatmul.mubr.f32.gmra.mrb[0].mxu0 %v1467
      %v1660 = vpop.f32.mrb[0].mxu0
      %v1661 = vadd.f32 0.0, %v1660
      %v1662 = vpop.f32.mrb[0].mxu0
      %1663 = vmatprep.mubr.f32.mxu0 0.0
      %1664 = vmatmul.mubr.f32.gmra.mrb[0].mxu0 %v1470
      %v1665 = vpop.f32.mrb[0].mxu0
      %v1666 = vadd.f32 0.0, %v1665
      %v1667 = vpop.f32.mrb[0].mxu0
      %1668 = vmatprep.mubr.f32.mxu0 0.0
      %1669 = vmatmul.mubr.f32.gmra.mrb[0].mxu0 %v1473
      %v1670 = vpop.f32.mrb[0].mxu0
      %v1671 = vadd.f32 0.0, %v1670
      %v1672 = vpop.f32.mrb[0].mxu0
      %1673 = vmatprep.mubr.f32.mxu0 0.0
      %1674 = vmatmul.mubr.f32.gmra.mrb[0].mxu0 %v1476
      %v1675 = vpop.f32.mrb[0].mxu0
      %v1676 = vadd.f32 0.0, %v1675
      %v1677 = vpop.f32.mrb[0].mxu0
      %1678 = vmatprep.mubr.f32.mxu0 0.0
      %1679 = vmatmul.mubr.f32.gmra.mrb[0].mxu0 %v1479
      %v1680 = vpop.f32.mrb[0].mxu0
      %v1681 = vadd.f32 0.0, %v1680
      %v1682 = vpop.f32.mrb[0].mxu0
      %1683 = vmatprep.mubr.f32.mxu0 0.0
      %1684 = vmatmul.mubr.f32.gmra.mrb[0].mxu0 %v1482
      %v1685 = vpop.f32.mrb[0].mxu0
      %v1686 = vadd.f32 0.0, %v1685
      %v1687 = vpop.f32.mrb[0].mxu0
      %1688 = vmatprep.mubr.f32.mxu0 0.0
      %1689 = vmatmul.mubr.f32.gmra.mrb[0].mxu0 %v1485
      %v1690 = vpop.f32.mrb[0].mxu0
      %v1691 = vadd.f32 0.0, %v1690
      %v1692 = vpop.f32.mrb[0].mxu0
      %1693 = vmatprep.mubr.f32.mxu0 0.0
      %1694 = vmatmul.mubr.f32.gmra.mrb[0].mxu0 %v1488
      %v1695 = vpop.f32.mrb[0].mxu0
      %v1696 = vadd.f32 0.0, %v1695
      %v1697 = vpop.f32.mrb[0].mxu0
      %1698 = vmatprep.mubr.f32.mxu0 0.0
      %1699 = vmatmul.mubr.f32.gmra.mrb[0].mxu0 %v1491
      %v1700 = vpop.f32.mrb[0].mxu0
      %v1701 = vadd.f32 0.0, %v1700
      %v1702 = vpop.f32.mrb[0].mxu0
      %1703 = vmatprep.mubr.f32.mxu0 0.0
      %1704 = vmatmul.mubr.f32.gmra.mrb[0].mxu0 %v1494
      %v1705 = vpop.f32.mrb[0].mxu0
      %v1706 = vadd.f32 0.0, %v1705
      %v1707 = vpop.f32.mrb[0].mxu0
      %1708 = vmatprep.mubr.f32.mxu0 0.0
      %1709 = vmatmul.mubr.f32.gmra.mrb[0].mxu0 %v1497
      %v1710 = vpop.f32.mrb[0].mxu0
      %v1711 = vadd.f32 0.0, %v1710
      %v1712 = vpop.f32.mrb[0].mxu0
      %1713 = vmatprep.mubr.f32.mxu0 0.0
      %1714 = vmatmul.mubr.f32.gmra.mrb[0].mxu0 %v1500
      %v1715 = vpop.f32.mrb[0].mxu0
      %v1716 = vadd.f32 0.0, %v1715
      %v1717 = vpop.f32.mrb[0].mxu0
      %1718 = vmatprep.mubr.f32.mxu0 0.0
      %1719 = vmatmul.mubr.f32.gmra.mrb[0].mxu0 %v1503
      %v1720 = vpop.f32.mrb[0].mxu0
      %v1721 = vadd.f32 0.0, %v1720
      %v1722 = vpop.f32.mrb[0].mxu0
      %1723 = vmatprep.mubr.f32.mxu0 0.0
      %1724 = vmatmul.mubr.f32.gmra.mrb[0].mxu0 %v1506
      %v1725 = vpop.f32.mrb[0].mxu0
      %v1726 = vadd.f32 0.0, %v1725
      %v1727 = vpop.f32.mrb[0].mxu0
      %1728 = vmatprep.mubr.f32.mxu0 0.0
      %1729 = vmatmul.mubr.f32.gmra.mrb[0].mxu0 %v1509
      %v1730 = vpop.f32.mrb[0].mxu0
      %v1731 = vadd.f32 0.0, %v1730
      %v1732 = vpop.f32.mrb[0].mxu0
      %1733 = vmatprep.mubr.f32.mxu0 0.0
      %1734 = vmatmul.mubr.f32.gmra.mrb[0].mxu0 %v1512
      %v1735 = vpop.f32.mrb[0].mxu0
      %v1736 = vadd.f32 0.0, %v1735
      %v1737 = vpop.f32.mrb[0].mxu0
      %1738 = vdwg.mxu0
      %v1739 = vadd.f32 %v1349, %v1581
      %v1740 = vadd.f32 %v1350, %v1586
      %v1741 = vadd.f32 %v1351, %v1591
      %v1742 = vadd.f32 %v1352, %v1596
      %v1743 = vadd.f32 %v1353, %v1601
      %v1744 = vadd.f32 %v1354, %v1606
      %v1745 = vadd.f32 %v1355, %v1611
      %v1746 = vadd.f32 %v1356, %v1616
      %v1747 = vadd.f32 %v1357, %v1621
      %v1748 = vadd.f32 %v1358, %v1626
      %v1749 = vadd.f32 %v1359, %v1631
      %v1750 = vadd.f32 %v1360, %v1636
      %v1751 = vadd.f32 %v1361, %v1641
      %v1752 = vadd.f32 %v1362, %v1646
      %v1753 = vadd.f32 %v1363, %v1651
      %v1754 = vadd.f32 %v1364, %v1656
      %v1755 = vadd.f32 %v1365, %v1661
      %v1756 = vadd.f32 %v1366, %v1666
      %v1757 = vadd.f32 %v1367, %v1671
      %v1758 = vadd.f32 %v1368, %v1676
      %v1759 = vadd.f32 %v1369, %v1681
      %v1760 = vadd.f32 %v1370, %v1686
      %v1761 = vadd.f32 %v1371, %v1691
      %v1762 = vadd.f32 %v1372, %v1696
      %v1763 = vadd.f32 %v1373, %v1701
      %v1764 = vadd.f32 %v1374, %v1706
      %v1765 = vadd.f32 %v1375, %v1711
      %v1766 = vadd.f32 %v1376, %v1716
      %v1767 = vadd.f32 %v1377, %v1721
      %v1768 = vadd.f32 %v1378, %v1726
      %v1769 = vadd.f32 %v1379, %v1731
      %v1770 = vadd.f32 %v1380, %v1736
      %v1771 = vld [vmem:[%s243 + $0x1] sm:$0xff]
      %v1772 = vld [vmem:[%s243 + $0x9] sm:$0xff]
      %v1773 = vld [vmem:[%s243 + $0x19] sm:$0xff]
      %v1774 = vld [vmem:[%s243 + $0x21] sm:$0xff]
      %v1775 = vld [vmem:[%s243 + $0x31] sm:$0xff]
      %v1776 = vld [vmem:[%s243 + $0x39] sm:$0xff]
      %v1777 = vld [vmem:[%s243 + $0x49] sm:$0xff]
      %v1778 = vld [vmem:[%s243 + $0x51] sm:$0xff]
      %v1779 = vld [vmem:[%s243 + $0x61] sm:$0xff]
      %v1780 = vld [vmem:[%s243 + $0x69] sm:$0xff]
      %v1781 = vld [vmem:[%s243 + $0x79] sm:$0xff]
      %v1782 = vld [vmem:[%s243 + $0x81] sm:$0xff]
      %v1783 = vld [vmem:[%s243 + $0x91] sm:$0xff]
      %v1784 = vld [vmem:[%s243 + $0x99] sm:$0xff]
      %v1785 = vld [vmem:[%s243 + $0xa9] sm:$0xff]
      %v1786 = vld [vmem:[%s243 + $0xb1] sm:$0xff]
      %v1787 = vld [vmem:[%s243 + $0xc1] sm:$0xff]
      %v1788 = vld [vmem:[%s243 + $0xc9] sm:$0xff]
      %v1789 = vld [vmem:[%s243 + $0xd9] sm:$0xff]
      %v1790 = vld [vmem:[%s243 + $0xe1] sm:$0xff]
      %v1791 = vld [vmem:[%s243 + $0xf1] sm:$0xff]
      %v1792 = vld [vmem:[%s243 + $0xf9] sm:$0xff]
      %v1793 = vld [vmem:[%s243 + $0x109] sm:$0xff]
      %v1794 = vld [vmem:[%s243 + $0x111] sm:$0xff]
      %v1795 = vld [vmem:[%s243 + $0x121] sm:$0xff]
      %v1796 = vld [vmem:[%s243 + $0x129] sm:$0xff]
      %v1797 = vld [vmem:[%s243 + $0x139] sm:$0xff]
      %v1798 = vld [vmem:[%s243 + $0x141] sm:$0xff]
      %v1799 = vld [vmem:[%s243 + $0x151] sm:$0xff]
      %v1800 = vld [vmem:[%s243 + $0x159] sm:$0xff]
      %v1801 = vld [vmem:[%s243 + $0x169] sm:$0xff]
      %v1802 = vld [vmem:[%s243 + $0x171] sm:$0xff]
      %s1803 = scalar_lea.vmem %s2, 128
      %v1804 = vld [vmem:[%s1803] sm:$0xff]
      %v1805 = vld [vmem:[%s1803 + $0x8] sm:$0xff]
      %v1806 = vld [vmem:[%s1803 + $0x10] sm:$0xff]
      %v1807 = vld [vmem:[%s1803 + $0x18] sm:$0xff]
      %v1809 = vsel %vm165, %v1771, 0
      %v1812 = vsel %vm165, %v1772, 0
      %v1815 = vsel %vm165, %v1773, 0
      %v1818 = vsel %vm165, %v1774, 0
      %v1821 = vsel %vm165, %v1775, 0
      %v1824 = vsel %vm165, %v1776, 0
      %v1827 = vsel %vm165, %v1777, 0
      %v1830 = vsel %vm165, %v1778, 0
      %v1833 = vsel %vm165, %v1779, 0
      %v1836 = vsel %vm165, %v1780, 0
      %v1839 = vsel %vm165, %v1781, 0
      %v1842 = vsel %vm165, %v1782, 0
      %v1845 = vsel %vm165, %v1783, 0
      %v1848 = vsel %vm165, %v1784, 0
      %v1851 = vsel %vm165, %v1785, 0
      %v1854 = vsel %vm165, %v1786, 0
      %v1857 = vsel %vm165, %v1787, 0
      %v1860 = vsel %vm165, %v1788, 0
      %v1863 = vsel %vm165, %v1789, 0
      %v1866 = vsel %vm165, %v1790, 0
      %v1869 = vsel %vm165, %v1791, 0
      %v1872 = vsel %vm165, %v1792, 0
      %v1875 = vsel %vm165, %v1793, 0
      %v1878 = vsel %vm165, %v1794, 0
      %v1881 = vsel %vm165, %v1795, 0
      %v1884 = vsel %vm165, %v1796, 0
      %v1887 = vsel %vm165, %v1797, 0
      %v1890 = vsel %vm165, %v1798, 0
      %v1893 = vsel %vm165, %v1799, 0
      %v1896 = vsel %vm165, %v1800, 0
      %v1899 = vsel %vm165, %v1801, 0
      %v1902 = vsel %vm165, %v1802, 0
      %1904 = vmatprep.subr.mxu0 0.0
      %1905 = vmatpush1.msra.mxu0 %v1804
      %1906 = vmatprep.subr.mxu0 0.0
      %1907 = vmatpush1.msra.mxu0 %v1805
      %1908 = vmatprep.subr.mxu0 0.0
      %1909 = vmatpush1.msra.mxu0 %v1806
      %1910 = vmatprep.subr.mxu0 0.0
      %1911 = vmatpush1.msra.mxu0 %v1807
      %1912 = vmatprep.subr.mxu0 0.0
      %1913 = vmatpush1.msra.mxu0 0.0
      %1914 = vmatprep.subr.mxu0 0.0
      %1915 = vmatpush1.msra.mxu0 0.0
      %1916 = vmatprep.subr.mxu0 0.0
      %1917 = vmatpush1.msra.mxu0 0.0
      %1918 = vmatprep.subr.mxu0 0.0
      %1919 = vmatpush1.msra.mxu0 0.0
      %1920 = vmatprep.subr.mxu0 0.0
      %1921 = vmatpush1.msra.mxu0 0.0
      %1922 = vmatprep.subr.mxu0 0.0
      %1923 = vmatpush1.msra.mxu0 0.0
      %1924 = vmatprep.subr.mxu0 0.0
      %1925 = vmatpush1.msra.mxu0 0.0
      %1926 = vmatprep.subr.mxu0 0.0
      %1927 = vmatpush1.msra.mxu0 0.0
      %1928 = vmatprep.subr.mxu0 0.0
      %1929 = vmatpush1.msra.mxu0 0.0
      %1930 = vmatprep.subr.mxu0 0.0
      %1931 = vmatpush1.msra.mxu0 0.0
      %1932 = vmatprep.subr.mxu0 0.0
      %1933 = vmatpush1.msra.mxu0 0.0
      %1934 = vmatprep.subr.mxu0 0.0
      %1935 = vmatpush1.msra.mxu0 0.0
      %1936 = vmatprep.subr.mxu0 0.0
      %1937 = vmatpush1.msra.mxu0 0.0
      %1938 = vmatprep.subr.mxu0 0.0
      %1939 = vmatpush1.msra.mxu0 0.0
      %1940 = vmatprep.subr.mxu0 0.0
      %1941 = vmatpush1.msra.mxu0 0.0
      %1942 = vmatprep.subr.mxu0 0.0
      %1943 = vmatpush1.msra.mxu0 0.0
      %1944 = vmatprep.subr.mxu0 0.0
      %1945 = vmatpush1.msra.mxu0 0.0
      %1946 = vmatprep.subr.mxu0 0.0
      %1947 = vmatpush1.msra.mxu0 0.0
      %1948 = vmatprep.subr.mxu0 0.0
      %1949 = vmatpush1.msra.mxu0 0.0
      %1950 = vmatprep.subr.mxu0 0.0
      %1951 = vmatpush1.msra.mxu0 0.0
      %1952 = vmatprep.subr.mxu0 0.0
      %1953 = vmatpush1.msra.mxu0 0.0
      %1954 = vmatprep.subr.mxu0 0.0
      %1955 = vmatpush1.msra.mxu0 0.0
      %1956 = vmatprep.subr.mxu0 0.0
      %1957 = vmatpush1.msra.mxu0 0.0
      %1958 = vmatprep.subr.mxu0 0.0
      %1959 = vmatpush1.msra.mxu0 0.0
      %1960 = vmatprep.subr.mxu0 0.0
      %1961 = vmatpush1.msra.mxu0 0.0
      %1962 = vmatprep.subr.mxu0 0.0
      %1963 = vmatpush1.msra.mxu0 0.0
      %1964 = vmatprep.subr.mxu0 0.0
      %1965 = vmatpush1.msra.mxu0 0.0
      %1966 = vmatprep.subr.mxu0 0.0
      %1967 = vmatpush1.msra.mxu0 0.0
      %1968 = vmatprep.mubr.f32.mxu0 0.0
      %1969 = vmatmul.mubr.f32.gmra.mrb[0].mxu0 %v1809
      %v1970 = vpop.f32.mrb[0].mxu0
      %v1971 = vadd.f32 0.0, %v1970
      %v1972 = vpop.f32.mrb[0].mxu0
      %1973 = vmatprep.mubr.f32.mxu0 0.0
      %1974 = vmatmul.mubr.f32.gmra.mrb[0].mxu0 %v1812
      %v1975 = vpop.f32.mrb[0].mxu0
      %v1976 = vadd.f32 0.0, %v1975
      %v1977 = vpop.f32.mrb[0].mxu0
      %1978 = vmatprep.mubr.f32.mxu0 0.0
      %1979 = vmatmul.mubr.f32.gmra.mrb[0].mxu0 %v1815
      %v1980 = vpop.f32.mrb[0].mxu0
      %v1981 = vadd.f32 0.0, %v1980
      %v1982 = vpop.f32.mrb[0].mxu0
      %1983 = vmatprep.mubr.f32.mxu0 0.0
      %1984 = vmatmul.mubr.f32.gmra.mrb[0].mxu0 %v1818
      %v1985 = vpop.f32.mrb[0].mxu0
      %v1986 = vadd.f32 0.0, %v1985
      %v1987 = vpop.f32.mrb[0].mxu0
      %1988 = vmatprep.mubr.f32.mxu0 0.0
      %1989 = vmatmul.mubr.f32.gmra.mrb[0].mxu0 %v1821
      %v1990 = vpop.f32.mrb[0].mxu0
      %v1991 = vadd.f32 0.0, %v1990
      %v1992 = vpop.f32.mrb[0].mxu0
      %1993 = vmatprep.mubr.f32.mxu0 0.0
      %1994 = vmatmul.mubr.f32.gmra.mrb[0].mxu0 %v1824
      %v1995 = vpop.f32.mrb[0].mxu0
      %v1996 = vadd.f32 0.0, %v1995
      %v1997 = vpop.f32.mrb[0].mxu0
      %1998 = vmatprep.mubr.f32.mxu0 0.0
      %1999 = vmatmul.mubr.f32.gmra.mrb[0].mxu0 %v1827
      %v2000 = vpop.f32.mrb[0].mxu0
      %v2001 = vadd.f32 0.0, %v2000
      %v2002 = vpop.f32.mrb[0].mxu0
      %2003 = vmatprep.mubr.f32.mxu0 0.0
      %2004 = vmatmul.mubr.f32.gmra.mrb[0].mxu0 %v1830
      %v2005 = vpop.f32.mrb[0].mxu0
      %v2006 = vadd.f32 0.0, %v2005
      %v2007 = vpop.f32.mrb[0].mxu0
      %2008 = vmatprep.mubr.f32.mxu0 0.0
      %2009 = vmatmul.mubr.f32.gmra.mrb[0].mxu0 %v1833
      %v2010 = vpop.f32.mrb[0].mxu0
      %v2011 = vadd.f32 0.0, %v2010
      %v2012 = vpop.f32.mrb[0].mxu0
      %2013 = vmatprep.mubr.f32.mxu0 0.0
      %2014 = vmatmul.mubr.f32.gmra.mrb[0].mxu0 %v1836
      %v2015 = vpop.f32.mrb[0].mxu0
      %v2016 = vadd.f32 0.0, %v2015
      %v2017 = vpop.f32.mrb[0].mxu0
      %2018 = vmatprep.mubr.f32.mxu0 0.0
      %2019 = vmatmul.mubr.f32.gmra.mrb[0].mxu0 %v1839
      %v2020 = vpop.f32.mrb[0].mxu0
      %v2021 = vadd.f32 0.0, %v2020
      %v2022 = vpop.f32.mrb[0].mxu0
      %2023 = vmatprep.mubr.f32.mxu0 0.0
      %2024 = vmatmul.mubr.f32.gmra.mrb[0].mxu0 %v1842
      %v2025 = vpop.f32.mrb[0].mxu0
      %v2026 = vadd.f32 0.0, %v2025
      %v2027 = vpop.f32.mrb[0].mxu0
      %2028 = vmatprep.mubr.f32.mxu0 0.0
      %2029 = vmatmul.mubr.f32.gmra.mrb[0].mxu0 %v1845
      %v2030 = vpop.f32.mrb[0].mxu0
      %v2031 = vadd.f32 0.0, %v2030
      %v2032 = vpop.f32.mrb[0].mxu0
      %2033 = vmatprep.mubr.f32.mxu0 0.0
      %2034 = vmatmul.mubr.f32.gmra.mrb[0].mxu0 %v1848
      %v2035 = vpop.f32.mrb[0].mxu0
      %v2036 = vadd.f32 0.0, %v2035
      %v2037 = vpop.f32.mrb[0].mxu0
      %2038 = vmatprep.mubr.f32.mxu0 0.0
      %2039 = vmatmul.mubr.f32.gmra.mrb[0].mxu0 %v1851
      %v2040 = vpop.f32.mrb[0].mxu0
      %v2041 = vadd.f32 0.0, %v2040
      %v2042 = vpop.f32.mrb[0].mxu0
      %2043 = vmatprep.mubr.f32.mxu0 0.0
      %2044 = vmatmul.mubr.f32.gmra.mrb[0].mxu0 %v1854
      %v2045 = vpop.f32.mrb[0].mxu0
      %v2046 = vadd.f32 0.0, %v2045
      %v2047 = vpop.f32.mrb[0].mxu0
      %2048 = vmatprep.mubr.f32.mxu0 0.0
      %2049 = vmatmul.mubr.f32.gmra.mrb[0].mxu0 %v1857
      %v2050 = vpop.f32.mrb[0].mxu0
      %v2051 = vadd.f32 0.0, %v2050
      %v2052 = vpop.f32.mrb[0].mxu0
      %2053 = vmatprep.mubr.f32.mxu0 0.0
      %2054 = vmatmul.mubr.f32.gmra.mrb[0].mxu0 %v1860
      %v2055 = vpop.f32.mrb[0].mxu0
      %v2056 = vadd.f32 0.0, %v2055
      %v2057 = vpop.f32.mrb[0].mxu0
      %2058 = vmatprep.mubr.f32.mxu0 0.0
      %2059 = vmatmul.mubr.f32.gmra.mrb[0].mxu0 %v1863
      %v2060 = vpop.f32.mrb[0].mxu0
      %v2061 = vadd.f32 0.0, %v2060
      %v2062 = vpop.f32.mrb[0].mxu0
      %2063 = vmatprep.mubr.f32.mxu0 0.0
      %2064 = vmatmul.mubr.f32.gmra.mrb[0].mxu0 %v1866
      %v2065 = vpop.f32.mrb[0].mxu0
      %v2066 = vadd.f32 0.0, %v2065
      %v2067 = vpop.f32.mrb[0].mxu0
      %2068 = vmatprep.mubr.f32.mxu0 0.0
      %2069 = vmatmul.mubr.f32.gmra.mrb[0].mxu0 %v1869
      %v2070 = vpop.f32.mrb[0].mxu0
      %v2071 = vadd.f32 0.0, %v2070
      %v2072 = vpop.f32.mrb[0].mxu0
      %2073 = vmatprep.mubr.f32.mxu0 0.0
      %2074 = vmatmul.mubr.f32.gmra.mrb[0].mxu0 %v1872
      %v2075 = vpop.f32.mrb[0].mxu0
      %v2076 = vadd.f32 0.0, %v2075
      %v2077 = vpop.f32.mrb[0].mxu0
      %2078 = vmatprep.mubr.f32.mxu0 0.0
      %2079 = vmatmul.mubr.f32.gmra.mrb[0].mxu0 %v1875
      %v2080 = vpop.f32.mrb[0].mxu0
      %v2081 = vadd.f32 0.0, %v2080
      %v2082 = vpop.f32.mrb[0].mxu0
      %2083 = vmatprep.mubr.f32.mxu0 0.0
      %2084 = vmatmul.mubr.f32.gmra.mrb[0].mxu0 %v1878
      %v2085 = vpop.f32.mrb[0].mxu0
      %v2086 = vadd.f32 0.0, %v2085
      %v2087 = vpop.f32.mrb[0].mxu0
      %2088 = vmatprep.mubr.f32.mxu0 0.0
      %2089 = vmatmul.mubr.f32.gmra.mrb[0].mxu0 %v1881
      %v2090 = vpop.f32.mrb[0].mxu0
      %v2091 = vadd.f32 0.0, %v2090
      %v2092 = vpop.f32.mrb[0].mxu0
      %2093 = vmatprep.mubr.f32.mxu0 0.0
      %2094 = vmatmul.mubr.f32.gmra.mrb[0].mxu0 %v1884
      %v2095 = vpop.f32.mrb[0].mxu0
      %v2096 = vadd.f32 0.0, %v2095
      %v2097 = vpop.f32.mrb[0].mxu0
      %2098 = vmatprep.mubr.f32.mxu0 0.0
      %2099 = vmatmul.mubr.f32.gmra.mrb[0].mxu0 %v1887
      %v2100 = vpop.f32.mrb[0].mxu0
      %v2101 = vadd.f32 0.0, %v2100
      %v2102 = vpop.f32.mrb[0].mxu0
      %2103 = vmatprep.mubr.f32.mxu0 0.0
      %2104 = vmatmul.mubr.f32.gmra.mrb[0].mxu0 %v1890
      %v2105 = vpop.f32.mrb[0].mxu0
      %v2106 = vadd.f32 0.0, %v2105
      %v2107 = vpop.f32.mrb[0].mxu0
      %2108 = vmatprep.mubr.f32.mxu0 0.0
      %2109 = vmatmul.mubr.f32.gmra.mrb[0].mxu0 %v1893
      %v2110 = vpop.f32.mrb[0].mxu0
      %v2111 = vadd.f32 0.0, %v2110
      %v2112 = vpop.f32.mrb[0].mxu0
      %2113 = vmatprep.mubr.f32.mxu0 0.0
      %2114 = vmatmul.mubr.f32.gmra.mrb[0].mxu0 %v1896
      %v2115 = vpop.f32.mrb[0].mxu0
      %v2116 = vadd.f32 0.0, %v2115
      %v2117 = vpop.f32.mrb[0].mxu0
      %2118 = vmatprep.mubr.f32.mxu0 0.0
      %2119 = vmatmul.mubr.f32.gmra.mrb[0].mxu0 %v1899
      %v2120 = vpop.f32.mrb[0].mxu0
      %v2121 = vadd.f32 0.0, %v2120
      %v2122 = vpop.f32.mrb[0].mxu0
      %2123 = vmatprep.mubr.f32.mxu0 0.0
      %2124 = vmatmul.mubr.f32.gmra.mrb[0].mxu0 %v1902
      %v2125 = vpop.f32.mrb[0].mxu0
      %v2126 = vadd.f32 0.0, %v2125
      %v2127 = vpop.f32.mrb[0].mxu0
      %2128 = vdwg.mxu0
      %v2129 = vadd.f32 %v1739, %v1971
      %v2130 = vadd.f32 %v1740, %v1976
      %v2131 = vadd.f32 %v1741, %v1981
      %v2132 = vadd.f32 %v1742, %v1986
      %v2133 = vadd.f32 %v1743, %v1991
      %v2134 = vadd.f32 %v1744, %v1996
      %v2135 = vadd.f32 %v1745, %v2001
      %v2136 = vadd.f32 %v1746, %v2006
      %v2137 = vadd.f32 %v1747, %v2011
      %v2138 = vadd.f32 %v1748, %v2016
      %v2139 = vadd.f32 %v1749, %v2021
      %v2140 = vadd.f32 %v1750, %v2026
      %v2141 = vadd.f32 %v1751, %v2031
      %v2142 = vadd.f32 %v1752, %v2036
      %v2143 = vadd.f32 %v1753, %v2041
      %v2144 = vadd.f32 %v1754, %v2046
      %v2145 = vadd.f32 %v1755, %v2051
      %v2146 = vadd.f32 %v1756, %v2056
      %v2147 = vadd.f32 %v1757, %v2061
      %v2148 = vadd.f32 %v1758, %v2066
      %v2149 = vadd.f32 %v1759, %v2071
      %v2150 = vadd.f32 %v1760, %v2076
      %v2151 = vadd.f32 %v1761, %v2081
      %v2152 = vadd.f32 %v1762, %v2086
      %v2153 = vadd.f32 %v1763, %v2091
      %v2154 = vadd.f32 %v1764, %v2096
      %v2155 = vadd.f32 %v1765, %v2101
      %v2156 = vadd.f32 %v1766, %v2106
      %v2157 = vadd.f32 %v1767, %v2111
      %v2158 = vadd.f32 %v1768, %v2116
      %v2159 = vadd.f32 %v1769, %v2121
      %v2160 = vadd.f32 %v1770, %v2126
      %v2161 = vld [vmem:[%s243 + $0x2] sm:$0xff]
      %v2162 = vld [vmem:[%s243 + $0xa] sm:$0xff]
      %v2163 = vld [vmem:[%s243 + $0x1a] sm:$0xff]
      %v2164 = vld [vmem:[%s243 + $0x22] sm:$0xff]
      %v2165 = vld [vmem:[%s243 + $0x32] sm:$0xff]
      %v2166 = vld [vmem:[%s243 + $0x3a] sm:$0xff]
      %v2167 = vld [vmem:[%s243 + $0x4a] sm:$0xff]
      %v2168 = vld [vmem:[%s243 + $0x52] sm:$0xff]
      %v2169 = vld [vmem:[%s243 + $0x62] sm:$0xff]
      %v2170 = vld [vmem:[%s243 + $0x6a] sm:$0xff]
      %v2171 = vld [vmem:[%s243 + $0x7a] sm:$0xff]
      %v2172 = vld [vmem:[%s243 + $0x82] sm:$0xff]
      %v2173 = vld [vmem:[%s243 + $0x92] sm:$0xff]
      %v2174 = vld [vmem:[%s243 + $0x9a] sm:$0xff]
      %v2175 = vld [vmem:[%s243 + $0xaa] sm:$0xff]
      %v2176 = vld [vmem:[%s243 + $0xb2] sm:$0xff]
      %v2177 = vld [vmem:[%s243 + $0xc2] sm:$0xff]
      %v2178 = vld [vmem:[%s243 + $0xca] sm:$0xff]
      %v2179 = vld [vmem:[%s243 + $0xda] sm:$0xff]
      %v2180 = vld [vmem:[%s243 + $0xe2] sm:$0xff]
      %v2181 = vld [vmem:[%s243 + $0xf2] sm:$0xff]
      %v2182 = vld [vmem:[%s243 + $0xfa] sm:$0xff]
      %v2183 = vld [vmem:[%s243 + $0x10a] sm:$0xff]
      %v2184 = vld [vmem:[%s243 + $0x112] sm:$0xff]
      %v2185 = vld [vmem:[%s243 + $0x122] sm:$0xff]
      %v2186 = vld [vmem:[%s243 + $0x12a] sm:$0xff]
      %v2187 = vld [vmem:[%s243 + $0x13a] sm:$0xff]
      %v2188 = vld [vmem:[%s243 + $0x142] sm:$0xff]
      %v2189 = vld [vmem:[%s243 + $0x152] sm:$0xff]
      %v2190 = vld [vmem:[%s243 + $0x15a] sm:$0xff]
      %v2191 = vld [vmem:[%s243 + $0x16a] sm:$0xff]
      %v2192 = vld [vmem:[%s243 + $0x172] sm:$0xff]
      %s2193 = scalar_lea.vmem %s2, 160
      %v2194 = vld [vmem:[%s2193] sm:$0xff]
      %v2195 = vld [vmem:[%s2193 + $0x8] sm:$0xff]
      %v2196 = vld [vmem:[%s2193 + $0x10] sm:$0xff]
      %v2197 = vld [vmem:[%s2193 + $0x18] sm:$0xff]
      %v2199 = vsel %vm165, %v2161, 0
      %v2202 = vsel %vm165, %v2162, 0
      %v2205 = vsel %vm165, %v2163, 0
      %v2208 = vsel %vm165, %v2164, 0
      %v2211 = vsel %vm165, %v2165, 0
      %v2214 = vsel %vm165, %v2166, 0
      %v2217 = vsel %vm165, %v2167, 0
      %v2220 = vsel %vm165, %v2168, 0
      %v2223 = vsel %vm165, %v2169, 0
      %v2226 = vsel %vm165, %v2170, 0
      %v2229 = vsel %vm165, %v2171, 0
      %v2232 = vsel %vm165, %v2172, 0
      %v2235 = vsel %vm165, %v2173, 0
      %v2238 = vsel %vm165, %v2174, 0
      %v2241 = vsel %vm165, %v2175, 0
      %v2244 = vsel %vm165, %v2176, 0
      %v2247 = vsel %vm165, %v2177, 0
      %v2250 = vsel %vm165, %v2178, 0
      %v2253 = vsel %vm165, %v2179, 0
      %v2256 = vsel %vm165, %v2180, 0
      %v2259 = vsel %vm165, %v2181, 0
      %v2262 = vsel %vm165, %v2182, 0
      %v2265 = vsel %vm165, %v2183, 0
      %v2268 = vsel %vm165, %v2184, 0
      %v2271 = vsel %vm165, %v2185, 0
      %v2274 = vsel %vm165, %v2186, 0
      %v2277 = vsel %vm165, %v2187, 0
      %v2280 = vsel %vm165, %v2188, 0
      %v2283 = vsel %vm165, %v2189, 0
      %v2286 = vsel %vm165, %v2190, 0
      %v2289 = vsel %vm165, %v2191, 0
      %v2292 = vsel %vm165, %v2192, 0
      %2294 = vmatprep.subr.mxu0 0.0
      %2295 = vmatpush1.msra.mxu0 %v2194
      %2296 = vmatprep.subr.mxu0 0.0
      %2297 = vmatpush1.msra.mxu0 %v2195
      %2298 = vmatprep.subr.mxu0 0.0
      %2299 = vmatpush1.msra.mxu0 %v2196
      %2300 = vmatprep.subr.mxu0 0.0
      %2301 = vmatpush1.msra.mxu0 %v2197
      %2302 = vmatprep.subr.mxu0 0.0
      %2303 = vmatpush1.msra.mxu0 0.0
      %2304 = vmatprep.subr.mxu0 0.0
      %2305 = vmatpush1.msra.mxu0 0.0
      %2306 = vmatprep.subr.mxu0 0.0
      %2307 = vmatpush1.msra.mxu0 0.0
      %2308 = vmatprep.subr.mxu0 0.0
      %2309 = vmatpush1.msra.mxu0 0.0
      %2310 = vmatprep.subr.mxu0 0.0
      %2311 = vmatpush1.msra.mxu0 0.0
      %2312 = vmatprep.subr.mxu0 0.0
      %2313 = vmatpush1.msra.mxu0 0.0
      %2314 = vmatprep.subr.mxu0 0.0
      %2315 = vmatpush1.msra.mxu0 0.0
      %2316 = vmatprep.subr.mxu0 0.0
      %2317 = vmatpush1.msra.mxu0 0.0
      %2318 = vmatprep.subr.mxu0 0.0
      %2319 = vmatpush1.msra.mxu0 0.0
      %2320 = vmatprep.subr.mxu0 0.0
      %2321 = vmatpush1.msra.mxu0 0.0
      %2322 = vmatprep.subr.mxu0 0.0
      %2323 = vmatpush1.msra.mxu0 0.0
      %2324 = vmatprep.subr.mxu0 0.0
      %2325 = vmatpush1.msra.mxu0 0.0
      %2326 = vmatprep.subr.mxu0 0.0
      %2327 = vmatpush1.msra.mxu0 0.0
      %2328 = vmatprep.subr.mxu0 0.0
      %2329 = vmatpush1.msra.mxu0 0.0
      %2330 = vmatprep.subr.mxu0 0.0
      %2331 = vmatpush1.msra.mxu0 0.0
      %2332 = vmatprep.subr.mxu0 0.0
      %2333 = vmatpush1.msra.mxu0 0.0
      %2334 = vmatprep.subr.mxu0 0.0
      %2335 = vmatpush1.msra.mxu0 0.0
      %2336 = vmatprep.subr.mxu0 0.0
      %2337 = vmatpush1.msra.mxu0 0.0
      %2338 = vmatprep.subr.mxu0 0.0
      %2339 = vmatpush1.msra.mxu0 0.0
      %2340 = vmatprep.subr.mxu0 0.0
      %2341 = vmatpush1.msra.mxu0 0.0
      %2342 = vmatprep.subr.mxu0 0.0
      %2343 = vmatpush1.msra.mxu0 0.0
      %2344 = vmatprep.subr.mxu0 0.0
      %2345 = vmatpush1.msra.mxu0 0.0
      %2346 = vmatprep.subr.mxu0 0.0
      %2347 = vmatpush1.msra.mxu0 0.0
      %2348 = vmatprep.subr.mxu0 0.0
      %2349 = vmatpush1.msra.mxu0 0.0
      %2350 = vmatprep.subr.mxu0 0.0
      %2351 = vmatpush1.msra.mxu0 0.0
      %2352 = vmatprep.subr.mxu0 0.0
      %2353 = vmatpush1.msra.mxu0 0.0
      %2354 = vmatprep.subr.mxu0 0.0
      %2355 = vmatpush1.msra.mxu0 0.0
      %2356 = vmatprep.subr.mxu0 0.0
      %2357 = vmatpush1.msra.mxu0 0.0
      %2358 = vmatprep.mubr.f32.mxu0 0.0
      %2359 = vmatmul.mubr.f32.gmra.mrb[0].mxu0 %v2199
      %v2360 = vpop.f32.mrb[0].mxu0
      %v2361 = vadd.f32 0.0, %v2360
      %v2362 = vpop.f32.mrb[0].mxu0
      %2363 = vmatprep.mubr.f32.mxu0 0.0
      %2364 = vmatmul.mubr.f32.gmra.mrb[0].mxu0 %v2202
      %v2365 = vpop.f32.mrb[0].mxu0
      %v2366 = vadd.f32 0.0, %v2365
      %v2367 = vpop.f32.mrb[0].mxu0
      %2368 = vmatprep.mubr.f32.mxu0 0.0
      %2369 = vmatmul.mubr.f32.gmra.mrb[0].mxu0 %v2205
      %v2370 = vpop.f32.mrb[0].mxu0
      %v2371 = vadd.f32 0.0, %v2370
      %v2372 = vpop.f32.mrb[0].mxu0
      %2373 = vmatprep.mubr.f32.mxu0 0.0
      %2374 = vmatmul.mubr.f32.gmra.mrb[0].mxu0 %v2208
      %v2375 = vpop.f32.mrb[0].mxu0
      %v2376 = vadd.f32 0.0, %v2375
      %v2377 = vpop.f32.mrb[0].mxu0
      %2378 = vmatprep.mubr.f32.mxu0 0.0
      %2379 = vmatmul.mubr.f32.gmra.mrb[0].mxu0 %v2211
      %v2380 = vpop.f32.mrb[0].mxu0
      %v2381 = vadd.f32 0.0, %v2380
      %v2382 = vpop.f32.mrb[0].mxu0
      %2383 = vmatprep.mubr.f32.mxu0 0.0
      %2384 = vmatmul.mubr.f32.gmra.mrb[0].mxu0 %v2214
      %v2385 = vpop.f32.mrb[0].mxu0
      %v2386 = vadd.f32 0.0, %v2385
      %v2387 = vpop.f32.mrb[0].mxu0
      %2388 = vmatprep.mubr.f32.mxu0 0.0
      %2389 = vmatmul.mubr.f32.gmra.mrb[0].mxu0 %v2217
      %v2390 = vpop.f32.mrb[0].mxu0
      %v2391 = vadd.f32 0.0, %v2390
      %v2392 = vpop.f32.mrb[0].mxu0
      %2393 = vmatprep.mubr.f32.mxu0 0.0
      %2394 = vmatmul.mubr.f32.gmra.mrb[0].mxu0 %v2220
      %v2395 = vpop.f32.mrb[0].mxu0
      %v2396 = vadd.f32 0.0, %v2395
      %v2397 = vpop.f32.mrb[0].mxu0
      %2398 = vmatprep.mubr.f32.mxu0 0.0
      %2399 = vmatmul.mubr.f32.gmra.mrb[0].mxu0 %v2223
      %v2400 = vpop.f32.mrb[0].mxu0
      %v2401 = vadd.f32 0.0, %v2400
      %v2402 = vpop.f32.mrb[0].mxu0
      %2403 = vmatprep.mubr.f32.mxu0 0.0
      %2404 = vmatmul.mubr.f32.gmra.mrb[0].mxu0 %v2226
      %v2405 = vpop.f32.mrb[0].mxu0
      %v2406 = vadd.f32 0.0, %v2405
      %v2407 = vpop.f32.mrb[0].mxu0
      %2408 = vmatprep.mubr.f32.mxu0 0.0
      %2409 = vmatmul.mubr.f32.gmra.mrb[0].mxu0 %v2229
      %v2410 = vpop.f32.mrb[0].mxu0
      %v2411 = vadd.f32 0.0, %v2410
      %v2412 = vpop.f32.mrb[0].mxu0
      %2413 = vmatprep.mubr.f32.mxu0 0.0
      %2414 = vmatmul.mubr.f32.gmra.mrb[0].mxu0 %v2232
      %v2415 = vpop.f32.mrb[0].mxu0
      %v2416 = vadd.f32 0.0, %v2415
      %v2417 = vpop.f32.mrb[0].mxu0
      %2418 = vmatprep.mubr.f32.mxu0 0.0
      %2419 = vmatmul.mubr.f32.gmra.mrb[0].mxu0 %v2235
      %v2420 = vpop.f32.mrb[0].mxu0
      %v2421 = vadd.f32 0.0, %v2420
      %v2422 = vpop.f32.mrb[0].mxu0
      %2423 = vmatprep.mubr.f32.mxu0 0.0
      %2424 = vmatmul.mubr.f32.gmra.mrb[0].mxu0 %v2238
      %v2425 = vpop.f32.mrb[0].mxu0
      %v2426 = vadd.f32 0.0, %v2425
      %v2427 = vpop.f32.mrb[0].mxu0
      %2428 = vmatprep.mubr.f32.mxu0 0.0
      %2429 = vmatmul.mubr.f32.gmra.mrb[0].mxu0 %v2241
      %v2430 = vpop.f32.mrb[0].mxu0
      %v2431 = vadd.f32 0.0, %v2430
      %v2432 = vpop.f32.mrb[0].mxu0
      %2433 = vmatprep.mubr.f32.mxu0 0.0
      %2434 = vmatmul.mubr.f32.gmra.mrb[0].mxu0 %v2244
      %v2435 = vpop.f32.mrb[0].mxu0
      %v2436 = vadd.f32 0.0, %v2435
      %v2437 = vpop.f32.mrb[0].mxu0
      %2438 = vmatprep.mubr.f32.mxu0 0.0
      %2439 = vmatmul.mubr.f32.gmra.mrb[0].mxu0 %v2247
      %v2440 = vpop.f32.mrb[0].mxu0
      %v2441 = vadd.f32 0.0, %v2440
      %v2442 = vpop.f32.mrb[0].mxu0
      %2443 = vmatprep.mubr.f32.mxu0 0.0
      %2444 = vmatmul.mubr.f32.gmra.mrb[0].mxu0 %v2250
      %v2445 = vpop.f32.mrb[0].mxu0
      %v2446 = vadd.f32 0.0, %v2445
      %v2447 = vpop.f32.mrb[0].mxu0
      %2448 = vmatprep.mubr.f32.mxu0 0.0
      %2449 = vmatmul.mubr.f32.gmra.mrb[0].mxu0 %v2253
      %v2450 = vpop.f32.mrb[0].mxu0
      %v2451 = vadd.f32 0.0, %v2450
      %v2452 = vpop.f32.mrb[0].mxu0
      %2453 = vmatprep.mubr.f32.mxu0 0.0
      %2454 = vmatmul.mubr.f32.gmra.mrb[0].mxu0 %v2256
      %v2455 = vpop.f32.mrb[0].mxu0
      %v2456 = vadd.f32 0.0, %v2455
      %v2457 = vpop.f32.mrb[0].mxu0
      %2458 = vmatprep.mubr.f32.mxu0 0.0
      %2459 = vmatmul.mubr.f32.gmra.mrb[0].mxu0 %v2259
      %v2460 = vpop.f32.mrb[0].mxu0
      %v2461 = vadd.f32 0.0, %v2460
      %v2462 = vpop.f32.mrb[0].mxu0
      %2463 = vmatprep.mubr.f32.mxu0 0.0
      %2464 = vmatmul.mubr.f32.gmra.mrb[0].mxu0 %v2262
      %v2465 = vpop.f32.mrb[0].mxu0
      %v2466 = vadd.f32 0.0, %v2465
      %v2467 = vpop.f32.mrb[0].mxu0
      %2468 = vmatprep.mubr.f32.mxu0 0.0
      %2469 = vmatmul.mubr.f32.gmra.mrb[0].mxu0 %v2265
      %v2470 = vpop.f32.mrb[0].mxu0
      %v2471 = vadd.f32 0.0, %v2470
      %v2472 = vpop.f32.mrb[0].mxu0
      %2473 = vmatprep.mubr.f32.mxu0 0.0
      %2474 = vmatmul.mubr.f32.gmra.mrb[0].mxu0 %v2268
      %v2475 = vpop.f32.mrb[0].mxu0
      %v2476 = vadd.f32 0.0, %v2475
      %v2477 = vpop.f32.mrb[0].mxu0
      %2478 = vmatprep.mubr.f32.mxu0 0.0
      %2479 = vmatmul.mubr.f32.gmra.mrb[0].mxu0 %v2271
      %v2480 = vpop.f32.mrb[0].mxu0
      %v2481 = vadd.f32 0.0, %v2480
      %v2482 = vpop.f32.mrb[0].mxu0
      %2483 = vmatprep.mubr.f32.mxu0 0.0
      %2484 = vmatmul.mubr.f32.gmra.mrb[0].mxu0 %v2274
      %v2485 = vpop.f32.mrb[0].mxu0
      %v2486 = vadd.f32 0.0, %v2485
      %v2487 = vpop.f32.mrb[0].mxu0
      %2488 = vmatprep.mubr.f32.mxu0 0.0
      %2489 = vmatmul.mubr.f32.gmra.mrb[0].mxu0 %v2277
      %v2490 = vpop.f32.mrb[0].mxu0
      %v2491 = vadd.f32 0.0, %v2490
      %v2492 = vpop.f32.mrb[0].mxu0
      %2493 = vmatprep.mubr.f32.mxu0 0.0
      %2494 = vmatmul.mubr.f32.gmra.mrb[0].mxu0 %v2280
      %v2495 = vpop.f32.mrb[0].mxu0
      %v2496 = vadd.f32 0.0, %v2495
      %v2497 = vpop.f32.mrb[0].mxu0
      %2498 = vmatprep.mubr.f32.mxu0 0.0
      %2499 = vmatmul.mubr.f32.gmra.mrb[0].mxu0 %v2283
      %v2500 = vpop.f32.mrb[0].mxu0
      %v2501 = vadd.f32 0.0, %v2500
      %v2502 = vpop.f32.mrb[0].mxu0
      %2503 = vmatprep.mubr.f32.mxu0 0.0
      %2504 = vmatmul.mubr.f32.gmra.mrb[0].mxu0 %v2286
      %v2505 = vpop.f32.mrb[0].mxu0
      %v2506 = vadd.f32 0.0, %v2505
      %v2507 = vpop.f32.mrb[0].mxu0
      %2508 = vmatprep.mubr.f32.mxu0 0.0
      %2509 = vmatmul.mubr.f32.gmra.mrb[0].mxu0 %v2289
      %v2510 = vpop.f32.mrb[0].mxu0
      %v2511 = vadd.f32 0.0, %v2510
      %v2512 = vpop.f32.mrb[0].mxu0
      %2513 = vmatprep.mubr.f32.mxu0 0.0
      %2514 = vmatmul.mubr.f32.gmra.mrb[0].mxu0 %v2292
      %v2515 = vpop.f32.mrb[0].mxu0
      %v2516 = vadd.f32 0.0, %v2515
      %v2517 = vpop.f32.mrb[0].mxu0
      %2518 = vdwg.mxu0
      %v2519 = vadd.f32 %v2129, %v2361
      %v2520 = vadd.f32 %v2130, %v2366
      %v2521 = vadd.f32 %v2131, %v2371
      %v2522 = vadd.f32 %v2132, %v2376
      %v2523 = vadd.f32 %v2133, %v2381
      %v2524 = vadd.f32 %v2134, %v2386
      %v2525 = vadd.f32 %v2135, %v2391
      %v2526 = vadd.f32 %v2136, %v2396
      %v2527 = vadd.f32 %v2137, %v2401
      %v2528 = vadd.f32 %v2138, %v2406
      %v2529 = vadd.f32 %v2139, %v2411
      %v2530 = vadd.f32 %v2140, %v2416
      %v2531 = vadd.f32 %v2141, %v2421
      %v2532 = vadd.f32 %v2142, %v2426
      %v2533 = vadd.f32 %v2143, %v2431
      %v2534 = vadd.f32 %v2144, %v2436
      %v2535 = vadd.f32 %v2145, %v2441
      %v2536 = vadd.f32 %v2146, %v2446
      %v2537 = vadd.f32 %v2147, %v2451
      %v2538 = vadd.f32 %v2148, %v2456
      %v2539 = vadd.f32 %v2149, %v2461
      %v2540 = vadd.f32 %v2150, %v2466
      %v2541 = vadd.f32 %v2151, %v2471
      %v2542 = vadd.f32 %v2152, %v2476
      %v2543 = vadd.f32 %v2153, %v2481
      %v2544 = vadd.f32 %v2154, %v2486
      %v2545 = vadd.f32 %v2155, %v2491
      %v2546 = vadd.f32 %v2156, %v2496
      %v2547 = vadd.f32 %v2157, %v2501
      %v2548 = vadd.f32 %v2158, %v2506
      %v2549 = vadd.f32 %v2159, %v2511
      %v2550 = vadd.f32 %v2160, %v2516
      %s2551 = scalar_lea.vmem [#allocation2], 48
      %v2552 = vld [vmem:[%s2551] sm:$0xff]
      %v2553 = vld [vmem:[%s2551 + $0x8] sm:$0xff]
      %v2554 = vld [vmem:[%s2551 + $0x18] sm:$0xff]
      %v2555 = vld [vmem:[%s2551 + $0x20] sm:$0xff]
      %v2556 = vld [vmem:[%s2551 + $0x30] sm:$0xff]
      %v2557 = vld [vmem:[%s2551 + $0x38] sm:$0xff]
      %v2558 = vld [vmem:[%s2551 + $0x48] sm:$0xff]
      %v2559 = vld [vmem:[%s2551 + $0x50] sm:$0xff]
      %v2560 = vld [vmem:[%s2551 + $0x60] sm:$0xff]
      %v2561 = vld [vmem:[%s2551 + $0x68] sm:$0xff]
      %v2562 = vld [vmem:[%s2551 + $0x78] sm:$0xff]
      %v2563 = vld [vmem:[%s2551 + $0x80] sm:$0xff]
      %v2564 = vld [vmem:[%s2551 + $0x90] sm:$0xff]
      %v2565 = vld [vmem:[%s2551 + $0x98] sm:$0xff]
      %v2566 = vld [vmem:[%s2551 + $0xa8] sm:$0xff]
      %v2567 = vld [vmem:[%s2551 + $0xb0] sm:$0xff]
      %v2568 = vld [vmem:[%s2551 + $0xc0] sm:$0xff]
      %v2569 = vld [vmem:[%s2551 + $0xc8] sm:$0xff]
      %v2570 = vld [vmem:[%s2551 + $0xd8] sm:$0xff]
      %v2571 = vld [vmem:[%s2551 + $0xe0] sm:$0xff]
      %v2572 = vld [vmem:[%s2551 + $0xf0] sm:$0xff]
      %v2573 = vld [vmem:[%s2551 + $0xf8] sm:$0xff]
      %v2574 = vld [vmem:[%s2551 + $0x108] sm:$0xff]
      %v2575 = vld [vmem:[%s2551 + $0x110] sm:$0xff]
      %v2576 = vld [vmem:[%s2551 + $0x120] sm:$0xff]
      %v2577 = vld [vmem:[%s2551 + $0x128] sm:$0xff]
      %v2578 = vld [vmem:[%s2551 + $0x138] sm:$0xff]
      %v2579 = vld [vmem:[%s2551 + $0x140] sm:$0xff]
      %v2580 = vld [vmem:[%s2551 + $0x150] sm:$0xff]
      %v2581 = vld [vmem:[%s2551 + $0x158] sm:$0xff]
      %v2582 = vld [vmem:[%s2551 + $0x168] sm:$0xff]
      %v2583 = vld [vmem:[%s2551 + $0x170] sm:$0xff]
      %s2584 = scalar_lea.vmem %s2, 192
      %v2585 = vld [vmem:[%s2584] sm:$0xff]
      %v2586 = vld [vmem:[%s2584 + $0x8] sm:$0xff]
      %v2587 = vld [vmem:[%s2584 + $0x10] sm:$0xff]
      %v2588 = vld [vmem:[%s2584 + $0x18] sm:$0xff]
      %v2590 = vsel %vm165, %v2552, 0
      %v2593 = vsel %vm165, %v2553, 0
      %v2596 = vsel %vm165, %v2554, 0
      %v2599 = vsel %vm165, %v2555, 0
      %v2602 = vsel %vm165, %v2556, 0
      %v2605 = vsel %vm165, %v2557, 0
      %v2608 = vsel %vm165, %v2558, 0
      %v2611 = vsel %vm165, %v2559, 0
      %v2614 = vsel %vm165, %v2560, 0
      %v2617 = vsel %vm165, %v2561, 0
      %v2620 = vsel %vm165, %v2562, 0
      %v2623 = vsel %vm165, %v2563, 0
      %v2626 = vsel %vm165, %v2564, 0
      %v2629 = vsel %vm165, %v2565, 0
      %v2632 = vsel %vm165, %v2566, 0
      %v2635 = vsel %vm165, %v2567, 0
      %v2638 = vsel %vm165, %v2568, 0
      %v2641 = vsel %vm165, %v2569, 0
      %v2644 = vsel %vm165, %v2570, 0
      %v2647 = vsel %vm165, %v2571, 0
      %v2650 = vsel %vm165, %v2572, 0
      %v2653 = vsel %vm165, %v2573, 0
      %v2656 = vsel %vm165, %v2574, 0
      %v2659 = vsel %vm165, %v2575, 0
      %v2662 = vsel %vm165, %v2576, 0
      %v2665 = vsel %vm165, %v2577, 0
      %v2668 = vsel %vm165, %v2578, 0
      %v2671 = vsel %vm165, %v2579, 0
      %v2674 = vsel %vm165, %v2580, 0
      %v2677 = vsel %vm165, %v2581, 0
      %v2680 = vsel %vm165, %v2582, 0
      %v2683 = vsel %vm165, %v2583, 0
      %2685 = vmatprep.subr.mxu0 0.0
      %2686 = vmatpush1.msra.mxu0 %v2585
      %2687 = vmatprep.subr.mxu0 0.0
      %2688 = vmatpush1.msra.mxu0 %v2586
      %2689 = vmatprep.subr.mxu0 0.0
      %2690 = vmatpush1.msra.mxu0 %v2587
      %2691 = vmatprep.subr.mxu0 0.0
      %2692 = vmatpush1.msra.mxu0 %v2588
      %2693 = vmatprep.subr.mxu0 0.0
      %2694 = vmatpush1.msra.mxu0 0.0
      %2695 = vmatprep.subr.mxu0 0.0
      %2696 = vmatpush1.msra.mxu0 0.0
      %2697 = vmatprep.subr.mxu0 0.0
      %2698 = vmatpush1.msra.mxu0 0.0
      %2699 = vmatprep.subr.mxu0 0.0
      %2700 = vmatpush1.msra.mxu0 0.0
      %2701 = vmatprep.subr.mxu0 0.0
      %2702 = vmatpush1.msra.mxu0 0.0
      %2703 = vmatprep.subr.mxu0 0.0
      %2704 = vmatpush1.msra.mxu0 0.0
      %2705 = vmatprep.subr.mxu0 0.0
      %2706 = vmatpush1.msra.mxu0 0.0
      %2707 = vmatprep.subr.mxu0 0.0
      %2708 = vmatpush1.msra.mxu0 0.0
      %2709 = vmatprep.subr.mxu0 0.0
      %2710 = vmatpush1.msra.mxu0 0.0
      %2711 = vmatprep.subr.mxu0 0.0
      %2712 = vmatpush1.msra.mxu0 0.0
      %2713 = vmatprep.subr.mxu0 0.0
      %2714 = vmatpush1.msra.mxu0 0.0
      %2715 = vmatprep.subr.mxu0 0.0
      %2716 = vmatpush1.msra.mxu0 0.0
      %2717 = vmatprep.subr.mxu0 0.0
      %2718 = vmatpush1.msra.mxu0 0.0
      %2719 = vmatprep.subr.mxu0 0.0
      %2720 = vmatpush1.msra.mxu0 0.0
      %2721 = vmatprep.subr.mxu0 0.0
      %2722 = vmatpush1.msra.mxu0 0.0
      %2723 = vmatprep.subr.mxu0 0.0
      %2724 = vmatpush1.msra.mxu0 0.0
      %2725 = vmatprep.subr.mxu0 0.0
      %2726 = vmatpush1.msra.mxu0 0.0
      %2727 = vmatprep.subr.mxu0 0.0
      %2728 = vmatpush1.msra.mxu0 0.0
      %2729 = vmatprep.subr.mxu0 0.0
      %2730 = vmatpush1.msra.mxu0 0.0
      %2731 = vmatprep.subr.mxu0 0.0
      %2732 = vmatpush1.msra.mxu0 0.0
      %2733 = vmatprep.subr.mxu0 0.0
      %2734 = vmatpush1.msra.mxu0 0.0
      %2735 = vmatprep.subr.mxu0 0.0
      %2736 = vmatpush1.msra.mxu0 0.0
      %2737 = vmatprep.subr.mxu0 0.0
      %2738 = vmatpush1.msra.mxu0 0.0
      %2739 = vmatprep.subr.mxu0 0.0
      %2740 = vmatpush1.msra.mxu0 0.0
      %2741 = vmatprep.subr.mxu0 0.0
      %2742 = vmatpush1.msra.mxu0 0.0
      %2743 = vmatprep.subr.mxu0 0.0
      %2744 = vmatpush1.msra.mxu0 0.0
      %2745 = vmatprep.subr.mxu0 0.0
      %2746 = vmatpush1.msra.mxu0 0.0
      %2747 = vmatprep.subr.mxu0 0.0
      %2748 = vmatpush1.msra.mxu0 0.0
      %2749 = vmatprep.mubr.f32.mxu0 0.0
      %2750 = vmatmul.mubr.f32.gmra.mrb[0].mxu0 %v2590
      %v2751 = vpop.f32.mrb[0].mxu0
      %v2752 = vadd.f32 0.0, %v2751
      %v2753 = vpop.f32.mrb[0].mxu0
      %2754 = vmatprep.mubr.f32.mxu0 0.0
      %2755 = vmatmul.mubr.f32.gmra.mrb[0].mxu0 %v2593
      %v2756 = vpop.f32.mrb[0].mxu0
      %v2757 = vadd.f32 0.0, %v2756
      %v2758 = vpop.f32.mrb[0].mxu0
      %2759 = vmatprep.mubr.f32.mxu0 0.0
      %2760 = vmatmul.mubr.f32.gmra.mrb[0].mxu0 %v2596
      %v2761 = vpop.f32.mrb[0].mxu0
      %v2762 = vadd.f32 0.0, %v2761
      %v2763 = vpop.f32.mrb[0].mxu0
      %2764 = vmatprep.mubr.f32.mxu0 0.0
      %2765 = vmatmul.mubr.f32.gmra.mrb[0].mxu0 %v2599
      %v2766 = vpop.f32.mrb[0].mxu0
      %v2767 = vadd.f32 0.0, %v2766
      %v2768 = vpop.f32.mrb[0].mxu0
      %2769 = vmatprep.mubr.f32.mxu0 0.0
      %2770 = vmatmul.mubr.f32.gmra.mrb[0].mxu0 %v2602
      %v2771 = vpop.f32.mrb[0].mxu0
      %v2772 = vadd.f32 0.0, %v2771
      %v2773 = vpop.f32.mrb[0].mxu0
      %2774 = vmatprep.mubr.f32.mxu0 0.0
      %2775 = vmatmul.mubr.f32.gmra.mrb[0].mxu0 %v2605
      %v2776 = vpop.f32.mrb[0].mxu0
      %v2777 = vadd.f32 0.0, %v2776
      %v2778 = vpop.f32.mrb[0].mxu0
      %2779 = vmatprep.mubr.f32.mxu0 0.0
      %2780 = vmatmul.mubr.f32.gmra.mrb[0].mxu0 %v2608
      %v2781 = vpop.f32.mrb[0].mxu0
      %v2782 = vadd.f32 0.0, %v2781
      %v2783 = vpop.f32.mrb[0].mxu0
      %2784 = vmatprep.mubr.f32.mxu0 0.0
      %2785 = vmatmul.mubr.f32.gmra.mrb[0].mxu0 %v2611
      %v2786 = vpop.f32.mrb[0].mxu0
      %v2787 = vadd.f32 0.0, %v2786
      %v2788 = vpop.f32.mrb[0].mxu0
      %2789 = vmatprep.mubr.f32.mxu0 0.0
      %2790 = vmatmul.mubr.f32.gmra.mrb[0].mxu0 %v2614
      %v2791 = vpop.f32.mrb[0].mxu0
      %v2792 = vadd.f32 0.0, %v2791
      %v2793 = vpop.f32.mrb[0].mxu0
      %2794 = vmatprep.mubr.f32.mxu0 0.0
      %2795 = vmatmul.mubr.f32.gmra.mrb[0].mxu0 %v2617
      %v2796 = vpop.f32.mrb[0].mxu0
      %v2797 = vadd.f32 0.0, %v2796
      %v2798 = vpop.f32.mrb[0].mxu0
      %2799 = vmatprep.mubr.f32.mxu0 0.0
      %2800 = vmatmul.mubr.f32.gmra.mrb[0].mxu0 %v2620
      %v2801 = vpop.f32.mrb[0].mxu0
      %v2802 = vadd.f32 0.0, %v2801
      %v2803 = vpop.f32.mrb[0].mxu0
      %2804 = vmatprep.mubr.f32.mxu0 0.0
      %2805 = vmatmul.mubr.f32.gmra.mrb[0].mxu0 %v2623
      %v2806 = vpop.f32.mrb[0].mxu0
      %v2807 = vadd.f32 0.0, %v2806
      %v2808 = vpop.f32.mrb[0].mxu0
      %2809 = vmatprep.mubr.f32.mxu0 0.0
      %2810 = vmatmul.mubr.f32.gmra.mrb[0].mxu0 %v2626
      %v2811 = vpop.f32.mrb[0].mxu0
      %v2812 = vadd.f32 0.0, %v2811
      %v2813 = vpop.f32.mrb[0].mxu0
      %2814 = vmatprep.mubr.f32.mxu0 0.0
      %2815 = vmatmul.mubr.f32.gmra.mrb[0].mxu0 %v2629
      %v2816 = vpop.f32.mrb[0].mxu0
      %v2817 = vadd.f32 0.0, %v2816
      %v2818 = vpop.f32.mrb[0].mxu0
      %2819 = vmatprep.mubr.f32.mxu0 0.0
      %2820 = vmatmul.mubr.f32.gmra.mrb[0].mxu0 %v2632
      %v2821 = vpop.f32.mrb[0].mxu0
      %v2822 = vadd.f32 0.0, %v2821
      %v2823 = vpop.f32.mrb[0].mxu0
      %2824 = vmatprep.mubr.f32.mxu0 0.0
      %2825 = vmatmul.mubr.f32.gmra.mrb[0].mxu0 %v2635
      %v2826 = vpop.f32.mrb[0].mxu0
      %v2827 = vadd.f32 0.0, %v2826
      %v2828 = vpop.f32.mrb[0].mxu0
      %2829 = vmatprep.mubr.f32.mxu0 0.0
      %2830 = vmatmul.mubr.f32.gmra.mrb[0].mxu0 %v2638
      %v2831 = vpop.f32.mrb[0].mxu0
      %v2832 = vadd.f32 0.0, %v2831
      %v2833 = vpop.f32.mrb[0].mxu0
      %2834 = vmatprep.mubr.f32.mxu0 0.0
      %2835 = vmatmul.mubr.f32.gmra.mrb[0].mxu0 %v2641
      %v2836 = vpop.f32.mrb[0].mxu0
      %v2837 = vadd.f32 0.0, %v2836
      %v2838 = vpop.f32.mrb[0].mxu0
      %2839 = vmatprep.mubr.f32.mxu0 0.0
      %2840 = vmatmul.mubr.f32.gmra.mrb[0].mxu0 %v2644
      %v2841 = vpop.f32.mrb[0].mxu0
      %v2842 = vadd.f32 0.0, %v2841
      %v2843 = vpop.f32.mrb[0].mxu0
      %2844 = vmatprep.mubr.f32.mxu0 0.0
      %2845 = vmatmul.mubr.f32.gmra.mrb[0].mxu0 %v2647
      %v2846 = vpop.f32.mrb[0].mxu0
      %v2847 = vadd.f32 0.0, %v2846
      %v2848 = vpop.f32.mrb[0].mxu0
      %2849 = vmatprep.mubr.f32.mxu0 0.0
      %2850 = vmatmul.mubr.f32.gmra.mrb[0].mxu0 %v2650
      %v2851 = vpop.f32.mrb[0].mxu0
      %v2852 = vadd.f32 0.0, %v2851
      %v2853 = vpop.f32.mrb[0].mxu0
      %2854 = vmatprep.mubr.f32.mxu0 0.0
      %2855 = vmatmul.mubr.f32.gmra.mrb[0].mxu0 %v2653
      %v2856 = vpop.f32.mrb[0].mxu0
      %v2857 = vadd.f32 0.0, %v2856
      %v2858 = vpop.f32.mrb[0].mxu0
      %2859 = vmatprep.mubr.f32.mxu0 0.0
      %2860 = vmatmul.mubr.f32.gmra.mrb[0].mxu0 %v2656
      %v2861 = vpop.f32.mrb[0].mxu0
      %v2862 = vadd.f32 0.0, %v2861
      %v2863 = vpop.f32.mrb[0].mxu0
      %2864 = vmatprep.mubr.f32.mxu0 0.0
      %2865 = vmatmul.mubr.f32.gmra.mrb[0].mxu0 %v2659
      %v2866 = vpop.f32.mrb[0].mxu0
      %v2867 = vadd.f32 0.0, %v2866
      %v2868 = vpop.f32.mrb[0].mxu0
      %2869 = vmatprep.mubr.f32.mxu0 0.0
      %2870 = vmatmul.mubr.f32.gmra.mrb[0].mxu0 %v2662
      %v2871 = vpop.f32.mrb[0].mxu0
      %v2872 = vadd.f32 0.0, %v2871
      %v2873 = vpop.f32.mrb[0].mxu0
      %2874 = vmatprep.mubr.f32.mxu0 0.0
      %2875 = vmatmul.mubr.f32.gmra.mrb[0].mxu0 %v2665
      %v2876 = vpop.f32.mrb[0].mxu0
      %v2877 = vadd.f32 0.0, %v2876
      %v2878 = vpop.f32.mrb[0].mxu0
      %2879 = vmatprep.mubr.f32.mxu0 0.0
      %2880 = vmatmul.mubr.f32.gmra.mrb[0].mxu0 %v2668
      %v2881 = vpop.f32.mrb[0].mxu0
      %v2882 = vadd.f32 0.0, %v2881
      %v2883 = vpop.f32.mrb[0].mxu0
      %2884 = vmatprep.mubr.f32.mxu0 0.0
      %2885 = vmatmul.mubr.f32.gmra.mrb[0].mxu0 %v2671
      %v2886 = vpop.f32.mrb[0].mxu0
      %v2887 = vadd.f32 0.0, %v2886
      %v2888 = vpop.f32.mrb[0].mxu0
      %2889 = vmatprep.mubr.f32.mxu0 0.0
      %2890 = vmatmul.mubr.f32.gmra.mrb[0].mxu0 %v2674
      %v2891 = vpop.f32.mrb[0].mxu0
      %v2892 = vadd.f32 0.0, %v2891
      %v2893 = vpop.f32.mrb[0].mxu0
      %2894 = vmatprep.mubr.f32.mxu0 0.0
      %2895 = vmatmul.mubr.f32.gmra.mrb[0].mxu0 %v2677
      %v2896 = vpop.f32.mrb[0].mxu0
      %v2897 = vadd.f32 0.0, %v2896
      %v2898 = vpop.f32.mrb[0].mxu0
      %2899 = vmatprep.mubr.f32.mxu0 0.0
      %2900 = vmatmul.mubr.f32.gmra.mrb[0].mxu0 %v2680
      %v2901 = vpop.f32.mrb[0].mxu0
      %v2902 = vadd.f32 0.0, %v2901
      %v2903 = vpop.f32.mrb[0].mxu0
      %2904 = vmatprep.mubr.f32.mxu0 0.0
      %2905 = vmatmul.mubr.f32.gmra.mrb[0].mxu0 %v2683
      %v2906 = vpop.f32.mrb[0].mxu0
      %v2907 = vadd.f32 0.0, %v2906
      %v2908 = vpop.f32.mrb[0].mxu0
      %2909 = vdwg.mxu0
      %v2910 = vadd.f32 %v2519, %v2752
      %v2911 = vadd.f32 %v2520, %v2757
      %v2912 = vadd.f32 %v2521, %v2762
      %v2913 = vadd.f32 %v2522, %v2767
      %v2914 = vadd.f32 %v2523, %v2772
      %v2915 = vadd.f32 %v2524, %v2777
      %v2916 = vadd.f32 %v2525, %v2782
      %v2917 = vadd.f32 %v2526, %v2787
      %v2918 = vadd.f32 %v2527, %v2792
      %v2919 = vadd.f32 %v2528, %v2797
      %v2920 = vadd.f32 %v2529, %v2802
      %v2921 = vadd.f32 %v2530, %v2807
      %v2922 = vadd.f32 %v2531, %v2812
      %v2923 = vadd.f32 %v2532, %v2817
      %v2924 = vadd.f32 %v2533, %v2822
      %v2925 = vadd.f32 %v2534, %v2827
      %v2926 = vadd.f32 %v2535, %v2832
      %v2927 = vadd.f32 %v2536, %v2837
      %v2928 = vadd.f32 %v2537, %v2842
      %v2929 = vadd.f32 %v2538, %v2847
      %v2930 = vadd.f32 %v2539, %v2852
      %v2931 = vadd.f32 %v2540, %v2857
      %v2932 = vadd.f32 %v2541, %v2862
      %v2933 = vadd.f32 %v2542, %v2867
      %v2934 = vadd.f32 %v2543, %v2872
      %v2935 = vadd.f32 %v2544, %v2877
      %v2936 = vadd.f32 %v2545, %v2882
      %v2937 = vadd.f32 %v2546, %v2887
      %v2938 = vadd.f32 %v2547, %v2892
      %v2939 = vadd.f32 %v2548, %v2897
      %v2940 = vadd.f32 %v2549, %v2902
      %v2941 = vadd.f32 %v2550, %v2907
      %v2942 = vld [vmem:[%s2551 + $0x1] sm:$0xff]
      %v2943 = vld [vmem:[%s2551 + $0x9] sm:$0xff]
      %v2944 = vld [vmem:[%s2551 + $0x19] sm:$0xff]
      %v2945 = vld [vmem:[%s2551 + $0x21] sm:$0xff]
      %v2946 = vld [vmem:[%s2551 + $0x31] sm:$0xff]
      %v2947 = vld [vmem:[%s2551 + $0x39] sm:$0xff]
      %v2948 = vld [vmem:[%s2551 + $0x49] sm:$0xff]
      %v2949 = vld [vmem:[%s2551 + $0x51] sm:$0xff]
      %v2950 = vld [vmem:[%s2551 + $0x61] sm:$0xff]
      %v2951 = vld [vmem:[%s2551 + $0x69] sm:$0xff]
      %v2952 = vld [vmem:[%s2551 + $0x79] sm:$0xff]
      %v2953 = vld [vmem:[%s2551 + $0x81] sm:$0xff]
      %v2954 = vld [vmem:[%s2551 + $0x91] sm:$0xff]
      %v2955 = vld [vmem:[%s2551 + $0x99] sm:$0xff]
      %v2956 = vld [vmem:[%s2551 + $0xa9] sm:$0xff]
      %v2957 = vld [vmem:[%s2551 + $0xb1] sm:$0xff]
      %v2958 = vld [vmem:[%s2551 + $0xc1] sm:$0xff]
      %v2959 = vld [vmem:[%s2551 + $0xc9] sm:$0xff]
      %v2960 = vld [vmem:[%s2551 + $0xd9] sm:$0xff]
      %v2961 = vld [vmem:[%s2551 + $0xe1] sm:$0xff]
      %v2962 = vld [vmem:[%s2551 + $0xf1] sm:$0xff]
      %v2963 = vld [vmem:[%s2551 + $0xf9] sm:$0xff]
      %v2964 = vld [vmem:[%s2551 + $0x109] sm:$0xff]
      %v2965 = vld [vmem:[%s2551 + $0x111] sm:$0xff]
      %v2966 = vld [vmem:[%s2551 + $0x121] sm:$0xff]
      %v2967 = vld [vmem:[%s2551 + $0x129] sm:$0xff]
      %v2968 = vld [vmem:[%s2551 + $0x139] sm:$0xff]
      %v2969 = vld [vmem:[%s2551 + $0x141] sm:$0xff]
      %v2970 = vld [vmem:[%s2551 + $0x151] sm:$0xff]
      %v2971 = vld [vmem:[%s2551 + $0x159] sm:$0xff]
      %v2972 = vld [vmem:[%s2551 + $0x169] sm:$0xff]
      %v2973 = vld [vmem:[%s2551 + $0x171] sm:$0xff]
      %s2974 = scalar_lea.vmem %s2, 224
      %v2975 = vld [vmem:[%s2974] sm:$0xff]
      %v2976 = vld [vmem:[%s2974 + $0x8] sm:$0xff]
      %v2977 = vld [vmem:[%s2974 + $0x10] sm:$0xff]
      %v2978 = vld [vmem:[%s2974 + $0x18] sm:$0xff]
      %v2980 = vsel %vm165, %v2942, 0
      %v2983 = vsel %vm165, %v2943, 0
      %v2986 = vsel %vm165, %v2944, 0
      %v2989 = vsel %vm165, %v2945, 0
      %v2992 = vsel %vm165, %v2946, 0
      %v2995 = vsel %vm165, %v2947, 0
      %v2998 = vsel %vm165, %v2948, 0
      %v3001 = vsel %vm165, %v2949, 0
      %v3004 = vsel %vm165, %v2950, 0
      %v3007 = vsel %vm165, %v2951, 0
      %v3010 = vsel %vm165, %v2952, 0
      %v3013 = vsel %vm165, %v2953, 0
      %v3016 = vsel %vm165, %v2954, 0
      %v3019 = vsel %vm165, %v2955, 0
      %v3022 = vsel %vm165, %v2956, 0
      %v3025 = vsel %vm165, %v2957, 0
      %v3028 = vsel %vm165, %v2958, 0
      %v3031 = vsel %vm165, %v2959, 0
      %v3034 = vsel %vm165, %v2960, 0
      %v3037 = vsel %vm165, %v2961, 0
      %v3040 = vsel %vm165, %v2962, 0
      %v3043 = vsel %vm165, %v2963, 0
      %v3046 = vsel %vm165, %v2964, 0
      %v3049 = vsel %vm165, %v2965, 0
      %v3052 = vsel %vm165, %v2966, 0
      %v3055 = vsel %vm165, %v2967, 0
      %v3058 = vsel %vm165, %v2968, 0
      %v3061 = vsel %vm165, %v2969, 0
      %v3064 = vsel %vm165, %v2970, 0
      %v3067 = vsel %vm165, %v2971, 0
      %v3070 = vsel %vm165, %v2972, 0
      %v3073 = vsel %vm165, %v2973, 0
      %3075 = vmatprep.subr.mxu0 0.0
      %3076 = vmatpush1.msra.mxu0 %v2975
      %3077 = vmatprep.subr.mxu0 0.0
      %3078 = vmatpush1.msra.mxu0 %v2976
      %3079 = vmatprep.subr.mxu0 0.0
      %3080 = vmatpush1.msra.mxu0 %v2977
      %3081 = vmatprep.subr.mxu0 0.0
      %3082 = vmatpush1.msra.mxu0 %v2978
      %3083 = vmatprep.subr.mxu0 0.0
      %3084 = vmatpush1.msra.mxu0 0.0
      %3085 = vmatprep.subr.mxu0 0.0
      %3086 = vmatpush1.msra.mxu0 0.0
      %3087 = vmatprep.subr.mxu0 0.0
      %3088 = vmatpush1.msra.mxu0 0.0
      %3089 = vmatprep.subr.mxu0 0.0
      %3090 = vmatpush1.msra.mxu0 0.0
      %3091 = vmatprep.subr.mxu0 0.0
      %3092 = vmatpush1.msra.mxu0 0.0
      %3093 = vmatprep.subr.mxu0 0.0
      %3094 = vmatpush1.msra.mxu0 0.0
      %3095 = vmatprep.subr.mxu0 0.0
      %3096 = vmatpush1.msra.mxu0 0.0
      %3097 = vmatprep.subr.mxu0 0.0
      %3098 = vmatpush1.msra.mxu0 0.0
      %3099 = vmatprep.subr.mxu0 0.0
      %3100 = vmatpush1.msra.mxu0 0.0
      %3101 = vmatprep.subr.mxu0 0.0
      %3102 = vmatpush1.msra.mxu0 0.0
      %3103 = vmatprep.subr.mxu0 0.0
      %3104 = vmatpush1.msra.mxu0 0.0
      %3105 = vmatprep.subr.mxu0 0.0
      %3106 = vmatpush1.msra.mxu0 0.0
      %3107 = vmatprep.subr.mxu0 0.0
      %3108 = vmatpush1.msra.mxu0 0.0
      %3109 = vmatprep.subr.mxu0 0.0
      %3110 = vmatpush1.msra.mxu0 0.0
      %3111 = vmatprep.subr.mxu0 0.0
      %3112 = vmatpush1.msra.mxu0 0.0
      %3113 = vmatprep.subr.mxu0 0.0
      %3114 = vmatpush1.msra.mxu0 0.0
      %3115 = vmatprep.subr.mxu0 0.0
      %3116 = vmatpush1.msra.mxu0 0.0
      %3117 = vmatprep.subr.mxu0 0.0
      %3118 = vmatpush1.msra.mxu0 0.0
      %3119 = vmatprep.subr.mxu0 0.0
      %3120 = vmatpush1.msra.mxu0 0.0
      %3121 = vmatprep.subr.mxu0 0.0
      %3122 = vmatpush1.msra.mxu0 0.0
      %3123 = vmatprep.subr.mxu0 0.0
      %3124 = vmatpush1.msra.mxu0 0.0
      %3125 = vmatprep.subr.mxu0 0.0
      %3126 = vmatpush1.msra.mxu0 0.0
      %3127 = vmatprep.subr.mxu0 0.0
      %3128 = vmatpush1.msra.mxu0 0.0
      %3129 = vmatprep.subr.mxu0 0.0
      %3130 = vmatpush1.msra.mxu0 0.0
      %3131 = vmatprep.subr.mxu0 0.0
      %3132 = vmatpush1.msra.mxu0 0.0
      %3133 = vmatprep.subr.mxu0 0.0
      %3134 = vmatpush1.msra.mxu0 0.0
      %3135 = vmatprep.subr.mxu0 0.0
      %3136 = vmatpush1.msra.mxu0 0.0
      %3137 = vmatprep.subr.mxu0 0.0
      %3138 = vmatpush1.msra.mxu0 0.0
      %3139 = vmatprep.mubr.f32.mxu0 0.0
      %3140 = vmatmul.mubr.f32.gmra.mrb[0].mxu0 %v2980
      %v3141 = vpop.f32.mrb[0].mxu0
      %v3142 = vadd.f32 0.0, %v3141
      %v3143 = vpop.f32.mrb[0].mxu0
      %3144 = vmatprep.mubr.f32.mxu0 0.0
      %3145 = vmatmul.mubr.f32.gmra.mrb[0].mxu0 %v2983
      %v3146 = vpop.f32.mrb[0].mxu0
      %v3147 = vadd.f32 0.0, %v3146
      %v3148 = vpop.f32.mrb[0].mxu0
      %3149 = vmatprep.mubr.f32.mxu0 0.0
      %3150 = vmatmul.mubr.f32.gmra.mrb[0].mxu0 %v2986
      %v3151 = vpop.f32.mrb[0].mxu0
      %v3152 = vadd.f32 0.0, %v3151
      %v3153 = vpop.f32.mrb[0].mxu0
      %3154 = vmatprep.mubr.f32.mxu0 0.0
      %3155 = vmatmul.mubr.f32.gmra.mrb[0].mxu0 %v2989
      %v3156 = vpop.f32.mrb[0].mxu0
      %v3157 = vadd.f32 0.0, %v3156
      %v3158 = vpop.f32.mrb[0].mxu0
      %3159 = vmatprep.mubr.f32.mxu0 0.0
      %3160 = vmatmul.mubr.f32.gmra.mrb[0].mxu0 %v2992
      %v3161 = vpop.f32.mrb[0].mxu0
      %v3162 = vadd.f32 0.0, %v3161
      %v3163 = vpop.f32.mrb[0].mxu0
      %3164 = vmatprep.mubr.f32.mxu0 0.0
      %3165 = vmatmul.mubr.f32.gmra.mrb[0].mxu0 %v2995
      %v3166 = vpop.f32.mrb[0].mxu0
      %v3167 = vadd.f32 0.0, %v3166
      %v3168 = vpop.f32.mrb[0].mxu0
      %3169 = vmatprep.mubr.f32.mxu0 0.0
      %3170 = vmatmul.mubr.f32.gmra.mrb[0].mxu0 %v2998
      %v3171 = vpop.f32.mrb[0].mxu0
      %v3172 = vadd.f32 0.0, %v3171
      %v3173 = vpop.f32.mrb[0].mxu0
      %3174 = vmatprep.mubr.f32.mxu0 0.0
      %3175 = vmatmul.mubr.f32.gmra.mrb[0].mxu0 %v3001
      %v3176 = vpop.f32.mrb[0].mxu0
      %v3177 = vadd.f32 0.0, %v3176
      %v3178 = vpop.f32.mrb[0].mxu0
      %3179 = vmatprep.mubr.f32.mxu0 0.0
      %3180 = vmatmul.mubr.f32.gmra.mrb[0].mxu0 %v3004
      %v3181 = vpop.f32.mrb[0].mxu0
      %v3182 = vadd.f32 0.0, %v3181
      %v3183 = vpop.f32.mrb[0].mxu0
      %3184 = vmatprep.mubr.f32.mxu0 0.0
      %3185 = vmatmul.mubr.f32.gmra.mrb[0].mxu0 %v3007
      %v3186 = vpop.f32.mrb[0].mxu0
      %v3187 = vadd.f32 0.0, %v3186
      %v3188 = vpop.f32.mrb[0].mxu0
      %3189 = vmatprep.mubr.f32.mxu0 0.0
      %3190 = vmatmul.mubr.f32.gmra.mrb[0].mxu0 %v3010
      %v3191 = vpop.f32.mrb[0].mxu0
      %v3192 = vadd.f32 0.0, %v3191
      %v3193 = vpop.f32.mrb[0].mxu0
      %3194 = vmatprep.mubr.f32.mxu0 0.0
      %3195 = vmatmul.mubr.f32.gmra.mrb[0].mxu0 %v3013
      %v3196 = vpop.f32.mrb[0].mxu0
      %v3197 = vadd.f32 0.0, %v3196
      %v3198 = vpop.f32.mrb[0].mxu0
      %3199 = vmatprep.mubr.f32.mxu0 0.0
      %3200 = vmatmul.mubr.f32.gmra.mrb[0].mxu0 %v3016
      %v3201 = vpop.f32.mrb[0].mxu0
      %v3202 = vadd.f32 0.0, %v3201
      %v3203 = vpop.f32.mrb[0].mxu0
      %3204 = vmatprep.mubr.f32.mxu0 0.0
      %3205 = vmatmul.mubr.f32.gmra.mrb[0].mxu0 %v3019
      %v3206 = vpop.f32.mrb[0].mxu0
      %v3207 = vadd.f32 0.0, %v3206
      %v3208 = vpop.f32.mrb[0].mxu0
      %3209 = vmatprep.mubr.f32.mxu0 0.0
      %3210 = vmatmul.mubr.f32.gmra.mrb[0].mxu0 %v3022
      %v3211 = vpop.f32.mrb[0].mxu0
      %v3212 = vadd.f32 0.0, %v3211
      %v3213 = vpop.f32.mrb[0].mxu0
      %3214 = vmatprep.mubr.f32.mxu0 0.0
      %3215 = vmatmul.mubr.f32.gmra.mrb[0].mxu0 %v3025
      %v3216 = vpop.f32.mrb[0].mxu0
      %v3217 = vadd.f32 0.0, %v3216
      %v3218 = vpop.f32.mrb[0].mxu0
      %3219 = vmatprep.mubr.f32.mxu0 0.0
      %3220 = vmatmul.mubr.f32.gmra.mrb[0].mxu0 %v3028
      %v3221 = vpop.f32.mrb[0].mxu0
      %v3222 = vadd.f32 0.0, %v3221
      %v3223 = vpop.f32.mrb[0].mxu0
      %3224 = vmatprep.mubr.f32.mxu0 0.0
      %3225 = vmatmul.mubr.f32.gmra.mrb[0].mxu0 %v3031
      %v3226 = vpop.f32.mrb[0].mxu0
      %v3227 = vadd.f32 0.0, %v3226
      %v3228 = vpop.f32.mrb[0].mxu0
      %3229 = vmatprep.mubr.f32.mxu0 0.0
      %3230 = vmatmul.mubr.f32.gmra.mrb[0].mxu0 %v3034
      %v3231 = vpop.f32.mrb[0].mxu0
      %v3232 = vadd.f32 0.0, %v3231
      %v3233 = vpop.f32.mrb[0].mxu0
      %3234 = vmatprep.mubr.f32.mxu0 0.0
      %3235 = vmatmul.mubr.f32.gmra.mrb[0].mxu0 %v3037
      %v3236 = vpop.f32.mrb[0].mxu0
      %v3237 = vadd.f32 0.0, %v3236
      %v3238 = vpop.f32.mrb[0].mxu0
      %3239 = vmatprep.mubr.f32.mxu0 0.0
      %3240 = vmatmul.mubr.f32.gmra.mrb[0].mxu0 %v3040
      %v3241 = vpop.f32.mrb[0].mxu0
      %v3242 = vadd.f32 0.0, %v3241
      %v3243 = vpop.f32.mrb[0].mxu0
      %3244 = vmatprep.mubr.f32.mxu0 0.0
      %3245 = vmatmul.mubr.f32.gmra.mrb[0].mxu0 %v3043
      %v3246 = vpop.f32.mrb[0].mxu0
      %v3247 = vadd.f32 0.0, %v3246
      %v3248 = vpop.f32.mrb[0].mxu0
      %3249 = vmatprep.mubr.f32.mxu0 0.0
      %3250 = vmatmul.mubr.f32.gmra.mrb[0].mxu0 %v3046
      %v3251 = vpop.f32.mrb[0].mxu0
      %v3252 = vadd.f32 0.0, %v3251
      %v3253 = vpop.f32.mrb[0].mxu0
      %3254 = vmatprep.mubr.f32.mxu0 0.0
      %3255 = vmatmul.mubr.f32.gmra.mrb[0].mxu0 %v3049
      %v3256 = vpop.f32.mrb[0].mxu0
      %v3257 = vadd.f32 0.0, %v3256
      %v3258 = vpop.f32.mrb[0].mxu0
      %3259 = vmatprep.mubr.f32.mxu0 0.0
      %3260 = vmatmul.mubr.f32.gmra.mrb[0].mxu0 %v3052
      %v3261 = vpop.f32.mrb[0].mxu0
      %v3262 = vadd.f32 0.0, %v3261
      %v3263 = vpop.f32.mrb[0].mxu0
      %3264 = vmatprep.mubr.f32.mxu0 0.0
      %3265 = vmatmul.mubr.f32.gmra.mrb[0].mxu0 %v3055
      %v3266 = vpop.f32.mrb[0].mxu0
      %v3267 = vadd.f32 0.0, %v3266
      %v3268 = vpop.f32.mrb[0].mxu0
      %3269 = vmatprep.mubr.f32.mxu0 0.0
      %3270 = vmatmul.mubr.f32.gmra.mrb[0].mxu0 %v3058
      %v3271 = vpop.f32.mrb[0].mxu0
      %v3272 = vadd.f32 0.0, %v3271
      %v3273 = vpop.f32.mrb[0].mxu0
      %3274 = vmatprep.mubr.f32.mxu0 0.0
      %3275 = vmatmul.mubr.f32.gmra.mrb[0].mxu0 %v3061
      %v3276 = vpop.f32.mrb[0].mxu0
      %v3277 = vadd.f32 0.0, %v3276
      %v3278 = vpop.f32.mrb[0].mxu0
      %3279 = vmatprep.mubr.f32.mxu0 0.0
      %3280 = vmatmul.mubr.f32.gmra.mrb[0].mxu0 %v3064
      %v3281 = vpop.f32.mrb[0].mxu0
      %v3282 = vadd.f32 0.0, %v3281
      %v3283 = vpop.f32.mrb[0].mxu0
      %3284 = vmatprep.mubr.f32.mxu0 0.0
      %3285 = vmatmul.mubr.f32.gmra.mrb[0].mxu0 %v3067
      %v3286 = vpop.f32.mrb[0].mxu0
      %v3287 = vadd.f32 0.0, %v3286
      %v3288 = vpop.f32.mrb[0].mxu0
      %3289 = vmatprep.mubr.f32.mxu0 0.0
      %3290 = vmatmul.mubr.f32.gmra.mrb[0].mxu0 %v3070
      %v3291 = vpop.f32.mrb[0].mxu0
      %v3292 = vadd.f32 0.0, %v3291
      %v3293 = vpop.f32.mrb[0].mxu0
      %3294 = vmatprep.mubr.f32.mxu0 0.0
      %3295 = vmatmul.mubr.f32.gmra.mrb[0].mxu0 %v3073
      %v3296 = vpop.f32.mrb[0].mxu0
      %v3297 = vadd.f32 0.0, %v3296
      %v3298 = vpop.f32.mrb[0].mxu0
      %3299 = vdwg.mxu0
      %v3300 = vadd.f32 %v2910, %v3142
      %v3301 = vadd.f32 %v2911, %v3147
      %v3302 = vadd.f32 %v2912, %v3152
      %v3303 = vadd.f32 %v2913, %v3157
      %v3304 = vadd.f32 %v2914, %v3162
      %v3305 = vadd.f32 %v2915, %v3167
      %v3306 = vadd.f32 %v2916, %v3172
      %v3307 = vadd.f32 %v2917, %v3177
      %v3308 = vadd.f32 %v2918, %v3182
      %v3309 = vadd.f32 %v2919, %v3187
      %v3310 = vadd.f32 %v2920, %v3192
      %v3311 = vadd.f32 %v2921, %v3197
      %v3312 = vadd.f32 %v2922, %v3202
      %v3313 = vadd.f32 %v2923, %v3207
      %v3314 = vadd.f32 %v2924, %v3212
      %v3315 = vadd.f32 %v2925, %v3217
      %v3316 = vadd.f32 %v2926, %v3222
      %v3317 = vadd.f32 %v2927, %v3227
      %v3318 = vadd.f32 %v2928, %v3232
      %v3319 = vadd.f32 %v2929, %v3237
      %v3320 = vadd.f32 %v2930, %v3242
      %v3321 = vadd.f32 %v2931, %v3247
      %v3322 = vadd.f32 %v2932, %v3252
      %v3323 = vadd.f32 %v2933, %v3257
      %v3324 = vadd.f32 %v2934, %v3262
      %v3325 = vadd.f32 %v2935, %v3267
      %v3326 = vadd.f32 %v2936, %v3272
      %v3327 = vadd.f32 %v2937, %v3277
      %v3328 = vadd.f32 %v2938, %v3282
      %v3329 = vadd.f32 %v2939, %v3287
      %v3330 = vadd.f32 %v2940, %v3292
      %v3331 = vadd.f32 %v2941, %v3297
      %v3332 = vld [vmem:[%s2551 + $0x2] sm:$0xff]
      %v3333 = vld [vmem:[%s2551 + $0xa] sm:$0xff]
      %v3334 = vld [vmem:[%s2551 + $0x1a] sm:$0xff]
      %v3335 = vld [vmem:[%s2551 + $0x22] sm:$0xff]
      %v3336 = vld [vmem:[%s2551 + $0x32] sm:$0xff]
      %v3337 = vld [vmem:[%s2551 + $0x3a] sm:$0xff]
      %v3338 = vld [vmem:[%s2551 + $0x4a] sm:$0xff]
      %v3339 = vld [vmem:[%s2551 + $0x52] sm:$0xff]
      %v3340 = vld [vmem:[%s2551 + $0x62] sm:$0xff]
      %v3341 = vld [vmem:[%s2551 + $0x6a] sm:$0xff]
      %v3342 = vld [vmem:[%s2551 + $0x7a] sm:$0xff]
      %v3343 = vld [vmem:[%s2551 + $0x82] sm:$0xff]
      %v3344 = vld [vmem:[%s2551 + $0x92] sm:$0xff]
      %v3345 = vld [vmem:[%s2551 + $0x9a] sm:$0xff]
      %v3346 = vld [vmem:[%s2551 + $0xaa] sm:$0xff]
      %v3347 = vld [vmem:[%s2551 + $0xb2] sm:$0xff]
      %v3348 = vld [vmem:[%s2551 + $0xc2] sm:$0xff]
      %v3349 = vld [vmem:[%s2551 + $0xca] sm:$0xff]
      %v3350 = vld [vmem:[%s2551 + $0xda] sm:$0xff]
      %v3351 = vld [vmem:[%s2551 + $0xe2] sm:$0xff]
      %v3352 = vld [vmem:[%s2551 + $0xf2] sm:$0xff]
      %v3353 = vld [vmem:[%s2551 + $0xfa] sm:$0xff]
      %v3354 = vld [vmem:[%s2551 + $0x10a] sm:$0xff]
      %v3355 = vld [vmem:[%s2551 + $0x112] sm:$0xff]
      %v3356 = vld [vmem:[%s2551 + $0x122] sm:$0xff]
      %v3357 = vld [vmem:[%s2551 + $0x12a] sm:$0xff]
      %v3358 = vld [vmem:[%s2551 + $0x13a] sm:$0xff]
      %v3359 = vld [vmem:[%s2551 + $0x142] sm:$0xff]
      %v3360 = vld [vmem:[%s2551 + $0x152] sm:$0xff]
      %v3361 = vld [vmem:[%s2551 + $0x15a] sm:$0xff]
      %v3362 = vld [vmem:[%s2551 + $0x16a] sm:$0xff]
      %v3363 = vld [vmem:[%s2551 + $0x172] sm:$0xff]
      %s3364 = scalar_lea.vmem %s2, 256
      %v3365 = vld [vmem:[%s3364] sm:$0xff]
      %v3366 = vld [vmem:[%s3364 + $0x8] sm:$0xff]
      %v3367 = vld [vmem:[%s3364 + $0x10] sm:$0xff]
      %v3368 = vld [vmem:[%s3364 + $0x18] sm:$0xff]
      %v3370 = vsel %vm165, %v3332, 0
      %v3373 = vsel %vm165, %v3333, 0
      %v3376 = vsel %vm165, %v3334, 0
      %v3379 = vsel %vm165, %v3335, 0
      %v3382 = vsel %vm165, %v3336, 0
      %v3385 = vsel %vm165, %v3337, 0
      %v3388 = vsel %vm165, %v3338, 0
      %v3391 = vsel %vm165, %v3339, 0
      %v3394 = vsel %vm165, %v3340, 0
      %v3397 = vsel %vm165, %v3341, 0
      %v3400 = vsel %vm165, %v3342, 0
      %v3403 = vsel %vm165, %v3343, 0
      %v3406 = vsel %vm165, %v3344, 0
      %v3409 = vsel %vm165, %v3345, 0
      %v3412 = vsel %vm165, %v3346, 0
      %v3415 = vsel %vm165, %v3347, 0
      %v3418 = vsel %vm165, %v3348, 0
      %v3421 = vsel %vm165, %v3349, 0
      %v3424 = vsel %vm165, %v3350, 0
      %v3427 = vsel %vm165, %v3351, 0
      %v3430 = vsel %vm165, %v3352, 0
      %v3433 = vsel %vm165, %v3353, 0
      %v3436 = vsel %vm165, %v3354, 0
      %v3439 = vsel %vm165, %v3355, 0
      %v3442 = vsel %vm165, %v3356, 0
      %v3445 = vsel %vm165, %v3357, 0
      %v3448 = vsel %vm165, %v3358, 0
      %v3451 = vsel %vm165, %v3359, 0
      %v3454 = vsel %vm165, %v3360, 0
      %v3457 = vsel %vm165, %v3361, 0
      %v3460 = vsel %vm165, %v3362, 0
      %v3463 = vsel %vm165, %v3363, 0
      %3465 = vmatprep.subr.mxu0 0.0
      %3466 = vmatpush1.msra.mxu0 %v3365
      %3467 = vmatprep.subr.mxu0 0.0
      %3468 = vmatpush1.msra.mxu0 %v3366
      %3469 = vmatprep.subr.mxu0 0.0
      %3470 = vmatpush1.msra.mxu0 %v3367
      %3471 = vmatprep.subr.mxu0 0.0
      %3472 = vmatpush1.msra.mxu0 %v3368
      %3473 = vmatprep.subr.mxu0 0.0
      %3474 = vmatpush1.msra.mxu0 0.0
      %3475 = vmatprep.subr.mxu0 0.0
      %3476 = vmatpush1.msra.mxu0 0.0
      %3477 = vmatprep.subr.mxu0 0.0
      %3478 = vmatpush1.msra.mxu0 0.0
      %3479 = vmatprep.subr.mxu0 0.0
      %3480 = vmatpush1.msra.mxu0 0.0
      %3481 = vmatprep.subr.mxu0 0.0
      %3482 = vmatpush1.msra.mxu0 0.0
      %3483 = vmatprep.subr.mxu0 0.0
      %3484 = vmatpush1.msra.mxu0 0.0
      %3485 = vmatprep.subr.mxu0 0.0
      %3486 = vmatpush1.msra.mxu0 0.0
      %3487 = vmatprep.subr.mxu0 0.0
      %3488 = vmatpush1.msra.mxu0 0.0
      %3489 = vmatprep.subr.mxu0 0.0
      %3490 = vmatpush1.msra.mxu0 0.0
      %3491 = vmatprep.subr.mxu0 0.0
      %3492 = vmatpush1.msra.mxu0 0.0
      %3493 = vmatprep.subr.mxu0 0.0
      %3494 = vmatpush1.msra.mxu0 0.0
      %3495 = vmatprep.subr.mxu0 0.0
      %3496 = vmatpush1.msra.mxu0 0.0
      %3497 = vmatprep.subr.mxu0 0.0
      %3498 = vmatpush1.msra.mxu0 0.0
      %3499 = vmatprep.subr.mxu0 0.0
      %3500 = vmatpush1.msra.mxu0 0.0
      %3501 = vmatprep.subr.mxu0 0.0
      %3502 = vmatpush1.msra.mxu0 0.0
      %3503 = vmatprep.subr.mxu0 0.0
      %3504 = vmatpush1.msra.mxu0 0.0
      %3505 = vmatprep.subr.mxu0 0.0
      %3506 = vmatpush1.msra.mxu0 0.0
      %3507 = vmatprep.subr.mxu0 0.0
      %3508 = vmatpush1.msra.mxu0 0.0
      %3509 = vmatprep.subr.mxu0 0.0
      %3510 = vmatpush1.msra.mxu0 0.0
      %3511 = vmatprep.subr.mxu0 0.0
      %3512 = vmatpush1.msra.mxu0 0.0
      %3513 = vmatprep.subr.mxu0 0.0
      %3514 = vmatpush1.msra.mxu0 0.0
      %3515 = vmatprep.subr.mxu0 0.0
      %3516 = vmatpush1.msra.mxu0 0.0
      %3517 = vmatprep.subr.mxu0 0.0
      %3518 = vmatpush1.msra.mxu0 0.0
      %3519 = vmatprep.subr.mxu0 0.0
      %3520 = vmatpush1.msra.mxu0 0.0
      %3521 = vmatprep.subr.mxu0 0.0
      %3522 = vmatpush1.msra.mxu0 0.0
      %3523 = vmatprep.subr.mxu0 0.0
      %3524 = vmatpush1.msra.mxu0 0.0
      %3525 = vmatprep.subr.mxu0 0.0
      %3526 = vmatpush1.msra.mxu0 0.0
      %3527 = vmatprep.subr.mxu0 0.0
      %3528 = vmatpush1.msra.mxu0 0.0
      %3529 = vmatprep.mubr.f32.mxu0 0.0
      %3530 = vmatmul.mubr.f32.gmra.mrb[0].mxu0 %v3370
      %v3531 = vpop.f32.mrb[0].mxu0
      %v3532 = vadd.f32 0.0, %v3531
      %v3533 = vpop.f32.mrb[0].mxu0
      %3534 = vmatprep.mubr.f32.mxu0 0.0
      %3535 = vmatmul.mubr.f32.gmra.mrb[0].mxu0 %v3373
      %v3536 = vpop.f32.mrb[0].mxu0
      %v3537 = vadd.f32 0.0, %v3536
      %v3538 = vpop.f32.mrb[0].mxu0
      %3539 = vmatprep.mubr.f32.mxu0 0.0
      %3540 = vmatmul.mubr.f32.gmra.mrb[0].mxu0 %v3376
      %v3541 = vpop.f32.mrb[0].mxu0
      %v3542 = vadd.f32 0.0, %v3541
      %v3543 = vpop.f32.mrb[0].mxu0
      %3544 = vmatprep.mubr.f32.mxu0 0.0
      %3545 = vmatmul.mubr.f32.gmra.mrb[0].mxu0 %v3379
      %v3546 = vpop.f32.mrb[0].mxu0
      %v3547 = vadd.f32 0.0, %v3546
      %v3548 = vpop.f32.mrb[0].mxu0
      %3549 = vmatprep.mubr.f32.mxu0 0.0
      %3550 = vmatmul.mubr.f32.gmra.mrb[0].mxu0 %v3382
      %v3551 = vpop.f32.mrb[0].mxu0
      %v3552 = vadd.f32 0.0, %v3551
      %v3553 = vpop.f32.mrb[0].mxu0
      %3554 = vmatprep.mubr.f32.mxu0 0.0
      %3555 = vmatmul.mubr.f32.gmra.mrb[0].mxu0 %v3385
      %v3556 = vpop.f32.mrb[0].mxu0
      %v3557 = vadd.f32 0.0, %v3556
      %v3558 = vpop.f32.mrb[0].mxu0
      %3559 = vmatprep.mubr.f32.mxu0 0.0
      %3560 = vmatmul.mubr.f32.gmra.mrb[0].mxu0 %v3388
      %v3561 = vpop.f32.mrb[0].mxu0
      %v3562 = vadd.f32 0.0, %v3561
      %v3563 = vpop.f32.mrb[0].mxu0
      %3564 = vmatprep.mubr.f32.mxu0 0.0
      %3565 = vmatmul.mubr.f32.gmra.mrb[0].mxu0 %v3391
      %v3566 = vpop.f32.mrb[0].mxu0
      %v3567 = vadd.f32 0.0, %v3566
      %v3568 = vpop.f32.mrb[0].mxu0
      %3569 = vmatprep.mubr.f32.mxu0 0.0
      %3570 = vmatmul.mubr.f32.gmra.mrb[0].mxu0 %v3394
      %v3571 = vpop.f32.mrb[0].mxu0
      %v3572 = vadd.f32 0.0, %v3571
      %v3573 = vpop.f32.mrb[0].mxu0
      %3574 = vmatprep.mubr.f32.mxu0 0.0
      %3575 = vmatmul.mubr.f32.gmra.mrb[0].mxu0 %v3397
      %v3576 = vpop.f32.mrb[0].mxu0
      %v3577 = vadd.f32 0.0, %v3576
      %v3578 = vpop.f32.mrb[0].mxu0
      %3579 = vmatprep.mubr.f32.mxu0 0.0
      %3580 = vmatmul.mubr.f32.gmra.mrb[0].mxu0 %v3400
      %v3581 = vpop.f32.mrb[0].mxu0
      %v3582 = vadd.f32 0.0, %v3581
      %v3583 = vpop.f32.mrb[0].mxu0
      %3584 = vmatprep.mubr.f32.mxu0 0.0
      %3585 = vmatmul.mubr.f32.gmra.mrb[0].mxu0 %v3403
      %v3586 = vpop.f32.mrb[0].mxu0
      %v3587 = vadd.f32 0.0, %v3586
      %v3588 = vpop.f32.mrb[0].mxu0
      %3589 = vmatprep.mubr.f32.mxu0 0.0
      %3590 = vmatmul.mubr.f32.gmra.mrb[0].mxu0 %v3406
      %v3591 = vpop.f32.mrb[0].mxu0
      %v3592 = vadd.f32 0.0, %v3591
      %v3593 = vpop.f32.mrb[0].mxu0
      %3594 = vmatprep.mubr.f32.mxu0 0.0
      %3595 = vmatmul.mubr.f32.gmra.mrb[0].mxu0 %v3409
      %v3596 = vpop.f32.mrb[0].mxu0
      %v3597 = vadd.f32 0.0, %v3596
      %v3598 = vpop.f32.mrb[0].mxu0
      %3599 = vmatprep.mubr.f32.mxu0 0.0
      %3600 = vmatmul.mubr.f32.gmra.mrb[0].mxu0 %v3412
      %v3601 = vpop.f32.mrb[0].mxu0
      %v3602 = vadd.f32 0.0, %v3601
      %v3603 = vpop.f32.mrb[0].mxu0
      %3604 = vmatprep.mubr.f32.mxu0 0.0
      %3605 = vmatmul.mubr.f32.gmra.mrb[0].mxu0 %v3415
      %v3606 = vpop.f32.mrb[0].mxu0
      %v3607 = vadd.f32 0.0, %v3606
      %v3608 = vpop.f32.mrb[0].mxu0
      %3609 = vmatprep.mubr.f32.mxu0 0.0
      %3610 = vmatmul.mubr.f32.gmra.mrb[0].mxu0 %v3418
      %v3611 = vpop.f32.mrb[0].mxu0
      %v3612 = vadd.f32 0.0, %v3611
      %v3613 = vpop.f32.mrb[0].mxu0
      %3614 = vmatprep.mubr.f32.mxu0 0.0
      %3615 = vmatmul.mubr.f32.gmra.mrb[0].mxu0 %v3421
      %v3616 = vpop.f32.mrb[0].mxu0
      %v3617 = vadd.f32 0.0, %v3616
      %v3618 = vpop.f32.mrb[0].mxu0
      %3619 = vmatprep.mubr.f32.mxu0 0.0
      %3620 = vmatmul.mubr.f32.gmra.mrb[0].mxu0 %v3424
      %v3621 = vpop.f32.mrb[0].mxu0
      %v3622 = vadd.f32 0.0, %v3621
      %v3623 = vpop.f32.mrb[0].mxu0
      %3624 = vmatprep.mubr.f32.mxu0 0.0
      %3625 = vmatmul.mubr.f32.gmra.mrb[0].mxu0 %v3427
      %v3626 = vpop.f32.mrb[0].mxu0
      %v3627 = vadd.f32 0.0, %v3626
      %v3628 = vpop.f32.mrb[0].mxu0
      %3629 = vmatprep.mubr.f32.mxu0 0.0
      %3630 = vmatmul.mubr.f32.gmra.mrb[0].mxu0 %v3430
      %v3631 = vpop.f32.mrb[0].mxu0
      %v3632 = vadd.f32 0.0, %v3631
      %v3633 = vpop.f32.mrb[0].mxu0
      %3634 = vmatprep.mubr.f32.mxu0 0.0
      %3635 = vmatmul.mubr.f32.gmra.mrb[0].mxu0 %v3433
      %v3636 = vpop.f32.mrb[0].mxu0
      %v3637 = vadd.f32 0.0, %v3636
      %v3638 = vpop.f32.mrb[0].mxu0
      %3639 = vmatprep.mubr.f32.mxu0 0.0
      %3640 = vmatmul.mubr.f32.gmra.mrb[0].mxu0 %v3436
      %v3641 = vpop.f32.mrb[0].mxu0
      %v3642 = vadd.f32 0.0, %v3641
      %v3643 = vpop.f32.mrb[0].mxu0
      %3644 = vmatprep.mubr.f32.mxu0 0.0
      %3645 = vmatmul.mubr.f32.gmra.mrb[0].mxu0 %v3439
      %v3646 = vpop.f32.mrb[0].mxu0
      %v3647 = vadd.f32 0.0, %v3646
      %v3648 = vpop.f32.mrb[0].mxu0
      %3649 = vmatprep.mubr.f32.mxu0 0.0
      %3650 = vmatmul.mubr.f32.gmra.mrb[0].mxu0 %v3442
      %v3651 = vpop.f32.mrb[0].mxu0
      %v3652 = vadd.f32 0.0, %v3651
      %v3653 = vpop.f32.mrb[0].mxu0
      %3654 = vmatprep.mubr.f32.mxu0 0.0
      %3655 = vmatmul.mubr.f32.gmra.mrb[0].mxu0 %v3445
      %v3656 = vpop.f32.mrb[0].mxu0
      %v3657 = vadd.f32 0.0, %v3656
      %v3658 = vpop.f32.mrb[0].mxu0
      %3659 = vmatprep.mubr.f32.mxu0 0.0
      %3660 = vmatmul.mubr.f32.gmra.mrb[0].mxu0 %v3448
      %v3661 = vpop.f32.mrb[0].mxu0
      %v3662 = vadd.f32 0.0, %v3661
      %v3663 = vpop.f32.mrb[0].mxu0
      %3664 = vmatprep.mubr.f32.mxu0 0.0
      %3665 = vmatmul.mubr.f32.gmra.mrb[0].mxu0 %v3451
      %v3666 = vpop.f32.mrb[0].mxu0
      %v3667 = vadd.f32 0.0, %v3666
      %v3668 = vpop.f32.mrb[0].mxu0
      %3669 = vmatprep.mubr.f32.mxu0 0.0
      %3670 = vmatmul.mubr.f32.gmra.mrb[0].mxu0 %v3454
      %v3671 = vpop.f32.mrb[0].mxu0
      %v3672 = vadd.f32 0.0, %v3671
      %v3673 = vpop.f32.mrb[0].mxu0
      %3674 = vmatprep.mubr.f32.mxu0 0.0
      %3675 = vmatmul.mubr.f32.gmra.mrb[0].mxu0 %v3457
      %v3676 = vpop.f32.mrb[0].mxu0
      %v3677 = vadd.f32 0.0, %v3676
      %v3678 = vpop.f32.mrb[0].mxu0
      %3679 = vmatprep.mubr.f32.mxu0 0.0
      %3680 = vmatmul.mubr.f32.gmra.mrb[0].mxu0 %v3460
      %v3681 = vpop.f32.mrb[0].mxu0
      %v3682 = vadd.f32 0.0, %v3681
      %v3683 = vpop.f32.mrb[0].mxu0
      %3684 = vmatprep.mubr.f32.mxu0 0.0
      %3685 = vmatmul.mubr.f32.gmra.mrb[0].mxu0 %v3463
      %v3686 = vpop.f32.mrb[0].mxu0
      %v3687 = vadd.f32 0.0, %v3686
      %v3688 = vpop.f32.mrb[0].mxu0
      %3689 = vdwg.mxu0
      %v3690 = vadd.f32 %v3300, %v3532
      %v3691 = vadd.f32 %v3301, %v3537
      %v3692 = vadd.f32 %v3302, %v3542
      %v3693 = vadd.f32 %v3303, %v3547
      %v3694 = vadd.f32 %v3304, %v3552
      %v3695 = vadd.f32 %v3305, %v3557
      %v3696 = vadd.f32 %v3306, %v3562
      %v3697 = vadd.f32 %v3307, %v3567
      %v3698 = vadd.f32 %v3308, %v3572
      %v3699 = vadd.f32 %v3309, %v3577
      %v3700 = vadd.f32 %v3310, %v3582
      %v3701 = vadd.f32 %v3311, %v3587
      %v3702 = vadd.f32 %v3312, %v3592
      %v3703 = vadd.f32 %v3313, %v3597
      %v3704 = vadd.f32 %v3314, %v3602
      %v3705 = vadd.f32 %v3315, %v3607
      %v3706 = vadd.f32 %v3316, %v3612
      %v3707 = vadd.f32 %v3317, %v3617
      %v3708 = vadd.f32 %v3318, %v3622
      %v3709 = vadd.f32 %v3319, %v3627
      %v3710 = vadd.f32 %v3320, %v3632
      %v3711 = vadd.f32 %v3321, %v3637
      %v3712 = vadd.f32 %v3322, %v3642
      %v3713 = vadd.f32 %v3323, %v3647
      %v3714 = vadd.f32 %v3324, %v3652
      %v3715 = vadd.f32 %v3325, %v3657
      %v3716 = vadd.f32 %v3326, %v3662
      %v3717 = vadd.f32 %v3327, %v3667
      %v3718 = vadd.f32 %v3328, %v3672
      %v3719 = vadd.f32 %v3329, %v3677
      %v3720 = vadd.f32 %v3330, %v3682
      %v3721 = vadd.f32 %v3331, %v3687
      %p3722 = scmp.eq.s32.totalorder %s20, 0
      // Predicated region
      $region29: #{adaptive_block_forward.2} parent=27 // pred_check
        %p3723 = pneg %p3722
      $region30: #{adaptive_block_forward.2} parent=27 // pred_check_branch
        %3725 = sbr.rel (%p3723) target = $region32
      $region31: #{adaptive_block_forward.2} parent=27 // pred_region
        %v3726 = vsel %vm165, %v3690, 0.0
        %v3727 = vsel %vm165, %v3691, 0.0
        %v3728 = vadd.f32 %v3726, %v3727
        %v3729 = vsel %vm165, %v3692, 0.0
        %v3730 = vadd.f32 %v3728, %v3729
        %v3731 = vsel %vm165, %v3693, 0.0
        %v3732 = vadd.f32 %v3730, %v3731
        %v3733 = vsel %vm165, %v3694, 0.0
        %v3734 = vadd.f32 %v3732, %v3733
        %v3735 = vsel %vm165, %v3695, 0.0
        %v3736 = vadd.f32 %v3734, %v3735
        %v3737 = vsel %vm165, %v3696, 0.0
        %v3738 = vadd.f32 %v3736, %v3737
        %v3739 = vsel %vm165, %v3697, 0.0
        %v3740 = vadd.f32 %v3738, %v3739
        %v3741 = vsel %vm165, %v3698, 0.0
        %v3742 = vadd.f32 %v3740, %v3741
        %v3743 = vsel %vm165, %v3699, 0.0
        %v3744 = vadd.f32 %v3742, %v3743
        %v3745 = vsel %vm165, %v3700, 0.0
        %v3746 = vadd.f32 %v3744, %v3745
        %v3747 = vsel %vm165, %v3701, 0.0
        %v3748 = vadd.f32 %v3746, %v3747
        %v3749 = vsel %vm165, %v3702, 0.0
        %v3750 = vadd.f32 %v3748, %v3749
        %v3751 = vsel %vm165, %v3703, 0.0
        %v3752 = vadd.f32 %v3750, %v3751
        %v3753 = vsel %vm165, %v3704, 0.0
        %v3754 = vadd.f32 %v3752, %v3753
        %v3755 = vsel %vm165, %v3705, 0.0
        %v3756 = vadd.f32 %v3754, %v3755
        %v3757 = vsel %vm165, %v3706, 0.0
        %v3758 = vadd.f32 %v3756, %v3757
        %v3759 = vsel %vm165, %v3707, 0.0
        %v3760 = vadd.f32 %v3758, %v3759
        %v3761 = vsel %vm165, %v3708, 0.0
        %v3762 = vadd.f32 %v3760, %v3761
        %v3763 = vsel %vm165, %v3709, 0.0
        %v3764 = vadd.f32 %v3762, %v3763
        %v3765 = vsel %vm165, %v3710, 0.0
        %v3766 = vadd.f32 %v3764, %v3765
        %v3767 = vsel %vm165, %v3711, 0.0
        %v3768 = vadd.f32 %v3766, %v3767
        %v3769 = vsel %vm165, %v3712, 0.0
        %v3770 = vadd.f32 %v3768, %v3769
        %v3771 = vsel %vm165, %v3713, 0.0
        %v3772 = vadd.f32 %v3770, %v3771
        %v3773 = vsel %vm165, %v3714, 0.0
        %v3774 = vadd.f32 %v3772, %v3773
        %v3775 = vsel %vm165, %v3715, 0.0
        %v3776 = vadd.f32 %v3774, %v3775
        %v3777 = vsel %vm165, %v3716, 0.0
        %v3778 = vadd.f32 %v3776, %v3777
        %v3779 = vsel %vm165, %v3717, 0.0
        %v3780 = vadd.f32 %v3778, %v3779
        %v3781 = vsel %vm165, %v3718, 0.0
        %v3782 = vadd.f32 %v3780, %v3781
        %v3783 = vsel %vm165, %v3719, 0.0
        %v3784 = vadd.f32 %v3782, %v3783
        %v3785 = vsel %vm165, %v3720, 0.0
        %v3786 = vadd.f32 %v3784, %v3785
        %v3787 = vsel %vm165, %v3721, 0.0
        %v3788 = vadd.f32 %v3786, %v3787
        %v3789 = vrot.slane %v3788, 4
        %v3790 = vadd.f32 %v3788, %v3789
        %v3791 = vrot.slane %v3790, 2
        %v3792 = vadd.f32 %v3790, %v3791
        %v3793 = vrot.slane %v3792, 1
        %v3794 = vadd.f32 %v3792, %v3793
        %v3795 = vmul.f32 %v3690, %v3690
        %v3796 = vmul.f32 %v3691, %v3691
        %v3797 = vmul.f32 %v3692, %v3692
        %v3798 = vmul.f32 %v3693, %v3693
        %v3799 = vmul.f32 %v3694, %v3694
        %v3800 = vmul.f32 %v3695, %v3695
        %v3801 = vmul.f32 %v3696, %v3696
        %v3802 = vmul.f32 %v3697, %v3697
        %v3803 = vmul.f32 %v3698, %v3698
        %v3804 = vmul.f32 %v3699, %v3699
        %v3805 = vmul.f32 %v3700, %v3700
        %v3806 = vmul.f32 %v3701, %v3701
        %v3807 = vmul.f32 %v3702, %v3702
        %v3808 = vmul.f32 %v3703, %v3703
        %v3809 = vmul.f32 %v3704, %v3704
        %v3810 = vmul.f32 %v3705, %v3705
        %v3811 = vmul.f32 %v3706, %v3706
        %v3812 = vmul.f32 %v3707, %v3707
        %v3813 = vmul.f32 %v3708, %v3708
        %v3814 = vmul.f32 %v3709, %v3709
        %v3815 = vmul.f32 %v3710, %v3710
        %v3816 = vmul.f32 %v3711, %v3711
        %v3817 = vmul.f32 %v3712, %v3712
        %v3818 = vmul.f32 %v3713, %v3713
        %v3819 = vmul.f32 %v3714, %v3714
        %v3820 = vmul.f32 %v3715, %v3715
        %v3821 = vmul.f32 %v3716, %v3716
        %v3822 = vmul.f32 %v3717, %v3717
        %v3823 = vmul.f32 %v3718, %v3718
        %v3824 = vmul.f32 %v3719, %v3719
        %v3825 = vmul.f32 %v3720, %v3720
        %v3826 = vmul.f32 %v3721, %v3721
        %v3827 = vsel %vm165, %v3795, 0.0
        %v3828 = vsel %vm165, %v3796, 0.0
        %v3829 = vadd.f32 %v3827, %v3828
        %v3830 = vsel %vm165, %v3797, 0.0
        %v3831 = vadd.f32 %v3829, %v3830
        %v3832 = vsel %vm165, %v3798, 0.0
        %v3833 = vadd.f32 %v3831, %v3832
        %v3834 = vsel %vm165, %v3799, 0.0
        %v3835 = vadd.f32 %v3833, %v3834
        %v3836 = vsel %vm165, %v3800, 0.0
        %v3837 = vadd.f32 %v3835, %v3836
        %v3838 = vsel %vm165, %v3801, 0.0
        %v3839 = vadd.f32 %v3837, %v3838
        %v3840 = vsel %vm165, %v3802, 0.0
        %v3841 = vadd.f32 %v3839, %v3840
        %v3842 = vsel %vm165, %v3803, 0.0
        %v3843 = vadd.f32 %v3841, %v3842
        %v3844 = vsel %vm165, %v3804, 0.0
        %v3845 = vadd.f32 %v3843, %v3844
        %v3846 = vsel %vm165, %v3805, 0.0
        %v3847 = vadd.f32 %v3845, %v3846
        %v3848 = vsel %vm165, %v3806, 0.0
        %v3849 = vadd.f32 %v3847, %v3848
        %v3850 = vsel %vm165, %v3807, 0.0
        %v3851 = vadd.f32 %v3849, %v3850
        %v3852 = vsel %vm165, %v3808, 0.0
        %v3853 = vadd.f32 %v3851, %v3852
        %v3854 = vsel %vm165, %v3809, 0.0
        %v3855 = vadd.f32 %v3853, %v3854
        %v3856 = vsel %vm165, %v3810, 0.0
        %v3857 = vadd.f32 %v3855, %v3856
        %v3858 = vsel %vm165, %v3811, 0.0
        %v3859 = vadd.f32 %v3857, %v3858
        %v3860 = vsel %vm165, %v3812, 0.0
        %v3861 = vadd.f32 %v3859, %v3860
        %v3862 = vsel %vm165, %v3813, 0.0
        %v3863 = vadd.f32 %v3861, %v3862
        %v3864 = vsel %vm165, %v3814, 0.0
        %v3865 = vadd.f32 %v3863, %v3864
        %v3866 = vsel %vm165, %v3815, 0.0
        %v3867 = vadd.f32 %v3865, %v3866
        %v3868 = vsel %vm165, %v3816, 0.0
        %v3869 = vadd.f32 %v3867, %v3868
        %v3870 = vsel %vm165, %v3817, 0.0
        %v3871 = vadd.f32 %v3869, %v3870
        %v3872 = vsel %vm165, %v3818, 0.0
        %v3873 = vadd.f32 %v3871, %v3872
        %v3874 = vsel %vm165, %v3819, 0.0
        %v3875 = vadd.f32 %v3873, %v3874
        %v3876 = vsel %vm165, %v3820, 0.0
        %v3877 = vadd.f32 %v3875, %v3876
        %v3878 = vsel %vm165, %v3821, 0.0
        %v3879 = vadd.f32 %v3877, %v3878
        %v3880 = vsel %vm165, %v3822, 0.0
        %v3881 = vadd.f32 %v3879, %v3880
        %v3882 = vsel %vm165, %v3823, 0.0
        %v3883 = vadd.f32 %v3881, %v3882
        %v3884 = vsel %vm165, %v3824, 0.0
        %v3885 = vadd.f32 %v3883, %v3884
        %v3886 = vsel %vm165, %v3825, 0.0
        %v3887 = vadd.f32 %v3885, %v3886
        %v3888 = vsel %vm165, %v3826, 0.0
        %v3889 = vadd.f32 %v3887, %v3888
        %v3890 = vrot.slane %v3889, 4
        %v3891 = vadd.f32 %v3889, %v3890
        %v3892 = vrot.slane %v3891, 2
        %v3893 = vadd.f32 %v3891, %v3892
        %v3894 = vrot.slane %v3893, 1
        %v3895 = vadd.f32 %v3893, %v3894
        %v3896 = vmul.f32 %v3794, 0.00390625
        %v3897 = vmul.f32 %v3896, 256.0
        %v3898 = vmul.f32 %v3897, %v3896
        %v3899 = vsub.f32 %v3895, %v3898
        %v3900 = vmul.f32 %v3899, 0.003921569
        %v3901 = vadd.f32 %v3900, 1e-05
        %3902 = vst.msk [vmem:[#allocation3] sm:$0x1] %vm174, %v3896
        %v3903 = vrsqrt.pop %v3901
        %v3904 = vmul.f32 %v3901, %v3903
        %vm3905 = vcmp.eq.f32.partialorder %v3901, inf
        %v3906 = vsel %vm3905, %v3901, %v3904
        %vm3907 = vcmp.eq.f32.partialorder %v3901, 0.0
        %v3908 = vand.u32 %v3901, 2147483648
        %v3909 = vsel %vm3907, %v3908, %v3906
        %3910 = vst.msk [vmem:[#allocation4] sm:$0x1] %vm174, %v3909
      $region32: #{adaptive_block_forward.2} parent=27 // pred_fallthru
        _
      // Predicated region
      $region33: #{adaptive_block_forward.2} parent=27 // pred_check
        %p3911 = pneg %p164
      $region34: #{adaptive_block_forward.2} parent=27 // pred_check_branch
        %3913 = sbr.rel (%p3911) target = $region36
      $region35: #{adaptive_block_forward.2} parent=27 // pred_region
        %v3914 = vsel %vm165, %v3690, 0.0
        %v3915 = vsel %vm165, %v3691, 0.0
        %v3916 = vadd.f32 %v3914, %v3915
        %v3917 = vsel %vm165, %v3692, 0.0
        %v3918 = vadd.f32 %v3916, %v3917
        %v3919 = vsel %vm165, %v3693, 0.0
        %v3920 = vadd.f32 %v3918, %v3919
        %v3921 = vsel %vm165, %v3694, 0.0
        %v3922 = vadd.f32 %v3920, %v3921
        %v3923 = vsel %vm165, %v3695, 0.0
        %v3924 = vadd.f32 %v3922, %v3923
        %v3925 = vsel %vm165, %v3696, 0.0
        %v3926 = vadd.f32 %v3924, %v3925
        %v3927 = vsel %vm165, %v3697, 0.0
        %v3928 = vadd.f32 %v3926, %v3927
        %v3929 = vsel %vm165, %v3698, 0.0
        %v3930 = vadd.f32 %v3928, %v3929
        %v3931 = vsel %vm165, %v3699, 0.0
        %v3932 = vadd.f32 %v3930, %v3931
        %v3933 = vsel %vm165, %v3700, 0.0
        %v3934 = vadd.f32 %v3932, %v3933
        %v3935 = vsel %vm165, %v3701, 0.0
        %v3936 = vadd.f32 %v3934, %v3935
        %v3937 = vsel %vm165, %v3702, 0.0
        %v3938 = vadd.f32 %v3936, %v3937
        %v3939 = vsel %vm165, %v3703, 0.0
        %v3940 = vadd.f32 %v3938, %v3939
        %v3941 = vsel %vm165, %v3704, 0.0
        %v3942 = vadd.f32 %v3940, %v3941
        %v3943 = vsel %vm165, %v3705, 0.0
        %v3944 = vadd.f32 %v3942, %v3943
        %v3945 = vsel %vm165, %v3706, 0.0
        %v3946 = vadd.f32 %v3944, %v3945
        %v3947 = vsel %vm165, %v3707, 0.0
        %v3948 = vadd.f32 %v3946, %v3947
        %v3949 = vsel %vm165, %v3708, 0.0
        %v3950 = vadd.f32 %v3948, %v3949
        %v3951 = vsel %vm165, %v3709, 0.0
        %v3952 = vadd.f32 %v3950, %v3951
        %v3953 = vsel %vm165, %v3710, 0.0
        %v3954 = vadd.f32 %v3952, %v3953
        %v3955 = vsel %vm165, %v3711, 0.0
        %v3956 = vadd.f32 %v3954, %v3955
        %v3957 = vsel %vm165, %v3712, 0.0
        %v3958 = vadd.f32 %v3956, %v3957
        %v3959 = vsel %vm165, %v3713, 0.0
        %v3960 = vadd.f32 %v3958, %v3959
        %v3961 = vsel %vm165, %v3714, 0.0
        %v3962 = vadd.f32 %v3960, %v3961
        %v3963 = vsel %vm165, %v3715, 0.0
        %v3964 = vadd.f32 %v3962, %v3963
        %v3965 = vsel %vm165, %v3716, 0.0
        %v3966 = vadd.f32 %v3964, %v3965
        %v3967 = vsel %vm165, %v3717, 0.0
        %v3968 = vadd.f32 %v3966, %v3967
        %v3969 = vsel %vm165, %v3718, 0.0
        %v3970 = vadd.f32 %v3968, %v3969
        %v3971 = vsel %vm165, %v3719, 0.0
        %v3972 = vadd.f32 %v3970, %v3971
        %v3973 = vsel %vm165, %v3720, 0.0
        %v3974 = vadd.f32 %v3972, %v3973
        %v3975 = vsel %vm165, %v3721, 0.0
        %v3976 = vadd.f32 %v3974, %v3975
        %v3977 = vrot.slane %v3976, 4
        %v3978 = vadd.f32 %v3976, %v3977
        %v3979 = vrot.slane %v3978, 2
        %v3980 = vadd.f32 %v3978, %v3979
        %v3981 = vrot.slane %v3980, 1
        %v3982 = vadd.f32 %v3980, %v3981
        %v3983 = vmul.f32 %v3690, %v3690
        %v3984 = vmul.f32 %v3691, %v3691
        %v3985 = vmul.f32 %v3692, %v3692
        %v3986 = vmul.f32 %v3693, %v3693
        %v3987 = vmul.f32 %v3694, %v3694
        %v3988 = vmul.f32 %v3695, %v3695
        %v3989 = vmul.f32 %v3696, %v3696
        %v3990 = vmul.f32 %v3697, %v3697
        %v3991 = vmul.f32 %v3698, %v3698
        %v3992 = vmul.f32 %v3699, %v3699
        %v3993 = vmul.f32 %v3700, %v3700
        %v3994 = vmul.f32 %v3701, %v3701
        %v3995 = vmul.f32 %v3702, %v3702
        %v3996 = vmul.f32 %v3703, %v3703
        %v3997 = vmul.f32 %v3704, %v3704
        %v3998 = vmul.f32 %v3705, %v3705
        %v3999 = vmul.f32 %v3706, %v3706
        %v4000 = vmul.f32 %v3707, %v3707
        %v4001 = vmul.f32 %v3708, %v3708
        %v4002 = vmul.f32 %v3709, %v3709
        %v4003 = vmul.f32 %v3710, %v3710
        %v4004 = vmul.f32 %v3711, %v3711
        %v4005 = vmul.f32 %v3712, %v3712
        %v4006 = vmul.f32 %v3713, %v3713
        %v4007 = vmul.f32 %v3714, %v3714
        %v4008 = vmul.f32 %v3715, %v3715
        %v4009 = vmul.f32 %v3716, %v3716
        %v4010 = vmul.f32 %v3717, %v3717
        %v4011 = vmul.f32 %v3718, %v3718
        %v4012 = vmul.f32 %v3719, %v3719
        %v4013 = vmul.f32 %v3720, %v3720
        %v4014 = vmul.f32 %v3721, %v3721
        %v4015 = vsel %vm165, %v3983, 0.0
        %v4016 = vsel %vm165, %v3984, 0.0
        %v4017 = vadd.f32 %v4015, %v4016
        %v4018 = vsel %vm165, %v3985, 0.0
        %v4019 = vadd.f32 %v4017, %v4018
        %v4020 = vsel %vm165, %v3986, 0.0
        %v4021 = vadd.f32 %v4019, %v4020
        %v4022 = vsel %vm165, %v3987, 0.0
        %v4023 = vadd.f32 %v4021, %v4022
        %v4024 = vsel %vm165, %v3988, 0.0
        %v4025 = vadd.f32 %v4023, %v4024
        %v4026 = vsel %vm165, %v3989, 0.0
        %v4027 = vadd.f32 %v4025, %v4026
        %v4028 = vsel %vm165, %v3990, 0.0
        %v4029 = vadd.f32 %v4027, %v4028
        %v4030 = vsel %vm165, %v3991, 0.0
        %v4031 = vadd.f32 %v4029, %v4030
        %v4032 = vsel %vm165, %v3992, 0.0
        %v4033 = vadd.f32 %v4031, %v4032
        %v4034 = vsel %vm165, %v3993, 0.0
        %v4035 = vadd.f32 %v4033, %v4034
        %v4036 = vsel %vm165, %v3994, 0.0
        %v4037 = vadd.f32 %v4035, %v4036
        %v4038 = vsel %vm165, %v3995, 0.0
        %v4039 = vadd.f32 %v4037, %v4038
        %v4040 = vsel %vm165, %v3996, 0.0
        %v4041 = vadd.f32 %v4039, %v4040
        %v4042 = vsel %vm165, %v3997, 0.0
        %v4043 = vadd.f32 %v4041, %v4042
        %v4044 = vsel %vm165, %v3998, 0.0
        %v4045 = vadd.f32 %v4043, %v4044
        %v4046 = vsel %vm165, %v3999, 0.0
        %v4047 = vadd.f32 %v4045, %v4046
        %v4048 = vsel %vm165, %v4000, 0.0
        %v4049 = vadd.f32 %v4047, %v4048
        %v4050 = vsel %vm165, %v4001, 0.0
        %v4051 = vadd.f32 %v4049, %v4050
        %v4052 = vsel %vm165, %v4002, 0.0
        %v4053 = vadd.f32 %v4051, %v4052
        %v4054 = vsel %vm165, %v4003, 0.0
        %v4055 = vadd.f32 %v4053, %v4054
        %v4056 = vsel %vm165, %v4004, 0.0
        %v4057 = vadd.f32 %v4055, %v4056
        %v4058 = vsel %vm165, %v4005, 0.0
        %v4059 = vadd.f32 %v4057, %v4058
        %v4060 = vsel %vm165, %v4006, 0.0
        %v4061 = vadd.f32 %v4059, %v4060
        %v4062 = vsel %vm165, %v4007, 0.0
        %v4063 = vadd.f32 %v4061, %v4062
        %v4064 = vsel %vm165, %v4008, 0.0
        %v4065 = vadd.f32 %v4063, %v4064
        %v4066 = vsel %vm165, %v4009, 0.0
        %v4067 = vadd.f32 %v4065, %v4066
        %v4068 = vsel %vm165, %v4010, 0.0
        %v4069 = vadd.f32 %v4067, %v4068
        %v4070 = vsel %vm165, %v4011, 0.0
        %v4071 = vadd.f32 %v4069, %v4070
        %v4072 = vsel %vm165, %v4012, 0.0
        %v4073 = vadd.f32 %v4071, %v4072
        %v4074 = vsel %vm165, %v4013, 0.0
        %v4075 = vadd.f32 %v4073, %v4074
        %v4076 = vsel %vm165, %v4014, 0.0
        %v4077 = vadd.f32 %v4075, %v4076
        %v4078 = vrot.slane %v4077, 4
        %v4079 = vadd.f32 %v4077, %v4078
        %v4080 = vrot.slane %v4079, 2
        %v4081 = vadd.f32 %v4079, %v4080
        %v4082 = vrot.slane %v4081, 1
        %v4083 = vadd.f32 %v4081, %v4082
        %v4084 = vmul.f32 %v3982, 0.00390625
        %v4085 = vmul.f32 %v4084, 256.0
        %v4086 = vmul.f32 %v4085, %v4084
        %v4087 = vsub.f32 %v4083, %v4086
        %v4088 = vmul.f32 %v4087, 0.003921569
        %v4089 = vadd.f32 %v4088, 1e-05
        %v4090 = vld [vmem:[#allocation4] sm:$0x1]
        %v4091 = vrsqrt.pop %v4089
        %v4092 = vmul.f32 %v4090, %v4091
        %v4093 = vld [vmem:[#allocation3] sm:$0x1]
        %v4094 = vmul.f32 %v4084, %v4092
        %v4095 = vsub.f32 %v4093, %v4094
        %v4097 = vlaneseq
        %v4098 = vshrl.u32 %v4097, 7
        %v4099 = vsub.s32 0, %v4098
        %v4100 = vrot.slane %v4092, %v4099
        %v4102 = vmul.f32 %v3690, %v4100
        %v4103 = vmul.f32 %v3691, %v4100
        %v4104 = vmul.f32 %v3692, %v4100
        %v4105 = vmul.f32 %v3693, %v4100
        %v4106 = vmul.f32 %v3694, %v4100
        %v4107 = vmul.f32 %v3695, %v4100
        %v4108 = vmul.f32 %v3696, %v4100
        %v4109 = vmul.f32 %v3697, %v4100
        %v4110 = vmul.f32 %v3698, %v4100
        %v4111 = vmul.f32 %v3699, %v4100
        %v4112 = vmul.f32 %v3700, %v4100
        %v4113 = vmul.f32 %v3701, %v4100
        %v4114 = vmul.f32 %v3702, %v4100
        %v4115 = vmul.f32 %v3703, %v4100
        %v4116 = vmul.f32 %v3704, %v4100
        %v4117 = vmul.f32 %v3705, %v4100
        %v4118 = vmul.f32 %v3706, %v4100
        %v4119 = vmul.f32 %v3707, %v4100
        %v4120 = vmul.f32 %v3708, %v4100
        %v4121 = vmul.f32 %v3709, %v4100
        %v4122 = vmul.f32 %v3710, %v4100
        %v4123 = vmul.f32 %v3711, %v4100
        %v4124 = vmul.f32 %v3712, %v4100
        %v4125 = vmul.f32 %v3713, %v4100
        %v4126 = vmul.f32 %v3714, %v4100
        %v4127 = vmul.f32 %v3715, %v4100
        %v4128 = vmul.f32 %v3716, %v4100
        %v4129 = vmul.f32 %v3717, %v4100
        %v4130 = vmul.f32 %v3718, %v4100
        %v4131 = vmul.f32 %v3719, %v4100
        %v4132 = vmul.f32 %v3720, %v4100
        %v4133 = vmul.f32 %v3721, %v4100
        %v4135 = vlaneseq
        %v4136 = vshrl.u32 %v4135, 7
        %v4137 = vsub.s32 0, %v4136
        %v4138 = vrot.slane %v4095, %v4137
        %v4140 = vadd.f32 %v4102, %v4138
        %v4141 = vadd.f32 %v4103, %v4138
        %v4142 = vadd.f32 %v4104, %v4138
        %v4143 = vadd.f32 %v4105, %v4138
        %v4144 = vadd.f32 %v4106, %v4138
        %v4145 = vadd.f32 %v4107, %v4138
        %v4146 = vadd.f32 %v4108, %v4138
        %v4147 = vadd.f32 %v4109, %v4138
        %v4148 = vadd.f32 %v4110, %v4138
        %v4149 = vadd.f32 %v4111, %v4138
        %v4150 = vadd.f32 %v4112, %v4138
        %v4151 = vadd.f32 %v4113, %v4138
        %v4152 = vadd.f32 %v4114, %v4138
        %v4153 = vadd.f32 %v4115, %v4138
        %v4154 = vadd.f32 %v4116, %v4138
        %v4155 = vadd.f32 %v4117, %v4138
        %v4156 = vadd.f32 %v4118, %v4138
        %v4157 = vadd.f32 %v4119, %v4138
        %v4158 = vadd.f32 %v4120, %v4138
        %v4159 = vadd.f32 %v4121, %v4138
        %v4160 = vadd.f32 %v4122, %v4138
        %v4161 = vadd.f32 %v4123, %v4138
        %v4162 = vadd.f32 %v4124, %v4138
        %v4163 = vadd.f32 %v4125, %v4138
        %v4164 = vadd.f32 %v4126, %v4138
        %v4165 = vadd.f32 %v4127, %v4138
        %v4166 = vadd.f32 %v4128, %v4138
        %v4167 = vadd.f32 %v4129, %v4138
        %v4168 = vadd.f32 %v4130, %v4138
        %v4169 = vadd.f32 %v4131, %v4138
        %v4170 = vadd.f32 %v4132, %v4138
        %v4171 = vadd.f32 %v4133, %v4138
        %v4172 = vmax.f32 %v4140, 0.0
        %v4173 = vmax.f32 %v4141, 0.0
        %v4174 = vmax.f32 %v4142, 0.0
        %v4175 = vmax.f32 %v4143, 0.0
        %v4176 = vmax.f32 %v4144, 0.0
        %v4177 = vmax.f32 %v4145, 0.0
        %v4178 = vmax.f32 %v4146, 0.0
        %v4179 = vmax.f32 %v4147, 0.0
        %v4180 = vmax.f32 %v4148, 0.0
        %v4181 = vmax.f32 %v4149, 0.0
        %v4182 = vmax.f32 %v4150, 0.0
        %v4183 = vmax.f32 %v4151, 0.0
        %v4184 = vmax.f32 %v4152, 0.0
        %v4185 = vmax.f32 %v4153, 0.0
        %v4186 = vmax.f32 %v4154, 0.0
        %v4187 = vmax.f32 %v4155, 0.0
        %v4188 = vmax.f32 %v4156, 0.0
        %v4189 = vmax.f32 %v4157, 0.0
        %v4190 = vmax.f32 %v4158, 0.0
        %v4191 = vmax.f32 %v4159, 0.0
        %v4192 = vmax.f32 %v4160, 0.0
        %v4193 = vmax.f32 %v4161, 0.0
        %v4194 = vmax.f32 %v4162, 0.0
        %v4195 = vmax.f32 %v4163, 0.0
        %v4196 = vmax.f32 %v4164, 0.0
        %v4197 = vmax.f32 %v4165, 0.0
        %v4198 = vmax.f32 %v4166, 0.0
        %v4199 = vmax.f32 %v4167, 0.0
        %v4200 = vmax.f32 %v4168, 0.0
        %v4201 = vmax.f32 %v4169, 0.0
        %v4202 = vmax.f32 %v4170, 0.0
        %v4203 = vmax.f32 %v4171, 0.0
        %4204 = vst.msk [vmem:[%s161] sm:$0xff] %vm165, %v4172
        %4205 = vst.msk [vmem:[%s161 + $0x8] sm:$0xff] %vm165, %v4173
        %4206 = vst.msk [vmem:[%s161 + $0x10] sm:$0xff] %vm165, %v4174
        %4207 = vst.msk [vmem:[%s161 + $0x18] sm:$0xff] %vm165, %v4175
        %4208 = vst.msk [vmem:[%s161 + $0x20] sm:$0xff] %vm165, %v4176
        %4209 = vst.msk [vmem:[%s161 + $0x28] sm:$0xff] %vm165, %v4177
        %4210 = vst.msk [vmem:[%s161 + $0x30] sm:$0xff] %vm165, %v4178
        %4211 = vst.msk [vmem:[%s161 + $0x38] sm:$0xff] %vm165, %v4179
        %4212 = vst.msk [vmem:[%s161 + $0x40] sm:$0xff] %vm165, %v4180
        %4213 = vst.msk [vmem:[%s161 + $0x48] sm:$0xff] %vm165, %v4181
        %4214 = vst.msk [vmem:[%s161 + $0x50] sm:$0xff] %vm165, %v4182
        %4215 = vst.msk [vmem:[%s161 + $0x58] sm:$0xff] %vm165, %v4183
        %4216 = vst.msk [vmem:[%s161 + $0x60] sm:$0xff] %vm165, %v4184
        %4217 = vst.msk [vmem:[%s161 + $0x68] sm:$0xff] %vm165, %v4185
        %4218 = vst.msk [vmem:[%s161 + $0x70] sm:$0xff] %vm165, %v4186
        %4219 = vst.msk [vmem:[%s161 + $0x78] sm:$0xff] %vm165, %v4187
        %4220 = vst.msk [vmem:[%s161 + $0x80] sm:$0xff] %vm165, %v4188
        %4221 = vst.msk [vmem:[%s161 + $0x88] sm:$0xff] %vm165, %v4189
        %4222 = vst.msk [vmem:[%s161 + $0x90] sm:$0xff] %vm165, %v4190
        %4223 = vst.msk [vmem:[%s161 + $0x98] sm:$0xff] %vm165, %v4191
        %4224 = vst.msk [vmem:[%s161 + $0xa0] sm:$0xff] %vm165, %v4192
        %4225 = vst.msk [vmem:[%s161 + $0xa8] sm:$0xff] %vm165, %v4193
        %4226 = vst.msk [vmem:[%s161 + $0xb0] sm:$0xff] %vm165, %v4194
        %4227 = vst.msk [vmem:[%s161 + $0xb8] sm:$0xff] %vm165, %v4195
        %4228 = vst.msk [vmem:[%s161 + $0xc0] sm:$0xff] %vm165, %v4196
        %4229 = vst.msk [vmem:[%s161 + $0xc8] sm:$0xff] %vm165, %v4197
        %4230 = vst.msk [vmem:[%s161 + $0xd0] sm:$0xff] %vm165, %v4198
        %4231 = vst.msk [vmem:[%s161 + $0xd8] sm:$0xff] %vm165, %v4199
        %4232 = vst.msk [vmem:[%s161 + $0xe0] sm:$0xff] %vm165, %v4200
        %4233 = vst.msk [vmem:[%s161 + $0xe8] sm:$0xff] %vm165, %v4201
        %4234 = vst.msk [vmem:[%s161 + $0xf0] sm:$0xff] %vm165, %v4202
        %4235 = vst.msk [vmem:[%s161 + $0xf8] sm:$0xff] %vm165, %v4203
      $region36: #{adaptive_block_forward.2} parent=27 // pred_fallthru
        _
      %p4236 = scmp.ge.s32.totalorder %s163, 2
      // Predicated region
      $region37: #{adaptive_block_forward.2} parent=27 // pred_check
        %p4237 = pneg %p4236
      $region38: #{adaptive_block_forward.2} parent=27 // pred_check_branch
        %4239 = sbr.rel (%p4237) target = $region40
      $region39: #{adaptive_block_forward.2} parent=27 // pred_region
        %v4240 = vmax.f32 %v3690, 0.0
        %v4241 = vmax.f32 %v3691, 0.0
        %v4242 = vmax.f32 %v3692, 0.0
        %v4243 = vmax.f32 %v3693, 0.0
        %v4244 = vmax.f32 %v3694, 0.0
        %v4245 = vmax.f32 %v3695, 0.0
        %v4246 = vmax.f32 %v3696, 0.0
        %v4247 = vmax.f32 %v3697, 0.0
        %v4248 = vmax.f32 %v3698, 0.0
        %v4249 = vmax.f32 %v3699, 0.0
        %v4250 = vmax.f32 %v3700, 0.0
        %v4251 = vmax.f32 %v3701, 0.0
        %v4252 = vmax.f32 %v3702, 0.0
        %v4253 = vmax.f32 %v3703, 0.0
        %v4254 = vmax.f32 %v3704, 0.0
        %v4255 = vmax.f32 %v3705, 0.0
        %v4256 = vmax.f32 %v3706, 0.0
        %v4257 = vmax.f32 %v3707, 0.0
        %v4258 = vmax.f32 %v3708, 0.0
        %v4259 = vmax.f32 %v3709, 0.0
        %v4260 = vmax.f32 %v3710, 0.0
        %v4261 = vmax.f32 %v3711, 0.0
        %v4262 = vmax.f32 %v3712, 0.0
        %v4263 = vmax.f32 %v3713, 0.0
        %v4264 = vmax.f32 %v3714, 0.0
        %v4265 = vmax.f32 %v3715, 0.0
        %v4266 = vmax.f32 %v3716, 0.0
        %v4267 = vmax.f32 %v3717, 0.0
        %v4268 = vmax.f32 %v3718, 0.0
        %v4269 = vmax.f32 %v3719, 0.0
        %v4270 = vmax.f32 %v3720, 0.0
        %v4271 = vmax.f32 %v3721, 0.0
        %4272 = vst.msk [vmem:[%s161] sm:$0xff] %vm165, %v4240
        %4273 = vst.msk [vmem:[%s161 + $0x8] sm:$0xff] %vm165, %v4241
        %4274 = vst.msk [vmem:[%s161 + $0x10] sm:$0xff] %vm165, %v4242
        %4275 = vst.msk [vmem:[%s161 + $0x18] sm:$0xff] %vm165, %v4243
        %4276 = vst.msk [vmem:[%s161 + $0x20] sm:$0xff] %vm165, %v4244
        %4277 = vst.msk [vmem:[%s161 + $0x28] sm:$0xff] %vm165, %v4245
        %4278 = vst.msk [vmem:[%s161 + $0x30] sm:$0xff] %vm165, %v4246
        %4279 = vst.msk [vmem:[%s161 + $0x38] sm:$0xff] %vm165, %v4247
        %4280 = vst.msk [vmem:[%s161 + $0x40] sm:$0xff] %vm165, %v4248
        %4281 = vst.msk [vmem:[%s161 + $0x48] sm:$0xff] %vm165, %v4249
        %4282 = vst.msk [vmem:[%s161 + $0x50] sm:$0xff] %vm165, %v4250
        %4283 = vst.msk [vmem:[%s161 + $0x58] sm:$0xff] %vm165, %v4251
        %4284 = vst.msk [vmem:[%s161 + $0x60] sm:$0xff] %vm165, %v4252
        %4285 = vst.msk [vmem:[%s161 + $0x68] sm:$0xff] %vm165, %v4253
        %4286 = vst.msk [vmem:[%s161 + $0x70] sm:$0xff] %vm165, %v4254
        %4287 = vst.msk [vmem:[%s161 + $0x78] sm:$0xff] %vm165, %v4255
        %4288 = vst.msk [vmem:[%s161 + $0x80] sm:$0xff] %vm165, %v4256
        %4289 = vst.msk [vmem:[%s161 + $0x88] sm:$0xff] %vm165, %v4257
        %4290 = vst.msk [vmem:[%s161 + $0x90] sm:$0xff] %vm165, %v4258
        %4291 = vst.msk [vmem:[%s161 + $0x98] sm:$0xff] %vm165, %v4259
        %4292 = vst.msk [vmem:[%s161 + $0xa0] sm:$0xff] %vm165, %v4260
        %4293 = vst.msk [vmem:[%s161 + $0xa8] sm:$0xff] %vm165, %v4261
        %4294 = vst.msk [vmem:[%s161 + $0xb0] sm:$0xff] %vm165, %v4262
        %4295 = vst.msk [vmem:[%s161 + $0xb8] sm:$0xff] %vm165, %v4263
        %4296 = vst.msk [vmem:[%s161 + $0xc0] sm:$0xff] %vm165, %v4264
        %4297 = vst.msk [vmem:[%s161 + $0xc8] sm:$0xff] %vm165, %v4265
        %4298 = vst.msk [vmem:[%s161 + $0xd0] sm:$0xff] %vm165, %v4266
        %4299 = vst.msk [vmem:[%s161 + $0xd8] sm:$0xff] %vm165, %v4267
        %4300 = vst.msk [vmem:[%s161 + $0xe0] sm:$0xff] %vm165, %v4268
        %4301 = vst.msk [vmem:[%s161 + $0xe8] sm:$0xff] %vm165, %v4269
        %4302 = vst.msk [vmem:[%s161 + $0xf0] sm:$0xff] %vm165, %v4270
        %4303 = vst.msk [vmem:[%s161 + $0xf8] sm:$0xff] %vm165, %v4271
      $region40: #{adaptive_block_forward.2} parent=27 // pred_fallthru
        _
      %s4304 = sld [smem:[#allocation6 + %s20]]
      %p4305 = scmp.lt.s32.totalorder %s4304, 3
      %s4306 = scalar_select %p4305, %s4304, 3
      %s4307 = smul.addr %s4306, 32
      %s4308 = smul.addr %s4307, 8
      %s4309 = scalar_lea.vmem %s3, %s4308
      // Predicated region
      $region41: #{adaptive_block_forward.2} parent=27 // pred_check
        %p4310 = pneg %p89
      $region42: #{adaptive_block_forward.2} parent=27 // pred_check_branch
        %4312 = sbr.rel (%p4310) target = $region44
      $region43: #{adaptive_block_forward.2} parent=27 // pred_region
        %s4313 = sld [smem:[#allocation6 + %s20]]
      $region44: #{adaptive_block_forward.2} parent=27 // pred_fallthru
        _
    $region28: #{adaptive_block_forward.2} parent=5 // pred_fallthru
      _
    %p4314 = scmp.le.s32.totalorder 2, %s15
    // Predicated region
    $region45: #{adaptive_block_forward.2} parent=5 // pred_check
      %p4315 = pneg %p4314
    $region46: #{adaptive_block_forward.2} parent=5 // pred_check_branch
      %4317 = sbr.rel (%p4315) target = $region48
    $region47: #{adaptive_block_forward.2} parent=5 // pred_region
      %s4318 = ssub.s32 %s15, 2
      // Predicated region
      $region49: #{adaptive_block_forward.2} parent=47 // pred_check
        %p4319 = pneg %p95
      $region50: #{adaptive_block_forward.2} parent=47 // pred_check_branch
        %4321 = sbr.rel (%p4319) target = $region52
      $region51: #{adaptive_block_forward.2} parent=47 // pred_region
        %s4322 = sld [smem:[#allocation6 + %s21]]
        %p4323 = scmp.lt.s32.totalorder %s4322, 3
        %s4324 = scalar_select %p4323, %s4322, 3
        %s4325 = smul.addr %s4324, 32
        %s4326 = smul.addr %s4325, 8
        %s4327 = scalar_lea.vmem %s3, %s4326
      $region52: #{adaptive_block_forward.2} parent=47 // pred_fallthru
        _
    $region48: #{adaptive_block_forward.2} parent=5 // pred_fallthru
      _
  $region6: #{adaptive_block_forward.2} parent=0 // loop_footer
    %s19 = sadd.s32 1, %s15
  $region7: #{adaptive_block_forward.2} parent=0 // loop_footer_branch
    %14 = sbr.rel target = $region3
  $region8: #{adaptive_block_forward.2} parent=0 // loop_exit
    _

// kernel: adaptive_block_forward.3
$region0: #{adaptive_block_forward.3}
  #allocation0 [shape = 'u32[]', space=smem, size = 0x4, offset = 0x4, fixed_abs, tag = 'smem constant byte address 0x4 - core index']
  #allocation1 [shape = 'u32[144,128]{1,0:T(1,128)}', space=vmem, size = 0x12000, scoped, tag = 'internal scratch']
  #allocation2 [shape = 'f32[18,18,32]{2,1,0:T(8,128)}', space=vmem, size = 0x36000, scoped, tag = 'scratch operand']
  #allocation3 [shape = 'f32[1,32]{1,0:T(1,128)}', space=vmem, size = 0x200, scoped, tag = 'scratch operand']
  #allocation4 [shape = 'f32[1,32]{1,0:T(1,128)}', space=vmem, size = 0x200, scoped, tag = 'scratch operand']
  #allocation5 [shape = 's32[1]{0}', space=sflag, size = 0x4, scoped, tag = 'scoped memory for adaptive_block_forward.3']
  #allocation6 [shape = 'u8[512]{0}', space=smem, size = 0x200, scoped, tag = 'prefetched SMEM operand 0']
  %s0 = inlined_call_operand.vmem [shape: s32[4], index: 0, kind: input, shape index: {}]
  %s1 = inlined_call_operand.vmem [shape: f32[4,16,16,32], index: 1, kind: input, shape index: {}]
  %s2 = inlined_call_operand.vmem [shape: f32[9,32,32], index: 2, kind: input, shape index: {}]
  %s3 = inlined_call_operand.vmem [shape: f32[4,16,16,32], index: 3, kind: input, shape index: {}]
  %s4 = inlined_call_operand.hbm [shape: f32[4,16,16,32], index: 4, kind: output, shape index: {}]
  %s5 = sld [smem:[#allocation0]]
  $region57: #{adaptive_block_forward.3} parent=0
    _
  %s7 = ssub.s32 1, %s5
  %s8 = scalar_select 0, %s7, %s5
  %s9 = sshll.u32 %s0, 4
  %s10 = int_to_ptr.vmem [resolvable:$true] %s9
  %12 = dma.vmem_to_smem %s10, 16, [#allocation6], [#allocation5]
  %13 = dma.done [#allocation5], 16
  %14 = sfence
  $region1: #{adaptive_block_forward.3} parent=0
    #allocation7 [shape = 'u8[262144]{0}', space=vmem, size = 0x40000, scoped, tag = 'output window, operand 0']
    #allocation8 [shape = 's32[2]{0}', space=sflag, size = 0x8, scoped, tag = 'scoped memory for adaptive_block_forward.3']
    %15 = vsyncpa [#allocation8], 0
    %s16 = scalar_lea.sflag [#allocation8], 1
    %17 = vsyncpa %s16, 0
    loop: start=0, step=1, limit=6
    $region2: #{adaptive_block_forward.3} parent=1 // loop_pre_header
      _
    $region3: #{adaptive_block_forward.3} parent=1 // loop_header
      %s19 = sphi 0, %s23
      %p20 = scmp.ge.s32.totalorder %s19, 6
      %s31 = sphi 0, %s33
      %s34 = sphi 0, %s31
      %s35 = sphi 0, %s34
      %s51 = sphi 0, %s35
      %s55 = sphi 0, %s55
      %s57 = sphi 0, %s55
      %s58 = sphi 0, %s57
      %s72 = sphi 0, %s58
      %s80 = sphi 0, %s82
      %s83 = sphi 0, %s80
      %s84 = sphi 0, %s83
      %s100 = sphi 0, %s84
      %s108 = sphi 0, %s110
      %s111 = sphi 0, %s108
      %s112 = sphi 0, %s111
      %s128 = sphi 0, %s112
    $region4: #{adaptive_block_forward.3} parent=1 // loop_header_branch
      %22 = sbr.rel (%p20) target = $region8
    $region5: #{adaptive_block_forward.3} parent=1 // loop_body
      %s24 = ssub.s32 %s19, 1
      %s25 = ssub.s32 %s19, 2
      %s26 = sadd.s32 %s19, 1
      %s27 = sld [smem:[#allocation6 + %s19]]
      %s28 = sld [smem:[#allocation6 + %s26]]
      %s29 = ssub.s32 %s27, %s28
      %p30 = scmp.eq.s32.totalorder %s29, 0
      %s32 = sadd.s32 %s31, 1
      %s33 = scalar_select %p30, %s31, %s32
      %p36 = pneg %p30
      %p37 = scmp.eq.s32.totalorder %s19, 3
      %p38 = por %p36, %p37
      %p39 = scmp.ne.s32.totalorder %s31, %s34
      %p40 = scmp.eq.s32.totalorder %s19, 0
      %p41 = por %p39, %p40
      %p42 = scmp.ne.s32.totalorder %s31, %s34
      %p43 = scmp.eq.s32.totalorder %s24, 3
      %p44 = por %p42, %p43
      %p45 = scmp.ne.s32.totalorder %s34, %s35
      %p46 = scmp.eq.s32.totalorder %s24, 0
      %p47 = por %p45, %p46
      %p48 = scmp.ne.s32.totalorder %s34, %s35
      %p49 = scmp.eq.s32.totalorder %s25, 3
      %p50 = por %p48, %p49
      %p52 = scmp.ne.s32.totalorder %s35, %s51
      %p53 = scmp.eq.s32.totalorder %s25, 0
      %p54 = por %p52, %p53
      %s56 = sadd.s32 %s55, 1
      %p59 = scmp.eq.s32.totalorder %s19, 3
      %p60 = scmp.ne.s32.totalorder %s55, %s57
      %p61 = scmp.eq.s32.totalorder %s19, 0
      %p62 = por %p60, %p61
      %p63 = scmp.ne.s32.totalorder %s55, %s57
      %p64 = scmp.eq.s32.totalorder %s24, 3
      %p65 = por %p63, %p64
      %p66 = scmp.ne.s32.totalorder %s57, %s58
      %p67 = scmp.eq.s32.totalorder %s24, 0
      %p68 = por %p66, %p67
      %p69 = scmp.ne.s32.totalorder %s57, %s58
      %p70 = scmp.eq.s32.totalorder %s25, 3
      %p71 = por %p69, %p70
      %p73 = scmp.ne.s32.totalorder %s58, %s72
      %p74 = scmp.eq.s32.totalorder %s25, 0
      %p75 = por %p73, %p74
      %s76 = sld [smem:[#allocation6 + %s19]]
      %s77 = sld [smem:[#allocation6 + %s26]]
      %s78 = ssub.s32 %s76, %s77
      %p79 = scmp.eq.s32.totalorder %s78, 0
      %s81 = sadd.s32 %s80, 1
      %s82 = scalar_select %p79, %s80, %s81
      %p85 = pneg %p79
      %p86 = scmp.eq.s32.totalorder %s19, 3
      %p87 = por %p85, %p86
      %p88 = scmp.ne.s32.totalorder %s80, %s83
      %p89 = scmp.eq.s32.totalorder %s19, 0
      %p90 = por %p88, %p89
      %p91 = scmp.ne.s32.totalorder %s80, %s83
      %p92 = scmp.eq.s32.totalorder %s24, 3
      %p93 = por %p91, %p92
      %p94 = scmp.ne.s32.totalorder %s83, %s84
      %p95 = scmp.eq.s32.totalorder %s24, 0
      %p96 = por %p94, %p95
      %p97 = scmp.ne.s32.totalorder %s83, %s84
      %p98 = scmp.eq.s32.totalorder %s25, 3
      %p99 = por %p97, %p98
      %p101 = scmp.ne.s32.totalorder %s84, %s100
      %p102 = scmp.eq.s32.totalorder %s25, 0
      %p103 = por %p101, %p102
      %s104 = sld [smem:[#allocation6 + %s19]]
      %s105 = sld [smem:[#allocation6 + %s26]]
      %s106 = ssub.s32 %s104, %s105
      %p107 = scmp.eq.s32.totalorder %s106, 0
      %s109 = sadd.s32 %s108, 1
      %s110 = scalar_select %p107, %s108, %s109
      %p113 = pneg %p107
      %p114 = scmp.eq.s32.totalorder %s19, 3
      %p115 = por %p113, %p114
      %p116 = scmp.ne.s32.totalorder %s108, %s111
      %p117 = scmp.eq.s32.totalorder %s19, 0
      %p118 = por %p116, %p117
      %p119 = scmp.ne.s32.totalorder %s108, %s111
      %p120 = scmp.eq.s32.totalorder %s24, 3
      %p121 = por %p119, %p120
      %p122 = scmp.ne.s32.totalorder %s111, %s112
      %p123 = scmp.eq.s32.totalorder %s24, 0
      %p124 = por %p122, %p123
      %p125 = scmp.ne.s32.totalorder %s111, %s112
      %p126 = scmp.eq.s32.totalorder %s25, 3
      %p127 = por %p125, %p126
      %p129 = scmp.ne.s32.totalorder %s112, %s128
      %p130 = scmp.eq.s32.totalorder %s25, 0
      %p131 = por %p129, %p130
      %p132 = scmp.le.s32.totalorder 1, %s19
      %p133 = scmp.lt.s32.totalorder %s19, 5
      %p134 = pnand %p132, %p133
      %p135 = pneg %p134
      // Predicated region
      $region9: #{adaptive_block_forward.3} parent=5 // pred_check
        _
      $region10: #{adaptive_block_forward.3} parent=5 // pred_check_branch
        %137 = sbr.rel (%p134) target = $region12
      $region11: #{adaptive_block_forward.3} parent=5 // pred_region
        %s138 = ssub.s32 %s19, 1
        // Predicated region
        $region13: #{adaptive_block_forward.3} parent=11 // pred_check
          %p139 = pneg %p68
        $region14: #{adaptive_block_forward.3} parent=11 // pred_check_branch
          %141 = sbr.rel (%p139) target = $region16
        $region15: #{adaptive_block_forward.3} parent=11 // pred_region
          _
        $region16: #{adaptive_block_forward.3} parent=11 // pred_fallthru
          _
      $region12: #{adaptive_block_forward.3} parent=5 // pred_fallthru
        _
      %p142 = scmp.lt.s32.totalorder %s19, 4
      // Predicated region
      $region17: #{adaptive_block_forward.3} parent=5 // pred_check
        %p143 = pneg %p142
      $region18: #{adaptive_block_forward.3} parent=5 // pred_check_branch
        %145 = sbr.rel (%p143) target = $region20
      $region19: #{adaptive_block_forward.3} parent=5 // pred_region
        // Predicated region
        $region21: #{adaptive_block_forward.3} parent=19 // pred_check
          %p146 = pneg %p41
        $region22: #{adaptive_block_forward.3} parent=19 // pred_check_branch
          %148 = sbr.rel (%p146) target = $region24
        $region23: #{adaptive_block_forward.3} parent=19 // pred_region
          %s149 = sld [smem:[#allocation6 + %s19]]
          %p150 = scmp.lt.s32.totalorder %s149, 3
          %s151 = scalar_select %p150, %s149, 3
          %s152 = smul.addr %s151, 32
          %s153 = smul.addr %s152, 8
          %s154 = scalar_lea.vmem %s1, %s153
          %s155 = sld [smem:[#allocation6 + %s19]]
        $region24: #{adaptive_block_forward.3} parent=19 // pred_fallthru
          _
        // Predicated region
        $region25: #{adaptive_block_forward.3} parent=19 // pred_check
          %p156 = pneg %p90
        $region26: #{adaptive_block_forward.3} parent=19 // pred_check_branch
          %158 = sbr.rel (%p156) target = $region28
        $region27: #{adaptive_block_forward.3} parent=19 // pred_region
          %s159 = sld [smem:[#allocation6 + %s19]]
          %p160 = scmp.lt.s32.totalorder %s159, 3
          %s161 = scalar_select %p160, %s159, 3
          %s162 = smul.addr %s161, 32
          %s163 = smul.addr %s162, 8
          %s164 = scalar_lea.vmem %s3, %s163
          %s165 = sld [smem:[#allocation6 + %s19]]
        $region28: #{adaptive_block_forward.3} parent=19 // pred_fallthru
          _
      $region20: #{adaptive_block_forward.3} parent=5 // pred_fallthru
        _
      %p166 = scmp.le.s32.totalorder 1, %s19
      %p167 = scmp.lt.s32.totalorder %s19, 5
      %p168 = pnand %p166, %p167
      %p169 = pneg %p168
      // Predicated region
      $region29: #{adaptive_block_forward.3} parent=5 // pred_check
        _
      $region30: #{adaptive_block_forward.3} parent=5 // pred_check_branch
        %171 = sbr.rel (%p168) target = $region32
      $region31: #{adaptive_block_forward.3} parent=5 // pred_region
        %s172 = ssub.s32 %s19, 1
        %s173 = sld [smem:[#allocation6 + %s24]]
        %p174 = scmp.lt.s32.totalorder %s173, 3
        %s175 = scalar_select %p174, %s173, 3
        %s176 = smul.addr %s175, 32
        %s177 = smul.addr %s176, 8
        %s178 = scalar_lea.vmem %s1, %s177
        %p179 = pneg %p47
        %p180 = pneg %p44
        %p181 = pneg %p68
        %p182 = pneg %p65
        %s183 = sld [smem:[#allocation6 + %s24]]
        %p184 = scmp.lt.s32.totalorder %s183, 3
        %s185 = scalar_select %p184, %s183, 3
        %s186 = smul.addr %s185, 32
        %s187 = smul.addr %s186, 8
        %s188 = scalar_lea.vmem %s3, %s187
        %p189 = pneg %p96
        %p190 = pneg %p93
        %p191 = pneg %p124
        %p192 = pneg %p121
        %s193 = sand.u32 %s111, 1
        %s194 = scalar_lea.sflag [#allocation8], %s193
        %s195 = sand.u32 %s111, 1
        %s196 = smul.addr %s195, 256
        %s197 = scalar_lea.vmem [#allocation7], %s196
        %s198 = sld [smem:[#allocation6 + %s24]]
        %p199 = scmp.lt.s32.totalorder %s198, 3
        %s200 = scalar_select %p199, %s198, 3
        %s201 = smul.addr %s200, 32
        %s202 = smul.addr %s201, 8
        %s203 = scalar_lea.vmem %s1, %s202
        %s204 = sld [smem:[#allocation6 + %s24]]
        %s205 = sld [smem:[#allocation6 + %s24]]
        %p206 = scmp.lt.s32.totalorder %s205, 3
        %s207 = scalar_select %p206, %s205, 3
        %s208 = smul.addr %s207, 32
        %s209 = smul.addr %s208, 8
        %s210 = scalar_lea.vmem %s3, %s209
        %s211 = sld [smem:[#allocation6 + %s24]]
        %s212 = sld [smem:[#allocation6 + %s24]]
        %s213 = sld [smem:[#allocation6 + %s24]]
        %p214 = scmp.lt.s32.totalorder %s213, 2
        %vm215 = vcmask 261120
        %216 = vst.msk [vmem:[#allocation2] sm:$0xff] %vm215, 0.0
        %217 = vst.msk [vmem:[#allocation2 + $0x8] sm:$0xff] %vm215, 0.0
        %vm218 = vcmask 254976
        %219 = vst.msk [vmem:[#allocation2 + $0x10] sm:$0x3] %vm218, 0.0
        %s220 = scalar_lea.vmem [#allocation2], 408
        %221 = vst.msk [vmem:[%s220] sm:$0xff] %vm215, 0.0
        %222 = vst.msk [vmem:[%s220 + $0x8] sm:$0xff] %vm215, 0.0
        %223 = vst.msk [vmem:[%s220 + $0x10] sm:$0x3] %vm218, 0.0
        %vm224 = vcmask 253952
        %225 = vst.msk [vmem:[#allocation2] sm:$0x1] %vm224, 0.0
        %226 = vst.msk [vmem:[#allocation2 + $0x18] sm:$0x1] %vm224, 0.0
        %227 = vst.msk [vmem:[#allocation2 + $0x30] sm:$0x1] %vm224, 0.0
        %228 = vst.msk [vmem:[#allocation2 + $0x48] sm:$0x1] %vm224, 0.0
        %229 = vst.msk [vmem:[#allocation2 + $0x60] sm:$0x1] %vm224, 0.0
        %230 = vst.msk [vmem:[#allocation2 + $0x78] sm:$0x1] %vm224, 0.0
        %231 = vst.msk [vmem:[#allocation2 + $0x90] sm:$0x1] %vm224, 0.0
        %232 = vst.msk [vmem:[#allocation2 + $0xa8] sm:$0x1] %vm224, 0.0
        %233 = vst.msk [vmem:[#allocation2 + $0xc0] sm:$0x1] %vm224, 0.0
        %234 = vst.msk [vmem:[#allocation2 + $0xd8] sm:$0x1] %vm224, 0.0
        %235 = vst.msk [vmem:[#allocation2 + $0xf0] sm:$0x1] %vm224, 0.0
        %236 = vst.msk [vmem:[#allocation2 + $0x108] sm:$0x1] %vm224, 0.0
        %237 = vst.msk [vmem:[#allocation2 + $0x120] sm:$0x1] %vm224, 0.0
        %238 = vst.msk [vmem:[#allocation2 + $0x138] sm:$0x1] %vm224, 0.0
        %239 = vst.msk [vmem:[#allocation2 + $0x150] sm:$0x1] %vm224, 0.0
        %240 = vst.msk [vmem:[#allocation2 + $0x168] sm:$0x1] %vm224, 0.0
        %241 = vst.msk [vmem:[#allocation2 + $0x180] sm:$0x1] %vm224, 0.0
        %242 = vst.msk [vmem:[#allocation2 + $0x198] sm:$0x1] %vm224, 0.0
        %243 = vst.msk [vmem:[#allocation2 + $0x11] sm:$0x1] %vm224, 0.0
        %244 = vst.msk [vmem:[#allocation2 + $0x29] sm:$0x1] %vm224, 0.0
        %245 = vst.msk [vmem:[#allocation2 + $0x41] sm:$0x1] %vm224, 0.0
        %246 = vst.msk [vmem:[#allocation2 + $0x59] sm:$0x1] %vm224, 0.0
        %247 = vst.msk [vmem:[#allocation2 + $0x71] sm:$0x1] %vm224, 0.0
        %248 = vst.msk [vmem:[#allocation2 + $0x89] sm:$0x1] %vm224, 0.0
        %249 = vst.msk [vmem:[#allocation2 + $0xa1] sm:$0x1] %vm224, 0.0
        %250 = vst.msk [vmem:[#allocation2 + $0xb9] sm:$0x1] %vm224, 0.0
        %251 = vst.msk [vmem:[#allocation2 + $0xd1] sm:$0x1] %vm224, 0.0
        %252 = vst.msk [vmem:[#allocation2 + $0xe9] sm:$0x1] %vm224, 0.0
        %253 = vst.msk [vmem:[#allocation2 + $0x101] sm:$0x1] %vm224, 0.0
        %254 = vst.msk [vmem:[#allocation2 + $0x119] sm:$0x1] %vm224, 0.0
        %255 = vst.msk [vmem:[#allocation2 + $0x131] sm:$0x1] %vm224, 0.0
        %256 = vst.msk [vmem:[#allocation2 + $0x149] sm:$0x1] %vm224, 0.0
        %257 = vst.msk [vmem:[#allocation2 + $0x161] sm:$0x1] %vm224, 0.0
        %258 = vst.msk [vmem:[#allocation2 + $0x179] sm:$0x1] %vm224, 0.0
        %259 = vst.msk [vmem:[#allocation2 + $0x191] sm:$0x1] %vm224, 0.0
        %260 = vst.msk [vmem:[#allocation2 + $0x1a9] sm:$0x1] %vm224, 0.0
        %v261 = vld [vmem:[%s203] sm:$0xff]
        %v262 = vld [vmem:[%s203 + $0x8] sm:$0xff]
        %v263 = vld [vmem:[%s203 + $0x10] sm:$0xff]
        %v264 = vld [vmem:[%s203 + $0x18] sm:$0xff]
        %v265 = vld [vmem:[%s203 + $0x20] sm:$0xff]
        %v266 = vld [vmem:[%s203 + $0x28] sm:$0xff]
        %v267 = vld [vmem:[%s203 + $0x30] sm:$0xff]
        %v268 = vld [vmem:[%s203 + $0x38] sm:$0xff]
        %v269 = vld [vmem:[%s203 + $0x40] sm:$0xff]
        %v270 = vld [vmem:[%s203 + $0x48] sm:$0xff]
        %v271 = vld [vmem:[%s203 + $0x50] sm:$0xff]
        %v272 = vld [vmem:[%s203 + $0x58] sm:$0xff]
        %v273 = vld [vmem:[%s203 + $0x60] sm:$0xff]
        %v274 = vld [vmem:[%s203 + $0x68] sm:$0xff]
        %v275 = vld [vmem:[%s203 + $0x70] sm:$0xff]
        %v276 = vld [vmem:[%s203 + $0x78] sm:$0xff]
        %v277 = vld [vmem:[%s203 + $0x80] sm:$0xff]
        %v278 = vld [vmem:[%s203 + $0x88] sm:$0xff]
        %v279 = vld [vmem:[%s203 + $0x90] sm:$0xff]
        %v280 = vld [vmem:[%s203 + $0x98] sm:$0xff]
        %v281 = vld [vmem:[%s203 + $0xa0] sm:$0xff]
        %v282 = vld [vmem:[%s203 + $0xa8] sm:$0xff]
        %v283 = vld [vmem:[%s203 + $0xb0] sm:$0xff]
        %v284 = vld [vmem:[%s203 + $0xb8] sm:$0xff]
        %v285 = vld [vmem:[%s203 + $0xc0] sm:$0xff]
        %v286 = vld [vmem:[%s203 + $0xc8] sm:$0xff]
        %v287 = vld [vmem:[%s203 + $0xd0] sm:$0xff]
        %v288 = vld [vmem:[%s203 + $0xd8] sm:$0xff]
        %v289 = vld [vmem:[%s203 + $0xe0] sm:$0xff]
        %v290 = vld [vmem:[%s203 + $0xe8] sm:$0xff]
        %v291 = vld [vmem:[%s203 + $0xf0] sm:$0xff]
        %v292 = vld [vmem:[%s203 + $0xf8] sm:$0xff]
        %s293 = scalar_lea.vmem [#allocation2], 24
        %294 = vst.msk [vmem:[%s293 + $0x1] sm:$0xff] %vm215, %v261
        %295 = vst.msk [vmem:[%s293 + $0x9] sm:$0xff] %vm215, %v262
        %296 = vst.msk [vmem:[%s293 + $0x19] sm:$0xff] %vm215, %v263
        %297 = vst.msk [vmem:[%s293 + $0x21] sm:$0xff] %vm215, %v264
        %298 = vst.msk [vmem:[%s293 + $0x31] sm:$0xff] %vm215, %v265
        %299 = vst.msk [vmem:[%s293 + $0x39] sm:$0xff] %vm215, %v266
        %300 = vst.msk [vmem:[%s293 + $0x49] sm:$0xff] %vm215, %v267
        %301 = vst.msk [vmem:[%s293 + $0x51] sm:$0xff] %vm215, %v268
        %302 = vst.msk [vmem:[%s293 + $0x61] sm:$0xff] %vm215, %v269
        %303 = vst.msk [vmem:[%s293 + $0x69] sm:$0xff] %vm215, %v270
        %304 = vst.msk [vmem:[%s293 + $0x79] sm:$0xff] %vm215, %v271
        %305 = vst.msk [vmem:[%s293 + $0x81] sm:$0xff] %vm215, %v272
        %306 = vst.msk [vmem:[%s293 + $0x91] sm:$0xff] %vm215, %v273
        %307 = vst.msk [vmem:[%s293 + $0x99] sm:$0xff] %vm215, %v274
        %308 = vst.msk [vmem:[%s293 + $0xa9] sm:$0xff] %vm215, %v275
        %309 = vst.msk [vmem:[%s293 + $0xb1] sm:$0xff] %vm215, %v276
        %310 = vst.msk [vmem:[%s293 + $0xc1] sm:$0xff] %vm215, %v277
        %311 = vst.msk [vmem:[%s293 + $0xc9] sm:$0xff] %vm215, %v278
        %312 = vst.msk [vmem:[%s293 + $0xd9] sm:$0xff] %vm215, %v279
        %313 = vst.msk [vmem:[%s293 + $0xe1] sm:$0xff] %vm215, %v280
        %314 = vst.msk [vmem:[%s293 + $0xf1] sm:$0xff] %vm215, %v281
        %315 = vst.msk [vmem:[%s293 + $0xf9] sm:$0xff] %vm215, %v282
        %316 = vst.msk [vmem:[%s293 + $0x109] sm:$0xff] %vm215, %v283
        %317 = vst.msk [vmem:[%s293 + $0x111] sm:$0xff] %vm215, %v284
        %318 = vst.msk [vmem:[%s293 + $0x121] sm:$0xff] %vm215, %v285
        %319 = vst.msk [vmem:[%s293 + $0x129] sm:$0xff] %vm215, %v286
        %320 = vst.msk [vmem:[%s293 + $0x139] sm:$0xff] %vm215, %v287
        %321 = vst.msk [vmem:[%s293 + $0x141] sm:$0xff] %vm215, %v288
        %322 = vst.msk [vmem:[%s293 + $0x151] sm:$0xff] %vm215, %v289
        %323 = vst.msk [vmem:[%s293 + $0x159] sm:$0xff] %vm215, %v290
        %324 = vst.msk [vmem:[%s293 + $0x169] sm:$0xff] %vm215, %v291
        %325 = vst.msk [vmem:[%s293 + $0x171] sm:$0xff] %vm215, %v292
        %v326 = vld [vmem:[#allocation2] sm:$0xff]
        %v327 = vld [vmem:[#allocation2 + $0x8] sm:$0xff]
        %v328 = vld [vmem:[#allocation2 + $0x18] sm:$0xff]
        %v329 = vld [vmem:[#allocation2 + $0x20] sm:$0xff]
        %v330 = vld [vmem:[#allocation2 + $0x30] sm:$0xff]
        %v331 = vld [vmem:[#allocation2 + $0x38] sm:$0xff]
        %v332 = vld [vmem:[#allocation2 + $0x48] sm:$0xff]
        %v333 = vld [vmem:[#allocation2 + $0x50] sm:$0xff]
        %v334 = vld [vmem:[#allocation2 + $0x60] sm:$0xff]
        %v335 = vld [vmem:[#allocation2 + $0x68] sm:$0xff]
        %v336 = vld [vmem:[#allocation2 + $0x78] sm:$0xff]
        %v337 = vld [vmem:[#allocation2 + $0x80] sm:$0xff]
        %v338 = vld [vmem:[#allocation2 + $0x90] sm:$0xff]
        %v339 = vld [vmem:[#allocation2 + $0x98] sm:$0xff]
        %v340 = vld [vmem:[#allocation2 + $0xa8] sm:$0xff]
        %v341 = vld [vmem:[#allocation2 + $0xb0] sm:$0xff]
        %v342 = vld [vmem:[#allocation2 + $0xc0] sm:$0xff]
        %v343 = vld [vmem:[#allocation2 + $0xc8] sm:$0xff]
        %v344 = vld [vmem:[#allocation2 + $0xd8] sm:$0xff]
        %v345 = vld [vmem:[#allocation2 + $0xe0] sm:$0xff]
        %v346 = vld [vmem:[#allocation2 + $0xf0] sm:$0xff]
        %v347 = vld [vmem:[#allocation2 + $0xf8] sm:$0xff]
        %v348 = vld [vmem:[#allocation2 + $0x108] sm:$0xff]
        %v349 = vld [vmem:[#allocation2 + $0x110] sm:$0xff]
        %v350 = vld [vmem:[#allocation2 + $0x120] sm:$0xff]
        %v351 = vld [vmem:[#allocation2 + $0x128] sm:$0xff]
        %v352 = vld [vmem:[#allocation2 + $0x138] sm:$0xff]
        %v353 = vld [vmem:[#allocation2 + $0x140] sm:$0xff]
        %v354 = vld [vmem:[#allocation2 + $0x150] sm:$0xff]
        %v355 = vld [vmem:[#allocation2 + $0x158] sm:$0xff]
        %v356 = vld [vmem:[#allocation2 + $0x168] sm:$0xff]
        %v357 = vld [vmem:[#allocation2 + $0x170] sm:$0xff]
        %v358 = vld [vmem:[%s2] sm:$0xff]
        %v359 = vld [vmem:[%s2 + $0x8] sm:$0xff]
        %v360 = vld [vmem:[%s2 + $0x10] sm:$0xff]
        %v361 = vld [vmem:[%s2 + $0x18] sm:$0xff]
        %v362 = vld [vmem:[#allocation2 + $0x1] sm:$0xff]
        %v363 = vld [vmem:[#allocation2 + $0x9] sm:$0xff]
        %v364 = vld [vmem:[#allocation2 + $0x19] sm:$0xff]
        %v365 = vld [vmem:[#allocation2 + $0x21] sm:$0xff]
        %v366 = vld [vmem:[#allocation2 + $0x31] sm:$0xff]
        %v367 = vld [vmem:[#allocation2 + $0x39] sm:$0xff]
        %v368 = vld [vmem:[#allocation2 + $0x49] sm:$0xff]
        %v369 = vld [vmem:[#allocation2 + $0x51] sm:$0xff]
        %v370 = vld [vmem:[#allocation2 + $0x61] sm:$0xff]
        %v371 = vld [vmem:[#allocation2 + $0x69] sm:$0xff]
        %v372 = vld [vmem:[#allocation2 + $0x79] sm:$0xff]
        %v373 = vld [vmem:[#allocation2 + $0x81] sm:$0xff]
        %v374 = vld [vmem:[#allocation2 + $0x91] sm:$0xff]
        %v375 = vld [vmem:[#allocation2 + $0x99] sm:$0xff]
        %v376 = vld [vmem:[#allocation2 + $0xa9] sm:$0xff]
        %v377 = vld [vmem:[#allocation2 + $0xb1] sm:$0xff]
        %v378 = vld [vmem:[#allocation2 + $0xc1] sm:$0xff]
        %v379 = vld [vmem:[#allocation2 + $0xc9] sm:$0xff]
        %v380 = vld [vmem:[#allocation2 + $0xd9] sm:$0xff]
        %v381 = vld [vmem:[#allocation2 + $0xe1] sm:$0xff]
        %v382 = vld [vmem:[#allocation2 + $0xf1] sm:$0xff]
        %v383 = vld [vmem:[#allocation2 + $0xf9] sm:$0xff]
        %v384 = vld [vmem:[#allocation2 + $0x109] sm:$0xff]
        %v385 = vld [vmem:[#allocation2 + $0x111] sm:$0xff]
        %v386 = vld [vmem:[#allocation2 + $0x121] sm:$0xff]
        %v387 = vld [vmem:[#allocation2 + $0x129] sm:$0xff]
        %v388 = vld [vmem:[#allocation2 + $0x139] sm:$0xff]
        %v389 = vld [vmem:[#allocation2 + $0x141] sm:$0xff]
        %v390 = vld [vmem:[#allocation2 + $0x151] sm:$0xff]
        %v391 = vld [vmem:[#allocation2 + $0x159] sm:$0xff]
        %v392 = vld [vmem:[#allocation2 + $0x169] sm:$0xff]
        %v393 = vld [vmem:[#allocation2 + $0x171] sm:$0xff]
        %s394 = scalar_lea.vmem %s2, 32
        %v395 = vld [vmem:[%s394] sm:$0xff]
        %v396 = vld [vmem:[%s394 + $0x8] sm:$0xff]
        %v397 = vld [vmem:[%s394 + $0x10] sm:$0xff]
        %v398 = vld [vmem:[%s394 + $0x18] sm:$0xff]
        %v400 = vsel %vm215, %v362, 0
        %v403 = vsel %vm215, %v363, 0
        %v406 = vsel %vm215, %v364, 0
        %v409 = vsel %vm215, %v365, 0
        %v412 = vsel %vm215, %v366, 0
        %v415 = vsel %vm215, %v367, 0
        %v418 = vsel %vm215, %v368, 0
        %v421 = vsel %vm215, %v369, 0
        %v424 = vsel %vm215, %v370, 0
        %v427 = vsel %vm215, %v371, 0
        %v430 = vsel %vm215, %v372, 0
        %v433 = vsel %vm215, %v373, 0
        %v436 = vsel %vm215, %v374, 0
        %v439 = vsel %vm215, %v375, 0
        %v442 = vsel %vm215, %v376, 0
        %v445 = vsel %vm215, %v377, 0
        %v448 = vsel %vm215, %v378, 0
        %v451 = vsel %vm215, %v379, 0
        %v454 = vsel %vm215, %v380, 0
        %v457 = vsel %vm215, %v381, 0
        %v460 = vsel %vm215, %v382, 0
        %v463 = vsel %vm215, %v383, 0
        %v466 = vsel %vm215, %v384, 0
        %v469 = vsel %vm215, %v385, 0
        %v472 = vsel %vm215, %v386, 0
        %v475 = vsel %vm215, %v387, 0
        %v478 = vsel %vm215, %v388, 0
        %v481 = vsel %vm215, %v389, 0
        %v484 = vsel %vm215, %v390, 0
        %v487 = vsel %vm215, %v391, 0
        %v490 = vsel %vm215, %v392, 0
        %v493 = vsel %vm215, %v393, 0
        %495 = vmatprep.subr.mxu0 0.0
        %496 = vmatpush1.msra.mxu0 %v395
        %497 = vmatprep.subr.mxu0 0.0
        %498 = vmatpush1.msra.mxu0 %v396
        %499 = vmatprep.subr.mxu0 0.0
        %500 = vmatpush1.msra.mxu0 %v397
        %501 = vmatprep.subr.mxu0 0.0
        %502 = vmatpush1.msra.mxu0 %v398
        %503 = vmatprep.subr.mxu0 0.0
        %504 = vmatpush1.msra.mxu0 0.0
        %505 = vmatprep.subr.mxu0 0.0
        %506 = vmatpush1.msra.mxu0 0.0
        %507 = vmatprep.subr.mxu0 0.0
        %508 = vmatpush1.msra.mxu0 0.0
        %509 = vmatprep.subr.mxu0 0.0
        %510 = vmatpush1.msra.mxu0 0.0
        %511 = vmatprep.subr.mxu0 0.0
        %512 = vmatpush1.msra.mxu0 0.0
        %513 = vmatprep.subr.mxu0 0.0
        %514 = vmatpush1.msra.mxu0 0.0
        %515 = vmatprep.subr.mxu0 0.0
        %516 = vmatpush1.msra.mxu0 0.0
        %517 = vmatprep.subr.mxu0 0.0
        %518 = vmatpush1.msra.mxu0 0.0
        %519 = vmatprep.subr.mxu0 0.0
        %520 = vmatpush1.msra.mxu0 0.0
        %521 = vmatprep.subr.mxu0 0.0
        %522 = vmatpush1.msra.mxu0 0.0
        %523 = vmatprep.subr.mxu0 0.0
        %524 = vmatpush1.msra.mxu0 0.0
        %525 = vmatprep.subr.mxu0 0.0
        %526 = vmatpush1.msra.mxu0 0.0
        %527 = vmatprep.subr.mxu0 0.0
        %528 = vmatpush1.msra.mxu0 0.0
        %529 = vmatprep.subr.mxu0 0.0
        %530 = vmatpush1.msra.mxu0 0.0
        %531 = vmatprep.subr.mxu0 0.0
        %532 = vmatpush1.msra.mxu0 0.0
        %533 = vmatprep.subr.mxu0 0.0
        %534 = vmatpush1.msra.mxu0 0.0
        %535 = vmatprep.subr.mxu0 0.0
        %536 = vmatpush1.msra.mxu0 0.0
        %537 = vmatprep.subr.mxu0 0.0
        %538 = vmatpush1.msra.mxu0 0.0
        %539 = vmatprep.subr.mxu0 0.0
        %540 = vmatpush1.msra.mxu0 0.0
        %541 = vmatprep.subr.mxu0 0.0
        %542 = vmatpush1.msra.mxu0 0.0
        %543 = vmatprep.subr.mxu0 0.0
        %544 = vmatpush1.msra.mxu0 0.0
        %545 = vmatprep.subr.mxu0 0.0
        %546 = vmatpush1.msra.mxu0 0.0
        %547 = vmatprep.subr.mxu0 0.0
        %548 = vmatpush1.msra.mxu0 0.0
        %549 = vmatprep.subr.mxu0 0.0
        %550 = vmatpush1.msra.mxu0 0.0
        %551 = vmatprep.subr.mxu0 0.0
        %552 = vmatpush1.msra.mxu0 0.0
        %553 = vmatprep.subr.mxu0 0.0
        %554 = vmatpush1.msra.mxu0 0.0
        %555 = vmatprep.subr.mxu0 0.0
        %556 = vmatpush1.msra.mxu0 0.0
        %557 = vmatprep.subr.mxu0 0.0
        %558 = vmatpush1.msra.mxu0 0.0
        %559 = vmatprep.mubr.f32.mxu0 0.0
        %560 = vmatmul.mubr.f32.gmra.mrb[0].mxu0 %v400
        %v561 = vpop.f32.mrb[0].mxu0
        %v562 = vadd.f32 0.0, %v561
        %v563 = vpop.f32.mrb[0].mxu0
        %564 = vmatprep.mubr.f32.mxu0 0.0
        %565 = vmatmul.mubr.f32.gmra.mrb[0].mxu0 %v403
        %v566 = vpop.f32.mrb[0].mxu0
        %v567 = vadd.f32 0.0, %v566
        %v568 = vpop.f32.mrb[0].mxu0
        %569 = vmatprep.mubr.f32.mxu0 0.0
        %570 = vmatmul.mubr.f32.gmra.mrb[0].mxu0 %v406
        %v571 = vpop.f32.mrb[0].mxu0
        %v572 = vadd.f32 0.0, %v571
        %v573 = vpop.f32.mrb[0].mxu0
        %574 = vmatprep.mubr.f32.mxu0 0.0
        %575 = vmatmul.mubr.f32.gmra.mrb[0].mxu0 %v409
        %v576 = vpop.f32.mrb[0].mxu0
        %v577 = vadd.f32 0.0, %v576
        %v578 = vpop.f32.mrb[0].mxu0
        %579 = vmatprep.mubr.f32.mxu0 0.0
        %580 = vmatmul.mubr.f32.gmra.mrb[0].mxu0 %v412
        %v581 = vpop.f32.mrb[0].mxu0
        %v582 = vadd.f32 0.0, %v581
        %v583 = vpop.f32.mrb[0].mxu0
        %584 = vmatprep.mubr.f32.mxu0 0.0
        %585 = vmatmul.mubr.f32.gmra.mrb[0].mxu0 %v415
        %v586 = vpop.f32.mrb[0].mxu0
        %v587 = vadd.f32 0.0, %v586
        %v588 = vpop.f32.mrb[0].mxu0
        %589 = vmatprep.mubr.f32.mxu0 0.0
        %590 = vmatmul.mubr.f32.gmra.mrb[0].mxu0 %v418
        %v591 = vpop.f32.mrb[0].mxu0
        %v592 = vadd.f32 0.0, %v591
        %v593 = vpop.f32.mrb[0].mxu0
        %594 = vmatprep.mubr.f32.mxu0 0.0
        %595 = vmatmul.mubr.f32.gmra.mrb[0].mxu0 %v421
        %v596 = vpop.f32.mrb[0].mxu0
        %v597 = vadd.f32 0.0, %v596
        %v598 = vpop.f32.mrb[0].mxu0
        %599 = vmatprep.mubr.f32.mxu0 0.0
        %600 = vmatmul.mubr.f32.gmra.mrb[0].mxu0 %v424
        %v601 = vpop.f32.mrb[0].mxu0
        %v602 = vadd.f32 0.0, %v601
        %v603 = vpop.f32.mrb[0].mxu0
        %604 = vmatprep.mubr.f32.mxu0 0.0
        %605 = vmatmul.mubr.f32.gmra.mrb[0].mxu0 %v427
        %v606 = vpop.f32.mrb[0].mxu0
        %v607 = vadd.f32 0.0, %v606
        %v608 = vpop.f32.mrb[0].mxu0
        %609 = vmatprep.mubr.f32.mxu0 0.0
        %610 = vmatmul.mubr.f32.gmra.mrb[0].mxu0 %v430
        %v611 = vpop.f32.mrb[0].mxu0
        %v612 = vadd.f32 0.0, %v611
        %v613 = vpop.f32.mrb[0].mxu0
        %614 = vmatprep.mubr.f32.mxu0 0.0
        %615 = vmatmul.mubr.f32.gmra.mrb[0].mxu0 %v433
        %v616 = vpop.f32.mrb[0].mxu0
        %v617 = vadd.f32 0.0, %v616
        %v618 = vpop.f32.mrb[0].mxu0
        %619 = vmatprep.mubr.f32.mxu0 0.0
        %620 = vmatmul.mubr.f32.gmra.mrb[0].mxu0 %v436
        %v621 = vpop.f32.mrb[0].mxu0
        %v622 = vadd.f32 0.0, %v621
        %v623 = vpop.f32.mrb[0].mxu0
        %624 = vmatprep.mubr.f32.mxu0 0.0
        %625 = vmatmul.mubr.f32.gmra.mrb[0].mxu0 %v439
        %v626 = vpop.f32.mrb[0].mxu0
        %v627 = vadd.f32 0.0, %v626
        %v628 = vpop.f32.mrb[0].mxu0
        %629 = vmatprep.mubr.f32.mxu0 0.0
        %630 = vmatmul.mubr.f32.gmra.mrb[0].mxu0 %v442
        %v631 = vpop.f32.mrb[0].mxu0
        %v632 = vadd.f32 0.0, %v631
        %v633 = vpop.f32.mrb[0].mxu0
        %634 = vmatprep.mubr.f32.mxu0 0.0
        %635 = vmatmul.mubr.f32.gmra.mrb[0].mxu0 %v445
        %v636 = vpop.f32.mrb[0].mxu0
        %v637 = vadd.f32 0.0, %v636
        %v638 = vpop.f32.mrb[0].mxu0
        %639 = vmatprep.mubr.f32.mxu0 0.0
        %640 = vmatmul.mubr.f32.gmra.mrb[0].mxu0 %v448
        %v641 = vpop.f32.mrb[0].mxu0
        %v642 = vadd.f32 0.0, %v641
        %v643 = vpop.f32.mrb[0].mxu0
        %644 = vmatprep.mubr.f32.mxu0 0.0
        %645 = vmatmul.mubr.f32.gmra.mrb[0].mxu0 %v451
        %v646 = vpop.f32.mrb[0].mxu0
        %v647 = vadd.f32 0.0, %v646
        %v648 = vpop.f32.mrb[0].mxu0
        %649 = vmatprep.mubr.f32.mxu0 0.0
        %650 = vmatmul.mubr.f32.gmra.mrb[0].mxu0 %v454
        %v651 = vpop.f32.mrb[0].mxu0
        %v652 = vadd.f32 0.0, %v651
        %v653 = vpop.f32.mrb[0].mxu0
        %654 = vmatprep.mubr.f32.mxu0 0.0
        %655 = vmatmul.mubr.f32.gmra.mrb[0].mxu0 %v457
        %v656 = vpop.f32.mrb[0].mxu0
        %v657 = vadd.f32 0.0, %v656
        %v658 = vpop.f32.mrb[0].mxu0
        %659 = vmatprep.mubr.f32.mxu0 0.0
        %660 = vmatmul.mubr.f32.gmra.mrb[0].mxu0 %v460
        %v661 = vpop.f32.mrb[0].mxu0
        %v662 = vadd.f32 0.0, %v661
        %v663 = vpop.f32.mrb[0].mxu0
        %664 = vmatprep.mubr.f32.mxu0 0.0
        %665 = vmatmul.mubr.f32.gmra.mrb[0].mxu0 %v463
        %v666 = vpop.f32.mrb[0].mxu0
        %v667 = vadd.f32 0.0, %v666
        %v668 = vpop.f32.mrb[0].mxu0
        %669 = vmatprep.mubr.f32.mxu0 0.0
        %670 = vmatmul.mubr.f32.gmra.mrb[0].mxu0 %v466
        %v671 = vpop.f32.mrb[0].mxu0
        %v672 = vadd.f32 0.0, %v671
        %v673 = vpop.f32.mrb[0].mxu0
        %674 = vmatprep.mubr.f32.mxu0 0.0
        %675 = vmatmul.mubr.f32.gmra.mrb[0].mxu0 %v469
        %v676 = vpop.f32.mrb[0].mxu0
        %v677 = vadd.f32 0.0, %v676
        %v678 = vpop.f32.mrb[0].mxu0
        %679 = vmatprep.mubr.f32.mxu0 0.0
        %680 = vmatmul.mubr.f32.gmra.mrb[0].mxu0 %v472
        %v681 = vpop.f32.mrb[0].mxu0
        %v682 = vadd.f32 0.0, %v681
        %v683 = vpop.f32.mrb[0].mxu0
        %684 = vmatprep.mubr.f32.mxu0 0.0
        %685 = vmatmul.mubr.f32.gmra.mrb[0].mxu0 %v475
        %v686 = vpop.f32.mrb[0].mxu0
        %v687 = vadd.f32 0.0, %v686
        %v688 = vpop.f32.mrb[0].mxu0
        %689 = vmatprep.mubr.f32.mxu0 0.0
        %690 = vmatmul.mubr.f32.gmra.mrb[0].mxu0 %v478
        %v691 = vpop.f32.mrb[0].mxu0
        %v692 = vadd.f32 0.0, %v691
        %v693 = vpop.f32.mrb[0].mxu0
        %694 = vmatprep.mubr.f32.mxu0 0.0
        %695 = vmatmul.mubr.f32.gmra.mrb[0].mxu0 %v481
        %v696 = vpop.f32.mrb[0].mxu0
        %v697 = vadd.f32 0.0, %v696
        %v698 = vpop.f32.mrb[0].mxu0
        %699 = vmatprep.mubr.f32.mxu0 0.0
        %700 = vmatmul.mubr.f32.gmra.mrb[0].mxu0 %v484
        %v701 = vpop.f32.mrb[0].mxu0
        %v702 = vadd.f32 0.0, %v701
        %v703 = vpop.f32.mrb[0].mxu0
        %704 = vmatprep.mubr.f32.mxu0 0.0
        %705 = vmatmul.mubr.f32.gmra.mrb[0].mxu0 %v487
        %v706 = vpop.f32.mrb[0].mxu0
        %v707 = vadd.f32 0.0, %v706
        %v708 = vpop.f32.mrb[0].mxu0
        %709 = vmatprep.mubr.f32.mxu0 0.0
        %710 = vmatmul.mubr.f32.gmra.mrb[0].mxu0 %v490
        %v711 = vpop.f32.mrb[0].mxu0
        %v712 = vadd.f32 0.0, %v711
        %v713 = vpop.f32.mrb[0].mxu0
        %714 = vmatprep.mubr.f32.mxu0 0.0
        %715 = vmatmul.mubr.f32.gmra.mrb[0].mxu0 %v493
        %v716 = vpop.f32.mrb[0].mxu0
        %v717 = vadd.f32 0.0, %v716
        %v718 = vpop.f32.mrb[0].mxu0
        %719 = vdwg.mxu0
        %v721 = vsel %vm215, %v326, 0
        %v724 = vsel %vm215, %v327, 0
        %v727 = vsel %vm215, %v328, 0
        %v730 = vsel %vm215, %v329, 0
        %v733 = vsel %vm215, %v330, 0
        %v736 = vsel %vm215, %v331, 0
        %v739 = vsel %vm215, %v332, 0
        %v742 = vsel %vm215, %v333, 0
        %v745 = vsel %vm215, %v334, 0
        %v748 = vsel %vm215, %v335, 0
        %v751 = vsel %vm215, %v336, 0
        %v754 = vsel %vm215, %v337, 0
        %v757 = vsel %vm215, %v338, 0
        %v760 = vsel %vm215, %v339, 0
        %v763 = vsel %vm215, %v340, 0
        %v766 = vsel %vm215, %v341, 0
        %v769 = vsel %vm215, %v342, 0
        %v772 = vsel %vm215, %v343, 0
        %v775 = vsel %vm215, %v344, 0
        %v778 = vsel %vm215, %v345, 0
        %v781 = vsel %vm215, %v346, 0
        %v784 = vsel %vm215, %v347, 0
        %v787 = vsel %vm215, %v348, 0
        %v790 = vsel %vm215, %v349, 0
        %v793 = vsel %vm215, %v350, 0
        %v796 = vsel %vm215, %v351, 0
        %v799 = vsel %vm215, %v352, 0
        %v802 = vsel %vm215, %v353, 0
        %v805 = vsel %vm215, %v354, 0
        %v808 = vsel %vm215, %v355, 0
        %v811 = vsel %vm215, %v356, 0
        %v814 = vsel %vm215, %v357, 0
        %816 = vmatprep.subr.mxu0 0.0
        %817 = vmatpush1.msra.mxu0 %v358
        %818 = vmatprep.subr.mxu0 0.0
        %819 = vmatpush1.msra.mxu0 %v359
        %820 = vmatprep.subr.mxu0 0.0
        %821 = vmatpush1.msra.mxu0 %v360
        %822 = vmatprep.subr.mxu0 0.0
        %823 = vmatpush1.msra.mxu0 %v361
        %824 = vmatprep.subr.mxu0 0.0
        %825 = vmatpush1.msra.mxu0 0.0
        %826 = vmatprep.subr.mxu0 0.0
        %827 = vmatpush1.msra.mxu0 0.0
        %828 = vmatprep.subr.mxu0 0.0
        %829 = vmatpush1.msra.mxu0 0.0
        %830 = vmatprep.subr.mxu0 0.0
        %831 = vmatpush1.msra.mxu0 0.0
        %832 = vmatprep.subr.mxu0 0.0
        %833 = vmatpush1.msra.mxu0 0.0
        %834 = vmatprep.subr.mxu0 0.0
        %835 = vmatpush1.msra.mxu0 0.0
        %836 = vmatprep.subr.mxu0 0.0
        %837 = vmatpush1.msra.mxu0 0.0
        %838 = vmatprep.subr.mxu0 0.0
        %839 = vmatpush1.msra.mxu0 0.0
        %840 = vmatprep.subr.mxu0 0.0
        %841 = vmatpush1.msra.mxu0 0.0
        %842 = vmatprep.subr.mxu0 0.0
        %843 = vmatpush1.msra.mxu0 0.0
        %844 = vmatprep.subr.mxu0 0.0
        %845 = vmatpush1.msra.mxu0 0.0
        %846 = vmatprep.subr.mxu0 0.0
        %847 = vmatpush1.msra.mxu0 0.0
        %848 = vmatprep.subr.mxu0 0.0
        %849 = vmatpush1.msra.mxu0 0.0
        %850 = vmatprep.subr.mxu0 0.0
        %851 = vmatpush1.msra.mxu0 0.0
        %852 = vmatprep.subr.mxu0 0.0
        %853 = vmatpush1.msra.mxu0 0.0
        %854 = vmatprep.subr.mxu0 0.0
        %855 = vmatpush1.msra.mxu0 0.0
        %856 = vmatprep.subr.mxu0 0.0
        %857 = vmatpush1.msra.mxu0 0.0
        %858 = vmatprep.subr.mxu0 0.0
        %859 = vmatpush1.msra.mxu0 0.0
        %860 = vmatprep.subr.mxu0 0.0
        %861 = vmatpush1.msra.mxu0 0.0
        %862 = vmatprep.subr.mxu0 0.0
        %863 = vmatpush1.msra.mxu0 0.0
        %864 = vmatprep.subr.mxu0 0.0
        %865 = vmatpush1.msra.mxu0 0.0
        %866 = vmatprep.subr.mxu0 0.0
        %867 = vmatpush1.msra.mxu0 0.0
        %868 = vmatprep.subr.mxu0 0.0
        %869 = vmatpush1.msra.mxu0 0.0
        %870 = vmatprep.subr.mxu0 0.0
        %871 = vmatpush1.msra.mxu0 0.0
        %872 = vmatprep.subr.mxu0 0.0
        %873 = vmatpush1.msra.mxu0 0.0
        %874 = vmatprep.subr.mxu0 0.0
        %875 = vmatpush1.msra.mxu0 0.0
        %876 = vmatprep.subr.mxu0 0.0
        %877 = vmatpush1.msra.mxu0 0.0
        %878 = vmatprep.subr.mxu0 0.0
        %879 = vmatpush1.msra.mxu0 0.0
        %880 = vmatprep.mubr.f32.mxu0 0.0
        %881 = vmatmul.mubr.f32.gmra.mrb[0].mxu0 %v721
        %v882 = vpop.f32.mrb[0].mxu0
        %v883 = vadd.f32 %v562, %v882
        %v884 = vpop.f32.mrb[0].mxu0
        %885 = vmatprep.mubr.f32.mxu0 0.0
        %886 = vmatmul.mubr.f32.gmra.mrb[0].mxu0 %v724
        %v887 = vpop.f32.mrb[0].mxu0
        %v888 = vadd.f32 %v567, %v887
        %v889 = vpop.f32.mrb[0].mxu0
        %890 = vmatprep.mubr.f32.mxu0 0.0
        %891 = vmatmul.mubr.f32.gmra.mrb[0].mxu0 %v727
        %v892 = vpop.f32.mrb[0].mxu0
        %v893 = vadd.f32 %v572, %v892
        %v894 = vpop.f32.mrb[0].mxu0
        %895 = vmatprep.mubr.f32.mxu0 0.0
        %896 = vmatmul.mubr.f32.gmra.mrb[0].mxu0 %v730
        %v897 = vpop.f32.mrb[0].mxu0
        %v898 = vadd.f32 %v577, %v897
        %v899 = vpop.f32.mrb[0].mxu0
        %900 = vmatprep.mubr.f32.mxu0 0.0
        %901 = vmatmul.mubr.f32.gmra.mrb[0].mxu0 %v733
        %v902 = vpop.f32.mrb[0].mxu0
        %v903 = vadd.f32 %v582, %v902
        %v904 = vpop.f32.mrb[0].mxu0
        %905 = vmatprep.mubr.f32.mxu0 0.0
        %906 = vmatmul.mubr.f32.gmra.mrb[0].mxu0 %v736
        %v907 = vpop.f32.mrb[0].mxu0
        %v908 = vadd.f32 %v587, %v907
        %v909 = vpop.f32.mrb[0].mxu0
        %910 = vmatprep.mubr.f32.mxu0 0.0
        %911 = vmatmul.mubr.f32.gmra.mrb[0].mxu0 %v739
        %v912 = vpop.f32.mrb[0].mxu0
        %v913 = vadd.f32 %v592, %v912
        %v914 = vpop.f32.mrb[0].mxu0
        %915 = vmatprep.mubr.f32.mxu0 0.0
        %916 = vmatmul.mubr.f32.gmra.mrb[0].mxu0 %v742
        %v917 = vpop.f32.mrb[0].mxu0
        %v918 = vadd.f32 %v597, %v917
        %v919 = vpop.f32.mrb[0].mxu0
        %920 = vmatprep.mubr.f32.mxu0 0.0
        %921 = vmatmul.mubr.f32.gmra.mrb[0].mxu0 %v745
        %v922 = vpop.f32.mrb[0].mxu0
        %v923 = vadd.f32 %v602, %v922
        %v924 = vpop.f32.mrb[0].mxu0
        %925 = vmatprep.mubr.f32.mxu0 0.0
        %926 = vmatmul.mubr.f32.gmra.mrb[0].mxu0 %v748
        %v927 = vpop.f32.mrb[0].mxu0
        %v928 = vadd.f32 %v607, %v927
        %v929 = vpop.f32.mrb[0].mxu0
        %930 = vmatprep.mubr.f32.mxu0 0.0
        %931 = vmatmul.mubr.f32.gmra.mrb[0].mxu0 %v751
        %v932 = vpop.f32.mrb[0].mxu0
        %v933 = vadd.f32 %v612, %v932
        %v934 = vpop.f32.mrb[0].mxu0
        %935 = vmatprep.mubr.f32.mxu0 0.0
        %936 = vmatmul.mubr.f32.gmra.mrb[0].mxu0 %v754
        %v937 = vpop.f32.mrb[0].mxu0
        %v938 = vadd.f32 %v617, %v937
        %v939 = vpop.f32.mrb[0].mxu0
        %940 = vmatprep.mubr.f32.mxu0 0.0
        %941 = vmatmul.mubr.f32.gmra.mrb[0].mxu0 %v757
        %v942 = vpop.f32.mrb[0].mxu0
        %v943 = vadd.f32 %v622, %v942
        %v944 = vpop.f32.mrb[0].mxu0
        %945 = vmatprep.mubr.f32.mxu0 0.0
        %946 = vmatmul.mubr.f32.gmra.mrb[0].mxu0 %v760
        %v947 = vpop.f32.mrb[0].mxu0
        %v948 = vadd.f32 %v627, %v947
        %v949 = vpop.f32.mrb[0].mxu0
        %950 = vmatprep.mubr.f32.mxu0 0.0
        %951 = vmatmul.mubr.f32.gmra.mrb[0].mxu0 %v763
        %v952 = vpop.f32.mrb[0].mxu0
        %v953 = vadd.f32 %v632, %v952
        %v954 = vpop.f32.mrb[0].mxu0
        %955 = vmatprep.mubr.f32.mxu0 0.0
        %956 = vmatmul.mubr.f32.gmra.mrb[0].mxu0 %v766
        %v957 = vpop.f32.mrb[0].mxu0
        %v958 = vadd.f32 %v637, %v957
        %v959 = vpop.f32.mrb[0].mxu0
        %960 = vmatprep.mubr.f32.mxu0 0.0
        %961 = vmatmul.mubr.f32.gmra.mrb[0].mxu0 %v769
        %v962 = vpop.f32.mrb[0].mxu0
        %v963 = vadd.f32 %v642, %v962
        %v964 = vpop.f32.mrb[0].mxu0
        %965 = vmatprep.mubr.f32.mxu0 0.0
        %966 = vmatmul.mubr.f32.gmra.mrb[0].mxu0 %v772
        %v967 = vpop.f32.mrb[0].mxu0
        %v968 = vadd.f32 %v647, %v967
        %v969 = vpop.f32.mrb[0].mxu0
        %970 = vmatprep.mubr.f32.mxu0 0.0
        %971 = vmatmul.mubr.f32.gmra.mrb[0].mxu0 %v775
        %v972 = vpop.f32.mrb[0].mxu0
        %v973 = vadd.f32 %v652, %v972
        %v974 = vpop.f32.mrb[0].mxu0
        %975 = vmatprep.mubr.f32.mxu0 0.0
        %976 = vmatmul.mubr.f32.gmra.mrb[0].mxu0 %v778
        %v977 = vpop.f32.mrb[0].mxu0
        %v978 = vadd.f32 %v657, %v977
        %v979 = vpop.f32.mrb[0].mxu0
        %980 = vmatprep.mubr.f32.mxu0 0.0
        %981 = vmatmul.mubr.f32.gmra.mrb[0].mxu0 %v781
        %v982 = vpop.f32.mrb[0].mxu0
        %v983 = vadd.f32 %v662, %v982
        %v984 = vpop.f32.mrb[0].mxu0
        %985 = vmatprep.mubr.f32.mxu0 0.0
        %986 = vmatmul.mubr.f32.gmra.mrb[0].mxu0 %v784
        %v987 = vpop.f32.mrb[0].mxu0
        %v988 = vadd.f32 %v667, %v987
        %v989 = vpop.f32.mrb[0].mxu0
        %990 = vmatprep.mubr.f32.mxu0 0.0
        %991 = vmatmul.mubr.f32.gmra.mrb[0].mxu0 %v787
        %v992 = vpop.f32.mrb[0].mxu0
        %v993 = vadd.f32 %v672, %v992
        %v994 = vpop.f32.mrb[0].mxu0
        %995 = vmatprep.mubr.f32.mxu0 0.0
        %996 = vmatmul.mubr.f32.gmra.mrb[0].mxu0 %v790
        %v997 = vpop.f32.mrb[0].mxu0
        %v998 = vadd.f32 %v677, %v997
        %v999 = vpop.f32.mrb[0].mxu0
        %1000 = vmatprep.mubr.f32.mxu0 0.0
        %1001 = vmatmul.mubr.f32.gmra.mrb[0].mxu0 %v793
        %v1002 = vpop.f32.mrb[0].mxu0
        %v1003 = vadd.f32 %v682, %v1002
        %v1004 = vpop.f32.mrb[0].mxu0
        %1005 = vmatprep.mubr.f32.mxu0 0.0
        %1006 = vmatmul.mubr.f32.gmra.mrb[0].mxu0 %v796
        %v1007 = vpop.f32.mrb[0].mxu0
        %v1008 = vadd.f32 %v687, %v1007
        %v1009 = vpop.f32.mrb[0].mxu0
        %1010 = vmatprep.mubr.f32.mxu0 0.0
        %1011 = vmatmul.mubr.f32.gmra.mrb[0].mxu0 %v799
        %v1012 = vpop.f32.mrb[0].mxu0
        %v1013 = vadd.f32 %v692, %v1012
        %v1014 = vpop.f32.mrb[0].mxu0
        %1015 = vmatprep.mubr.f32.mxu0 0.0
        %1016 = vmatmul.mubr.f32.gmra.mrb[0].mxu0 %v802
        %v1017 = vpop.f32.mrb[0].mxu0
        %v1018 = vadd.f32 %v697, %v1017
        %v1019 = vpop.f32.mrb[0].mxu0
        %1020 = vmatprep.mubr.f32.mxu0 0.0
        %1021 = vmatmul.mubr.f32.gmra.mrb[0].mxu0 %v805
        %v1022 = vpop.f32.mrb[0].mxu0
        %v1023 = vadd.f32 %v702, %v1022
        %v1024 = vpop.f32.mrb[0].mxu0
        %1025 = vmatprep.mubr.f32.mxu0 0.0
        %1026 = vmatmul.mubr.f32.gmra.mrb[0].mxu0 %v808
        %v1027 = vpop.f32.mrb[0].mxu0
        %v1028 = vadd.f32 %v707, %v1027
        %v1029 = vpop.f32.mrb[0].mxu0
        %1030 = vmatprep.mubr.f32.mxu0 0.0
        %1031 = vmatmul.mubr.f32.gmra.mrb[0].mxu0 %v811
        %v1032 = vpop.f32.mrb[0].mxu0
        %v1033 = vadd.f32 %v712, %v1032
        %v1034 = vpop.f32.mrb[0].mxu0
        %1035 = vmatprep.mubr.f32.mxu0 0.0
        %1036 = vmatmul.mubr.f32.gmra.mrb[0].mxu0 %v814
        %v1037 = vpop.f32.mrb[0].mxu0
        %v1038 = vadd.f32 %v717, %v1037
        %v1039 = vpop.f32.mrb[0].mxu0
        %1040 = vdwg.mxu0
        %v1041 = vld [vmem:[#allocation2 + $0x2] sm:$0xff]
        %v1042 = vld [vmem:[#allocation2 + $0xa] sm:$0xff]
        %v1043 = vld [vmem:[#allocation2 + $0x1a] sm:$0xff]
        %v1044 = vld [vmem:[#allocation2 + $0x22] sm:$0xff]
        %v1045 = vld [vmem:[#allocation2 + $0x32] sm:$0xff]
        %v1046 = vld [vmem:[#allocation2 + $0x3a] sm:$0xff]
        %v1047 = vld [vmem:[#allocation2 + $0x4a] sm:$0xff]
        %v1048 = vld [vmem:[#allocation2 + $0x52] sm:$0xff]
        %v1049 = vld [vmem:[#allocation2 + $0x62] sm:$0xff]
        %v1050 = vld [vmem:[#allocation2 + $0x6a] sm:$0xff]
        %v1051 = vld [vmem:[#allocation2 + $0x7a] sm:$0xff]
        %v1052 = vld [vmem:[#allocation2 + $0x82] sm:$0xff]
        %v1053 = vld [vmem:[#allocation2 + $0x92] sm:$0xff]
        %v1054 = vld [vmem:[#allocation2 + $0x9a] sm:$0xff]
        %v1055 = vld [vmem:[#allocation2 + $0xaa] sm:$0xff]
        %v1056 = vld [vmem:[#allocation2 + $0xb2] sm:$0xff]
        %v1057 = vld [vmem:[#allocation2 + $0xc2] sm:$0xff]
        %v1058 = vld [vmem:[#allocation2 + $0xca] sm:$0xff]
        %v1059 = vld [vmem:[#allocation2 + $0xda] sm:$0xff]
        %v1060 = vld [vmem:[#allocation2 + $0xe2] sm:$0xff]
        %v1061 = vld [vmem:[#allocation2 + $0xf2] sm:$0xff]
        %v1062 = vld [vmem:[#allocation2 + $0xfa] sm:$0xff]
        %v1063 = vld [vmem:[#allocation2 + $0x10a] sm:$0xff]
        %v1064 = vld [vmem:[#allocation2 + $0x112] sm:$0xff]
        %v1065 = vld [vmem:[#allocation2 + $0x122] sm:$0xff]
        %v1066 = vld [vmem:[#allocation2 + $0x12a] sm:$0xff]
        %v1067 = vld [vmem:[#allocation2 + $0x13a] sm:$0xff]
        %v1068 = vld [vmem:[#allocation2 + $0x142] sm:$0xff]
        %v1069 = vld [vmem:[#allocation2 + $0x152] sm:$0xff]
        %v1070 = vld [vmem:[#allocation2 + $0x15a] sm:$0xff]
        %v1071 = vld [vmem:[#allocation2 + $0x16a] sm:$0xff]
        %v1072 = vld [vmem:[#allocation2 + $0x172] sm:$0xff]
        %s1073 = scalar_lea.vmem %s2, 64
        %v1074 = vld [vmem:[%s1073] sm:$0xff]
        %v1075 = vld [vmem:[%s1073 + $0x8] sm:$0xff]
        %v1076 = vld [vmem:[%s1073 + $0x10] sm:$0xff]
        %v1077 = vld [vmem:[%s1073 + $0x18] sm:$0xff]
        %v1079 = vsel %vm215, %v1041, 0
        %v1082 = vsel %vm215, %v1042, 0
        %v1085 = vsel %vm215, %v1043, 0
        %v1088 = vsel %vm215, %v1044, 0
        %v1091 = vsel %vm215, %v1045, 0
        %v1094 = vsel %vm215, %v1046, 0
        %v1097 = vsel %vm215, %v1047, 0
        %v1100 = vsel %vm215, %v1048, 0
        %v1103 = vsel %vm215, %v1049, 0
        %v1106 = vsel %vm215, %v1050, 0
        %v1109 = vsel %vm215, %v1051, 0
        %v1112 = vsel %vm215, %v1052, 0
        %v1115 = vsel %vm215, %v1053, 0
        %v1118 = vsel %vm215, %v1054, 0
        %v1121 = vsel %vm215, %v1055, 0
        %v1124 = vsel %vm215, %v1056, 0
        %v1127 = vsel %vm215, %v1057, 0
        %v1130 = vsel %vm215, %v1058, 0
        %v1133 = vsel %vm215, %v1059, 0
        %v1136 = vsel %vm215, %v1060, 0
        %v1139 = vsel %vm215, %v1061, 0
        %v1142 = vsel %vm215, %v1062, 0
        %v1145 = vsel %vm215, %v1063, 0
        %v1148 = vsel %vm215, %v1064, 0
        %v1151 = vsel %vm215, %v1065, 0
        %v1154 = vsel %vm215, %v1066, 0
        %v1157 = vsel %vm215, %v1067, 0
        %v1160 = vsel %vm215, %v1068, 0
        %v1163 = vsel %vm215, %v1069, 0
        %v1166 = vsel %vm215, %v1070, 0
        %v1169 = vsel %vm215, %v1071, 0
        %v1172 = vsel %vm215, %v1072, 0
        %1174 = vmatprep.subr.mxu0 0.0
        %1175 = vmatpush1.msra.mxu0 %v1074
        %1176 = vmatprep.subr.mxu0 0.0
        %1177 = vmatpush1.msra.mxu0 %v1075
        %1178 = vmatprep.subr.mxu0 0.0
        %1179 = vmatpush1.msra.mxu0 %v1076
        %1180 = vmatprep.subr.mxu0 0.0
        %1181 = vmatpush1.msra.mxu0 %v1077
        %1182 = vmatprep.subr.mxu0 0.0
        %1183 = vmatpush1.msra.mxu0 0.0
        %1184 = vmatprep.subr.mxu0 0.0
        %1185 = vmatpush1.msra.mxu0 0.0
        %1186 = vmatprep.subr.mxu0 0.0
        %1187 = vmatpush1.msra.mxu0 0.0
        %1188 = vmatprep.subr.mxu0 0.0
        %1189 = vmatpush1.msra.mxu0 0.0
        %1190 = vmatprep.subr.mxu0 0.0
        %1191 = vmatpush1.msra.mxu0 0.0
        %1192 = vmatprep.subr.mxu0 0.0
        %1193 = vmatpush1.msra.mxu0 0.0
        %1194 = vmatprep.subr.mxu0 0.0
        %1195 = vmatpush1.msra.mxu0 0.0
        %1196 = vmatprep.subr.mxu0 0.0
        %1197 = vmatpush1.msra.mxu0 0.0
        %1198 = vmatprep.subr.mxu0 0.0
        %1199 = vmatpush1.msra.mxu0 0.0
        %1200 = vmatprep.subr.mxu0 0.0
        %1201 = vmatpush1.msra.mxu0 0.0
        %1202 = vmatprep.subr.mxu0 0.0
        %1203 = vmatpush1.msra.mxu0 0.0
        %1204 = vmatprep.subr.mxu0 0.0
        %1205 = vmatpush1.msra.mxu0 0.0
        %1206 = vmatprep.subr.mxu0 0.0
        %1207 = vmatpush1.msra.mxu0 0.0
        %1208 = vmatprep.subr.mxu0 0.0
        %1209 = vmatpush1.msra.mxu0 0.0
        %1210 = vmatprep.subr.mxu0 0.0
        %1211 = vmatpush1.msra.mxu0 0.0
        %1212 = vmatprep.subr.mxu0 0.0
        %1213 = vmatpush1.msra.mxu0 0.0
        %1214 = vmatprep.subr.mxu0 0.0
        %1215 = vmatpush1.msra.mxu0 0.0
        %1216 = vmatprep.subr.mxu0 0.0
        %1217 = vmatpush1.msra.mxu0 0.0
        %1218 = vmatprep.subr.mxu0 0.0
        %1219 = vmatpush1.msra.mxu0 0.0
        %1220 = vmatprep.subr.mxu0 0.0
        %1221 = vmatpush1.msra.mxu0 0.0
        %1222 = vmatprep.subr.mxu0 0.0
        %1223 = vmatpush1.msra.mxu0 0.0
        %1224 = vmatprep.subr.mxu0 0.0
        %1225 = vmatpush1.msra.mxu0 0.0
        %1226 = vmatprep.subr.mxu0 0.0
        %1227 = vmatpush1.msra.mxu0 0.0
        %1228 = vmatprep.subr.mxu0 0.0
        %1229 = vmatpush1.msra.mxu0 0.0
        %1230 = vmatprep.subr.mxu0 0.0
        %1231 = vmatpush1.msra.mxu0 0.0
        %1232 = vmatprep.subr.mxu0 0.0
        %1233 = vmatpush1.msra.mxu0 0.0
        %1234 = vmatprep.subr.mxu0 0.0
        %1235 = vmatpush1.msra.mxu0 0.0
        %1236 = vmatprep.subr.mxu0 0.0
        %1237 = vmatpush1.msra.mxu0 0.0
        %1238 = vmatprep.mubr.f32.mxu0 0.0
        %1239 = vmatmul.mubr.f32.gmra.mrb[0].mxu0 %v1079
        %v1240 = vpop.f32.mrb[0].mxu0
        %v1241 = vadd.f32 0.0, %v1240
        %v1242 = vpop.f32.mrb[0].mxu0
        %1243 = vmatprep.mubr.f32.mxu0 0.0
        %1244 = vmatmul.mubr.f32.gmra.mrb[0].mxu0 %v1082
        %v1245 = vpop.f32.mrb[0].mxu0
        %v1246 = vadd.f32 0.0, %v1245
        %v1247 = vpop.f32.mrb[0].mxu0
        %1248 = vmatprep.mubr.f32.mxu0 0.0
        %1249 = vmatmul.mubr.f32.gmra.mrb[0].mxu0 %v1085
        %v1250 = vpop.f32.mrb[0].mxu0
        %v1251 = vadd.f32 0.0, %v1250
        %v1252 = vpop.f32.mrb[0].mxu0
        %1253 = vmatprep.mubr.f32.mxu0 0.0
        %1254 = vmatmul.mubr.f32.gmra.mrb[0].mxu0 %v1088
        %v1255 = vpop.f32.mrb[0].mxu0
        %v1256 = vadd.f32 0.0, %v1255
        %v1257 = vpop.f32.mrb[0].mxu0
        %1258 = vmatprep.mubr.f32.mxu0 0.0
        %1259 = vmatmul.mubr.f32.gmra.mrb[0].mxu0 %v1091
        %v1260 = vpop.f32.mrb[0].mxu0
        %v1261 = vadd.f32 0.0, %v1260
        %v1262 = vpop.f32.mrb[0].mxu0
        %1263 = vmatprep.mubr.f32.mxu0 0.0
        %1264 = vmatmul.mubr.f32.gmra.mrb[0].mxu0 %v1094
        %v1265 = vpop.f32.mrb[0].mxu0
        %v1266 = vadd.f32 0.0, %v1265
        %v1267 = vpop.f32.mrb[0].mxu0
        %1268 = vmatprep.mubr.f32.mxu0 0.0
        %1269 = vmatmul.mubr.f32.gmra.mrb[0].mxu0 %v1097
        %v1270 = vpop.f32.mrb[0].mxu0
        %v1271 = vadd.f32 0.0, %v1270
        %v1272 = vpop.f32.mrb[0].mxu0
        %1273 = vmatprep.mubr.f32.mxu0 0.0
        %1274 = vmatmul.mubr.f32.gmra.mrb[0].mxu0 %v1100
        %v1275 = vpop.f32.mrb[0].mxu0
        %v1276 = vadd.f32 0.0, %v1275
        %v1277 = vpop.f32.mrb[0].mxu0
        %1278 = vmatprep.mubr.f32.mxu0 0.0
        %1279 = vmatmul.mubr.f32.gmra.mrb[0].mxu0 %v1103
        %v1280 = vpop.f32.mrb[0].mxu0
        %v1281 = vadd.f32 0.0, %v1280
        %v1282 = vpop.f32.mrb[0].mxu0
        %1283 = vmatprep.mubr.f32.mxu0 0.0
        %1284 = vmatmul.mubr.f32.gmra.mrb[0].mxu0 %v1106
        %v1285 = vpop.f32.mrb[0].mxu0
        %v1286 = vadd.f32 0.0, %v1285
        %v1287 = vpop.f32.mrb[0].mxu0
        %1288 = vmatprep.mubr.f32.mxu0 0.0
        %1289 = vmatmul.mubr.f32.gmra.mrb[0].mxu0 %v1109
        %v1290 = vpop.f32.mrb[0].mxu0
        %v1291 = vadd.f32 0.0, %v1290
        %v1292 = vpop.f32.mrb[0].mxu0
        %1293 = vmatprep.mubr.f32.mxu0 0.0
        %1294 = vmatmul.mubr.f32.gmra.mrb[0].mxu0 %v1112
        %v1295 = vpop.f32.mrb[0].mxu0
        %v1296 = vadd.f32 0.0, %v1295
        %v1297 = vpop.f32.mrb[0].mxu0
        %1298 = vmatprep.mubr.f32.mxu0 0.0
        %1299 = vmatmul.mubr.f32.gmra.mrb[0].mxu0 %v1115
        %v1300 = vpop.f32.mrb[0].mxu0
        %v1301 = vadd.f32 0.0, %v1300
        %v1302 = vpop.f32.mrb[0].mxu0
        %1303 = vmatprep.mubr.f32.mxu0 0.0
        %1304 = vmatmul.mubr.f32.gmra.mrb[0].mxu0 %v1118
        %v1305 = vpop.f32.mrb[0].mxu0
        %v1306 = vadd.f32 0.0, %v1305
        %v1307 = vpop.f32.mrb[0].mxu0
        %1308 = vmatprep.mubr.f32.mxu0 0.0
        %1309 = vmatmul.mubr.f32.gmra.mrb[0].mxu0 %v1121
        %v1310 = vpop.f32.mrb[0].mxu0
        %v1311 = vadd.f32 0.0, %v1310
        %v1312 = vpop.f32.mrb[0].mxu0
        %1313 = vmatprep.mubr.f32.mxu0 0.0
        %1314 = vmatmul.mubr.f32.gmra.mrb[0].mxu0 %v1124
        %v1315 = vpop.f32.mrb[0].mxu0
        %v1316 = vadd.f32 0.0, %v1315
        %v1317 = vpop.f32.mrb[0].mxu0
        %1318 = vmatprep.mubr.f32.mxu0 0.0
        %1319 = vmatmul.mubr.f32.gmra.mrb[0].mxu0 %v1127
        %v1320 = vpop.f32.mrb[0].mxu0
        %v1321 = vadd.f32 0.0, %v1320
        %v1322 = vpop.f32.mrb[0].mxu0
        %1323 = vmatprep.mubr.f32.mxu0 0.0
        %1324 = vmatmul.mubr.f32.gmra.mrb[0].mxu0 %v1130
        %v1325 = vpop.f32.mrb[0].mxu0
        %v1326 = vadd.f32 0.0, %v1325
        %v1327 = vpop.f32.mrb[0].mxu0
        %1328 = vmatprep.mubr.f32.mxu0 0.0
        %1329 = vmatmul.mubr.f32.gmra.mrb[0].mxu0 %v1133
        %v1330 = vpop.f32.mrb[0].mxu0
        %v1331 = vadd.f32 0.0, %v1330
        %v1332 = vpop.f32.mrb[0].mxu0
        %1333 = vmatprep.mubr.f32.mxu0 0.0
        %1334 = vmatmul.mubr.f32.gmra.mrb[0].mxu0 %v1136
        %v1335 = vpop.f32.mrb[0].mxu0
        %v1336 = vadd.f32 0.0, %v1335
        %v1337 = vpop.f32.mrb[0].mxu0
        %1338 = vmatprep.mubr.f32.mxu0 0.0
        %1339 = vmatmul.mubr.f32.gmra.mrb[0].mxu0 %v1139
        %v1340 = vpop.f32.mrb[0].mxu0
        %v1341 = vadd.f32 0.0, %v1340
        %v1342 = vpop.f32.mrb[0].mxu0
        %1343 = vmatprep.mubr.f32.mxu0 0.0
        %1344 = vmatmul.mubr.f32.gmra.mrb[0].mxu0 %v1142
        %v1345 = vpop.f32.mrb[0].mxu0
        %v1346 = vadd.f32 0.0, %v1345
        %v1347 = vpop.f32.mrb[0].mxu0
        %1348 = vmatprep.mubr.f32.mxu0 0.0
        %1349 = vmatmul.mubr.f32.gmra.mrb[0].mxu0 %v1145
        %v1350 = vpop.f32.mrb[0].mxu0
        %v1351 = vadd.f32 0.0, %v1350
        %v1352 = vpop.f32.mrb[0].mxu0
        %1353 = vmatprep.mubr.f32.mxu0 0.0
        %1354 = vmatmul.mubr.f32.gmra.mrb[0].mxu0 %v1148
        %v1355 = vpop.f32.mrb[0].mxu0
        %v1356 = vadd.f32 0.0, %v1355
        %v1357 = vpop.f32.mrb[0].mxu0
        %1358 = vmatprep.mubr.f32.mxu0 0.0
        %1359 = vmatmul.mubr.f32.gmra.mrb[0].mxu0 %v1151
        %v1360 = vpop.f32.mrb[0].mxu0
        %v1361 = vadd.f32 0.0, %v1360
        %v1362 = vpop.f32.mrb[0].mxu0
        %1363 = vmatprep.mubr.f32.mxu0 0.0
        %1364 = vmatmul.mubr.f32.gmra.mrb[0].mxu0 %v1154
        %v1365 = vpop.f32.mrb[0].mxu0
        %v1366 = vadd.f32 0.0, %v1365
        %v1367 = vpop.f32.mrb[0].mxu0
        %1368 = vmatprep.mubr.f32.mxu0 0.0
        %1369 = vmatmul.mubr.f32.gmra.mrb[0].mxu0 %v1157
        %v1370 = vpop.f32.mrb[0].mxu0
        %v1371 = vadd.f32 0.0, %v1370
        %v1372 = vpop.f32.mrb[0].mxu0
        %1373 = vmatprep.mubr.f32.mxu0 0.0
        %1374 = vmatmul.mubr.f32.gmra.mrb[0].mxu0 %v1160
        %v1375 = vpop.f32.mrb[0].mxu0
        %v1376 = vadd.f32 0.0, %v1375
        %v1377 = vpop.f32.mrb[0].mxu0
        %1378 = vmatprep.mubr.f32.mxu0 0.0
        %1379 = vmatmul.mubr.f32.gmra.mrb[0].mxu0 %v1163
        %v1380 = vpop.f32.mrb[0].mxu0
        %v1381 = vadd.f32 0.0, %v1380
        %v1382 = vpop.f32.mrb[0].mxu0
        %1383 = vmatprep.mubr.f32.mxu0 0.0
        %1384 = vmatmul.mubr.f32.gmra.mrb[0].mxu0 %v1166
        %v1385 = vpop.f32.mrb[0].mxu0
        %v1386 = vadd.f32 0.0, %v1385
        %v1387 = vpop.f32.mrb[0].mxu0
        %1388 = vmatprep.mubr.f32.mxu0 0.0
        %1389 = vmatmul.mubr.f32.gmra.mrb[0].mxu0 %v1169
        %v1390 = vpop.f32.mrb[0].mxu0
        %v1391 = vadd.f32 0.0, %v1390
        %v1392 = vpop.f32.mrb[0].mxu0
        %1393 = vmatprep.mubr.f32.mxu0 0.0
        %1394 = vmatmul.mubr.f32.gmra.mrb[0].mxu0 %v1172
        %v1395 = vpop.f32.mrb[0].mxu0
        %v1396 = vadd.f32 0.0, %v1395
        %v1397 = vpop.f32.mrb[0].mxu0
        %1398 = vdwg.mxu0
        %v1399 = vadd.f32 %v883, %v1241
        %v1400 = vadd.f32 %v888, %v1246
        %v1401 = vadd.f32 %v893, %v1251
        %v1402 = vadd.f32 %v898, %v1256
        %v1403 = vadd.f32 %v903, %v1261
        %v1404 = vadd.f32 %v908, %v1266
        %v1405 = vadd.f32 %v913, %v1271
        %v1406 = vadd.f32 %v918, %v1276
        %v1407 = vadd.f32 %v923, %v1281
        %v1408 = vadd.f32 %v928, %v1286
        %v1409 = vadd.f32 %v933, %v1291
        %v1410 = vadd.f32 %v938, %v1296
        %v1411 = vadd.f32 %v943, %v1301
        %v1412 = vadd.f32 %v948, %v1306
        %v1413 = vadd.f32 %v953, %v1311
        %v1414 = vadd.f32 %v958, %v1316
        %v1415 = vadd.f32 %v963, %v1321
        %v1416 = vadd.f32 %v968, %v1326
        %v1417 = vadd.f32 %v973, %v1331
        %v1418 = vadd.f32 %v978, %v1336
        %v1419 = vadd.f32 %v983, %v1341
        %v1420 = vadd.f32 %v988, %v1346
        %v1421 = vadd.f32 %v993, %v1351
        %v1422 = vadd.f32 %v998, %v1356
        %v1423 = vadd.f32 %v1003, %v1361
        %v1424 = vadd.f32 %v1008, %v1366
        %v1425 = vadd.f32 %v1013, %v1371
        %v1426 = vadd.f32 %v1018, %v1376
        %v1427 = vadd.f32 %v1023, %v1381
        %v1428 = vadd.f32 %v1028, %v1386
        %v1429 = vadd.f32 %v1033, %v1391
        %v1430 = vadd.f32 %v1038, %v1396
        %v1431 = vld [vmem:[%s293] sm:$0xff]
        %v1432 = vld [vmem:[%s293 + $0x8] sm:$0xff]
        %v1433 = vld [vmem:[%s293 + $0x18] sm:$0xff]
        %v1434 = vld [vmem:[%s293 + $0x20] sm:$0xff]
        %v1435 = vld [vmem:[%s293 + $0x30] sm:$0xff]
        %v1436 = vld [vmem:[%s293 + $0x38] sm:$0xff]
        %v1437 = vld [vmem:[%s293 + $0x48] sm:$0xff]
        %v1438 = vld [vmem:[%s293 + $0x50] sm:$0xff]
        %v1439 = vld [vmem:[%s293 + $0x60] sm:$0xff]
        %v1440 = vld [vmem:[%s293 + $0x68] sm:$0xff]
        %v1441 = vld [vmem:[%s293 + $0x78] sm:$0xff]
        %v1442 = vld [vmem:[%s293 + $0x80] sm:$0xff]
        %v1443 = vld [vmem:[%s293 + $0x90] sm:$0xff]
        %v1444 = vld [vmem:[%s293 + $0x98] sm:$0xff]
        %v1445 = vld [vmem:[%s293 + $0xa8] sm:$0xff]
        %v1446 = vld [vmem:[%s293 + $0xb0] sm:$0xff]
        %v1447 = vld [vmem:[%s293 + $0xc0] sm:$0xff]
        %v1448 = vld [vmem:[%s293 + $0xc8] sm:$0xff]
        %v1449 = vld [vmem:[%s293 + $0xd8] sm:$0xff]
        %v1450 = vld [vmem:[%s293 + $0xe0] sm:$0xff]
        %v1451 = vld [vmem:[%s293 + $0xf0] sm:$0xff]
        %v1452 = vld [vmem:[%s293 + $0xf8] sm:$0xff]
        %v1453 = vld [vmem:[%s293 + $0x108] sm:$0xff]
        %v1454 = vld [vmem:[%s293 + $0x110] sm:$0xff]
        %v1455 = vld [vmem:[%s293 + $0x120] sm:$0xff]
        %v1456 = vld [vmem:[%s293 + $0x128] sm:$0xff]
        %v1457 = vld [vmem:[%s293 + $0x138] sm:$0xff]
        %v1458 = vld [vmem:[%s293 + $0x140] sm:$0xff]
        %v1459 = vld [vmem:[%s293 + $0x150] sm:$0xff]
        %v1460 = vld [vmem:[%s293 + $0x158] sm:$0xff]
        %v1461 = vld [vmem:[%s293 + $0x168] sm:$0xff]
        %v1462 = vld [vmem:[%s293 + $0x170] sm:$0xff]
        %s1463 = scalar_lea.vmem %s2, 96
        %v1464 = vld [vmem:[%s1463] sm:$0xff]
        %v1465 = vld [vmem:[%s1463 + $0x8] sm:$0xff]
        %v1466 = vld [vmem:[%s1463 + $0x10] sm:$0xff]
        %v1467 = vld [vmem:[%s1463 + $0x18] sm:$0xff]
        %v1469 = vsel %vm215, %v1431, 0
        %v1472 = vsel %vm215, %v1432, 0
        %v1475 = vsel %vm215, %v1433, 0
        %v1478 = vsel %vm215, %v1434, 0
        %v1481 = vsel %vm215, %v1435, 0
        %v1484 = vsel %vm215, %v1436, 0
        %v1487 = vsel %vm215, %v1437, 0
        %v1490 = vsel %vm215, %v1438, 0
        %v1493 = vsel %vm215, %v1439, 0
        %v1496 = vsel %vm215, %v1440, 0
        %v1499 = vsel %vm215, %v1441, 0
        %v1502 = vsel %vm215, %v1442, 0
        %v1505 = vsel %vm215, %v1443, 0
        %v1508 = vsel %vm215, %v1444, 0
        %v1511 = vsel %vm215, %v1445, 0
        %v1514 = vsel %vm215, %v1446, 0
        %v1517 = vsel %vm215, %v1447, 0
        %v1520 = vsel %vm215, %v1448, 0
        %v1523 = vsel %vm215, %v1449, 0
        %v1526 = vsel %vm215, %v1450, 0
        %v1529 = vsel %vm215, %v1451, 0
        %v1532 = vsel %vm215, %v1452, 0
        %v1535 = vsel %vm215, %v1453, 0
        %v1538 = vsel %vm215, %v1454, 0
        %v1541 = vsel %vm215, %v1455, 0
        %v1544 = vsel %vm215, %v1456, 0
        %v1547 = vsel %vm215, %v1457, 0
        %v1550 = vsel %vm215, %v1458, 0
        %v1553 = vsel %vm215, %v1459, 0
        %v1556 = vsel %vm215, %v1460, 0
        %v1559 = vsel %vm215, %v1461, 0
        %v1562 = vsel %vm215, %v1462, 0
        %1564 = vmatprep.subr.mxu0 0.0
        %1565 = vmatpush1.msra.mxu0 %v1464
        %1566 = vmatprep.subr.mxu0 0.0
        %1567 = vmatpush1.msra.mxu0 %v1465
        %1568 = vmatprep.subr.mxu0 0.0
        %1569 = vmatpush1.msra.mxu0 %v1466
        %1570 = vmatprep.subr.mxu0 0.0
        %1571 = vmatpush1.msra.mxu0 %v1467
        %1572 = vmatprep.subr.mxu0 0.0
        %1573 = vmatpush1.msra.mxu0 0.0
        %1574 = vmatprep.subr.mxu0 0.0
        %1575 = vmatpush1.msra.mxu0 0.0
        %1576 = vmatprep.subr.mxu0 0.0
        %1577 = vmatpush1.msra.mxu0 0.0
        %1578 = vmatprep.subr.mxu0 0.0
        %1579 = vmatpush1.msra.mxu0 0.0
        %1580 = vmatprep.subr.mxu0 0.0
        %1581 = vmatpush1.msra.mxu0 0.0
        %1582 = vmatprep.subr.mxu0 0.0
        %1583 = vmatpush1.msra.mxu0 0.0
        %1584 = vmatprep.subr.mxu0 0.0
        %1585 = vmatpush1.msra.mxu0 0.0
        %1586 = vmatprep.subr.mxu0 0.0
        %1587 = vmatpush1.msra.mxu0 0.0
        %1588 = vmatprep.subr.mxu0 0.0
        %1589 = vmatpush1.msra.mxu0 0.0
        %1590 = vmatprep.subr.mxu0 0.0
        %1591 = vmatpush1.msra.mxu0 0.0
        %1592 = vmatprep.subr.mxu0 0.0
        %1593 = vmatpush1.msra.mxu0 0.0
        %1594 = vmatprep.subr.mxu0 0.0
        %1595 = vmatpush1.msra.mxu0 0.0
        %1596 = vmatprep.subr.mxu0 0.0
        %1597 = vmatpush1.msra.mxu0 0.0
        %1598 = vmatprep.subr.mxu0 0.0
        %1599 = vmatpush1.msra.mxu0 0.0
        %1600 = vmatprep.subr.mxu0 0.0
        %1601 = vmatpush1.msra.mxu0 0.0
        %1602 = vmatprep.subr.mxu0 0.0
        %1603 = vmatpush1.msra.mxu0 0.0
        %1604 = vmatprep.subr.mxu0 0.0
        %1605 = vmatpush1.msra.mxu0 0.0
        %1606 = vmatprep.subr.mxu0 0.0
        %1607 = vmatpush1.msra.mxu0 0.0
        %1608 = vmatprep.subr.mxu0 0.0
        %1609 = vmatpush1.msra.mxu0 0.0
        %1610 = vmatprep.subr.mxu0 0.0
        %1611 = vmatpush1.msra.mxu0 0.0
        %1612 = vmatprep.subr.mxu0 0.0
        %1613 = vmatpush1.msra.mxu0 0.0
        %1614 = vmatprep.subr.mxu0 0.0
        %1615 = vmatpush1.msra.mxu0 0.0
        %1616 = vmatprep.subr.mxu0 0.0
        %1617 = vmatpush1.msra.mxu0 0.0
        %1618 = vmatprep.subr.mxu0 0.0
        %1619 = vmatpush1.msra.mxu0 0.0
        %1620 = vmatprep.subr.mxu0 0.0
        %1621 = vmatpush1.msra.mxu0 0.0
        %1622 = vmatprep.subr.mxu0 0.0
        %1623 = vmatpush1.msra.mxu0 0.0
        %1624 = vmatprep.subr.mxu0 0.0
        %1625 = vmatpush1.msra.mxu0 0.0
        %1626 = vmatprep.subr.mxu0 0.0
        %1627 = vmatpush1.msra.mxu0 0.0
        %1628 = vmatprep.mubr.f32.mxu0 0.0
        %1629 = vmatmul.mubr.f32.gmra.mrb[0].mxu0 %v1469
        %v1630 = vpop.f32.mrb[0].mxu0
        %v1631 = vadd.f32 0.0, %v1630
        %v1632 = vpop.f32.mrb[0].mxu0
        %1633 = vmatprep.mubr.f32.mxu0 0.0
        %1634 = vmatmul.mubr.f32.gmra.mrb[0].mxu0 %v1472
        %v1635 = vpop.f32.mrb[0].mxu0
        %v1636 = vadd.f32 0.0, %v1635
        %v1637 = vpop.f32.mrb[0].mxu0
        %1638 = vmatprep.mubr.f32.mxu0 0.0
        %1639 = vmatmul.mubr.f32.gmra.mrb[0].mxu0 %v1475
        %v1640 = vpop.f32.mrb[0].mxu0
        %v1641 = vadd.f32 0.0, %v1640
        %v1642 = vpop.f32.mrb[0].mxu0
        %1643 = vmatprep.mubr.f32.mxu0 0.0
        %1644 = vmatmul.mubr.f32.gmra.mrb[0].mxu0 %v1478
        %v1645 = vpop.f32.mrb[0].mxu0
        %v1646 = vadd.f32 0.0, %v1645
        %v1647 = vpop.f32.mrb[0].mxu0
        %1648 = vmatprep.mubr.f32.mxu0 0.0
        %1649 = vmatmul.mubr.f32.gmra.mrb[0].mxu0 %v1481
        %v1650 = vpop.f32.mrb[0].mxu0
        %v1651 = vadd.f32 0.0, %v1650
        %v1652 = vpop.f32.mrb[0].mxu0
        %1653 = vmatprep.mubr.f32.mxu0 0.0
        %1654 = vmatmul.mubr.f32.gmra.mrb[0].mxu0 %v1484
        %v1655 = vpop.f32.mrb[0].mxu0
        %v1656 = vadd.f32 0.0, %v1655
        %v1657 = vpop.f32.mrb[0].mxu0
        %1658 = vmatprep.mubr.f32.mxu0 0.0
        %1659 = vmatmul.mubr.f32.gmra.mrb[0].mxu0 %v1487
        %v1660 = vpop.f32.mrb[0].mxu0
        %v1661 = vadd.f32 0.0, %v1660
        %v1662 = vpop.f32.mrb[0].mxu0
        %1663 = vmatprep.mubr.f32.mxu0 0.0
        %1664 = vmatmul.mubr.f32.gmra.mrb[0].mxu0 %v1490
        %v1665 = vpop.f32.mrb[0].mxu0
        %v1666 = vadd.f32 0.0, %v1665
        %v1667 = vpop.f32.mrb[0].mxu0
        %1668 = vmatprep.mubr.f32.mxu0 0.0
        %1669 = vmatmul.mubr.f32.gmra.mrb[0].mxu0 %v1493
        %v1670 = vpop.f32.mrb[0].mxu0
        %v1671 = vadd.f32 0.0, %v1670
        %v1672 = vpop.f32.mrb[0].mxu0
        %1673 = vmatprep.mubr.f32.mxu0 0.0
        %1674 = vmatmul.mubr.f32.gmra.mrb[0].mxu0 %v1496
        %v1675 = vpop.f32.mrb[0].mxu0
        %v1676 = vadd.f32 0.0, %v1675
        %v1677 = vpop.f32.mrb[0].mxu0
        %1678 = vmatprep.mubr.f32.mxu0 0.0
        %1679 = vmatmul.mubr.f32.gmra.mrb[0].mxu0 %v1499
        %v1680 = vpop.f32.mrb[0].mxu0
        %v1681 = vadd.f32 0.0, %v1680
        %v1682 = vpop.f32.mrb[0].mxu0
        %1683 = vmatprep.mubr.f32.mxu0 0.0
        %1684 = vmatmul.mubr.f32.gmra.mrb[0].mxu0 %v1502
        %v1685 = vpop.f32.mrb[0].mxu0
        %v1686 = vadd.f32 0.0, %v1685
        %v1687 = vpop.f32.mrb[0].mxu0
        %1688 = vmatprep.mubr.f32.mxu0 0.0
        %1689 = vmatmul.mubr.f32.gmra.mrb[0].mxu0 %v1505
        %v1690 = vpop.f32.mrb[0].mxu0
        %v1691 = vadd.f32 0.0, %v1690
        %v1692 = vpop.f32.mrb[0].mxu0
        %1693 = vmatprep.mubr.f32.mxu0 0.0
        %1694 = vmatmul.mubr.f32.gmra.mrb[0].mxu0 %v1508
        %v1695 = vpop.f32.mrb[0].mxu0
        %v1696 = vadd.f32 0.0, %v1695
        %v1697 = vpop.f32.mrb[0].mxu0
        %1698 = vmatprep.mubr.f32.mxu0 0.0
        %1699 = vmatmul.mubr.f32.gmra.mrb[0].mxu0 %v1511
        %v1700 = vpop.f32.mrb[0].mxu0
        %v1701 = vadd.f32 0.0, %v1700
        %v1702 = vpop.f32.mrb[0].mxu0
        %1703 = vmatprep.mubr.f32.mxu0 0.0
        %1704 = vmatmul.mubr.f32.gmra.mrb[0].mxu0 %v1514
        %v1705 = vpop.f32.mrb[0].mxu0
        %v1706 = vadd.f32 0.0, %v1705
        %v1707 = vpop.f32.mrb[0].mxu0
        %1708 = vmatprep.mubr.f32.mxu0 0.0
        %1709 = vmatmul.mubr.f32.gmra.mrb[0].mxu0 %v1517
        %v1710 = vpop.f32.mrb[0].mxu0
        %v1711 = vadd.f32 0.0, %v1710
        %v1712 = vpop.f32.mrb[0].mxu0
        %1713 = vmatprep.mubr.f32.mxu0 0.0
        %1714 = vmatmul.mubr.f32.gmra.mrb[0].mxu0 %v1520
        %v1715 = vpop.f32.mrb[0].mxu0
        %v1716 = vadd.f32 0.0, %v1715
        %v1717 = vpop.f32.mrb[0].mxu0
        %1718 = vmatprep.mubr.f32.mxu0 0.0
        %1719 = vmatmul.mubr.f32.gmra.mrb[0].mxu0 %v1523
        %v1720 = vpop.f32.mrb[0].mxu0
        %v1721 = vadd.f32 0.0, %v1720
        %v1722 = vpop.f32.mrb[0].mxu0
        %1723 = vmatprep.mubr.f32.mxu0 0.0
        %1724 = vmatmul.mubr.f32.gmra.mrb[0].mxu0 %v1526
        %v1725 = vpop.f32.mrb[0].mxu0
        %v1726 = vadd.f32 0.0, %v1725
        %v1727 = vpop.f32.mrb[0].mxu0
        %1728 = vmatprep.mubr.f32.mxu0 0.0
        %1729 = vmatmul.mubr.f32.gmra.mrb[0].mxu0 %v1529
        %v1730 = vpop.f32.mrb[0].mxu0
        %v1731 = vadd.f32 0.0, %v1730
        %v1732 = vpop.f32.mrb[0].mxu0
        %1733 = vmatprep.mubr.f32.mxu0 0.0
        %1734 = vmatmul.mubr.f32.gmra.mrb[0].mxu0 %v1532
        %v1735 = vpop.f32.mrb[0].mxu0
        %v1736 = vadd.f32 0.0, %v1735
        %v1737 = vpop.f32.mrb[0].mxu0
        %1738 = vmatprep.mubr.f32.mxu0 0.0
        %1739 = vmatmul.mubr.f32.gmra.mrb[0].mxu0 %v1535
        %v1740 = vpop.f32.mrb[0].mxu0
        %v1741 = vadd.f32 0.0, %v1740
        %v1742 = vpop.f32.mrb[0].mxu0
        %1743 = vmatprep.mubr.f32.mxu0 0.0
        %1744 = vmatmul.mubr.f32.gmra.mrb[0].mxu0 %v1538
        %v1745 = vpop.f32.mrb[0].mxu0
        %v1746 = vadd.f32 0.0, %v1745
        %v1747 = vpop.f32.mrb[0].mxu0
        %1748 = vmatprep.mubr.f32.mxu0 0.0
        %1749 = vmatmul.mubr.f32.gmra.mrb[0].mxu0 %v1541
        %v1750 = vpop.f32.mrb[0].mxu0
        %v1751 = vadd.f32 0.0, %v1750
        %v1752 = vpop.f32.mrb[0].mxu0
        %1753 = vmatprep.mubr.f32.mxu0 0.0
        %1754 = vmatmul.mubr.f32.gmra.mrb[0].mxu0 %v1544
        %v1755 = vpop.f32.mrb[0].mxu0
        %v1756 = vadd.f32 0.0, %v1755
        %v1757 = vpop.f32.mrb[0].mxu0
        %1758 = vmatprep.mubr.f32.mxu0 0.0
        %1759 = vmatmul.mubr.f32.gmra.mrb[0].mxu0 %v1547
        %v1760 = vpop.f32.mrb[0].mxu0
        %v1761 = vadd.f32 0.0, %v1760
        %v1762 = vpop.f32.mrb[0].mxu0
        %1763 = vmatprep.mubr.f32.mxu0 0.0
        %1764 = vmatmul.mubr.f32.gmra.mrb[0].mxu0 %v1550
        %v1765 = vpop.f32.mrb[0].mxu0
        %v1766 = vadd.f32 0.0, %v1765
        %v1767 = vpop.f32.mrb[0].mxu0
        %1768 = vmatprep.mubr.f32.mxu0 0.0
        %1769 = vmatmul.mubr.f32.gmra.mrb[0].mxu0 %v1553
        %v1770 = vpop.f32.mrb[0].mxu0
        %v1771 = vadd.f32 0.0, %v1770
        %v1772 = vpop.f32.mrb[0].mxu0
        %1773 = vmatprep.mubr.f32.mxu0 0.0
        %1774 = vmatmul.mubr.f32.gmra.mrb[0].mxu0 %v1556
        %v1775 = vpop.f32.mrb[0].mxu0
        %v1776 = vadd.f32 0.0, %v1775
        %v1777 = vpop.f32.mrb[0].mxu0
        %1778 = vmatprep.mubr.f32.mxu0 0.0
        %1779 = vmatmul.mubr.f32.gmra.mrb[0].mxu0 %v1559
        %v1780 = vpop.f32.mrb[0].mxu0
        %v1781 = vadd.f32 0.0, %v1780
        %v1782 = vpop.f32.mrb[0].mxu0
        %1783 = vmatprep.mubr.f32.mxu0 0.0
        %1784 = vmatmul.mubr.f32.gmra.mrb[0].mxu0 %v1562
        %v1785 = vpop.f32.mrb[0].mxu0
        %v1786 = vadd.f32 0.0, %v1785
        %v1787 = vpop.f32.mrb[0].mxu0
        %1788 = vdwg.mxu0
        %v1789 = vadd.f32 %v1399, %v1631
        %v1790 = vadd.f32 %v1400, %v1636
        %v1791 = vadd.f32 %v1401, %v1641
        %v1792 = vadd.f32 %v1402, %v1646
        %v1793 = vadd.f32 %v1403, %v1651
        %v1794 = vadd.f32 %v1404, %v1656
        %v1795 = vadd.f32 %v1405, %v1661
        %v1796 = vadd.f32 %v1406, %v1666
        %v1797 = vadd.f32 %v1407, %v1671
        %v1798 = vadd.f32 %v1408, %v1676
        %v1799 = vadd.f32 %v1409, %v1681
        %v1800 = vadd.f32 %v1410, %v1686
        %v1801 = vadd.f32 %v1411, %v1691
        %v1802 = vadd.f32 %v1412, %v1696
        %v1803 = vadd.f32 %v1413, %v1701
        %v1804 = vadd.f32 %v1414, %v1706
        %v1805 = vadd.f32 %v1415, %v1711
        %v1806 = vadd.f32 %v1416, %v1716
        %v1807 = vadd.f32 %v1417, %v1721
        %v1808 = vadd.f32 %v1418, %v1726
        %v1809 = vadd.f32 %v1419, %v1731
        %v1810 = vadd.f32 %v1420, %v1736
        %v1811 = vadd.f32 %v1421, %v1741
        %v1812 = vadd.f32 %v1422, %v1746
        %v1813 = vadd.f32 %v1423, %v1751
        %v1814 = vadd.f32 %v1424, %v1756
        %v1815 = vadd.f32 %v1425, %v1761
        %v1816 = vadd.f32 %v1426, %v1766
        %v1817 = vadd.f32 %v1427, %v1771
        %v1818 = vadd.f32 %v1428, %v1776
        %v1819 = vadd.f32 %v1429, %v1781
        %v1820 = vadd.f32 %v1430, %v1786
        %v1821 = vld [vmem:[%s293 + $0x1] sm:$0xff]
        %v1822 = vld [vmem:[%s293 + $0x9] sm:$0xff]
        %v1823 = vld [vmem:[%s293 + $0x19] sm:$0xff]
        %v1824 = vld [vmem:[%s293 + $0x21] sm:$0xff]
        %v1825 = vld [vmem:[%s293 + $0x31] sm:$0xff]
        %v1826 = vld [vmem:[%s293 + $0x39] sm:$0xff]
        %v1827 = vld [vmem:[%s293 + $0x49] sm:$0xff]
        %v1828 = vld [vmem:[%s293 + $0x51] sm:$0xff]
        %v1829 = vld [vmem:[%s293 + $0x61] sm:$0xff]
        %v1830 = vld [vmem:[%s293 + $0x69] sm:$0xff]
        %v1831 = vld [vmem:[%s293 + $0x79] sm:$0xff]
        %v1832 = vld [vmem:[%s293 + $0x81] sm:$0xff]
        %v1833 = vld [vmem:[%s293 + $0x91] sm:$0xff]
        %v1834 = vld [vmem:[%s293 + $0x99] sm:$0xff]
        %v1835 = vld [vmem:[%s293 + $0xa9] sm:$0xff]
        %v1836 = vld [vmem:[%s293 + $0xb1] sm:$0xff]
        %v1837 = vld [vmem:[%s293 + $0xc1] sm:$0xff]
        %v1838 = vld [vmem:[%s293 + $0xc9] sm:$0xff]
        %v1839 = vld [vmem:[%s293 + $0xd9] sm:$0xff]
        %v1840 = vld [vmem:[%s293 + $0xe1] sm:$0xff]
        %v1841 = vld [vmem:[%s293 + $0xf1] sm:$0xff]
        %v1842 = vld [vmem:[%s293 + $0xf9] sm:$0xff]
        %v1843 = vld [vmem:[%s293 + $0x109] sm:$0xff]
        %v1844 = vld [vmem:[%s293 + $0x111] sm:$0xff]
        %v1845 = vld [vmem:[%s293 + $0x121] sm:$0xff]
        %v1846 = vld [vmem:[%s293 + $0x129] sm:$0xff]
        %v1847 = vld [vmem:[%s293 + $0x139] sm:$0xff]
        %v1848 = vld [vmem:[%s293 + $0x141] sm:$0xff]
        %v1849 = vld [vmem:[%s293 + $0x151] sm:$0xff]
        %v1850 = vld [vmem:[%s293 + $0x159] sm:$0xff]
        %v1851 = vld [vmem:[%s293 + $0x169] sm:$0xff]
        %v1852 = vld [vmem:[%s293 + $0x171] sm:$0xff]
        %s1853 = scalar_lea.vmem %s2, 128
        %v1854 = vld [vmem:[%s1853] sm:$0xff]
        %v1855 = vld [vmem:[%s1853 + $0x8] sm:$0xff]
        %v1856 = vld [vmem:[%s1853 + $0x10] sm:$0xff]
        %v1857 = vld [vmem:[%s1853 + $0x18] sm:$0xff]
        %v1859 = vsel %vm215, %v1821, 0
        %v1862 = vsel %vm215, %v1822, 0
        %v1865 = vsel %vm215, %v1823, 0
        %v1868 = vsel %vm215, %v1824, 0
        %v1871 = vsel %vm215, %v1825, 0
        %v1874 = vsel %vm215, %v1826, 0
        %v1877 = vsel %vm215, %v1827, 0
        %v1880 = vsel %vm215, %v1828, 0
        %v1883 = vsel %vm215, %v1829, 0
        %v1886 = vsel %vm215, %v1830, 0
        %v1889 = vsel %vm215, %v1831, 0
        %v1892 = vsel %vm215, %v1832, 0
        %v1895 = vsel %vm215, %v1833, 0
        %v1898 = vsel %vm215, %v1834, 0
        %v1901 = vsel %vm215, %v1835, 0
        %v1904 = vsel %vm215, %v1836, 0
        %v1907 = vsel %vm215, %v1837, 0
        %v1910 = vsel %vm215, %v1838, 0
        %v1913 = vsel %vm215, %v1839, 0
        %v1916 = vsel %vm215, %v1840, 0
        %v1919 = vsel %vm215, %v1841, 0
        %v1922 = vsel %vm215, %v1842, 0
        %v1925 = vsel %vm215, %v1843, 0
        %v1928 = vsel %vm215, %v1844, 0
        %v1931 = vsel %vm215, %v1845, 0
        %v1934 = vsel %vm215, %v1846, 0
        %v1937 = vsel %vm215, %v1847, 0
        %v1940 = vsel %vm215, %v1848, 0
        %v1943 = vsel %vm215, %v1849, 0
        %v1946 = vsel %vm215, %v1850, 0
        %v1949 = vsel %vm215, %v1851, 0
        %v1952 = vsel %vm215, %v1852, 0
        %1954 = vmatprep.subr.mxu0 0.0
        %1955 = vmatpush1.msra.mxu0 %v1854
        %1956 = vmatprep.subr.mxu0 0.0
        %1957 = vmatpush1.msra.mxu0 %v1855
        %1958 = vmatprep.subr.mxu0 0.0
        %1959 = vmatpush1.msra.mxu0 %v1856
        %1960 = vmatprep.subr.mxu0 0.0
        %1961 = vmatpush1.msra.mxu0 %v1857
        %1962 = vmatprep.subr.mxu0 0.0
        %1963 = vmatpush1.msra.mxu0 0.0
        %1964 = vmatprep.subr.mxu0 0.0
        %1965 = vmatpush1.msra.mxu0 0.0
        %1966 = vmatprep.subr.mxu0 0.0
        %1967 = vmatpush1.msra.mxu0 0.0
        %1968 = vmatprep.subr.mxu0 0.0
        %1969 = vmatpush1.msra.mxu0 0.0
        %1970 = vmatprep.subr.mxu0 0.0
        %1971 = vmatpush1.msra.mxu0 0.0
        %1972 = vmatprep.subr.mxu0 0.0
        %1973 = vmatpush1.msra.mxu0 0.0
        %1974 = vmatprep.subr.mxu0 0.0
        %1975 = vmatpush1.msra.mxu0 0.0
        %1976 = vmatprep.subr.mxu0 0.0
        %1977 = vmatpush1.msra.mxu0 0.0
        %1978 = vmatprep.subr.mxu0 0.0
        %1979 = vmatpush1.msra.mxu0 0.0
        %1980 = vmatprep.subr.mxu0 0.0
        %1981 = vmatpush1.msra.mxu0 0.0
        %1982 = vmatprep.subr.mxu0 0.0
        %1983 = vmatpush1.msra.mxu0 0.0
        %1984 = vmatprep.subr.mxu0 0.0
        %1985 = vmatpush1.msra.mxu0 0.0
        %1986 = vmatprep.subr.mxu0 0.0
        %1987 = vmatpush1.msra.mxu0 0.0
        %1988 = vmatprep.subr.mxu0 0.0
        %1989 = vmatpush1.msra.mxu0 0.0
        %1990 = vmatprep.subr.mxu0 0.0
        %1991 = vmatpush1.msra.mxu0 0.0
        %1992 = vmatprep.subr.mxu0 0.0
        %1993 = vmatpush1.msra.mxu0 0.0
        %1994 = vmatprep.subr.mxu0 0.0
        %1995 = vmatpush1.msra.mxu0 0.0
        %1996 = vmatprep.subr.mxu0 0.0
        %1997 = vmatpush1.msra.mxu0 0.0
        %1998 = vmatprep.subr.mxu0 0.0
        %1999 = vmatpush1.msra.mxu0 0.0
        %2000 = vmatprep.subr.mxu0 0.0
        %2001 = vmatpush1.msra.mxu0 0.0
        %2002 = vmatprep.subr.mxu0 0.0
        %2003 = vmatpush1.msra.mxu0 0.0
        %2004 = vmatprep.subr.mxu0 0.0
        %2005 = vmatpush1.msra.mxu0 0.0
        %2006 = vmatprep.subr.mxu0 0.0
        %2007 = vmatpush1.msra.mxu0 0.0
        %2008 = vmatprep.subr.mxu0 0.0
        %2009 = vmatpush1.msra.mxu0 0.0
        %2010 = vmatprep.subr.mxu0 0.0
        %2011 = vmatpush1.msra.mxu0 0.0
        %2012 = vmatprep.subr.mxu0 0.0
        %2013 = vmatpush1.msra.mxu0 0.0
        %2014 = vmatprep.subr.mxu0 0.0
        %2015 = vmatpush1.msra.mxu0 0.0
        %2016 = vmatprep.subr.mxu0 0.0
        %2017 = vmatpush1.msra.mxu0 0.0
        %2018 = vmatprep.mubr.f32.mxu0 0.0
        %2019 = vmatmul.mubr.f32.gmra.mrb[0].mxu0 %v1859
        %v2020 = vpop.f32.mrb[0].mxu0
        %v2021 = vadd.f32 0.0, %v2020
        %v2022 = vpop.f32.mrb[0].mxu0
        %2023 = vmatprep.mubr.f32.mxu0 0.0
        %2024 = vmatmul.mubr.f32.gmra.mrb[0].mxu0 %v1862
        %v2025 = vpop.f32.mrb[0].mxu0
        %v2026 = vadd.f32 0.0, %v2025
        %v2027 = vpop.f32.mrb[0].mxu0
        %2028 = vmatprep.mubr.f32.mxu0 0.0
        %2029 = vmatmul.mubr.f32.gmra.mrb[0].mxu0 %v1865
        %v2030 = vpop.f32.mrb[0].mxu0
        %v2031 = vadd.f32 0.0, %v2030
        %v2032 = vpop.f32.mrb[0].mxu0
        %2033 = vmatprep.mubr.f32.mxu0 0.0
        %2034 = vmatmul.mubr.f32.gmra.mrb[0].mxu0 %v1868
        %v2035 = vpop.f32.mrb[0].mxu0
        %v2036 = vadd.f32 0.0, %v2035
        %v2037 = vpop.f32.mrb[0].mxu0
        %2038 = vmatprep.mubr.f32.mxu0 0.0
        %2039 = vmatmul.mubr.f32.gmra.mrb[0].mxu0 %v1871
        %v2040 = vpop.f32.mrb[0].mxu0
        %v2041 = vadd.f32 0.0, %v2040
        %v2042 = vpop.f32.mrb[0].mxu0
        %2043 = vmatprep.mubr.f32.mxu0 0.0
        %2044 = vmatmul.mubr.f32.gmra.mrb[0].mxu0 %v1874
        %v2045 = vpop.f32.mrb[0].mxu0
        %v2046 = vadd.f32 0.0, %v2045
        %v2047 = vpop.f32.mrb[0].mxu0
        %2048 = vmatprep.mubr.f32.mxu0 0.0
        %2049 = vmatmul.mubr.f32.gmra.mrb[0].mxu0 %v1877
        %v2050 = vpop.f32.mrb[0].mxu0
        %v2051 = vadd.f32 0.0, %v2050
        %v2052 = vpop.f32.mrb[0].mxu0
        %2053 = vmatprep.mubr.f32.mxu0 0.0
        %2054 = vmatmul.mubr.f32.gmra.mrb[0].mxu0 %v1880
        %v2055 = vpop.f32.mrb[0].mxu0
        %v2056 = vadd.f32 0.0, %v2055
        %v2057 = vpop.f32.mrb[0].mxu0
        %2058 = vmatprep.mubr.f32.mxu0 0.0
        %2059 = vmatmul.mubr.f32.gmra.mrb[0].mxu0 %v1883
        %v2060 = vpop.f32.mrb[0].mxu0
        %v2061 = vadd.f32 0.0, %v2060
        %v2062 = vpop.f32.mrb[0].mxu0
        %2063 = vmatprep.mubr.f32.mxu0 0.0
        %2064 = vmatmul.mubr.f32.gmra.mrb[0].mxu0 %v1886
        %v2065 = vpop.f32.mrb[0].mxu0
        %v2066 = vadd.f32 0.0, %v2065
        %v2067 = vpop.f32.mrb[0].mxu0
        %2068 = vmatprep.mubr.f32.mxu0 0.0
        %2069 = vmatmul.mubr.f32.gmra.mrb[0].mxu0 %v1889
        %v2070 = vpop.f32.mrb[0].mxu0
        %v2071 = vadd.f32 0.0, %v2070
        %v2072 = vpop.f32.mrb[0].mxu0
        %2073 = vmatprep.mubr.f32.mxu0 0.0
        %2074 = vmatmul.mubr.f32.gmra.mrb[0].mxu0 %v1892
        %v2075 = vpop.f32.mrb[0].mxu0
        %v2076 = vadd.f32 0.0, %v2075
        %v2077 = vpop.f32.mrb[0].mxu0
        %2078 = vmatprep.mubr.f32.mxu0 0.0
        %2079 = vmatmul.mubr.f32.gmra.mrb[0].mxu0 %v1895
        %v2080 = vpop.f32.mrb[0].mxu0
        %v2081 = vadd.f32 0.0, %v2080
        %v2082 = vpop.f32.mrb[0].mxu0
        %2083 = vmatprep.mubr.f32.mxu0 0.0
        %2084 = vmatmul.mubr.f32.gmra.mrb[0].mxu0 %v1898
        %v2085 = vpop.f32.mrb[0].mxu0
        %v2086 = vadd.f32 0.0, %v2085
        %v2087 = vpop.f32.mrb[0].mxu0
        %2088 = vmatprep.mubr.f32.mxu0 0.0
        %2089 = vmatmul.mubr.f32.gmra.mrb[0].mxu0 %v1901
        %v2090 = vpop.f32.mrb[0].mxu0
        %v2091 = vadd.f32 0.0, %v2090
        %v2092 = vpop.f32.mrb[0].mxu0
        %2093 = vmatprep.mubr.f32.mxu0 0.0
        %2094 = vmatmul.mubr.f32.gmra.mrb[0].mxu0 %v1904
        %v2095 = vpop.f32.mrb[0].mxu0
        %v2096 = vadd.f32 0.0, %v2095
        %v2097 = vpop.f32.mrb[0].mxu0
        %2098 = vmatprep.mubr.f32.mxu0 0.0
        %2099 = vmatmul.mubr.f32.gmra.mrb[0].mxu0 %v1907
        %v2100 = vpop.f32.mrb[0].mxu0
        %v2101 = vadd.f32 0.0, %v2100
        %v2102 = vpop.f32.mrb[0].mxu0
        %2103 = vmatprep.mubr.f32.mxu0 0.0
        %2104 = vmatmul.mubr.f32.gmra.mrb[0].mxu0 %v1910
        %v2105 = vpop.f32.mrb[0].mxu0
        %v2106 = vadd.f32 0.0, %v2105
        %v2107 = vpop.f32.mrb[0].mxu0
        %2108 = vmatprep.mubr.f32.mxu0 0.0
        %2109 = vmatmul.mubr.f32.gmra.mrb[0].mxu0 %v1913
        %v2110 = vpop.f32.mrb[0].mxu0
        %v2111 = vadd.f32 0.0, %v2110
        %v2112 = vpop.f32.mrb[0].mxu0
        %2113 = vmatprep.mubr.f32.mxu0 0.0
        %2114 = vmatmul.mubr.f32.gmra.mrb[0].mxu0 %v1916
        %v2115 = vpop.f32.mrb[0].mxu0
        %v2116 = vadd.f32 0.0, %v2115
        %v2117 = vpop.f32.mrb[0].mxu0
        %2118 = vmatprep.mubr.f32.mxu0 0.0
        %2119 = vmatmul.mubr.f32.gmra.mrb[0].mxu0 %v1919
        %v2120 = vpop.f32.mrb[0].mxu0
        %v2121 = vadd.f32 0.0, %v2120
        %v2122 = vpop.f32.mrb[0].mxu0
        %2123 = vmatprep.mubr.f32.mxu0 0.0
        %2124 = vmatmul.mubr.f32.gmra.mrb[0].mxu0 %v1922
        %v2125 = vpop.f32.mrb[0].mxu0
        %v2126 = vadd.f32 0.0, %v2125
        %v2127 = vpop.f32.mrb[0].mxu0
        %2128 = vmatprep.mubr.f32.mxu0 0.0
        %2129 = vmatmul.mubr.f32.gmra.mrb[0].mxu0 %v1925
        %v2130 = vpop.f32.mrb[0].mxu0
        %v2131 = vadd.f32 0.0, %v2130
        %v2132 = vpop.f32.mrb[0].mxu0
        %2133 = vmatprep.mubr.f32.mxu0 0.0
        %2134 = vmatmul.mubr.f32.gmra.mrb[0].mxu0 %v1928
        %v2135 = vpop.f32.mrb[0].mxu0
        %v2136 = vadd.f32 0.0, %v2135
        %v2137 = vpop.f32.mrb[0].mxu0
        %2138 = vmatprep.mubr.f32.mxu0 0.0
        %2139 = vmatmul.mubr.f32.gmra.mrb[0].mxu0 %v1931
        %v2140 = vpop.f32.mrb[0].mxu0
        %v2141 = vadd.f32 0.0, %v2140
        %v2142 = vpop.f32.mrb[0].mxu0
        %2143 = vmatprep.mubr.f32.mxu0 0.0
        %2144 = vmatmul.mubr.f32.gmra.mrb[0].mxu0 %v1934
        %v2145 = vpop.f32.mrb[0].mxu0
        %v2146 = vadd.f32 0.0, %v2145
        %v2147 = vpop.f32.mrb[0].mxu0
        %2148 = vmatprep.mubr.f32.mxu0 0.0
        %2149 = vmatmul.mubr.f32.gmra.mrb[0].mxu0 %v1937
        %v2150 = vpop.f32.mrb[0].mxu0
        %v2151 = vadd.f32 0.0, %v2150
        %v2152 = vpop.f32.mrb[0].mxu0
        %2153 = vmatprep.mubr.f32.mxu0 0.0
        %2154 = vmatmul.mubr.f32.gmra.mrb[0].mxu0 %v1940
        %v2155 = vpop.f32.mrb[0].mxu0
        %v2156 = vadd.f32 0.0, %v2155
        %v2157 = vpop.f32.mrb[0].mxu0
        %2158 = vmatprep.mubr.f32.mxu0 0.0
        %2159 = vmatmul.mubr.f32.gmra.mrb[0].mxu0 %v1943
        %v2160 = vpop.f32.mrb[0].mxu0
        %v2161 = vadd.f32 0.0, %v2160
        %v2162 = vpop.f32.mrb[0].mxu0
        %2163 = vmatprep.mubr.f32.mxu0 0.0
        %2164 = vmatmul.mubr.f32.gmra.mrb[0].mxu0 %v1946
        %v2165 = vpop.f32.mrb[0].mxu0
        %v2166 = vadd.f32 0.0, %v2165
        %v2167 = vpop.f32.mrb[0].mxu0
        %2168 = vmatprep.mubr.f32.mxu0 0.0
        %2169 = vmatmul.mubr.f32.gmra.mrb[0].mxu0 %v1949
        %v2170 = vpop.f32.mrb[0].mxu0
        %v2171 = vadd.f32 0.0, %v2170
        %v2172 = vpop.f32.mrb[0].mxu0
        %2173 = vmatprep.mubr.f32.mxu0 0.0
        %2174 = vmatmul.mubr.f32.gmra.mrb[0].mxu0 %v1952
        %v2175 = vpop.f32.mrb[0].mxu0
        %v2176 = vadd.f32 0.0, %v2175
        %v2177 = vpop.f32.mrb[0].mxu0
        %2178 = vdwg.mxu0
        %v2179 = vadd.f32 %v1789, %v2021
        %v2180 = vadd.f32 %v1790, %v2026
        %v2181 = vadd.f32 %v1791, %v2031
        %v2182 = vadd.f32 %v1792, %v2036
        %v2183 = vadd.f32 %v1793, %v2041
        %v2184 = vadd.f32 %v1794, %v2046
        %v2185 = vadd.f32 %v1795, %v2051
        %v2186 = vadd.f32 %v1796, %v2056
        %v2187 = vadd.f32 %v1797, %v2061
        %v2188 = vadd.f32 %v1798, %v2066
        %v2189 = vadd.f32 %v1799, %v2071
        %v2190 = vadd.f32 %v1800, %v2076
        %v2191 = vadd.f32 %v1801, %v2081
        %v2192 = vadd.f32 %v1802, %v2086
        %v2193 = vadd.f32 %v1803, %v2091
        %v2194 = vadd.f32 %v1804, %v2096
        %v2195 = vadd.f32 %v1805, %v2101
        %v2196 = vadd.f32 %v1806, %v2106
        %v2197 = vadd.f32 %v1807, %v2111
        %v2198 = vadd.f32 %v1808, %v2116
        %v2199 = vadd.f32 %v1809, %v2121
        %v2200 = vadd.f32 %v1810, %v2126
        %v2201 = vadd.f32 %v1811, %v2131
        %v2202 = vadd.f32 %v1812, %v2136
        %v2203 = vadd.f32 %v1813, %v2141
        %v2204 = vadd.f32 %v1814, %v2146
        %v2205 = vadd.f32 %v1815, %v2151
        %v2206 = vadd.f32 %v1816, %v2156
        %v2207 = vadd.f32 %v1817, %v2161
        %v2208 = vadd.f32 %v1818, %v2166
        %v2209 = vadd.f32 %v1819, %v2171
        %v2210 = vadd.f32 %v1820, %v2176
        %v2211 = vld [vmem:[%s293 + $0x2] sm:$0xff]
        %v2212 = vld [vmem:[%s293 + $0xa] sm:$0xff]
        %v2213 = vld [vmem:[%s293 + $0x1a] sm:$0xff]
        %v2214 = vld [vmem:[%s293 + $0x22] sm:$0xff]
        %v2215 = vld [vmem:[%s293 + $0x32] sm:$0xff]
        %v2216 = vld [vmem:[%s293 + $0x3a] sm:$0xff]
        %v2217 = vld [vmem:[%s293 + $0x4a] sm:$0xff]
        %v2218 = vld [vmem:[%s293 + $0x52] sm:$0xff]
        %v2219 = vld [vmem:[%s293 + $0x62] sm:$0xff]
        %v2220 = vld [vmem:[%s293 + $0x6a] sm:$0xff]
        %v2221 = vld [vmem:[%s293 + $0x7a] sm:$0xff]
        %v2222 = vld [vmem:[%s293 + $0x82] sm:$0xff]
        %v2223 = vld [vmem:[%s293 + $0x92] sm:$0xff]
        %v2224 = vld [vmem:[%s293 + $0x9a] sm:$0xff]
        %v2225 = vld [vmem:[%s293 + $0xaa] sm:$0xff]
        %v2226 = vld [vmem:[%s293 + $0xb2] sm:$0xff]
        %v2227 = vld [vmem:[%s293 + $0xc2] sm:$0xff]
        %v2228 = vld [vmem:[%s293 + $0xca] sm:$0xff]
        %v2229 = vld [vmem:[%s293 + $0xda] sm:$0xff]
        %v2230 = vld [vmem:[%s293 + $0xe2] sm:$0xff]
        %v2231 = vld [vmem:[%s293 + $0xf2] sm:$0xff]
        %v2232 = vld [vmem:[%s293 + $0xfa] sm:$0xff]
        %v2233 = vld [vmem:[%s293 + $0x10a] sm:$0xff]
        %v2234 = vld [vmem:[%s293 + $0x112] sm:$0xff]
        %v2235 = vld [vmem:[%s293 + $0x122] sm:$0xff]
        %v2236 = vld [vmem:[%s293 + $0x12a] sm:$0xff]
        %v2237 = vld [vmem:[%s293 + $0x13a] sm:$0xff]
        %v2238 = vld [vmem:[%s293 + $0x142] sm:$0xff]
        %v2239 = vld [vmem:[%s293 + $0x152] sm:$0xff]
        %v2240 = vld [vmem:[%s293 + $0x15a] sm:$0xff]
        %v2241 = vld [vmem:[%s293 + $0x16a] sm:$0xff]
        %v2242 = vld [vmem:[%s293 + $0x172] sm:$0xff]
        %s2243 = scalar_lea.vmem %s2, 160
        %v2244 = vld [vmem:[%s2243] sm:$0xff]
        %v2245 = vld [vmem:[%s2243 + $0x8] sm:$0xff]
        %v2246 = vld [vmem:[%s2243 + $0x10] sm:$0xff]
        %v2247 = vld [vmem:[%s2243 + $0x18] sm:$0xff]
        %v2249 = vsel %vm215, %v2211, 0
        %v2252 = vsel %vm215, %v2212, 0
        %v2255 = vsel %vm215, %v2213, 0
        %v2258 = vsel %vm215, %v2214, 0
        %v2261 = vsel %vm215, %v2215, 0
        %v2264 = vsel %vm215, %v2216, 0
        %v2267 = vsel %vm215, %v2217, 0
        %v2270 = vsel %vm215, %v2218, 0
        %v2273 = vsel %vm215, %v2219, 0
        %v2276 = vsel %vm215, %v2220, 0
        %v2279 = vsel %vm215, %v2221, 0
        %v2282 = vsel %vm215, %v2222, 0
        %v2285 = vsel %vm215, %v2223, 0
        %v2288 = vsel %vm215, %v2224, 0
        %v2291 = vsel %vm215, %v2225, 0
        %v2294 = vsel %vm215, %v2226, 0
        %v2297 = vsel %vm215, %v2227, 0
        %v2300 = vsel %vm215, %v2228, 0
        %v2303 = vsel %vm215, %v2229, 0
        %v2306 = vsel %vm215, %v2230, 0
        %v2309 = vsel %vm215, %v2231, 0
        %v2312 = vsel %vm215, %v2232, 0
        %v2315 = vsel %vm215, %v2233, 0
        %v2318 = vsel %vm215, %v2234, 0
        %v2321 = vsel %vm215, %v2235, 0
        %v2324 = vsel %vm215, %v2236, 0
        %v2327 = vsel %vm215, %v2237, 0
        %v2330 = vsel %vm215, %v2238, 0
        %v2333 = vsel %vm215, %v2239, 0
        %v2336 = vsel %vm215, %v2240, 0
        %v2339 = vsel %vm215, %v2241, 0
        %v2342 = vsel %vm215, %v2242, 0
        %2344 = vmatprep.subr.mxu0 0.0
        %2345 = vmatpush1.msra.mxu0 %v2244
        %2346 = vmatprep.subr.mxu0 0.0
        %2347 = vmatpush1.msra.mxu0 %v2245
        %2348 = vmatprep.subr.mxu0 0.0
        %2349 = vmatpush1.msra.mxu0 %v2246
        %2350 = vmatprep.subr.mxu0 0.0
        %2351 = vmatpush1.msra.mxu0 %v2247
        %2352 = vmatprep.subr.mxu0 0.0
        %2353 = vmatpush1.msra.mxu0 0.0
        %2354 = vmatprep.subr.mxu0 0.0
        %2355 = vmatpush1.msra.mxu0 0.0
        %2356 = vmatprep.subr.mxu0 0.0
        %2357 = vmatpush1.msra.mxu0 0.0
        %2358 = vmatprep.subr.mxu0 0.0
        %2359 = vmatpush1.msra.mxu0 0.0
        %2360 = vmatprep.subr.mxu0 0.0
        %2361 = vmatpush1.msra.mxu0 0.0
        %2362 = vmatprep.subr.mxu0 0.0
        %2363 = vmatpush1.msra.mxu0 0.0
        %2364 = vmatprep.subr.mxu0 0.0
        %2365 = vmatpush1.msra.mxu0 0.0
        %2366 = vmatprep.subr.mxu0 0.0
        %2367 = vmatpush1.msra.mxu0 0.0
        %2368 = vmatprep.subr.mxu0 0.0
        %2369 = vmatpush1.msra.mxu0 0.0
        %2370 = vmatprep.subr.mxu0 0.0
        %2371 = vmatpush1.msra.mxu0 0.0
        %2372 = vmatprep.subr.mxu0 0.0
        %2373 = vmatpush1.msra.mxu0 0.0
        %2374 = vmatprep.subr.mxu0 0.0
        %2375 = vmatpush1.msra.mxu0 0.0
        %2376 = vmatprep.subr.mxu0 0.0
        %2377 = vmatpush1.msra.mxu0 0.0
        %2378 = vmatprep.subr.mxu0 0.0
        %2379 = vmatpush1.msra.mxu0 0.0
        %2380 = vmatprep.subr.mxu0 0.0
        %2381 = vmatpush1.msra.mxu0 0.0
        %2382 = vmatprep.subr.mxu0 0.0
        %2383 = vmatpush1.msra.mxu0 0.0
        %2384 = vmatprep.subr.mxu0 0.0
        %2385 = vmatpush1.msra.mxu0 0.0
        %2386 = vmatprep.subr.mxu0 0.0
        %2387 = vmatpush1.msra.mxu0 0.0
        %2388 = vmatprep.subr.mxu0 0.0
        %2389 = vmatpush1.msra.mxu0 0.0
        %2390 = vmatprep.subr.mxu0 0.0
        %2391 = vmatpush1.msra.mxu0 0.0
        %2392 = vmatprep.subr.mxu0 0.0
        %2393 = vmatpush1.msra.mxu0 0.0
        %2394 = vmatprep.subr.mxu0 0.0
        %2395 = vmatpush1.msra.mxu0 0.0
        %2396 = vmatprep.subr.mxu0 0.0
        %2397 = vmatpush1.msra.mxu0 0.0
        %2398 = vmatprep.subr.mxu0 0.0
        %2399 = vmatpush1.msra.mxu0 0.0
        %2400 = vmatprep.subr.mxu0 0.0
        %2401 = vmatpush1.msra.mxu0 0.0
        %2402 = vmatprep.subr.mxu0 0.0
        %2403 = vmatpush1.msra.mxu0 0.0
        %2404 = vmatprep.subr.mxu0 0.0
        %2405 = vmatpush1.msra.mxu0 0.0
        %2406 = vmatprep.subr.mxu0 0.0
        %2407 = vmatpush1.msra.mxu0 0.0
        %2408 = vmatprep.mubr.f32.mxu0 0.0
        %2409 = vmatmul.mubr.f32.gmra.mrb[0].mxu0 %v2249
        %v2410 = vpop.f32.mrb[0].mxu0
        %v2411 = vadd.f32 0.0, %v2410
        %v2412 = vpop.f32.mrb[0].mxu0
        %2413 = vmatprep.mubr.f32.mxu0 0.0
        %2414 = vmatmul.mubr.f32.gmra.mrb[0].mxu0 %v2252
        %v2415 = vpop.f32.mrb[0].mxu0
        %v2416 = vadd.f32 0.0, %v2415
        %v2417 = vpop.f32.mrb[0].mxu0
        %2418 = vmatprep.mubr.f32.mxu0 0.0
        %2419 = vmatmul.mubr.f32.gmra.mrb[0].mxu0 %v2255
        %v2420 = vpop.f32.mrb[0].mxu0
        %v2421 = vadd.f32 0.0, %v2420
        %v2422 = vpop.f32.mrb[0].mxu0
        %2423 = vmatprep.mubr.f32.mxu0 0.0
        %2424 = vmatmul.mubr.f32.gmra.mrb[0].mxu0 %v2258
        %v2425 = vpop.f32.mrb[0].mxu0
        %v2426 = vadd.f32 0.0, %v2425
        %v2427 = vpop.f32.mrb[0].mxu0
        %2428 = vmatprep.mubr.f32.mxu0 0.0
        %2429 = vmatmul.mubr.f32.gmra.mrb[0].mxu0 %v2261
        %v2430 = vpop.f32.mrb[0].mxu0
        %v2431 = vadd.f32 0.0, %v2430
        %v2432 = vpop.f32.mrb[0].mxu0
        %2433 = vmatprep.mubr.f32.mxu0 0.0
        %2434 = vmatmul.mubr.f32.gmra.mrb[0].mxu0 %v2264
        %v2435 = vpop.f32.mrb[0].mxu0
        %v2436 = vadd.f32 0.0, %v2435
        %v2437 = vpop.f32.mrb[0].mxu0
        %2438 = vmatprep.mubr.f32.mxu0 0.0
        %2439 = vmatmul.mubr.f32.gmra.mrb[0].mxu0 %v2267
        %v2440 = vpop.f32.mrb[0].mxu0
        %v2441 = vadd.f32 0.0, %v2440
        %v2442 = vpop.f32.mrb[0].mxu0
        %2443 = vmatprep.mubr.f32.mxu0 0.0
        %2444 = vmatmul.mubr.f32.gmra.mrb[0].mxu0 %v2270
        %v2445 = vpop.f32.mrb[0].mxu0
        %v2446 = vadd.f32 0.0, %v2445
        %v2447 = vpop.f32.mrb[0].mxu0
        %2448 = vmatprep.mubr.f32.mxu0 0.0
        %2449 = vmatmul.mubr.f32.gmra.mrb[0].mxu0 %v2273
        %v2450 = vpop.f32.mrb[0].mxu0
        %v2451 = vadd.f32 0.0, %v2450
        %v2452 = vpop.f32.mrb[0].mxu0
        %2453 = vmatprep.mubr.f32.mxu0 0.0
        %2454 = vmatmul.mubr.f32.gmra.mrb[0].mxu0 %v2276
        %v2455 = vpop.f32.mrb[0].mxu0
        %v2456 = vadd.f32 0.0, %v2455
        %v2457 = vpop.f32.mrb[0].mxu0
        %2458 = vmatprep.mubr.f32.mxu0 0.0
        %2459 = vmatmul.mubr.f32.gmra.mrb[0].mxu0 %v2279
        %v2460 = vpop.f32.mrb[0].mxu0
        %v2461 = vadd.f32 0.0, %v2460
        %v2462 = vpop.f32.mrb[0].mxu0
        %2463 = vmatprep.mubr.f32.mxu0 0.0
        %2464 = vmatmul.mubr.f32.gmra.mrb[0].mxu0 %v2282
        %v2465 = vpop.f32.mrb[0].mxu0
        %v2466 = vadd.f32 0.0, %v2465
        %v2467 = vpop.f32.mrb[0].mxu0
        %2468 = vmatprep.mubr.f32.mxu0 0.0
        %2469 = vmatmul.mubr.f32.gmra.mrb[0].mxu0 %v2285
        %v2470 = vpop.f32.mrb[0].mxu0
        %v2471 = vadd.f32 0.0, %v2470
        %v2472 = vpop.f32.mrb[0].mxu0
        %2473 = vmatprep.mubr.f32.mxu0 0.0
        %2474 = vmatmul.mubr.f32.gmra.mrb[0].mxu0 %v2288
        %v2475 = vpop.f32.mrb[0].mxu0
        %v2476 = vadd.f32 0.0, %v2475
        %v2477 = vpop.f32.mrb[0].mxu0
        %2478 = vmatprep.mubr.f32.mxu0 0.0
        %2479 = vmatmul.mubr.f32.gmra.mrb[0].mxu0 %v2291
        %v2480 = vpop.f32.mrb[0].mxu0
        %v2481 = vadd.f32 0.0, %v2480
        %v2482 = vpop.f32.mrb[0].mxu0
        %2483 = vmatprep.mubr.f32.mxu0 0.0
        %2484 = vmatmul.mubr.f32.gmra.mrb[0].mxu0 %v2294
        %v2485 = vpop.f32.mrb[0].mxu0
        %v2486 = vadd.f32 0.0, %v2485
        %v2487 = vpop.f32.mrb[0].mxu0
        %2488 = vmatprep.mubr.f32.mxu0 0.0
        %2489 = vmatmul.mubr.f32.gmra.mrb[0].mxu0 %v2297
        %v2490 = vpop.f32.mrb[0].mxu0
        %v2491 = vadd.f32 0.0, %v2490
        %v2492 = vpop.f32.mrb[0].mxu0
        %2493 = vmatprep.mubr.f32.mxu0 0.0
        %2494 = vmatmul.mubr.f32.gmra.mrb[0].mxu0 %v2300
        %v2495 = vpop.f32.mrb[0].mxu0
        %v2496 = vadd.f32 0.0, %v2495
        %v2497 = vpop.f32.mrb[0].mxu0
        %2498 = vmatprep.mubr.f32.mxu0 0.0
        %2499 = vmatmul.mubr.f32.gmra.mrb[0].mxu0 %v2303
        %v2500 = vpop.f32.mrb[0].mxu0
        %v2501 = vadd.f32 0.0, %v2500
        %v2502 = vpop.f32.mrb[0].mxu0
        %2503 = vmatprep.mubr.f32.mxu0 0.0
        %2504 = vmatmul.mubr.f32.gmra.mrb[0].mxu0 %v2306
        %v2505 = vpop.f32.mrb[0].mxu0
        %v2506 = vadd.f32 0.0, %v2505
        %v2507 = vpop.f32.mrb[0].mxu0
        %2508 = vmatprep.mubr.f32.mxu0 0.0
        %2509 = vmatmul.mubr.f32.gmra.mrb[0].mxu0 %v2309
        %v2510 = vpop.f32.mrb[0].mxu0
        %v2511 = vadd.f32 0.0, %v2510
        %v2512 = vpop.f32.mrb[0].mxu0
        %2513 = vmatprep.mubr.f32.mxu0 0.0
        %2514 = vmatmul.mubr.f32.gmra.mrb[0].mxu0 %v2312
        %v2515 = vpop.f32.mrb[0].mxu0
        %v2516 = vadd.f32 0.0, %v2515
        %v2517 = vpop.f32.mrb[0].mxu0
        %2518 = vmatprep.mubr.f32.mxu0 0.0
        %2519 = vmatmul.mubr.f32.gmra.mrb[0].mxu0 %v2315
        %v2520 = vpop.f32.mrb[0].mxu0
        %v2521 = vadd.f32 0.0, %v2520
        %v2522 = vpop.f32.mrb[0].mxu0
        %2523 = vmatprep.mubr.f32.mxu0 0.0
        %2524 = vmatmul.mubr.f32.gmra.mrb[0].mxu0 %v2318
        %v2525 = vpop.f32.mrb[0].mxu0
        %v2526 = vadd.f32 0.0, %v2525
        %v2527 = vpop.f32.mrb[0].mxu0
        %2528 = vmatprep.mubr.f32.mxu0 0.0
        %2529 = vmatmul.mubr.f32.gmra.mrb[0].mxu0 %v2321
        %v2530 = vpop.f32.mrb[0].mxu0
        %v2531 = vadd.f32 0.0, %v2530
        %v2532 = vpop.f32.mrb[0].mxu0
        %2533 = vmatprep.mubr.f32.mxu0 0.0
        %2534 = vmatmul.mubr.f32.gmra.mrb[0].mxu0 %v2324
        %v2535 = vpop.f32.mrb[0].mxu0
        %v2536 = vadd.f32 0.0, %v2535
        %v2537 = vpop.f32.mrb[0].mxu0
        %2538 = vmatprep.mubr.f32.mxu0 0.0
        %2539 = vmatmul.mubr.f32.gmra.mrb[0].mxu0 %v2327
        %v2540 = vpop.f32.mrb[0].mxu0
        %v2541 = vadd.f32 0.0, %v2540
        %v2542 = vpop.f32.mrb[0].mxu0
        %2543 = vmatprep.mubr.f32.mxu0 0.0
        %2544 = vmatmul.mubr.f32.gmra.mrb[0].mxu0 %v2330
        %v2545 = vpop.f32.mrb[0].mxu0
        %v2546 = vadd.f32 0.0, %v2545
        %v2547 = vpop.f32.mrb[0].mxu0
        %2548 = vmatprep.mubr.f32.mxu0 0.0
        %2549 = vmatmul.mubr.f32.gmra.mrb[0].mxu0 %v2333
        %v2550 = vpop.f32.mrb[0].mxu0
        %v2551 = vadd.f32 0.0, %v2550
        %v2552 = vpop.f32.mrb[0].mxu0
        %2553 = vmatprep.mubr.f32.mxu0 0.0
        %2554 = vmatmul.mubr.f32.gmra.mrb[0].mxu0 %v2336
        %v2555 = vpop.f32.mrb[0].mxu0
        %v2556 = vadd.f32 0.0, %v2555
        %v2557 = vpop.f32.mrb[0].mxu0
        %2558 = vmatprep.mubr.f32.mxu0 0.0
        %2559 = vmatmul.mubr.f32.gmra.mrb[0].mxu0 %v2339
        %v2560 = vpop.f32.mrb[0].mxu0
        %v2561 = vadd.f32 0.0, %v2560
        %v2562 = vpop.f32.mrb[0].mxu0
        %2563 = vmatprep.mubr.f32.mxu0 0.0
        %2564 = vmatmul.mubr.f32.gmra.mrb[0].mxu0 %v2342
        %v2565 = vpop.f32.mrb[0].mxu0
        %v2566 = vadd.f32 0.0, %v2565
        %v2567 = vpop.f32.mrb[0].mxu0
        %2568 = vdwg.mxu0
        %v2569 = vadd.f32 %v2179, %v2411
        %v2570 = vadd.f32 %v2180, %v2416
        %v2571 = vadd.f32 %v2181, %v2421
        %v2572 = vadd.f32 %v2182, %v2426
        %v2573 = vadd.f32 %v2183, %v2431
        %v2574 = vadd.f32 %v2184, %v2436
        %v2575 = vadd.f32 %v2185, %v2441
        %v2576 = vadd.f32 %v2186, %v2446
        %v2577 = vadd.f32 %v2187, %v2451
        %v2578 = vadd.f32 %v2188, %v2456
        %v2579 = vadd.f32 %v2189, %v2461
        %v2580 = vadd.f32 %v2190, %v2466
        %v2581 = vadd.f32 %v2191, %v2471
        %v2582 = vadd.f32 %v2192, %v2476
        %v2583 = vadd.f32 %v2193, %v2481
        %v2584 = vadd.f32 %v2194, %v2486
        %v2585 = vadd.f32 %v2195, %v2491
        %v2586 = vadd.f32 %v2196, %v2496
        %v2587 = vadd.f32 %v2197, %v2501
        %v2588 = vadd.f32 %v2198, %v2506
        %v2589 = vadd.f32 %v2199, %v2511
        %v2590 = vadd.f32 %v2200, %v2516
        %v2591 = vadd.f32 %v2201, %v2521
        %v2592 = vadd.f32 %v2202, %v2526
        %v2593 = vadd.f32 %v2203, %v2531
        %v2594 = vadd.f32 %v2204, %v2536
        %v2595 = vadd.f32 %v2205, %v2541
        %v2596 = vadd.f32 %v2206, %v2546
        %v2597 = vadd.f32 %v2207, %v2551
        %v2598 = vadd.f32 %v2208, %v2556
        %v2599 = vadd.f32 %v2209, %v2561
        %v2600 = vadd.f32 %v2210, %v2566
        %s2601 = scalar_lea.vmem [#allocation2], 48
        %v2602 = vld [vmem:[%s2601] sm:$0xff]
        %v2603 = vld [vmem:[%s2601 + $0x8] sm:$0xff]
        %v2604 = vld [vmem:[%s2601 + $0x18] sm:$0xff]
        %v2605 = vld [vmem:[%s2601 + $0x20] sm:$0xff]
        %v2606 = vld [vmem:[%s2601 + $0x30] sm:$0xff]
        %v2607 = vld [vmem:[%s2601 + $0x38] sm:$0xff]
        %v2608 = vld [vmem:[%s2601 + $0x48] sm:$0xff]
        %v2609 = vld [vmem:[%s2601 + $0x50] sm:$0xff]
        %v2610 = vld [vmem:[%s2601 + $0x60] sm:$0xff]
        %v2611 = vld [vmem:[%s2601 + $0x68] sm:$0xff]
        %v2612 = vld [vmem:[%s2601 + $0x78] sm:$0xff]
        %v2613 = vld [vmem:[%s2601 + $0x80] sm:$0xff]
        %v2614 = vld [vmem:[%s2601 + $0x90] sm:$0xff]
        %v2615 = vld [vmem:[%s2601 + $0x98] sm:$0xff]
        %v2616 = vld [vmem:[%s2601 + $0xa8] sm:$0xff]
        %v2617 = vld [vmem:[%s2601 + $0xb0] sm:$0xff]
        %v2618 = vld [vmem:[%s2601 + $0xc0] sm:$0xff]
        %v2619 = vld [vmem:[%s2601 + $0xc8] sm:$0xff]
        %v2620 = vld [vmem:[%s2601 + $0xd8] sm:$0xff]
        %v2621 = vld [vmem:[%s2601 + $0xe0] sm:$0xff]
        %v2622 = vld [vmem:[%s2601 + $0xf0] sm:$0xff]
        %v2623 = vld [vmem:[%s2601 + $0xf8] sm:$0xff]
        %v2624 = vld [vmem:[%s2601 + $0x108] sm:$0xff]
        %v2625 = vld [vmem:[%s2601 + $0x110] sm:$0xff]
        %v2626 = vld [vmem:[%s2601 + $0x120] sm:$0xff]
        %v2627 = vld [vmem:[%s2601 + $0x128] sm:$0xff]
        %v2628 = vld [vmem:[%s2601 + $0x138] sm:$0xff]
        %v2629 = vld [vmem:[%s2601 + $0x140] sm:$0xff]
        %v2630 = vld [vmem:[%s2601 + $0x150] sm:$0xff]
        %v2631 = vld [vmem:[%s2601 + $0x158] sm:$0xff]
        %v2632 = vld [vmem:[%s2601 + $0x168] sm:$0xff]
        %v2633 = vld [vmem:[%s2601 + $0x170] sm:$0xff]
        %s2634 = scalar_lea.vmem %s2, 192
        %v2635 = vld [vmem:[%s2634] sm:$0xff]
        %v2636 = vld [vmem:[%s2634 + $0x8] sm:$0xff]
        %v2637 = vld [vmem:[%s2634 + $0x10] sm:$0xff]
        %v2638 = vld [vmem:[%s2634 + $0x18] sm:$0xff]
        %v2640 = vsel %vm215, %v2602, 0
        %v2643 = vsel %vm215, %v2603, 0
        %v2646 = vsel %vm215, %v2604, 0
        %v2649 = vsel %vm215, %v2605, 0
        %v2652 = vsel %vm215, %v2606, 0
        %v2655 = vsel %vm215, %v2607, 0
        %v2658 = vsel %vm215, %v2608, 0
        %v2661 = vsel %vm215, %v2609, 0
        %v2664 = vsel %vm215, %v2610, 0
        %v2667 = vsel %vm215, %v2611, 0
        %v2670 = vsel %vm215, %v2612, 0
        %v2673 = vsel %vm215, %v2613, 0
        %v2676 = vsel %vm215, %v2614, 0
        %v2679 = vsel %vm215, %v2615, 0
        %v2682 = vsel %vm215, %v2616, 0
        %v2685 = vsel %vm215, %v2617, 0
        %v2688 = vsel %vm215, %v2618, 0
        %v2691 = vsel %vm215, %v2619, 0
        %v2694 = vsel %vm215, %v2620, 0
        %v2697 = vsel %vm215, %v2621, 0
        %v2700 = vsel %vm215, %v2622, 0
        %v2703 = vsel %vm215, %v2623, 0
        %v2706 = vsel %vm215, %v2624, 0
        %v2709 = vsel %vm215, %v2625, 0
        %v2712 = vsel %vm215, %v2626, 0
        %v2715 = vsel %vm215, %v2627, 0
        %v2718 = vsel %vm215, %v2628, 0
        %v2721 = vsel %vm215, %v2629, 0
        %v2724 = vsel %vm215, %v2630, 0
        %v2727 = vsel %vm215, %v2631, 0
        %v2730 = vsel %vm215, %v2632, 0
        %v2733 = vsel %vm215, %v2633, 0
        %2735 = vmatprep.subr.mxu0 0.0
        %2736 = vmatpush1.msra.mxu0 %v2635
        %2737 = vmatprep.subr.mxu0 0.0
        %2738 = vmatpush1.msra.mxu0 %v2636
        %2739 = vmatprep.subr.mxu0 0.0
        %2740 = vmatpush1.msra.mxu0 %v2637
        %2741 = vmatprep.subr.mxu0 0.0
        %2742 = vmatpush1.msra.mxu0 %v2638
        %2743 = vmatprep.subr.mxu0 0.0
        %2744 = vmatpush1.msra.mxu0 0.0
        %2745 = vmatprep.subr.mxu0 0.0
        %2746 = vmatpush1.msra.mxu0 0.0
        %2747 = vmatprep.subr.mxu0 0.0
        %2748 = vmatpush1.msra.mxu0 0.0
        %2749 = vmatprep.subr.mxu0 0.0
        %2750 = vmatpush1.msra.mxu0 0.0
        %2751 = vmatprep.subr.mxu0 0.0
        %2752 = vmatpush1.msra.mxu0 0.0
        %2753 = vmatprep.subr.mxu0 0.0
        %2754 = vmatpush1.msra.mxu0 0.0
        %2755 = vmatprep.subr.mxu0 0.0
        %2756 = vmatpush1.msra.mxu0 0.0
        %2757 = vmatprep.subr.mxu0 0.0
        %2758 = vmatpush1.msra.mxu0 0.0
        %2759 = vmatprep.subr.mxu0 0.0
        %2760 = vmatpush1.msra.mxu0 0.0
        %2761 = vmatprep.subr.mxu0 0.0
        %2762 = vmatpush1.msra.mxu0 0.0
        %2763 = vmatprep.subr.mxu0 0.0
        %2764 = vmatpush1.msra.mxu0 0.0
        %2765 = vmatprep.subr.mxu0 0.0
        %2766 = vmatpush1.msra.mxu0 0.0
        %2767 = vmatprep.subr.mxu0 0.0
        %2768 = vmatpush1.msra.mxu0 0.0
        %2769 = vmatprep.subr.mxu0 0.0
        %2770 = vmatpush1.msra.mxu0 0.0
        %2771 = vmatprep.subr.mxu0 0.0
        %2772 = vmatpush1.msra.mxu0 0.0
        %2773 = vmatprep.subr.mxu0 0.0
        %2774 = vmatpush1.msra.mxu0 0.0
        %2775 = vmatprep.subr.mxu0 0.0
        %2776 = vmatpush1.msra.mxu0 0.0
        %2777 = vmatprep.subr.mxu0 0.0
        %2778 = vmatpush1.msra.mxu0 0.0
        %2779 = vmatprep.subr.mxu0 0.0
        %2780 = vmatpush1.msra.mxu0 0.0
        %2781 = vmatprep.subr.mxu0 0.0
        %2782 = vmatpush1.msra.mxu0 0.0
        %2783 = vmatprep.subr.mxu0 0.0
        %2784 = vmatpush1.msra.mxu0 0.0
        %2785 = vmatprep.subr.mxu0 0.0
        %2786 = vmatpush1.msra.mxu0 0.0
        %2787 = vmatprep.subr.mxu0 0.0
        %2788 = vmatpush1.msra.mxu0 0.0
        %2789 = vmatprep.subr.mxu0 0.0
        %2790 = vmatpush1.msra.mxu0 0.0
        %2791 = vmatprep.subr.mxu0 0.0
        %2792 = vmatpush1.msra.mxu0 0.0
        %2793 = vmatprep.subr.mxu0 0.0
        %2794 = vmatpush1.msra.mxu0 0.0
        %2795 = vmatprep.subr.mxu0 0.0
        %2796 = vmatpush1.msra.mxu0 0.0
        %2797 = vmatprep.subr.mxu0 0.0
        %2798 = vmatpush1.msra.mxu0 0.0
        %2799 = vmatprep.mubr.f32.mxu0 0.0
        %2800 = vmatmul.mubr.f32.gmra.mrb[0].mxu0 %v2640
        %v2801 = vpop.f32.mrb[0].mxu0
        %v2802 = vadd.f32 0.0, %v2801
        %v2803 = vpop.f32.mrb[0].mxu0
        %2804 = vmatprep.mubr.f32.mxu0 0.0
        %2805 = vmatmul.mubr.f32.gmra.mrb[0].mxu0 %v2643
        %v2806 = vpop.f32.mrb[0].mxu0
        %v2807 = vadd.f32 0.0, %v2806
        %v2808 = vpop.f32.mrb[0].mxu0
        %2809 = vmatprep.mubr.f32.mxu0 0.0
        %2810 = vmatmul.mubr.f32.gmra.mrb[0].mxu0 %v2646
        %v2811 = vpop.f32.mrb[0].mxu0
        %v2812 = vadd.f32 0.0, %v2811
        %v2813 = vpop.f32.mrb[0].mxu0
        %2814 = vmatprep.mubr.f32.mxu0 0.0
        %2815 = vmatmul.mubr.f32.gmra.mrb[0].mxu0 %v2649
        %v2816 = vpop.f32.mrb[0].mxu0
        %v2817 = vadd.f32 0.0, %v2816
        %v2818 = vpop.f32.mrb[0].mxu0
        %2819 = vmatprep.mubr.f32.mxu0 0.0
        %2820 = vmatmul.mubr.f32.gmra.mrb[0].mxu0 %v2652
        %v2821 = vpop.f32.mrb[0].mxu0
        %v2822 = vadd.f32 0.0, %v2821
        %v2823 = vpop.f32.mrb[0].mxu0
        %2824 = vmatprep.mubr.f32.mxu0 0.0
        %2825 = vmatmul.mubr.f32.gmra.mrb[0].mxu0 %v2655
        %v2826 = vpop.f32.mrb[0].mxu0
        %v2827 = vadd.f32 0.0, %v2826
        %v2828 = vpop.f32.mrb[0].mxu0
        %2829 = vmatprep.mubr.f32.mxu0 0.0
        %2830 = vmatmul.mubr.f32.gmra.mrb[0].mxu0 %v2658
        %v2831 = vpop.f32.mrb[0].mxu0
        %v2832 = vadd.f32 0.0, %v2831
        %v2833 = vpop.f32.mrb[0].mxu0
        %2834 = vmatprep.mubr.f32.mxu0 0.0
        %2835 = vmatmul.mubr.f32.gmra.mrb[0].mxu0 %v2661
        %v2836 = vpop.f32.mrb[0].mxu0
        %v2837 = vadd.f32 0.0, %v2836
        %v2838 = vpop.f32.mrb[0].mxu0
        %2839 = vmatprep.mubr.f32.mxu0 0.0
        %2840 = vmatmul.mubr.f32.gmra.mrb[0].mxu0 %v2664
        %v2841 = vpop.f32.mrb[0].mxu0
        %v2842 = vadd.f32 0.0, %v2841
        %v2843 = vpop.f32.mrb[0].mxu0
        %2844 = vmatprep.mubr.f32.mxu0 0.0
        %2845 = vmatmul.mubr.f32.gmra.mrb[0].mxu0 %v2667
        %v2846 = vpop.f32.mrb[0].mxu0
        %v2847 = vadd.f32 0.0, %v2846
        %v2848 = vpop.f32.mrb[0].mxu0
        %2849 = vmatprep.mubr.f32.mxu0 0.0
        %2850 = vmatmul.mubr.f32.gmra.mrb[0].mxu0 %v2670
        %v2851 = vpop.f32.mrb[0].mxu0
        %v2852 = vadd.f32 0.0, %v2851
        %v2853 = vpop.f32.mrb[0].mxu0
        %2854 = vmatprep.mubr.f32.mxu0 0.0
        %2855 = vmatmul.mubr.f32.gmra.mrb[0].mxu0 %v2673
        %v2856 = vpop.f32.mrb[0].mxu0
        %v2857 = vadd.f32 0.0, %v2856
        %v2858 = vpop.f32.mrb[0].mxu0
        %2859 = vmatprep.mubr.f32.mxu0 0.0
        %2860 = vmatmul.mubr.f32.gmra.mrb[0].mxu0 %v2676
        %v2861 = vpop.f32.mrb[0].mxu0
        %v2862 = vadd.f32 0.0, %v2861
        %v2863 = vpop.f32.mrb[0].mxu0
        %2864 = vmatprep.mubr.f32.mxu0 0.0
        %2865 = vmatmul.mubr.f32.gmra.mrb[0].mxu0 %v2679
        %v2866 = vpop.f32.mrb[0].mxu0
        %v2867 = vadd.f32 0.0, %v2866
        %v2868 = vpop.f32.mrb[0].mxu0
        %2869 = vmatprep.mubr.f32.mxu0 0.0
        %2870 = vmatmul.mubr.f32.gmra.mrb[0].mxu0 %v2682
        %v2871 = vpop.f32.mrb[0].mxu0
        %v2872 = vadd.f32 0.0, %v2871
        %v2873 = vpop.f32.mrb[0].mxu0
        %2874 = vmatprep.mubr.f32.mxu0 0.0
        %2875 = vmatmul.mubr.f32.gmra.mrb[0].mxu0 %v2685
        %v2876 = vpop.f32.mrb[0].mxu0
        %v2877 = vadd.f32 0.0, %v2876
        %v2878 = vpop.f32.mrb[0].mxu0
        %2879 = vmatprep.mubr.f32.mxu0 0.0
        %2880 = vmatmul.mubr.f32.gmra.mrb[0].mxu0 %v2688
        %v2881 = vpop.f32.mrb[0].mxu0
        %v2882 = vadd.f32 0.0, %v2881
        %v2883 = vpop.f32.mrb[0].mxu0
        %2884 = vmatprep.mubr.f32.mxu0 0.0
        %2885 = vmatmul.mubr.f32.gmra.mrb[0].mxu0 %v2691
        %v2886 = vpop.f32.mrb[0].mxu0
        %v2887 = vadd.f32 0.0, %v2886
        %v2888 = vpop.f32.mrb[0].mxu0
        %2889 = vmatprep.mubr.f32.mxu0 0.0
        %2890 = vmatmul.mubr.f32.gmra.mrb[0].mxu0 %v2694
        %v2891 = vpop.f32.mrb[0].mxu0
        %v2892 = vadd.f32 0.0, %v2891
        %v2893 = vpop.f32.mrb[0].mxu0
        %2894 = vmatprep.mubr.f32.mxu0 0.0
        %2895 = vmatmul.mubr.f32.gmra.mrb[0].mxu0 %v2697
        %v2896 = vpop.f32.mrb[0].mxu0
        %v2897 = vadd.f32 0.0, %v2896
        %v2898 = vpop.f32.mrb[0].mxu0
        %2899 = vmatprep.mubr.f32.mxu0 0.0
        %2900 = vmatmul.mubr.f32.gmra.mrb[0].mxu0 %v2700
        %v2901 = vpop.f32.mrb[0].mxu0
        %v2902 = vadd.f32 0.0, %v2901
        %v2903 = vpop.f32.mrb[0].mxu0
        %2904 = vmatprep.mubr.f32.mxu0 0.0
        %2905 = vmatmul.mubr.f32.gmra.mrb[0].mxu0 %v2703
        %v2906 = vpop.f32.mrb[0].mxu0
        %v2907 = vadd.f32 0.0, %v2906
        %v2908 = vpop.f32.mrb[0].mxu0
        %2909 = vmatprep.mubr.f32.mxu0 0.0
        %2910 = vmatmul.mubr.f32.gmra.mrb[0].mxu0 %v2706
        %v2911 = vpop.f32.mrb[0].mxu0
        %v2912 = vadd.f32 0.0, %v2911
        %v2913 = vpop.f32.mrb[0].mxu0
        %2914 = vmatprep.mubr.f32.mxu0 0.0
        %2915 = vmatmul.mubr.f32.gmra.mrb[0].mxu0 %v2709
        %v2916 = vpop.f32.mrb[0].mxu0
        %v2917 = vadd.f32 0.0, %v2916
        %v2918 = vpop.f32.mrb[0].mxu0
        %2919 = vmatprep.mubr.f32.mxu0 0.0
        %2920 = vmatmul.mubr.f32.gmra.mrb[0].mxu0 %v2712
        %v2921 = vpop.f32.mrb[0].mxu0
        %v2922 = vadd.f32 0.0, %v2921
        %v2923 = vpop.f32.mrb[0].mxu0
        %2924 = vmatprep.mubr.f32.mxu0 0.0
        %2925 = vmatmul.mubr.f32.gmra.mrb[0].mxu0 %v2715
        %v2926 = vpop.f32.mrb[0].mxu0
        %v2927 = vadd.f32 0.0, %v2926
        %v2928 = vpop.f32.mrb[0].mxu0
        %2929 = vmatprep.mubr.f32.mxu0 0.0
        %2930 = vmatmul.mubr.f32.gmra.mrb[0].mxu0 %v2718
        %v2931 = vpop.f32.mrb[0].mxu0
        %v2932 = vadd.f32 0.0, %v2931
        %v2933 = vpop.f32.mrb[0].mxu0
        %2934 = vmatprep.mubr.f32.mxu0 0.0
        %2935 = vmatmul.mubr.f32.gmra.mrb[0].mxu0 %v2721
        %v2936 = vpop.f32.mrb[0].mxu0
        %v2937 = vadd.f32 0.0, %v2936
        %v2938 = vpop.f32.mrb[0].mxu0
        %2939 = vmatprep.mubr.f32.mxu0 0.0
        %2940 = vmatmul.mubr.f32.gmra.mrb[0].mxu0 %v2724
        %v2941 = vpop.f32.mrb[0].mxu0
        %v2942 = vadd.f32 0.0, %v2941
        %v2943 = vpop.f32.mrb[0].mxu0
        %2944 = vmatprep.mubr.f32.mxu0 0.0
        %2945 = vmatmul.mubr.f32.gmra.mrb[0].mxu0 %v2727
        %v2946 = vpop.f32.mrb[0].mxu0
        %v2947 = vadd.f32 0.0, %v2946
        %v2948 = vpop.f32.mrb[0].mxu0
        %2949 = vmatprep.mubr.f32.mxu0 0.0
        %2950 = vmatmul.mubr.f32.gmra.mrb[0].mxu0 %v2730
        %v2951 = vpop.f32.mrb[0].mxu0
        %v2952 = vadd.f32 0.0, %v2951
        %v2953 = vpop.f32.mrb[0].mxu0
        %2954 = vmatprep.mubr.f32.mxu0 0.0
        %2955 = vmatmul.mubr.f32.gmra.mrb[0].mxu0 %v2733
        %v2956 = vpop.f32.mrb[0].mxu0
        %v2957 = vadd.f32 0.0, %v2956
        %v2958 = vpop.f32.mrb[0].mxu0
        %2959 = vdwg.mxu0
        %v2960 = vadd.f32 %v2569, %v2802
        %v2961 = vadd.f32 %v2570, %v2807
        %v2962 = vadd.f32 %v2571, %v2812
        %v2963 = vadd.f32 %v2572, %v2817
        %v2964 = vadd.f32 %v2573, %v2822
        %v2965 = vadd.f32 %v2574, %v2827
        %v2966 = vadd.f32 %v2575, %v2832
        %v2967 = vadd.f32 %v2576, %v2837
        %v2968 = vadd.f32 %v2577, %v2842
        %v2969 = vadd.f32 %v2578, %v2847
        %v2970 = vadd.f32 %v2579, %v2852
        %v2971 = vadd.f32 %v2580, %v2857
        %v2972 = vadd.f32 %v2581, %v2862
        %v2973 = vadd.f32 %v2582, %v2867
        %v2974 = vadd.f32 %v2583, %v2872
        %v2975 = vadd.f32 %v2584, %v2877
        %v2976 = vadd.f32 %v2585, %v2882
        %v2977 = vadd.f32 %v2586, %v2887
        %v2978 = vadd.f32 %v2587, %v2892
        %v2979 = vadd.f32 %v2588, %v2897
        %v2980 = vadd.f32 %v2589, %v2902
        %v2981 = vadd.f32 %v2590, %v2907
        %v2982 = vadd.f32 %v2591, %v2912
        %v2983 = vadd.f32 %v2592, %v2917
        %v2984 = vadd.f32 %v2593, %v2922
        %v2985 = vadd.f32 %v2594, %v2927
        %v2986 = vadd.f32 %v2595, %v2932
        %v2987 = vadd.f32 %v2596, %v2937
        %v2988 = vadd.f32 %v2597, %v2942
        %v2989 = vadd.f32 %v2598, %v2947
        %v2990 = vadd.f32 %v2599, %v2952
        %v2991 = vadd.f32 %v2600, %v2957
        %v2992 = vld [vmem:[%s2601 + $0x1] sm:$0xff]
        %v2993 = vld [vmem:[%s2601 + $0x9] sm:$0xff]
        %v2994 = vld [vmem:[%s2601 + $0x19] sm:$0xff]
        %v2995 = vld [vmem:[%s2601 + $0x21] sm:$0xff]
        %v2996 = vld [vmem:[%s2601 + $0x31] sm:$0xff]
        %v2997 = vld [vmem:[%s2601 + $0x39] sm:$0xff]
        %v2998 = vld [vmem:[%s2601 + $0x49] sm:$0xff]
        %v2999 = vld [vmem:[%s2601 + $0x51] sm:$0xff]
        %v3000 = vld [vmem:[%s2601 + $0x61] sm:$0xff]
        %v3001 = vld [vmem:[%s2601 + $0x69] sm:$0xff]
        %v3002 = vld [vmem:[%s2601 + $0x79] sm:$0xff]
        %v3003 = vld [vmem:[%s2601 + $0x81] sm:$0xff]
        %v3004 = vld [vmem:[%s2601 + $0x91] sm:$0xff]
        %v3005 = vld [vmem:[%s2601 + $0x99] sm:$0xff]
        %v3006 = vld [vmem:[%s2601 + $0xa9] sm:$0xff]
        %v3007 = vld [vmem:[%s2601 + $0xb1] sm:$0xff]
        %v3008 = vld [vmem:[%s2601 + $0xc1] sm:$0xff]
        %v3009 = vld [vmem:[%s2601 + $0xc9] sm:$0xff]
        %v3010 = vld [vmem:[%s2601 + $0xd9] sm:$0xff]
        %v3011 = vld [vmem:[%s2601 + $0xe1] sm:$0xff]
        %v3012 = vld [vmem:[%s2601 + $0xf1] sm:$0xff]
        %v3013 = vld [vmem:[%s2601 + $0xf9] sm:$0xff]
        %v3014 = vld [vmem:[%s2601 + $0x109] sm:$0xff]
        %v3015 = vld [vmem:[%s2601 + $0x111] sm:$0xff]
        %v3016 = vld [vmem:[%s2601 + $0x121] sm:$0xff]
        %v3017 = vld [vmem:[%s2601 + $0x129] sm:$0xff]
        %v3018 = vld [vmem:[%s2601 + $0x139] sm:$0xff]
        %v3019 = vld [vmem:[%s2601 + $0x141] sm:$0xff]
        %v3020 = vld [vmem:[%s2601 + $0x151] sm:$0xff]
        %v3021 = vld [vmem:[%s2601 + $0x159] sm:$0xff]
        %v3022 = vld [vmem:[%s2601 + $0x169] sm:$0xff]
        %v3023 = vld [vmem:[%s2601 + $0x171] sm:$0xff]
        %s3024 = scalar_lea.vmem %s2, 224
        %v3025 = vld [vmem:[%s3024] sm:$0xff]
        %v3026 = vld [vmem:[%s3024 + $0x8] sm:$0xff]
        %v3027 = vld [vmem:[%s3024 + $0x10] sm:$0xff]
        %v3028 = vld [vmem:[%s3024 + $0x18] sm:$0xff]
        %v3030 = vsel %vm215, %v2992, 0
        %v3033 = vsel %vm215, %v2993, 0
        %v3036 = vsel %vm215, %v2994, 0
        %v3039 = vsel %vm215, %v2995, 0
        %v3042 = vsel %vm215, %v2996, 0
        %v3045 = vsel %vm215, %v2997, 0
        %v3048 = vsel %vm215, %v2998, 0
        %v3051 = vsel %vm215, %v2999, 0
        %v3054 = vsel %vm215, %v3000, 0
        %v3057 = vsel %vm215, %v3001, 0
        %v3060 = vsel %vm215, %v3002, 0
        %v3063 = vsel %vm215, %v3003, 0
        %v3066 = vsel %vm215, %v3004, 0
        %v3069 = vsel %vm215, %v3005, 0
        %v3072 = vsel %vm215, %v3006, 0
        %v3075 = vsel %vm215, %v3007, 0
        %v3078 = vsel %vm215, %v3008, 0
        %v3081 = vsel %vm215, %v3009, 0
        %v3084 = vsel %vm215, %v3010, 0
        %v3087 = vsel %vm215, %v3011, 0
        %v3090 = vsel %vm215, %v3012, 0
        %v3093 = vsel %vm215, %v3013, 0
        %v3096 = vsel %vm215, %v3014, 0
        %v3099 = vsel %vm215, %v3015, 0
        %v3102 = vsel %vm215, %v3016, 0
        %v3105 = vsel %vm215, %v3017, 0
        %v3108 = vsel %vm215, %v3018, 0
        %v3111 = vsel %vm215, %v3019, 0
        %v3114 = vsel %vm215, %v3020, 0
        %v3117 = vsel %vm215, %v3021, 0
        %v3120 = vsel %vm215, %v3022, 0
        %v3123 = vsel %vm215, %v3023, 0
        %3125 = vmatprep.subr.mxu0 0.0
        %3126 = vmatpush1.msra.mxu0 %v3025
        %3127 = vmatprep.subr.mxu0 0.0
        %3128 = vmatpush1.msra.mxu0 %v3026
        %3129 = vmatprep.subr.mxu0 0.0
        %3130 = vmatpush1.msra.mxu0 %v3027
        %3131 = vmatprep.subr.mxu0 0.0
        %3132 = vmatpush1.msra.mxu0 %v3028
        %3133 = vmatprep.subr.mxu0 0.0
        %3134 = vmatpush1.msra.mxu0 0.0
        %3135 = vmatprep.subr.mxu0 0.0
        %3136 = vmatpush1.msra.mxu0 0.0
        %3137 = vmatprep.subr.mxu0 0.0
        %3138 = vmatpush1.msra.mxu0 0.0
        %3139 = vmatprep.subr.mxu0 0.0
        %3140 = vmatpush1.msra.mxu0 0.0
        %3141 = vmatprep.subr.mxu0 0.0
        %3142 = vmatpush1.msra.mxu0 0.0
        %3143 = vmatprep.subr.mxu0 0.0
        %3144 = vmatpush1.msra.mxu0 0.0
        %3145 = vmatprep.subr.mxu0 0.0
        %3146 = vmatpush1.msra.mxu0 0.0
        %3147 = vmatprep.subr.mxu0 0.0
        %3148 = vmatpush1.msra.mxu0 0.0
        %3149 = vmatprep.subr.mxu0 0.0
        %3150 = vmatpush1.msra.mxu0 0.0
        %3151 = vmatprep.subr.mxu0 0.0
        %3152 = vmatpush1.msra.mxu0 0.0
        %3153 = vmatprep.subr.mxu0 0.0
        %3154 = vmatpush1.msra.mxu0 0.0
        %3155 = vmatprep.subr.mxu0 0.0
        %3156 = vmatpush1.msra.mxu0 0.0
        %3157 = vmatprep.subr.mxu0 0.0
        %3158 = vmatpush1.msra.mxu0 0.0
        %3159 = vmatprep.subr.mxu0 0.0
        %3160 = vmatpush1.msra.mxu0 0.0
        %3161 = vmatprep.subr.mxu0 0.0
        %3162 = vmatpush1.msra.mxu0 0.0
        %3163 = vmatprep.subr.mxu0 0.0
        %3164 = vmatpush1.msra.mxu0 0.0
        %3165 = vmatprep.subr.mxu0 0.0
        %3166 = vmatpush1.msra.mxu0 0.0
        %3167 = vmatprep.subr.mxu0 0.0
        %3168 = vmatpush1.msra.mxu0 0.0
        %3169 = vmatprep.subr.mxu0 0.0
        %3170 = vmatpush1.msra.mxu0 0.0
        %3171 = vmatprep.subr.mxu0 0.0
        %3172 = vmatpush1.msra.mxu0 0.0
        %3173 = vmatprep.subr.mxu0 0.0
        %3174 = vmatpush1.msra.mxu0 0.0
        %3175 = vmatprep.subr.mxu0 0.0
        %3176 = vmatpush1.msra.mxu0 0.0
        %3177 = vmatprep.subr.mxu0 0.0
        %3178 = vmatpush1.msra.mxu0 0.0
        %3179 = vmatprep.subr.mxu0 0.0
        %3180 = vmatpush1.msra.mxu0 0.0
        %3181 = vmatprep.subr.mxu0 0.0
        %3182 = vmatpush1.msra.mxu0 0.0
        %3183 = vmatprep.subr.mxu0 0.0
        %3184 = vmatpush1.msra.mxu0 0.0
        %3185 = vmatprep.subr.mxu0 0.0
        %3186 = vmatpush1.msra.mxu0 0.0
        %3187 = vmatprep.subr.mxu0 0.0
        %3188 = vmatpush1.msra.mxu0 0.0
        %3189 = vmatprep.mubr.f32.mxu0 0.0
        %3190 = vmatmul.mubr.f32.gmra.mrb[0].mxu0 %v3030
        %v3191 = vpop.f32.mrb[0].mxu0
        %v3192 = vadd.f32 0.0, %v3191
        %v3193 = vpop.f32.mrb[0].mxu0
        %3194 = vmatprep.mubr.f32.mxu0 0.0
        %3195 = vmatmul.mubr.f32.gmra.mrb[0].mxu0 %v3033
        %v3196 = vpop.f32.mrb[0].mxu0
        %v3197 = vadd.f32 0.0, %v3196
        %v3198 = vpop.f32.mrb[0].mxu0
        %3199 = vmatprep.mubr.f32.mxu0 0.0
        %3200 = vmatmul.mubr.f32.gmra.mrb[0].mxu0 %v3036
        %v3201 = vpop.f32.mrb[0].mxu0
        %v3202 = vadd.f32 0.0, %v3201
        %v3203 = vpop.f32.mrb[0].mxu0
        %3204 = vmatprep.mubr.f32.mxu0 0.0
        %3205 = vmatmul.mubr.f32.gmra.mrb[0].mxu0 %v3039
        %v3206 = vpop.f32.mrb[0].mxu0
        %v3207 = vadd.f32 0.0, %v3206
        %v3208 = vpop.f32.mrb[0].mxu0
        %3209 = vmatprep.mubr.f32.mxu0 0.0
        %3210 = vmatmul.mubr.f32.gmra.mrb[0].mxu0 %v3042
        %v3211 = vpop.f32.mrb[0].mxu0
        %v3212 = vadd.f32 0.0, %v3211
        %v3213 = vpop.f32.mrb[0].mxu0
        %3214 = vmatprep.mubr.f32.mxu0 0.0
        %3215 = vmatmul.mubr.f32.gmra.mrb[0].mxu0 %v3045
        %v3216 = vpop.f32.mrb[0].mxu0
        %v3217 = vadd.f32 0.0, %v3216
        %v3218 = vpop.f32.mrb[0].mxu0
        %3219 = vmatprep.mubr.f32.mxu0 0.0
        %3220 = vmatmul.mubr.f32.gmra.mrb[0].mxu0 %v3048
        %v3221 = vpop.f32.mrb[0].mxu0
        %v3222 = vadd.f32 0.0, %v3221
        %v3223 = vpop.f32.mrb[0].mxu0
        %3224 = vmatprep.mubr.f32.mxu0 0.0
        %3225 = vmatmul.mubr.f32.gmra.mrb[0].mxu0 %v3051
        %v3226 = vpop.f32.mrb[0].mxu0
        %v3227 = vadd.f32 0.0, %v3226
        %v3228 = vpop.f32.mrb[0].mxu0
        %3229 = vmatprep.mubr.f32.mxu0 0.0
        %3230 = vmatmul.mubr.f32.gmra.mrb[0].mxu0 %v3054
        %v3231 = vpop.f32.mrb[0].mxu0
        %v3232 = vadd.f32 0.0, %v3231
        %v3233 = vpop.f32.mrb[0].mxu0
        %3234 = vmatprep.mubr.f32.mxu0 0.0
        %3235 = vmatmul.mubr.f32.gmra.mrb[0].mxu0 %v3057
        %v3236 = vpop.f32.mrb[0].mxu0
        %v3237 = vadd.f32 0.0, %v3236
        %v3238 = vpop.f32.mrb[0].mxu0
        %3239 = vmatprep.mubr.f32.mxu0 0.0
        %3240 = vmatmul.mubr.f32.gmra.mrb[0].mxu0 %v3060
        %v3241 = vpop.f32.mrb[0].mxu0
        %v3242 = vadd.f32 0.0, %v3241
        %v3243 = vpop.f32.mrb[0].mxu0
        %3244 = vmatprep.mubr.f32.mxu0 0.0
        %3245 = vmatmul.mubr.f32.gmra.mrb[0].mxu0 %v3063
        %v3246 = vpop.f32.mrb[0].mxu0
        %v3247 = vadd.f32 0.0, %v3246
        %v3248 = vpop.f32.mrb[0].mxu0
        %3249 = vmatprep.mubr.f32.mxu0 0.0
        %3250 = vmatmul.mubr.f32.gmra.mrb[0].mxu0 %v3066
        %v3251 = vpop.f32.mrb[0].mxu0
        %v3252 = vadd.f32 0.0, %v3251
        %v3253 = vpop.f32.mrb[0].mxu0
        %3254 = vmatprep.mubr.f32.mxu0 0.0
        %3255 = vmatmul.mubr.f32.gmra.mrb[0].mxu0 %v3069
        %v3256 = vpop.f32.mrb[0].mxu0
        %v3257 = vadd.f32 0.0, %v3256
        %v3258 = vpop.f32.mrb[0].mxu0
        %3259 = vmatprep.mubr.f32.mxu0 0.0
        %3260 = vmatmul.mubr.f32.gmra.mrb[0].mxu0 %v3072
        %v3261 = vpop.f32.mrb[0].mxu0
        %v3262 = vadd.f32 0.0, %v3261
        %v3263 = vpop.f32.mrb[0].mxu0
        %3264 = vmatprep.mubr.f32.mxu0 0.0
        %3265 = vmatmul.mubr.f32.gmra.mrb[0].mxu0 %v3075
        %v3266 = vpop.f32.mrb[0].mxu0
        %v3267 = vadd.f32 0.0, %v3266
        %v3268 = vpop.f32.mrb[0].mxu0
        %3269 = vmatprep.mubr.f32.mxu0 0.0
        %3270 = vmatmul.mubr.f32.gmra.mrb[0].mxu0 %v3078
        %v3271 = vpop.f32.mrb[0].mxu0
        %v3272 = vadd.f32 0.0, %v3271
        %v3273 = vpop.f32.mrb[0].mxu0
        %3274 = vmatprep.mubr.f32.mxu0 0.0
        %3275 = vmatmul.mubr.f32.gmra.mrb[0].mxu0 %v3081
        %v3276 = vpop.f32.mrb[0].mxu0
        %v3277 = vadd.f32 0.0, %v3276
        %v3278 = vpop.f32.mrb[0].mxu0
        %3279 = vmatprep.mubr.f32.mxu0 0.0
        %3280 = vmatmul.mubr.f32.gmra.mrb[0].mxu0 %v3084
        %v3281 = vpop.f32.mrb[0].mxu0
        %v3282 = vadd.f32 0.0, %v3281
        %v3283 = vpop.f32.mrb[0].mxu0
        %3284 = vmatprep.mubr.f32.mxu0 0.0
        %3285 = vmatmul.mubr.f32.gmra.mrb[0].mxu0 %v3087
        %v3286 = vpop.f32.mrb[0].mxu0
        %v3287 = vadd.f32 0.0, %v3286
        %v3288 = vpop.f32.mrb[0].mxu0
        %3289 = vmatprep.mubr.f32.mxu0 0.0
        %3290 = vmatmul.mubr.f32.gmra.mrb[0].mxu0 %v3090
        %v3291 = vpop.f32.mrb[0].mxu0
        %v3292 = vadd.f32 0.0, %v3291
        %v3293 = vpop.f32.mrb[0].mxu0
        %3294 = vmatprep.mubr.f32.mxu0 0.0
        %3295 = vmatmul.mubr.f32.gmra.mrb[0].mxu0 %v3093
        %v3296 = vpop.f32.mrb[0].mxu0
        %v3297 = vadd.f32 0.0, %v3296
        %v3298 = vpop.f32.mrb[0].mxu0
        %3299 = vmatprep.mubr.f32.mxu0 0.0
        %3300 = vmatmul.mubr.f32.gmra.mrb[0].mxu0 %v3096
        %v3301 = vpop.f32.mrb[0].mxu0
        %v3302 = vadd.f32 0.0, %v3301
        %v3303 = vpop.f32.mrb[0].mxu0
        %3304 = vmatprep.mubr.f32.mxu0 0.0
        %3305 = vmatmul.mubr.f32.gmra.mrb[0].mxu0 %v3099
        %v3306 = vpop.f32.mrb[0].mxu0
        %v3307 = vadd.f32 0.0, %v3306
        %v3308 = vpop.f32.mrb[0].mxu0
        %3309 = vmatprep.mubr.f32.mxu0 0.0
        %3310 = vmatmul.mubr.f32.gmra.mrb[0].mxu0 %v3102
        %v3311 = vpop.f32.mrb[0].mxu0
        %v3312 = vadd.f32 0.0, %v3311
        %v3313 = vpop.f32.mrb[0].mxu0
        %3314 = vmatprep.mubr.f32.mxu0 0.0
        %3315 = vmatmul.mubr.f32.gmra.mrb[0].mxu0 %v3105
        %v3316 = vpop.f32.mrb[0].mxu0
        %v3317 = vadd.f32 0.0, %v3316
        %v3318 = vpop.f32.mrb[0].mxu0
        %3319 = vmatprep.mubr.f32.mxu0 0.0
        %3320 = vmatmul.mubr.f32.gmra.mrb[0].mxu0 %v3108
        %v3321 = vpop.f32.mrb[0].mxu0
        %v3322 = vadd.f32 0.0, %v3321
        %v3323 = vpop.f32.mrb[0].mxu0
        %3324 = vmatprep.mubr.f32.mxu0 0.0
        %3325 = vmatmul.mubr.f32.gmra.mrb[0].mxu0 %v3111
        %v3326 = vpop.f32.mrb[0].mxu0
        %v3327 = vadd.f32 0.0, %v3326
        %v3328 = vpop.f32.mrb[0].mxu0
        %3329 = vmatprep.mubr.f32.mxu0 0.0
        %3330 = vmatmul.mubr.f32.gmra.mrb[0].mxu0 %v3114
        %v3331 = vpop.f32.mrb[0].mxu0
        %v3332 = vadd.f32 0.0, %v3331
        %v3333 = vpop.f32.mrb[0].mxu0
        %3334 = vmatprep.mubr.f32.mxu0 0.0
        %3335 = vmatmul.mubr.f32.gmra.mrb[0].mxu0 %v3117
        %v3336 = vpop.f32.mrb[0].mxu0
        %v3337 = vadd.f32 0.0, %v3336
        %v3338 = vpop.f32.mrb[0].mxu0
        %3339 = vmatprep.mubr.f32.mxu0 0.0
        %3340 = vmatmul.mubr.f32.gmra.mrb[0].mxu0 %v3120
        %v3341 = vpop.f32.mrb[0].mxu0
        %v3342 = vadd.f32 0.0, %v3341
        %v3343 = vpop.f32.mrb[0].mxu0
        %3344 = vmatprep.mubr.f32.mxu0 0.0
        %3345 = vmatmul.mubr.f32.gmra.mrb[0].mxu0 %v3123
        %v3346 = vpop.f32.mrb[0].mxu0
        %v3347 = vadd.f32 0.0, %v3346
        %v3348 = vpop.f32.mrb[0].mxu0
        %3349 = vdwg.mxu0
        %v3350 = vadd.f32 %v2960, %v3192
        %v3351 = vadd.f32 %v2961, %v3197
        %v3352 = vadd.f32 %v2962, %v3202
        %v3353 = vadd.f32 %v2963, %v3207
        %v3354 = vadd.f32 %v2964, %v3212
        %v3355 = vadd.f32 %v2965, %v3217
        %v3356 = vadd.f32 %v2966, %v3222
        %v3357 = vadd.f32 %v2967, %v3227
        %v3358 = vadd.f32 %v2968, %v3232
        %v3359 = vadd.f32 %v2969, %v3237
        %v3360 = vadd.f32 %v2970, %v3242
        %v3361 = vadd.f32 %v2971, %v3247
        %v3362 = vadd.f32 %v2972, %v3252
        %v3363 = vadd.f32 %v2973, %v3257
        %v3364 = vadd.f32 %v2974, %v3262
        %v3365 = vadd.f32 %v2975, %v3267
        %v3366 = vadd.f32 %v2976, %v3272
        %v3367 = vadd.f32 %v2977, %v3277
        %v3368 = vadd.f32 %v2978, %v3282
        %v3369 = vadd.f32 %v2979, %v3287
        %v3370 = vadd.f32 %v2980, %v3292
        %v3371 = vadd.f32 %v2981, %v3297
        %v3372 = vadd.f32 %v2982, %v3302
        %v3373 = vadd.f32 %v2983, %v3307
        %v3374 = vadd.f32 %v2984, %v3312
        %v3375 = vadd.f32 %v2985, %v3317
        %v3376 = vadd.f32 %v2986, %v3322
        %v3377 = vadd.f32 %v2987, %v3327
        %v3378 = vadd.f32 %v2988, %v3332
        %v3379 = vadd.f32 %v2989, %v3337
        %v3380 = vadd.f32 %v2990, %v3342
        %v3381 = vadd.f32 %v2991, %v3347
        %v3382 = vld [vmem:[%s2601 + $0x2] sm:$0xff]
        %v3383 = vld [vmem:[%s2601 + $0xa] sm:$0xff]
        %v3384 = vld [vmem:[%s2601 + $0x1a] sm:$0xff]
        %v3385 = vld [vmem:[%s2601 + $0x22] sm:$0xff]
        %v3386 = vld [vmem:[%s2601 + $0x32] sm:$0xff]
        %v3387 = vld [vmem:[%s2601 + $0x3a] sm:$0xff]
        %v3388 = vld [vmem:[%s2601 + $0x4a] sm:$0xff]
        %v3389 = vld [vmem:[%s2601 + $0x52] sm:$0xff]
        %v3390 = vld [vmem:[%s2601 + $0x62] sm:$0xff]
        %v3391 = vld [vmem:[%s2601 + $0x6a] sm:$0xff]
        %v3392 = vld [vmem:[%s2601 + $0x7a] sm:$0xff]
        %v3393 = vld [vmem:[%s2601 + $0x82] sm:$0xff]
        %v3394 = vld [vmem:[%s2601 + $0x92] sm:$0xff]
        %v3395 = vld [vmem:[%s2601 + $0x9a] sm:$0xff]
        %v3396 = vld [vmem:[%s2601 + $0xaa] sm:$0xff]
        %v3397 = vld [vmem:[%s2601 + $0xb2] sm:$0xff]
        %v3398 = vld [vmem:[%s2601 + $0xc2] sm:$0xff]
        %v3399 = vld [vmem:[%s2601 + $0xca] sm:$0xff]
        %v3400 = vld [vmem:[%s2601 + $0xda] sm:$0xff]
        %v3401 = vld [vmem:[%s2601 + $0xe2] sm:$0xff]
        %v3402 = vld [vmem:[%s2601 + $0xf2] sm:$0xff]
        %v3403 = vld [vmem:[%s2601 + $0xfa] sm:$0xff]
        %v3404 = vld [vmem:[%s2601 + $0x10a] sm:$0xff]
        %v3405 = vld [vmem:[%s2601 + $0x112] sm:$0xff]
        %v3406 = vld [vmem:[%s2601 + $0x122] sm:$0xff]
        %v3407 = vld [vmem:[%s2601 + $0x12a] sm:$0xff]
        %v3408 = vld [vmem:[%s2601 + $0x13a] sm:$0xff]
        %v3409 = vld [vmem:[%s2601 + $0x142] sm:$0xff]
        %v3410 = vld [vmem:[%s2601 + $0x152] sm:$0xff]
        %v3411 = vld [vmem:[%s2601 + $0x15a] sm:$0xff]
        %v3412 = vld [vmem:[%s2601 + $0x16a] sm:$0xff]
        %v3413 = vld [vmem:[%s2601 + $0x172] sm:$0xff]
        %s3414 = scalar_lea.vmem %s2, 256
        %v3415 = vld [vmem:[%s3414] sm:$0xff]
        %v3416 = vld [vmem:[%s3414 + $0x8] sm:$0xff]
        %v3417 = vld [vmem:[%s3414 + $0x10] sm:$0xff]
        %v3418 = vld [vmem:[%s3414 + $0x18] sm:$0xff]
        %v3420 = vsel %vm215, %v3382, 0
        %v3423 = vsel %vm215, %v3383, 0
        %v3426 = vsel %vm215, %v3384, 0
        %v3429 = vsel %vm215, %v3385, 0
        %v3432 = vsel %vm215, %v3386, 0
        %v3435 = vsel %vm215, %v3387, 0
        %v3438 = vsel %vm215, %v3388, 0
        %v3441 = vsel %vm215, %v3389, 0
        %v3444 = vsel %vm215, %v3390, 0
        %v3447 = vsel %vm215, %v3391, 0
        %v3450 = vsel %vm215, %v3392, 0
        %v3453 = vsel %vm215, %v3393, 0
        %v3456 = vsel %vm215, %v3394, 0
        %v3459 = vsel %vm215, %v3395, 0
        %v3462 = vsel %vm215, %v3396, 0
        %v3465 = vsel %vm215, %v3397, 0
        %v3468 = vsel %vm215, %v3398, 0
        %v3471 = vsel %vm215, %v3399, 0
        %v3474 = vsel %vm215, %v3400, 0
        %v3477 = vsel %vm215, %v3401, 0
        %v3480 = vsel %vm215, %v3402, 0
        %v3483 = vsel %vm215, %v3403, 0
        %v3486 = vsel %vm215, %v3404, 0
        %v3489 = vsel %vm215, %v3405, 0
        %v3492 = vsel %vm215, %v3406, 0
        %v3495 = vsel %vm215, %v3407, 0
        %v3498 = vsel %vm215, %v3408, 0
        %v3501 = vsel %vm215, %v3409, 0
        %v3504 = vsel %vm215, %v3410, 0
        %v3507 = vsel %vm215, %v3411, 0
        %v3510 = vsel %vm215, %v3412, 0
        %v3513 = vsel %vm215, %v3413, 0
        %3515 = vmatprep.subr.mxu0 0.0
        %3516 = vmatpush1.msra.mxu0 %v3415
        %3517 = vmatprep.subr.mxu0 0.0
        %3518 = vmatpush1.msra.mxu0 %v3416
        %3519 = vmatprep.subr.mxu0 0.0
        %3520 = vmatpush1.msra.mxu0 %v3417
        %3521 = vmatprep.subr.mxu0 0.0
        %3522 = vmatpush1.msra.mxu0 %v3418
        %3523 = vmatprep.subr.mxu0 0.0
        %3524 = vmatpush1.msra.mxu0 0.0
        %3525 = vmatprep.subr.mxu0 0.0
        %3526 = vmatpush1.msra.mxu0 0.0
        %3527 = vmatprep.subr.mxu0 0.0
        %3528 = vmatpush1.msra.mxu0 0.0
        %3529 = vmatprep.subr.mxu0 0.0
        %3530 = vmatpush1.msra.mxu0 0.0
        %3531 = vmatprep.subr.mxu0 0.0
        %3532 = vmatpush1.msra.mxu0 0.0
        %3533 = vmatprep.subr.mxu0 0.0
        %3534 = vmatpush1.msra.mxu0 0.0
        %3535 = vmatprep.subr.mxu0 0.0
        %3536 = vmatpush1.msra.mxu0 0.0
        %3537 = vmatprep.subr.mxu0 0.0
        %3538 = vmatpush1.msra.mxu0 0.0
        %3539 = vmatprep.subr.mxu0 0.0
        %3540 = vmatpush1.msra.mxu0 0.0
        %3541 = vmatprep.subr.mxu0 0.0
        %3542 = vmatpush1.msra.mxu0 0.0
        %3543 = vmatprep.subr.mxu0 0.0
        %3544 = vmatpush1.msra.mxu0 0.0
        %3545 = vmatprep.subr.mxu0 0.0
        %3546 = vmatpush1.msra.mxu0 0.0
        %3547 = vmatprep.subr.mxu0 0.0
        %3548 = vmatpush1.msra.mxu0 0.0
        %3549 = vmatprep.subr.mxu0 0.0
        %3550 = vmatpush1.msra.mxu0 0.0
        %3551 = vmatprep.subr.mxu0 0.0
        %3552 = vmatpush1.msra.mxu0 0.0
        %3553 = vmatprep.subr.mxu0 0.0
        %3554 = vmatpush1.msra.mxu0 0.0
        %3555 = vmatprep.subr.mxu0 0.0
        %3556 = vmatpush1.msra.mxu0 0.0
        %3557 = vmatprep.subr.mxu0 0.0
        %3558 = vmatpush1.msra.mxu0 0.0
        %3559 = vmatprep.subr.mxu0 0.0
        %3560 = vmatpush1.msra.mxu0 0.0
        %3561 = vmatprep.subr.mxu0 0.0
        %3562 = vmatpush1.msra.mxu0 0.0
        %3563 = vmatprep.subr.mxu0 0.0
        %3564 = vmatpush1.msra.mxu0 0.0
        %3565 = vmatprep.subr.mxu0 0.0
        %3566 = vmatpush1.msra.mxu0 0.0
        %3567 = vmatprep.subr.mxu0 0.0
        %3568 = vmatpush1.msra.mxu0 0.0
        %3569 = vmatprep.subr.mxu0 0.0
        %3570 = vmatpush1.msra.mxu0 0.0
        %3571 = vmatprep.subr.mxu0 0.0
        %3572 = vmatpush1.msra.mxu0 0.0
        %3573 = vmatprep.subr.mxu0 0.0
        %3574 = vmatpush1.msra.mxu0 0.0
        %3575 = vmatprep.subr.mxu0 0.0
        %3576 = vmatpush1.msra.mxu0 0.0
        %3577 = vmatprep.subr.mxu0 0.0
        %3578 = vmatpush1.msra.mxu0 0.0
        %3579 = vmatprep.mubr.f32.mxu0 0.0
        %3580 = vmatmul.mubr.f32.gmra.mrb[0].mxu0 %v3420
        %v3581 = vpop.f32.mrb[0].mxu0
        %v3582 = vadd.f32 0.0, %v3581
        %v3583 = vpop.f32.mrb[0].mxu0
        %3584 = vmatprep.mubr.f32.mxu0 0.0
        %3585 = vmatmul.mubr.f32.gmra.mrb[0].mxu0 %v3423
        %v3586 = vpop.f32.mrb[0].mxu0
        %v3587 = vadd.f32 0.0, %v3586
        %v3588 = vpop.f32.mrb[0].mxu0
        %3589 = vmatprep.mubr.f32.mxu0 0.0
        %3590 = vmatmul.mubr.f32.gmra.mrb[0].mxu0 %v3426
        %v3591 = vpop.f32.mrb[0].mxu0
        %v3592 = vadd.f32 0.0, %v3591
        %v3593 = vpop.f32.mrb[0].mxu0
        %3594 = vmatprep.mubr.f32.mxu0 0.0
        %3595 = vmatmul.mubr.f32.gmra.mrb[0].mxu0 %v3429
        %v3596 = vpop.f32.mrb[0].mxu0
        %v3597 = vadd.f32 0.0, %v3596
        %v3598 = vpop.f32.mrb[0].mxu0
        %3599 = vmatprep.mubr.f32.mxu0 0.0
        %3600 = vmatmul.mubr.f32.gmra.mrb[0].mxu0 %v3432
        %v3601 = vpop.f32.mrb[0].mxu0
        %v3602 = vadd.f32 0.0, %v3601
        %v3603 = vpop.f32.mrb[0].mxu0
        %3604 = vmatprep.mubr.f32.mxu0 0.0
        %3605 = vmatmul.mubr.f32.gmra.mrb[0].mxu0 %v3435
        %v3606 = vpop.f32.mrb[0].mxu0
        %v3607 = vadd.f32 0.0, %v3606
        %v3608 = vpop.f32.mrb[0].mxu0
        %3609 = vmatprep.mubr.f32.mxu0 0.0
        %3610 = vmatmul.mubr.f32.gmra.mrb[0].mxu0 %v3438
        %v3611 = vpop.f32.mrb[0].mxu0
        %v3612 = vadd.f32 0.0, %v3611
        %v3613 = vpop.f32.mrb[0].mxu0
        %3614 = vmatprep.mubr.f32.mxu0 0.0
        %3615 = vmatmul.mubr.f32.gmra.mrb[0].mxu0 %v3441
        %v3616 = vpop.f32.mrb[0].mxu0
        %v3617 = vadd.f32 0.0, %v3616
        %v3618 = vpop.f32.mrb[0].mxu0
        %3619 = vmatprep.mubr.f32.mxu0 0.0
        %3620 = vmatmul.mubr.f32.gmra.mrb[0].mxu0 %v3444
        %v3621 = vpop.f32.mrb[0].mxu0
        %v3622 = vadd.f32 0.0, %v3621
        %v3623 = vpop.f32.mrb[0].mxu0
        %3624 = vmatprep.mubr.f32.mxu0 0.0
        %3625 = vmatmul.mubr.f32.gmra.mrb[0].mxu0 %v3447
        %v3626 = vpop.f32.mrb[0].mxu0
        %v3627 = vadd.f32 0.0, %v3626
        %v3628 = vpop.f32.mrb[0].mxu0
        %3629 = vmatprep.mubr.f32.mxu0 0.0
        %3630 = vmatmul.mubr.f32.gmra.mrb[0].mxu0 %v3450
        %v3631 = vpop.f32.mrb[0].mxu0
        %v3632 = vadd.f32 0.0, %v3631
        %v3633 = vpop.f32.mrb[0].mxu0
        %3634 = vmatprep.mubr.f32.mxu0 0.0
        %3635 = vmatmul.mubr.f32.gmra.mrb[0].mxu0 %v3453
        %v3636 = vpop.f32.mrb[0].mxu0
        %v3637 = vadd.f32 0.0, %v3636
        %v3638 = vpop.f32.mrb[0].mxu0
        %3639 = vmatprep.mubr.f32.mxu0 0.0
        %3640 = vmatmul.mubr.f32.gmra.mrb[0].mxu0 %v3456
        %v3641 = vpop.f32.mrb[0].mxu0
        %v3642 = vadd.f32 0.0, %v3641
        %v3643 = vpop.f32.mrb[0].mxu0
        %3644 = vmatprep.mubr.f32.mxu0 0.0
        %3645 = vmatmul.mubr.f32.gmra.mrb[0].mxu0 %v3459
        %v3646 = vpop.f32.mrb[0].mxu0
        %v3647 = vadd.f32 0.0, %v3646
        %v3648 = vpop.f32.mrb[0].mxu0
        %3649 = vmatprep.mubr.f32.mxu0 0.0
        %3650 = vmatmul.mubr.f32.gmra.mrb[0].mxu0 %v3462
        %v3651 = vpop.f32.mrb[0].mxu0
        %v3652 = vadd.f32 0.0, %v3651
        %v3653 = vpop.f32.mrb[0].mxu0
        %3654 = vmatprep.mubr.f32.mxu0 0.0
        %3655 = vmatmul.mubr.f32.gmra.mrb[0].mxu0 %v3465
        %v3656 = vpop.f32.mrb[0].mxu0
        %v3657 = vadd.f32 0.0, %v3656
        %v3658 = vpop.f32.mrb[0].mxu0
        %3659 = vmatprep.mubr.f32.mxu0 0.0
        %3660 = vmatmul.mubr.f32.gmra.mrb[0].mxu0 %v3468
        %v3661 = vpop.f32.mrb[0].mxu0
        %v3662 = vadd.f32 0.0, %v3661
        %v3663 = vpop.f32.mrb[0].mxu0
        %3664 = vmatprep.mubr.f32.mxu0 0.0
        %3665 = vmatmul.mubr.f32.gmra.mrb[0].mxu0 %v3471
        %v3666 = vpop.f32.mrb[0].mxu0
        %v3667 = vadd.f32 0.0, %v3666
        %v3668 = vpop.f32.mrb[0].mxu0
        %3669 = vmatprep.mubr.f32.mxu0 0.0
        %3670 = vmatmul.mubr.f32.gmra.mrb[0].mxu0 %v3474
        %v3671 = vpop.f32.mrb[0].mxu0
        %v3672 = vadd.f32 0.0, %v3671
        %v3673 = vpop.f32.mrb[0].mxu0
        %3674 = vmatprep.mubr.f32.mxu0 0.0
        %3675 = vmatmul.mubr.f32.gmra.mrb[0].mxu0 %v3477
        %v3676 = vpop.f32.mrb[0].mxu0
        %v3677 = vadd.f32 0.0, %v3676
        %v3678 = vpop.f32.mrb[0].mxu0
        %3679 = vmatprep.mubr.f32.mxu0 0.0
        %3680 = vmatmul.mubr.f32.gmra.mrb[0].mxu0 %v3480
        %v3681 = vpop.f32.mrb[0].mxu0
        %v3682 = vadd.f32 0.0, %v3681
        %v3683 = vpop.f32.mrb[0].mxu0
        %3684 = vmatprep.mubr.f32.mxu0 0.0
        %3685 = vmatmul.mubr.f32.gmra.mrb[0].mxu0 %v3483
        %v3686 = vpop.f32.mrb[0].mxu0
        %v3687 = vadd.f32 0.0, %v3686
        %v3688 = vpop.f32.mrb[0].mxu0
        %3689 = vmatprep.mubr.f32.mxu0 0.0
        %3690 = vmatmul.mubr.f32.gmra.mrb[0].mxu0 %v3486
        %v3691 = vpop.f32.mrb[0].mxu0
        %v3692 = vadd.f32 0.0, %v3691
        %v3693 = vpop.f32.mrb[0].mxu0
        %3694 = vmatprep.mubr.f32.mxu0 0.0
        %3695 = vmatmul.mubr.f32.gmra.mrb[0].mxu0 %v3489
        %v3696 = vpop.f32.mrb[0].mxu0
        %v3697 = vadd.f32 0.0, %v3696
        %v3698 = vpop.f32.mrb[0].mxu0
        %3699 = vmatprep.mubr.f32.mxu0 0.0
        %3700 = vmatmul.mubr.f32.gmra.mrb[0].mxu0 %v3492
        %v3701 = vpop.f32.mrb[0].mxu0
        %v3702 = vadd.f32 0.0, %v3701
        %v3703 = vpop.f32.mrb[0].mxu0
        %3704 = vmatprep.mubr.f32.mxu0 0.0
        %3705 = vmatmul.mubr.f32.gmra.mrb[0].mxu0 %v3495
        %v3706 = vpop.f32.mrb[0].mxu0
        %v3707 = vadd.f32 0.0, %v3706
        %v3708 = vpop.f32.mrb[0].mxu0
        %3709 = vmatprep.mubr.f32.mxu0 0.0
        %3710 = vmatmul.mubr.f32.gmra.mrb[0].mxu0 %v3498
        %v3711 = vpop.f32.mrb[0].mxu0
        %v3712 = vadd.f32 0.0, %v3711
        %v3713 = vpop.f32.mrb[0].mxu0
        %3714 = vmatprep.mubr.f32.mxu0 0.0
        %3715 = vmatmul.mubr.f32.gmra.mrb[0].mxu0 %v3501
        %v3716 = vpop.f32.mrb[0].mxu0
        %v3717 = vadd.f32 0.0, %v3716
        %v3718 = vpop.f32.mrb[0].mxu0
        %3719 = vmatprep.mubr.f32.mxu0 0.0
        %3720 = vmatmul.mubr.f32.gmra.mrb[0].mxu0 %v3504
        %v3721 = vpop.f32.mrb[0].mxu0
        %v3722 = vadd.f32 0.0, %v3721
        %v3723 = vpop.f32.mrb[0].mxu0
        %3724 = vmatprep.mubr.f32.mxu0 0.0
        %3725 = vmatmul.mubr.f32.gmra.mrb[0].mxu0 %v3507
        %v3726 = vpop.f32.mrb[0].mxu0
        %v3727 = vadd.f32 0.0, %v3726
        %v3728 = vpop.f32.mrb[0].mxu0
        %3729 = vmatprep.mubr.f32.mxu0 0.0
        %3730 = vmatmul.mubr.f32.gmra.mrb[0].mxu0 %v3510
        %v3731 = vpop.f32.mrb[0].mxu0
        %v3732 = vadd.f32 0.0, %v3731
        %v3733 = vpop.f32.mrb[0].mxu0
        %3734 = vmatprep.mubr.f32.mxu0 0.0
        %3735 = vmatmul.mubr.f32.gmra.mrb[0].mxu0 %v3513
        %v3736 = vpop.f32.mrb[0].mxu0
        %v3737 = vadd.f32 0.0, %v3736
        %v3738 = vpop.f32.mrb[0].mxu0
        %3739 = vdwg.mxu0
        %v3740 = vadd.f32 %v3350, %v3582
        %v3741 = vadd.f32 %v3351, %v3587
        %v3742 = vadd.f32 %v3352, %v3592
        %v3743 = vadd.f32 %v3353, %v3597
        %v3744 = vadd.f32 %v3354, %v3602
        %v3745 = vadd.f32 %v3355, %v3607
        %v3746 = vadd.f32 %v3356, %v3612
        %v3747 = vadd.f32 %v3357, %v3617
        %v3748 = vadd.f32 %v3358, %v3622
        %v3749 = vadd.f32 %v3359, %v3627
        %v3750 = vadd.f32 %v3360, %v3632
        %v3751 = vadd.f32 %v3361, %v3637
        %v3752 = vadd.f32 %v3362, %v3642
        %v3753 = vadd.f32 %v3363, %v3647
        %v3754 = vadd.f32 %v3364, %v3652
        %v3755 = vadd.f32 %v3365, %v3657
        %v3756 = vadd.f32 %v3366, %v3662
        %v3757 = vadd.f32 %v3367, %v3667
        %v3758 = vadd.f32 %v3368, %v3672
        %v3759 = vadd.f32 %v3369, %v3677
        %v3760 = vadd.f32 %v3370, %v3682
        %v3761 = vadd.f32 %v3371, %v3687
        %v3762 = vadd.f32 %v3372, %v3692
        %v3763 = vadd.f32 %v3373, %v3697
        %v3764 = vadd.f32 %v3374, %v3702
        %v3765 = vadd.f32 %v3375, %v3707
        %v3766 = vadd.f32 %v3376, %v3712
        %v3767 = vadd.f32 %v3377, %v3717
        %v3768 = vadd.f32 %v3378, %v3722
        %v3769 = vadd.f32 %v3379, %v3727
        %v3770 = vadd.f32 %v3380, %v3732
        %v3771 = vadd.f32 %v3381, %v3737
        %p3772 = scmp.eq.s32.totalorder %s24, 0
        // Predicated region
        $region33: #{adaptive_block_forward.3} parent=31 // pred_check
          %p3773 = pneg %p3772
        $region34: #{adaptive_block_forward.3} parent=31 // pred_check_branch
          %3775 = sbr.rel (%p3773) target = $region36
        $region35: #{adaptive_block_forward.3} parent=31 // pred_region
          %v3776 = vsel %vm215, %v3740, 0.0
          %v3777 = vsel %vm215, %v3741, 0.0
          %v3778 = vadd.f32 %v3776, %v3777
          %v3779 = vsel %vm215, %v3742, 0.0
          %v3780 = vadd.f32 %v3778, %v3779
          %v3781 = vsel %vm215, %v3743, 0.0
          %v3782 = vadd.f32 %v3780, %v3781
          %v3783 = vsel %vm215, %v3744, 0.0
          %v3784 = vadd.f32 %v3782, %v3783
          %v3785 = vsel %vm215, %v3745, 0.0
          %v3786 = vadd.f32 %v3784, %v3785
          %v3787 = vsel %vm215, %v3746, 0.0
          %v3788 = vadd.f32 %v3786, %v3787
          %v3789 = vsel %vm215, %v3747, 0.0
          %v3790 = vadd.f32 %v3788, %v3789
          %v3791 = vsel %vm215, %v3748, 0.0
          %v3792 = vadd.f32 %v3790, %v3791
          %v3793 = vsel %vm215, %v3749, 0.0
          %v3794 = vadd.f32 %v3792, %v3793
          %v3795 = vsel %vm215, %v3750, 0.0
          %v3796 = vadd.f32 %v3794, %v3795
          %v3797 = vsel %vm215, %v3751, 0.0
          %v3798 = vadd.f32 %v3796, %v3797
          %v3799 = vsel %vm215, %v3752, 0.0
          %v3800 = vadd.f32 %v3798, %v3799
          %v3801 = vsel %vm215, %v3753, 0.0
          %v3802 = vadd.f32 %v3800, %v3801
          %v3803 = vsel %vm215, %v3754, 0.0
          %v3804 = vadd.f32 %v3802, %v3803
          %v3805 = vsel %vm215, %v3755, 0.0
          %v3806 = vadd.f32 %v3804, %v3805
          %v3807 = vsel %vm215, %v3756, 0.0
          %v3808 = vadd.f32 %v3806, %v3807
          %v3809 = vsel %vm215, %v3757, 0.0
          %v3810 = vadd.f32 %v3808, %v3809
          %v3811 = vsel %vm215, %v3758, 0.0
          %v3812 = vadd.f32 %v3810, %v3811
          %v3813 = vsel %vm215, %v3759, 0.0
          %v3814 = vadd.f32 %v3812, %v3813
          %v3815 = vsel %vm215, %v3760, 0.0
          %v3816 = vadd.f32 %v3814, %v3815
          %v3817 = vsel %vm215, %v3761, 0.0
          %v3818 = vadd.f32 %v3816, %v3817
          %v3819 = vsel %vm215, %v3762, 0.0
          %v3820 = vadd.f32 %v3818, %v3819
          %v3821 = vsel %vm215, %v3763, 0.0
          %v3822 = vadd.f32 %v3820, %v3821
          %v3823 = vsel %vm215, %v3764, 0.0
          %v3824 = vadd.f32 %v3822, %v3823
          %v3825 = vsel %vm215, %v3765, 0.0
          %v3826 = vadd.f32 %v3824, %v3825
          %v3827 = vsel %vm215, %v3766, 0.0
          %v3828 = vadd.f32 %v3826, %v3827
          %v3829 = vsel %vm215, %v3767, 0.0
          %v3830 = vadd.f32 %v3828, %v3829
          %v3831 = vsel %vm215, %v3768, 0.0
          %v3832 = vadd.f32 %v3830, %v3831
          %v3833 = vsel %vm215, %v3769, 0.0
          %v3834 = vadd.f32 %v3832, %v3833
          %v3835 = vsel %vm215, %v3770, 0.0
          %v3836 = vadd.f32 %v3834, %v3835
          %v3837 = vsel %vm215, %v3771, 0.0
          %v3838 = vadd.f32 %v3836, %v3837
          %v3839 = vrot.slane %v3838, 4
          %v3840 = vadd.f32 %v3838, %v3839
          %v3841 = vrot.slane %v3840, 2
          %v3842 = vadd.f32 %v3840, %v3841
          %v3843 = vrot.slane %v3842, 1
          %v3844 = vadd.f32 %v3842, %v3843
          %v3845 = vmul.f32 %v3740, %v3740
          %v3846 = vmul.f32 %v3741, %v3741
          %v3847 = vmul.f32 %v3742, %v3742
          %v3848 = vmul.f32 %v3743, %v3743
          %v3849 = vmul.f32 %v3744, %v3744
          %v3850 = vmul.f32 %v3745, %v3745
          %v3851 = vmul.f32 %v3746, %v3746
          %v3852 = vmul.f32 %v3747, %v3747
          %v3853 = vmul.f32 %v3748, %v3748
          %v3854 = vmul.f32 %v3749, %v3749
          %v3855 = vmul.f32 %v3750, %v3750
          %v3856 = vmul.f32 %v3751, %v3751
          %v3857 = vmul.f32 %v3752, %v3752
          %v3858 = vmul.f32 %v3753, %v3753
          %v3859 = vmul.f32 %v3754, %v3754
          %v3860 = vmul.f32 %v3755, %v3755
          %v3861 = vmul.f32 %v3756, %v3756
          %v3862 = vmul.f32 %v3757, %v3757
          %v3863 = vmul.f32 %v3758, %v3758
          %v3864 = vmul.f32 %v3759, %v3759
          %v3865 = vmul.f32 %v3760, %v3760
          %v3866 = vmul.f32 %v3761, %v3761
          %v3867 = vmul.f32 %v3762, %v3762
          %v3868 = vmul.f32 %v3763, %v3763
          %v3869 = vmul.f32 %v3764, %v3764
          %v3870 = vmul.f32 %v3765, %v3765
          %v3871 = vmul.f32 %v3766, %v3766
          %v3872 = vmul.f32 %v3767, %v3767
          %v3873 = vmul.f32 %v3768, %v3768
          %v3874 = vmul.f32 %v3769, %v3769
          %v3875 = vmul.f32 %v3770, %v3770
          %v3876 = vmul.f32 %v3771, %v3771
          %v3877 = vsel %vm215, %v3845, 0.0
          %v3878 = vsel %vm215, %v3846, 0.0
          %v3879 = vadd.f32 %v3877, %v3878
          %v3880 = vsel %vm215, %v3847, 0.0
          %v3881 = vadd.f32 %v3879, %v3880
          %v3882 = vsel %vm215, %v3848, 0.0
          %v3883 = vadd.f32 %v3881, %v3882
          %v3884 = vsel %vm215, %v3849, 0.0
          %v3885 = vadd.f32 %v3883, %v3884
          %v3886 = vsel %vm215, %v3850, 0.0
          %v3887 = vadd.f32 %v3885, %v3886
          %v3888 = vsel %vm215, %v3851, 0.0
          %v3889 = vadd.f32 %v3887, %v3888
          %v3890 = vsel %vm215, %v3852, 0.0
          %v3891 = vadd.f32 %v3889, %v3890
          %v3892 = vsel %vm215, %v3853, 0.0
          %v3893 = vadd.f32 %v3891, %v3892
          %v3894 = vsel %vm215, %v3854, 0.0
          %v3895 = vadd.f32 %v3893, %v3894
          %v3896 = vsel %vm215, %v3855, 0.0
          %v3897 = vadd.f32 %v3895, %v3896
          %v3898 = vsel %vm215, %v3856, 0.0
          %v3899 = vadd.f32 %v3897, %v3898
          %v3900 = vsel %vm215, %v3857, 0.0
          %v3901 = vadd.f32 %v3899, %v3900
          %v3902 = vsel %vm215, %v3858, 0.0
          %v3903 = vadd.f32 %v3901, %v3902
          %v3904 = vsel %vm215, %v3859, 0.0
          %v3905 = vadd.f32 %v3903, %v3904
          %v3906 = vsel %vm215, %v3860, 0.0
          %v3907 = vadd.f32 %v3905, %v3906
          %v3908 = vsel %vm215, %v3861, 0.0
          %v3909 = vadd.f32 %v3907, %v3908
          %v3910 = vsel %vm215, %v3862, 0.0
          %v3911 = vadd.f32 %v3909, %v3910
          %v3912 = vsel %vm215, %v3863, 0.0
          %v3913 = vadd.f32 %v3911, %v3912
          %v3914 = vsel %vm215, %v3864, 0.0
          %v3915 = vadd.f32 %v3913, %v3914
          %v3916 = vsel %vm215, %v3865, 0.0
          %v3917 = vadd.f32 %v3915, %v3916
          %v3918 = vsel %vm215, %v3866, 0.0
          %v3919 = vadd.f32 %v3917, %v3918
          %v3920 = vsel %vm215, %v3867, 0.0
          %v3921 = vadd.f32 %v3919, %v3920
          %v3922 = vsel %vm215, %v3868, 0.0
          %v3923 = vadd.f32 %v3921, %v3922
          %v3924 = vsel %vm215, %v3869, 0.0
          %v3925 = vadd.f32 %v3923, %v3924
          %v3926 = vsel %vm215, %v3870, 0.0
          %v3927 = vadd.f32 %v3925, %v3926
          %v3928 = vsel %vm215, %v3871, 0.0
          %v3929 = vadd.f32 %v3927, %v3928
          %v3930 = vsel %vm215, %v3872, 0.0
          %v3931 = vadd.f32 %v3929, %v3930
          %v3932 = vsel %vm215, %v3873, 0.0
          %v3933 = vadd.f32 %v3931, %v3932
          %v3934 = vsel %vm215, %v3874, 0.0
          %v3935 = vadd.f32 %v3933, %v3934
          %v3936 = vsel %vm215, %v3875, 0.0
          %v3937 = vadd.f32 %v3935, %v3936
          %v3938 = vsel %vm215, %v3876, 0.0
          %v3939 = vadd.f32 %v3937, %v3938
          %v3940 = vrot.slane %v3939, 4
          %v3941 = vadd.f32 %v3939, %v3940
          %v3942 = vrot.slane %v3941, 2
          %v3943 = vadd.f32 %v3941, %v3942
          %v3944 = vrot.slane %v3943, 1
          %v3945 = vadd.f32 %v3943, %v3944
          %v3946 = vmul.f32 %v3844, 0.00390625
          %v3947 = vmul.f32 %v3946, 256.0
          %v3948 = vmul.f32 %v3947, %v3946
          %v3949 = vsub.f32 %v3945, %v3948
          %v3950 = vmul.f32 %v3949, 0.003921569
          %v3951 = vadd.f32 %v3950, 1e-05
          %3952 = vst.msk [vmem:[#allocation3] sm:$0x1] %vm224, %v3946
          %v3953 = vrsqrt.pop %v3951
          %v3954 = vmul.f32 %v3951, %v3953
          %vm3955 = vcmp.eq.f32.partialorder %v3951, inf
          %v3956 = vsel %vm3955, %v3951, %v3954
          %vm3957 = vcmp.eq.f32.partialorder %v3951, 0.0
          %v3958 = vand.u32 %v3951, 2147483648
          %v3959 = vsel %vm3957, %v3958, %v3956
          %3960 = vst.msk [vmem:[#allocation4] sm:$0x1] %vm224, %v3959
        $region36: #{adaptive_block_forward.3} parent=31 // pred_fallthru
          _
        %v3961 = vld [vmem:[%s210] sm:$0xff]
        %v3962 = vld [vmem:[%s210 + $0x8] sm:$0xff]
        %v3963 = vld [vmem:[%s210 + $0x10] sm:$0xff]
        %v3964 = vld [vmem:[%s210 + $0x18] sm:$0xff]
        %v3965 = vld [vmem:[%s210 + $0x20] sm:$0xff]
        %v3966 = vld [vmem:[%s210 + $0x28] sm:$0xff]
        %v3967 = vld [vmem:[%s210 + $0x30] sm:$0xff]
        %v3968 = vld [vmem:[%s210 + $0x38] sm:$0xff]
        %v3969 = vld [vmem:[%s210 + $0x40] sm:$0xff]
        %v3970 = vld [vmem:[%s210 + $0x48] sm:$0xff]
        %v3971 = vld [vmem:[%s210 + $0x50] sm:$0xff]
        %v3972 = vld [vmem:[%s210 + $0x58] sm:$0xff]
        %v3973 = vld [vmem:[%s210 + $0x60] sm:$0xff]
        %v3974 = vld [vmem:[%s210 + $0x68] sm:$0xff]
        %v3975 = vld [vmem:[%s210 + $0x70] sm:$0xff]
        %v3976 = vld [vmem:[%s210 + $0x78] sm:$0xff]
        %v3977 = vld [vmem:[%s210 + $0x80] sm:$0xff]
        %v3978 = vld [vmem:[%s210 + $0x88] sm:$0xff]
        %v3979 = vld [vmem:[%s210 + $0x90] sm:$0xff]
        %v3980 = vld [vmem:[%s210 + $0x98] sm:$0xff]
        %v3981 = vld [vmem:[%s210 + $0xa0] sm:$0xff]
        %v3982 = vld [vmem:[%s210 + $0xa8] sm:$0xff]
        %v3983 = vld [vmem:[%s210 + $0xb0] sm:$0xff]
        %v3984 = vld [vmem:[%s210 + $0xb8] sm:$0xff]
        %v3985 = vld [vmem:[%s210 + $0xc0] sm:$0xff]
        %v3986 = vld [vmem:[%s210 + $0xc8] sm:$0xff]
        %v3987 = vld [vmem:[%s210 + $0xd0] sm:$0xff]
        %v3988 = vld [vmem:[%s210 + $0xd8] sm:$0xff]
        %v3989 = vld [vmem:[%s210 + $0xe0] sm:$0xff]
        %v3990 = vld [vmem:[%s210 + $0xe8] sm:$0xff]
        %v3991 = vld [vmem:[%s210 + $0xf0] sm:$0xff]
        %v3992 = vld [vmem:[%s210 + $0xf8] sm:$0xff]
        // Predicated region
        $region37: #{adaptive_block_forward.3} parent=31 // pred_check
          %p3993 = pneg %p214
        $region38: #{adaptive_block_forward.3} parent=31 // pred_check_branch
          %3995 = sbr.rel (%p3993) target = $region40
        $region39: #{adaptive_block_forward.3} parent=31 // pred_region
          %v3996 = vsel %vm215, %v3740, 0.0
          %v3997 = vsel %vm215, %v3741, 0.0
          %v3998 = vadd.f32 %v3996, %v3997
          %v3999 = vsel %vm215, %v3742, 0.0
          %v4000 = vadd.f32 %v3998, %v3999
          %v4001 = vsel %vm215, %v3743, 0.0
          %v4002 = vadd.f32 %v4000, %v4001
          %v4003 = vsel %vm215, %v3744, 0.0
          %v4004 = vadd.f32 %v4002, %v4003
          %v4005 = vsel %vm215, %v3745, 0.0
          %v4006 = vadd.f32 %v4004, %v4005
          %v4007 = vsel %vm215, %v3746, 0.0
          %v4008 = vadd.f32 %v4006, %v4007
          %v4009 = vsel %vm215, %v3747, 0.0
          %v4010 = vadd.f32 %v4008, %v4009
          %v4011 = vsel %vm215, %v3748, 0.0
          %v4012 = vadd.f32 %v4010, %v4011
          %v4013 = vsel %vm215, %v3749, 0.0
          %v4014 = vadd.f32 %v4012, %v4013
          %v4015 = vsel %vm215, %v3750, 0.0
          %v4016 = vadd.f32 %v4014, %v4015
          %v4017 = vsel %vm215, %v3751, 0.0
          %v4018 = vadd.f32 %v4016, %v4017
          %v4019 = vsel %vm215, %v3752, 0.0
          %v4020 = vadd.f32 %v4018, %v4019
          %v4021 = vsel %vm215, %v3753, 0.0
          %v4022 = vadd.f32 %v4020, %v4021
          %v4023 = vsel %vm215, %v3754, 0.0
          %v4024 = vadd.f32 %v4022, %v4023
          %v4025 = vsel %vm215, %v3755, 0.0
          %v4026 = vadd.f32 %v4024, %v4025
          %v4027 = vsel %vm215, %v3756, 0.0
          %v4028 = vadd.f32 %v4026, %v4027
          %v4029 = vsel %vm215, %v3757, 0.0
          %v4030 = vadd.f32 %v4028, %v4029
          %v4031 = vsel %vm215, %v3758, 0.0
          %v4032 = vadd.f32 %v4030, %v4031
          %v4033 = vsel %vm215, %v3759, 0.0
          %v4034 = vadd.f32 %v4032, %v4033
          %v4035 = vsel %vm215, %v3760, 0.0
          %v4036 = vadd.f32 %v4034, %v4035
          %v4037 = vsel %vm215, %v3761, 0.0
          %v4038 = vadd.f32 %v4036, %v4037
          %v4039 = vsel %vm215, %v3762, 0.0
          %v4040 = vadd.f32 %v4038, %v4039
          %v4041 = vsel %vm215, %v3763, 0.0
          %v4042 = vadd.f32 %v4040, %v4041
          %v4043 = vsel %vm215, %v3764, 0.0
          %v4044 = vadd.f32 %v4042, %v4043
          %v4045 = vsel %vm215, %v3765, 0.0
          %v4046 = vadd.f32 %v4044, %v4045
          %v4047 = vsel %vm215, %v3766, 0.0
          %v4048 = vadd.f32 %v4046, %v4047
          %v4049 = vsel %vm215, %v3767, 0.0
          %v4050 = vadd.f32 %v4048, %v4049
          %v4051 = vsel %vm215, %v3768, 0.0
          %v4052 = vadd.f32 %v4050, %v4051
          %v4053 = vsel %vm215, %v3769, 0.0
          %v4054 = vadd.f32 %v4052, %v4053
          %v4055 = vsel %vm215, %v3770, 0.0
          %v4056 = vadd.f32 %v4054, %v4055
          %v4057 = vsel %vm215, %v3771, 0.0
          %v4058 = vadd.f32 %v4056, %v4057
          %v4059 = vrot.slane %v4058, 4
          %v4060 = vadd.f32 %v4058, %v4059
          %v4061 = vrot.slane %v4060, 2
          %v4062 = vadd.f32 %v4060, %v4061
          %v4063 = vrot.slane %v4062, 1
          %v4064 = vadd.f32 %v4062, %v4063
          %v4065 = vmul.f32 %v3740, %v3740
          %v4066 = vmul.f32 %v3741, %v3741
          %v4067 = vmul.f32 %v3742, %v3742
          %v4068 = vmul.f32 %v3743, %v3743
          %v4069 = vmul.f32 %v3744, %v3744
          %v4070 = vmul.f32 %v3745, %v3745
          %v4071 = vmul.f32 %v3746, %v3746
          %v4072 = vmul.f32 %v3747, %v3747
          %v4073 = vmul.f32 %v3748, %v3748
          %v4074 = vmul.f32 %v3749, %v3749
          %v4075 = vmul.f32 %v3750, %v3750
          %v4076 = vmul.f32 %v3751, %v3751
          %v4077 = vmul.f32 %v3752, %v3752
          %v4078 = vmul.f32 %v3753, %v3753
          %v4079 = vmul.f32 %v3754, %v3754
          %v4080 = vmul.f32 %v3755, %v3755
          %v4081 = vmul.f32 %v3756, %v3756
          %v4082 = vmul.f32 %v3757, %v3757
          %v4083 = vmul.f32 %v3758, %v3758
          %v4084 = vmul.f32 %v3759, %v3759
          %v4085 = vmul.f32 %v3760, %v3760
          %v4086 = vmul.f32 %v3761, %v3761
          %v4087 = vmul.f32 %v3762, %v3762
          %v4088 = vmul.f32 %v3763, %v3763
          %v4089 = vmul.f32 %v3764, %v3764
          %v4090 = vmul.f32 %v3765, %v3765
          %v4091 = vmul.f32 %v3766, %v3766
          %v4092 = vmul.f32 %v3767, %v3767
          %v4093 = vmul.f32 %v3768, %v3768
          %v4094 = vmul.f32 %v3769, %v3769
          %v4095 = vmul.f32 %v3770, %v3770
          %v4096 = vmul.f32 %v3771, %v3771
          %v4097 = vsel %vm215, %v4065, 0.0
          %v4098 = vsel %vm215, %v4066, 0.0
          %v4099 = vadd.f32 %v4097, %v4098
          %v4100 = vsel %vm215, %v4067, 0.0
          %v4101 = vadd.f32 %v4099, %v4100
          %v4102 = vsel %vm215, %v4068, 0.0
          %v4103 = vadd.f32 %v4101, %v4102
          %v4104 = vsel %vm215, %v4069, 0.0
          %v4105 = vadd.f32 %v4103, %v4104
          %v4106 = vsel %vm215, %v4070, 0.0
          %v4107 = vadd.f32 %v4105, %v4106
          %v4108 = vsel %vm215, %v4071, 0.0
          %v4109 = vadd.f32 %v4107, %v4108
          %v4110 = vsel %vm215, %v4072, 0.0
          %v4111 = vadd.f32 %v4109, %v4110
          %v4112 = vsel %vm215, %v4073, 0.0
          %v4113 = vadd.f32 %v4111, %v4112
          %v4114 = vsel %vm215, %v4074, 0.0
          %v4115 = vadd.f32 %v4113, %v4114
          %v4116 = vsel %vm215, %v4075, 0.0
          %v4117 = vadd.f32 %v4115, %v4116
          %v4118 = vsel %vm215, %v4076, 0.0
          %v4119 = vadd.f32 %v4117, %v4118
          %v4120 = vsel %vm215, %v4077, 0.0
          %v4121 = vadd.f32 %v4119, %v4120
          %v4122 = vsel %vm215, %v4078, 0.0
          %v4123 = vadd.f32 %v4121, %v4122
          %v4124 = vsel %vm215, %v4079, 0.0
          %v4125 = vadd.f32 %v4123, %v4124
          %v4126 = vsel %vm215, %v4080, 0.0
          %v4127 = vadd.f32 %v4125, %v4126
          %v4128 = vsel %vm215, %v4081, 0.0
          %v4129 = vadd.f32 %v4127, %v4128
          %v4130 = vsel %vm215, %v4082, 0.0
          %v4131 = vadd.f32 %v4129, %v4130
          %v4132 = vsel %vm215, %v4083, 0.0
          %v4133 = vadd.f32 %v4131, %v4132
          %v4134 = vsel %vm215, %v4084, 0.0
          %v4135 = vadd.f32 %v4133, %v4134
          %v4136 = vsel %vm215, %v4085, 0.0
          %v4137 = vadd.f32 %v4135, %v4136
          %v4138 = vsel %vm215, %v4086, 0.0
          %v4139 = vadd.f32 %v4137, %v4138
          %v4140 = vsel %vm215, %v4087, 0.0
          %v4141 = vadd.f32 %v4139, %v4140
          %v4142 = vsel %vm215, %v4088, 0.0
          %v4143 = vadd.f32 %v4141, %v4142
          %v4144 = vsel %vm215, %v4089, 0.0
          %v4145 = vadd.f32 %v4143, %v4144
          %v4146 = vsel %vm215, %v4090, 0.0
          %v4147 = vadd.f32 %v4145, %v4146
          %v4148 = vsel %vm215, %v4091, 0.0
          %v4149 = vadd.f32 %v4147, %v4148
          %v4150 = vsel %vm215, %v4092, 0.0
          %v4151 = vadd.f32 %v4149, %v4150
          %v4152 = vsel %vm215, %v4093, 0.0
          %v4153 = vadd.f32 %v4151, %v4152
          %v4154 = vsel %vm215, %v4094, 0.0
          %v4155 = vadd.f32 %v4153, %v4154
          %v4156 = vsel %vm215, %v4095, 0.0
          %v4157 = vadd.f32 %v4155, %v4156
          %v4158 = vsel %vm215, %v4096, 0.0
          %v4159 = vadd.f32 %v4157, %v4158
          %v4160 = vrot.slane %v4159, 4
          %v4161 = vadd.f32 %v4159, %v4160
          %v4162 = vrot.slane %v4161, 2
          %v4163 = vadd.f32 %v4161, %v4162
          %v4164 = vrot.slane %v4163, 1
          %v4165 = vadd.f32 %v4163, %v4164
          %v4166 = vmul.f32 %v4064, 0.00390625
          %v4167 = vmul.f32 %v4166, 256.0
          %v4168 = vmul.f32 %v4167, %v4166
          %v4169 = vsub.f32 %v4165, %v4168
          %v4170 = vmul.f32 %v4169, 0.003921569
          %v4171 = vadd.f32 %v4170, 1e-05
          %v4172 = vld [vmem:[#allocation4] sm:$0x1]
          %v4173 = vrsqrt.pop %v4171
          %v4174 = vmul.f32 %v4172, %v4173
          %v4175 = vld [vmem:[#allocation3] sm:$0x1]
          %v4176 = vmul.f32 %v4166, %v4174
          %v4177 = vsub.f32 %v4175, %v4176
          %v4179 = vlaneseq
          %v4180 = vshrl.u32 %v4179, 7
          %v4181 = vsub.s32 0, %v4180
          %v4182 = vrot.slane %v4174, %v4181
          %v4184 = vmul.f32 %v3740, %v4182
          %v4185 = vmul.f32 %v3741, %v4182
          %v4186 = vmul.f32 %v3742, %v4182
          %v4187 = vmul.f32 %v3743, %v4182
          %v4188 = vmul.f32 %v3744, %v4182
          %v4189 = vmul.f32 %v3745, %v4182
          %v4190 = vmul.f32 %v3746, %v4182
          %v4191 = vmul.f32 %v3747, %v4182
          %v4192 = vmul.f32 %v3748, %v4182
          %v4193 = vmul.f32 %v3749, %v4182
          %v4194 = vmul.f32 %v3750, %v4182
          %v4195 = vmul.f32 %v3751, %v4182
          %v4196 = vmul.f32 %v3752, %v4182
          %v4197 = vmul.f32 %v3753, %v4182
          %v4198 = vmul.f32 %v3754, %v4182
          %v4199 = vmul.f32 %v3755, %v4182
          %v4200 = vmul.f32 %v3756, %v4182
          %v4201 = vmul.f32 %v3757, %v4182
          %v4202 = vmul.f32 %v3758, %v4182
          %v4203 = vmul.f32 %v3759, %v4182
          %v4204 = vmul.f32 %v3760, %v4182
          %v4205 = vmul.f32 %v3761, %v4182
          %v4206 = vmul.f32 %v3762, %v4182
          %v4207 = vmul.f32 %v3763, %v4182
          %v4208 = vmul.f32 %v3764, %v4182
          %v4209 = vmul.f32 %v3765, %v4182
          %v4210 = vmul.f32 %v3766, %v4182
          %v4211 = vmul.f32 %v3767, %v4182
          %v4212 = vmul.f32 %v3768, %v4182
          %v4213 = vmul.f32 %v3769, %v4182
          %v4214 = vmul.f32 %v3770, %v4182
          %v4215 = vmul.f32 %v3771, %v4182
          %v4217 = vlaneseq
          %v4218 = vshrl.u32 %v4217, 7
          %v4219 = vsub.s32 0, %v4218
          %v4220 = vrot.slane %v4177, %v4219
          %v4222 = vadd.f32 %v4184, %v4220
          %v4223 = vadd.f32 %v4185, %v4220
          %v4224 = vadd.f32 %v4186, %v4220
          %v4225 = vadd.f32 %v4187, %v4220
          %v4226 = vadd.f32 %v4188, %v4220
          %v4227 = vadd.f32 %v4189, %v4220
          %v4228 = vadd.f32 %v4190, %v4220
          %v4229 = vadd.f32 %v4191, %v4220
          %v4230 = vadd.f32 %v4192, %v4220
          %v4231 = vadd.f32 %v4193, %v4220
          %v4232 = vadd.f32 %v4194, %v4220
          %v4233 = vadd.f32 %v4195, %v4220
          %v4234 = vadd.f32 %v4196, %v4220
          %v4235 = vadd.f32 %v4197, %v4220
          %v4236 = vadd.f32 %v4198, %v4220
          %v4237 = vadd.f32 %v4199, %v4220
          %v4238 = vadd.f32 %v4200, %v4220
          %v4239 = vadd.f32 %v4201, %v4220
          %v4240 = vadd.f32 %v4202, %v4220
          %v4241 = vadd.f32 %v4203, %v4220
          %v4242 = vadd.f32 %v4204, %v4220
          %v4243 = vadd.f32 %v4205, %v4220
          %v4244 = vadd.f32 %v4206, %v4220
          %v4245 = vadd.f32 %v4207, %v4220
          %v4246 = vadd.f32 %v4208, %v4220
          %v4247 = vadd.f32 %v4209, %v4220
          %v4248 = vadd.f32 %v4210, %v4220
          %v4249 = vadd.f32 %v4211, %v4220
          %v4250 = vadd.f32 %v4212, %v4220
          %v4251 = vadd.f32 %v4213, %v4220
          %v4252 = vadd.f32 %v4214, %v4220
          %v4253 = vadd.f32 %v4215, %v4220
          %v4254 = vadd.f32 %v4222, %v3961
          %v4255 = vadd.f32 %v4223, %v3962
          %v4256 = vadd.f32 %v4224, %v3963
          %v4257 = vadd.f32 %v4225, %v3964
          %v4258 = vadd.f32 %v4226, %v3965
          %v4259 = vadd.f32 %v4227, %v3966
          %v4260 = vadd.f32 %v4228, %v3967
          %v4261 = vadd.f32 %v4229, %v3968
          %v4262 = vadd.f32 %v4230, %v3969
          %v4263 = vadd.f32 %v4231, %v3970
          %v4264 = vadd.f32 %v4232, %v3971
          %v4265 = vadd.f32 %v4233, %v3972
          %v4266 = vadd.f32 %v4234, %v3973
          %v4267 = vadd.f32 %v4235, %v3974
          %v4268 = vadd.f32 %v4236, %v3975
          %v4269 = vadd.f32 %v4237, %v3976
          %v4270 = vadd.f32 %v4238, %v3977
          %v4271 = vadd.f32 %v4239, %v3978
          %v4272 = vadd.f32 %v4240, %v3979
          %v4273 = vadd.f32 %v4241, %v3980
          %v4274 = vadd.f32 %v4242, %v3981
          %v4275 = vadd.f32 %v4243, %v3982
          %v4276 = vadd.f32 %v4244, %v3983
          %v4277 = vadd.f32 %v4245, %v3984
          %v4278 = vadd.f32 %v4246, %v3985
          %v4279 = vadd.f32 %v4247, %v3986
          %v4280 = vadd.f32 %v4248, %v3987
          %v4281 = vadd.f32 %v4249, %v3988
          %v4282 = vadd.f32 %v4250, %v3989
          %v4283 = vadd.f32 %v4251, %v3990
          %v4284 = vadd.f32 %v4252, %v3991
          %v4285 = vadd.f32 %v4253, %v3992
          %v4286 = vmax.f32 %v4254, 0.0
          %v4287 = vmax.f32 %v4255, 0.0
          %v4288 = vmax.f32 %v4256, 0.0
          %v4289 = vmax.f32 %v4257, 0.0
          %v4290 = vmax.f32 %v4258, 0.0
          %v4291 = vmax.f32 %v4259, 0.0
          %v4292 = vmax.f32 %v4260, 0.0
          %v4293 = vmax.f32 %v4261, 0.0
          %v4294 = vmax.f32 %v4262, 0.0
          %v4295 = vmax.f32 %v4263, 0.0
          %v4296 = vmax.f32 %v4264, 0.0
          %v4297 = vmax.f32 %v4265, 0.0
          %v4298 = vmax.f32 %v4266, 0.0
          %v4299 = vmax.f32 %v4267, 0.0
          %v4300 = vmax.f32 %v4268, 0.0
          %v4301 = vmax.f32 %v4269, 0.0
          %v4302 = vmax.f32 %v4270, 0.0
          %v4303 = vmax.f32 %v4271, 0.0
          %v4304 = vmax.f32 %v4272, 0.0
          %v4305 = vmax.f32 %v4273, 0.0
          %v4306 = vmax.f32 %v4274, 0.0
          %v4307 = vmax.f32 %v4275, 0.0
          %v4308 = vmax.f32 %v4276, 0.0
          %v4309 = vmax.f32 %v4277, 0.0
          %v4310 = vmax.f32 %v4278, 0.0
          %v4311 = vmax.f32 %v4279, 0.0
          %v4312 = vmax.f32 %v4280, 0.0
          %v4313 = vmax.f32 %v4281, 0.0
          %v4314 = vmax.f32 %v4282, 0.0
          %v4315 = vmax.f32 %v4283, 0.0
          %v4316 = vmax.f32 %v4284, 0.0
          %v4317 = vmax.f32 %v4285, 0.0
          %4318 = vst.msk [vmem:[%s197] sm:$0xff] %vm215, %v4286
          %4319 = vst.msk [vmem:[%s197 + $0x8] sm:$0xff] %vm215, %v4287
          %4320 = vst.msk [vmem:[%s197 + $0x10] sm:$0xff] %vm215, %v4288
          %4321 = vst.msk [vmem:[%s197 + $0x18] sm:$0xff] %vm215, %v4289
          %4322 = vst.msk [vmem:[%s197 + $0x20] sm:$0xff] %vm215, %v4290
          %4323 = vst.msk [vmem:[%s197 + $0x28] sm:$0xff] %vm215, %v4291
          %4324 = vst.msk [vmem:[%s197 + $0x30] sm:$0xff] %vm215, %v4292
          %4325 = vst.msk [vmem:[%s197 + $0x38] sm:$0xff] %vm215, %v4293
          %4326 = vst.msk [vmem:[%s197 + $0x40] sm:$0xff] %vm215, %v4294
          %4327 = vst.msk [vmem:[%s197 + $0x48] sm:$0xff] %vm215, %v4295
          %4328 = vst.msk [vmem:[%s197 + $0x50] sm:$0xff] %vm215, %v4296
          %4329 = vst.msk [vmem:[%s197 + $0x58] sm:$0xff] %vm215, %v4297
          %4330 = vst.msk [vmem:[%s197 + $0x60] sm:$0xff] %vm215, %v4298
          %4331 = vst.msk [vmem:[%s197 + $0x68] sm:$0xff] %vm215, %v4299
          %4332 = vst.msk [vmem:[%s197 + $0x70] sm:$0xff] %vm215, %v4300
          %4333 = vst.msk [vmem:[%s197 + $0x78] sm:$0xff] %vm215, %v4301
          %4334 = vst.msk [vmem:[%s197 + $0x80] sm:$0xff] %vm215, %v4302
          %4335 = vst.msk [vmem:[%s197 + $0x88] sm:$0xff] %vm215, %v4303
          %4336 = vst.msk [vmem:[%s197 + $0x90] sm:$0xff] %vm215, %v4304
          %4337 = vst.msk [vmem:[%s197 + $0x98] sm:$0xff] %vm215, %v4305
          %4338 = vst.msk [vmem:[%s197 + $0xa0] sm:$0xff] %vm215, %v4306
          %4339 = vst.msk [vmem:[%s197 + $0xa8] sm:$0xff] %vm215, %v4307
          %4340 = vst.msk [vmem:[%s197 + $0xb0] sm:$0xff] %vm215, %v4308
          %4341 = vst.msk [vmem:[%s197 + $0xb8] sm:$0xff] %vm215, %v4309
          %4342 = vst.msk [vmem:[%s197 + $0xc0] sm:$0xff] %vm215, %v4310
          %4343 = vst.msk [vmem:[%s197 + $0xc8] sm:$0xff] %vm215, %v4311
          %4344 = vst.msk [vmem:[%s197 + $0xd0] sm:$0xff] %vm215, %v4312
          %4345 = vst.msk [vmem:[%s197 + $0xd8] sm:$0xff] %vm215, %v4313
          %4346 = vst.msk [vmem:[%s197 + $0xe0] sm:$0xff] %vm215, %v4314
          %4347 = vst.msk [vmem:[%s197 + $0xe8] sm:$0xff] %vm215, %v4315
          %4348 = vst.msk [vmem:[%s197 + $0xf0] sm:$0xff] %vm215, %v4316
          %4349 = vst.msk [vmem:[%s197 + $0xf8] sm:$0xff] %vm215, %v4317
        $region40: #{adaptive_block_forward.3} parent=31 // pred_fallthru
          _
        %p4350 = scmp.ge.s32.totalorder %s213, 2
        // Predicated region
        $region41: #{adaptive_block_forward.3} parent=31 // pred_check
          %p4351 = pneg %p4350
        $region42: #{adaptive_block_forward.3} parent=31 // pred_check_branch
          %4353 = sbr.rel (%p4351) target = $region44
        $region43: #{adaptive_block_forward.3} parent=31 // pred_region
          %v4354 = vadd.f32 %v3740, %v3961
          %v4355 = vadd.f32 %v3741, %v3962
          %v4356 = vadd.f32 %v3742, %v3963
          %v4357 = vadd.f32 %v3743, %v3964
          %v4358 = vadd.f32 %v3744, %v3965
          %v4359 = vadd.f32 %v3745, %v3966
          %v4360 = vadd.f32 %v3746, %v3967
          %v4361 = vadd.f32 %v3747, %v3968
          %v4362 = vadd.f32 %v3748, %v3969
          %v4363 = vadd.f32 %v3749, %v3970
          %v4364 = vadd.f32 %v3750, %v3971
          %v4365 = vadd.f32 %v3751, %v3972
          %v4366 = vadd.f32 %v3752, %v3973
          %v4367 = vadd.f32 %v3753, %v3974
          %v4368 = vadd.f32 %v3754, %v3975
          %v4369 = vadd.f32 %v3755, %v3976
          %v4370 = vadd.f32 %v3756, %v3977
          %v4371 = vadd.f32 %v3757, %v3978
          %v4372 = vadd.f32 %v3758, %v3979
          %v4373 = vadd.f32 %v3759, %v3980
          %v4374 = vadd.f32 %v3760, %v3981
          %v4375 = vadd.f32 %v3761, %v3982
          %v4376 = vadd.f32 %v3762, %v3983
          %v4377 = vadd.f32 %v3763, %v3984
          %v4378 = vadd.f32 %v3764, %v3985
          %v4379 = vadd.f32 %v3765, %v3986
          %v4380 = vadd.f32 %v3766, %v3987
          %v4381 = vadd.f32 %v3767, %v3988
          %v4382 = vadd.f32 %v3768, %v3989
          %v4383 = vadd.f32 %v3769, %v3990
          %v4384 = vadd.f32 %v3770, %v3991
          %v4385 = vadd.f32 %v3771, %v3992
          %v4386 = vmax.f32 %v4354, 0.0
          %v4387 = vmax.f32 %v4355, 0.0
          %v4388 = vmax.f32 %v4356, 0.0
          %v4389 = vmax.f32 %v4357, 0.0
          %v4390 = vmax.f32 %v4358, 0.0
          %v4391 = vmax.f32 %v4359, 0.0
          %v4392 = vmax.f32 %v4360, 0.0
          %v4393 = vmax.f32 %v4361, 0.0
          %v4394 = vmax.f32 %v4362, 0.0
          %v4395 = vmax.f32 %v4363, 0.0
          %v4396 = vmax.f32 %v4364, 0.0
          %v4397 = vmax.f32 %v4365, 0.0
          %v4398 = vmax.f32 %v4366, 0.0
          %v4399 = vmax.f32 %v4367, 0.0
          %v4400 = vmax.f32 %v4368, 0.0
          %v4401 = vmax.f32 %v4369, 0.0
          %v4402 = vmax.f32 %v4370, 0.0
          %v4403 = vmax.f32 %v4371, 0.0
          %v4404 = vmax.f32 %v4372, 0.0
          %v4405 = vmax.f32 %v4373, 0.0
          %v4406 = vmax.f32 %v4374, 0.0
          %v4407 = vmax.f32 %v4375, 0.0
          %v4408 = vmax.f32 %v4376, 0.0
          %v4409 = vmax.f32 %v4377, 0.0
          %v4410 = vmax.f32 %v4378, 0.0
          %v4411 = vmax.f32 %v4379, 0.0
          %v4412 = vmax.f32 %v4380, 0.0
          %v4413 = vmax.f32 %v4381, 0.0
          %v4414 = vmax.f32 %v4382, 0.0
          %v4415 = vmax.f32 %v4383, 0.0
          %v4416 = vmax.f32 %v4384, 0.0
          %v4417 = vmax.f32 %v4385, 0.0
          %4418 = vst.msk [vmem:[%s197] sm:$0xff] %vm215, %v4386
          %4419 = vst.msk [vmem:[%s197 + $0x8] sm:$0xff] %vm215, %v4387
          %4420 = vst.msk [vmem:[%s197 + $0x10] sm:$0xff] %vm215, %v4388
          %4421 = vst.msk [vmem:[%s197 + $0x18] sm:$0xff] %vm215, %v4389
          %4422 = vst.msk [vmem:[%s197 + $0x20] sm:$0xff] %vm215, %v4390
          %4423 = vst.msk [vmem:[%s197 + $0x28] sm:$0xff] %vm215, %v4391
          %4424 = vst.msk [vmem:[%s197 + $0x30] sm:$0xff] %vm215, %v4392
          %4425 = vst.msk [vmem:[%s197 + $0x38] sm:$0xff] %vm215, %v4393
          %4426 = vst.msk [vmem:[%s197 + $0x40] sm:$0xff] %vm215, %v4394
          %4427 = vst.msk [vmem:[%s197 + $0x48] sm:$0xff] %vm215, %v4395
          %4428 = vst.msk [vmem:[%s197 + $0x50] sm:$0xff] %vm215, %v4396
          %4429 = vst.msk [vmem:[%s197 + $0x58] sm:$0xff] %vm215, %v4397
          %4430 = vst.msk [vmem:[%s197 + $0x60] sm:$0xff] %vm215, %v4398
          %4431 = vst.msk [vmem:[%s197 + $0x68] sm:$0xff] %vm215, %v4399
          %4432 = vst.msk [vmem:[%s197 + $0x70] sm:$0xff] %vm215, %v4400
          %4433 = vst.msk [vmem:[%s197 + $0x78] sm:$0xff] %vm215, %v4401
          %4434 = vst.msk [vmem:[%s197 + $0x80] sm:$0xff] %vm215, %v4402
          %4435 = vst.msk [vmem:[%s197 + $0x88] sm:$0xff] %vm215, %v4403
          %4436 = vst.msk [vmem:[%s197 + $0x90] sm:$0xff] %vm215, %v4404
          %4437 = vst.msk [vmem:[%s197 + $0x98] sm:$0xff] %vm215, %v4405
          %4438 = vst.msk [vmem:[%s197 + $0xa0] sm:$0xff] %vm215, %v4406
          %4439 = vst.msk [vmem:[%s197 + $0xa8] sm:$0xff] %vm215, %v4407
          %4440 = vst.msk [vmem:[%s197 + $0xb0] sm:$0xff] %vm215, %v4408
          %4441 = vst.msk [vmem:[%s197 + $0xb8] sm:$0xff] %vm215, %v4409
          %4442 = vst.msk [vmem:[%s197 + $0xc0] sm:$0xff] %vm215, %v4410
          %4443 = vst.msk [vmem:[%s197 + $0xc8] sm:$0xff] %vm215, %v4411
          %4444 = vst.msk [vmem:[%s197 + $0xd0] sm:$0xff] %vm215, %v4412
          %4445 = vst.msk [vmem:[%s197 + $0xd8] sm:$0xff] %vm215, %v4413
          %4446 = vst.msk [vmem:[%s197 + $0xe0] sm:$0xff] %vm215, %v4414
          %4447 = vst.msk [vmem:[%s197 + $0xe8] sm:$0xff] %vm215, %v4415
          %4448 = vst.msk [vmem:[%s197 + $0xf0] sm:$0xff] %vm215, %v4416
          %4449 = vst.msk [vmem:[%s197 + $0xf8] sm:$0xff] %vm215, %v4417
        $region44: #{adaptive_block_forward.3} parent=31 // pred_fallthru
          _
        %s4450 = sand.u32 %s111, 1
        %s4451 = scalar_lea.sflag [#allocation8], %s4450
        %s4452 = sand.u32 %s111, 1
        %s4453 = smul.addr %s4452, 256
        %s4454 = scalar_lea.vmem [#allocation7], %s4453
        // Predicated region
        $region45: #{adaptive_block_forward.3} parent=31 // pred_check
          %p4455 = pneg %p121
        $region46: #{adaptive_block_forward.3} parent=31 // pred_check_branch
          %4457 = sbr.rel (%p4455) target = $region48
        $region47: #{adaptive_block_forward.3} parent=31 // pred_region
          %s4458 = sld [smem:[#allocation6 + %s24]]
          %s4460 = ssub.s32 4096, 4096
          %4461 = vsyncadd %s4451, %s4460
          %s4462 = smul.addr %s4458, 32
          %s4463 = smul.addr %s4462, 128
          %s4464 = scalar_lea.hbm %s4, %s4463
          %s4465 = sshll.u32 %s4454, 4
          %s4466 = int_to_ptr.vmem [resolvable:$true] %s4465
          %4471 = dma.vmem_to_hbm [thread:$0]  %s4466, 4096, %s4464, %s4451, 128, 128, 8
        $region48: #{adaptive_block_forward.3} parent=31 // pred_fallthru
          _
      $region32: #{adaptive_block_forward.3} parent=5 // pred_fallthru
        _
      %p4472 = scmp.le.s32.totalorder 2, %s19
      // Predicated region
      $region49: #{adaptive_block_forward.3} parent=5 // pred_check
        %p4473 = pneg %p4472
      $region50: #{adaptive_block_forward.3} parent=5 // pred_check_branch
        %4475 = sbr.rel (%p4473) target = $region52
      $region51: #{adaptive_block_forward.3} parent=5 // pred_region
        %s4476 = ssub.s32 %s19, 2
        // Predicated region
        $region53: #{adaptive_block_forward.3} parent=51 // pred_check
          %p4477 = pneg %p127
        $region54: #{adaptive_block_forward.3} parent=51 // pred_check_branch
          %4479 = sbr.rel (%p4477) target = $region56
        $region55: #{adaptive_block_forward.3} parent=51 // pred_region
          %s4480 = sand.u32 %s112, 1
          %s4481 = scalar_lea.sflag [#allocation8], %s4480
          %s4482 = sand.u32 %s112, 1
          %s4483 = smul.addr %s4482, 256
          %s4484 = scalar_lea.vmem [#allocation7], %s4483
          %4485 = dma.done %s4481, 4096
        $region56: #{adaptive_block_forward.3} parent=51 // pred_fallthru
          _
      $region52: #{adaptive_block_forward.3} parent=5 // pred_fallthru
        _
    $region6: #{adaptive_block_forward.3} parent=1 // loop_footer
      %s23 = sadd.s32 1, %s19
    $region7: #{adaptive_block_forward.3} parent=1 // loop_footer_branch
      %18 = sbr.rel target = $region3
    $region8: #{adaptive_block_forward.3} parent=1 // loop_exit
      _
    %4486 = vsyncpa [#allocation8], 1
    %s4487 = scalar_lea.sflag [#allocation8], 1
    %4488 = vsyncpa %s4487, 1

</llo_original>
